<compile_context>
chip_gen: v7x
topology: tpu7x:2x2x1
jax: 0.10.0
libtpu: 0.0.40
codegen_flags: <defaults>
</compile_context>

<pallas_src>
import math

import jax
import jax.numpy as jnp
from jax.experimental import pallas as pl
from jax.experimental.pallas import tpu as pltpu

_BN_EPS = 1e-5


# ---------------------------------------------------------------------------
# Kernel A: fused (concat + 3x3 conv) and (concat + 1x1 conv), plus one-pass
#           partial BatchNorm statistics.  Grid: one image per step.
# ---------------------------------------------------------------------------
def _cat_fuse_conv_kernel(xp_ref, cp_ref, w1x_ref, w1c_ref, w2x_ref, w2c_ref,
                          y1_ref, y2_ref, st_ref):
    _, hp, wp, _ = xp_ref.shape
    h, w = hp - 2, wp - 2
    rows = h * w
    cout = y1_ref.shape[-1]

    def win(ref, di, dj):
        # Shifted window of the padded input, flattened to (rows, C_part),
        # cast to bf16 for the MXU (accumulation stays f32).
        c = ref.shape[-1]
        return ref[0, di:di + h, dj:dj + w, :].reshape(rows, c).astype(
            jnp.bfloat16)

    # ---- 1x1 branch: centre window; concat fused as two partial dots ------
    y2 = jnp.dot(win(xp_ref, 1, 1), w2x_ref[...],
                 preferred_element_type=jnp.float32)
    y2 = y2 + jnp.dot(win(cp_ref, 1, 1), w2c_ref[...],
                      preferred_element_type=jnp.float32)

    # ---- 3x3 branch: nine shifted-window matmuls (no HBM im2col) ----------
    y1 = jnp.zeros((rows, cout), jnp.float32)
    for di in range(3):
        for dj in range(3):
            y1 = y1 + jnp.dot(win(xp_ref, di, dj), w1x_ref[di, dj],
                              preferred_element_type=jnp.float32)
            y1 = y1 + jnp.dot(win(cp_ref, di, dj), w1c_ref[di, dj],
                              preferred_element_type=jnp.float32)

    y1_ref[0] = y1
    y2_ref[0] = y2

    # ---- one-pass per-image BN partials: [Σy1; Σy1²; Σy2; Σy2²] ------------
    st_ref[0] = jnp.concatenate(
        [jnp.sum(y1, axis=0, keepdims=True),
         jnp.sum(y1 * y1, axis=0, keepdims=True),
         jnp.sum(y2, axis=0, keepdims=True),
         jnp.sum(y2 * y2, axis=0, keepdims=True)],
        axis=0,
    )


# ---------------------------------------------------------------------------
# Kernel B: BN(batch stats) + ReLU on both branches + add.  Row-tiled,
#           lane-dense last axis (W*Cout).
# ---------------------------------------------------------------------------
def _bn_relu_add_kernel(y1_ref, y2_ref, a1_ref, b1_ref, a2_ref, b2_ref, o_ref):
    z1 = jnp.maximum(y1_ref[...] * a1_ref[...] + b1_ref[...], 0.0)
    z2 = jnp.maximum(y2_ref[...] * a2_ref[...] + b2_ref[...], 0.0)
    o_ref[...] = z1 + z2


# ---------------------------------------------------------------------------
# Wrapper
# ---------------------------------------------------------------------------
def cat_fuse_forward(x, x_cat, params):
    """x, x_cat: NCHW float32.  Returns NCHW float32 (train-mode BN)."""
    n, c_x, h, w = x.shape
    c_c = x_cat.shape[1]
    cout = params["w1x"].shape[-1]

    # NCHW -> NHWC (channels on lanes), spatial pad by 1 for the 3x3 branch.
    xp = jnp.pad(jnp.transpose(x, (0, 2, 3, 1)),
                 ((0, 0), (1, 1), (1, 1), (0, 0)))
    cp = jnp.pad(jnp.transpose(x_cat, (0, 2, 3, 1)),
                 ((0, 0), (1, 1), (1, 1), (0, 0)))
    hp, wp = h + 2, w + 2

    def full(shape):
        return pl.BlockSpec(shape, lambda i: (0,) * len(shape))

    # TODO(synk): for very large H*W, additionally tile H with a manual halo
    # DMA (pl.ANY + pltpu.make_async_copy) instead of one padded image/step.
    y1, y2, stats = pl.pallas_call(
        _cat_fuse_conv_kernel,
        out_shape=(
            jax.ShapeDtypeStruct((n, h * w, cout), jnp.float32),
            jax.ShapeDtypeStruct((n, h * w, cout), jnp.float32),
            jax.ShapeDtypeStruct((n, 4, cout), jnp.float32),
        ),
        grid=(n,),
        in_specs=[
            pl.BlockSpec((1, hp, wp, c_x), lambda i: (i, 0, 0, 0)),
            pl.BlockSpec((1, hp, wp, c_c), lambda i: (i, 0, 0, 0)),
            full((3, 3, c_x, cout)),
            full((3, 3, c_c, cout)),
            full((c_x, cout)),
            full((c_c, cout)),
        ],
        out_specs=(
            pl.BlockSpec((1, h * w, cout), lambda i: (i, 0, 0)),
            pl.BlockSpec((1, h * w, cout), lambda i: (i, 0, 0)),
            pl.BlockSpec((1, 4, cout), lambda i: (i, 0, 0)),
        ),
        compiler_params=pltpu.CompilerParams(
            dimension_semantics=("parallel",)),
    )(xp, cp, params["w1x"], params["w1c"], params["w2x"], params["w2c"])

    # Reduce partial stats -> per-channel scale/shift (tiny, plain JAX).
    count = float(n * h * w)
    s = jnp.sum(stats, axis=0)                       # (4, cout)
    mean1, mean2 = s[0] / count, s[2] / count
    var1 = jnp.maximum(s[1] / count - mean1 * mean1, 0.0)   # biased variance
    var2 = jnp.maximum(s[3] / count - mean2 * mean2, 0.0)
    scale1 = params["gamma1"] * jax.lax.rsqrt(var1 + _BN_EPS)
    scale2 = params["gamma2"] * jax.lax.rsqrt(var2 + _BN_EPS)
    shift1 = params["beta1"] - mean1 * scale1
    shift2 = params["beta2"] - mean2 * scale2

    # Lane-dense epilogue layout: rows = N*H, lanes = W*Cout (contiguous view).
    lanes = w * cout
    rows = n * h
    y1v = y1.reshape(rows, lanes)
    y2v = y2.reshape(rows, lanes)
    a1 = jnp.broadcast_to(scale1, (w, cout)).reshape(1, lanes)
    b1 = jnp.broadcast_to(shift1, (w, cout)).reshape(1, lanes)
    a2 = jnp.broadcast_to(scale2, (w, cout)).reshape(1, lanes)
    b2 = jnp.broadcast_to(shift2, (w, cout)).reshape(1, lanes)

    tm = 256 if rows >= 256 else rows
    out = pl.pallas_call(
        _bn_relu_add_kernel,
        out_shape=jax.ShapeDtypeStruct((rows, lanes), jnp.float32),
        grid=(pl.cdiv(rows, tm),),
        in_specs=[
            pl.BlockSpec((tm, lanes), lambda i: (i, 0)),
            pl.BlockSpec((tm, lanes), lambda i: (i, 0)),
            pl.BlockSpec((1, lanes), lambda i: (0, 0)),
            pl.BlockSpec((1, lanes), lambda i: (0, 0)),
            pl.BlockSpec((1, lanes), lambda i: (0, 0)),
            pl.BlockSpec((1, lanes), lambda i: (0, 0)),
        ],
        out_specs=pl.BlockSpec((tm, lanes), lambda i: (i, 0)),
        compiler_params=pltpu.CompilerParams(
            dimension_semantics=("parallel",)),
    )(y1v, y2v, a1, b1, a2, b2)

    return jnp.transpose(out.reshape(n, h, w, cout), (0, 3, 1, 2))   # -> NCHW


# ---------------------------------------------------------------------------
# Deterministic parameter construction (mirrors cat_fuse.__init__)
# ---------------------------------------------------------------------------
def make_params(key, c_x, c_cat, c_out):
    """Conv biases are intentionally omitted: a per-channel constant added
    before train-mode BatchNorm is a mathematical no-op.  Weights are stored
    pre-split along the input-channel (K) axis into an `x` part and an
    `x_cat` part so the channel concat fuses into the matmul; bf16 storage
    for the MXU (accumulation stays f32)."""
    k1, k2, k3, k4, k5, k6 = jax.random.split(key, 6)
    cin = c_x + c_cat
    s3 = 1.0 / math.sqrt(cin * 9)
    s1 = 1.0 / math.sqrt(cin)
    w1 = jax.random.normal(k1, (3, 3, cin, c_out), jnp.float32) * s3
    w2 = jax.random.normal(k2, (cin, c_out), jnp.float32) * s1
    return dict(
        w1x=w1[:, :, :c_x, :].astype(jnp.bfloat16),
        w1c=w1[:, :, c_x:, :].astype(jnp.bfloat16),
        w2x=w2[:c_x, :].astype(jnp.bfloat16),
        w2c=w2[c_x:, :].astype(jnp.bfloat16),
        gamma1=1.0 + 0.1 * jax.random.normal(k3, (c_out,), jnp.float32),
        beta1=0.05 * jax.random.normal(k4, (c_out,), jnp.float32),
        gamma2=1.0 + 0.1 * jax.random.normal(k5, (c_out,), jnp.float32),
        beta2=0.05 * jax.random.normal(k6, (c_out,), jnp.float32),
    )


if __name__ == "__main__":
    key = jax.random.PRNGKey(0)
    kx, kc, kp = jax.random.split(key, 3)

    n, c_x, c_cat, h, w, c_out = 2, 4, 4, 16, 16, 8
    x = jax.random.normal(kx, (n, c_x, h, w), jnp.float32)
    x_cat = jax.random.normal(kc, (n, c_cat, h, w), jnp.float32)
    params = make_params(kp, c_x, c_cat, c_out)

    fwd = jax.jit(lambda a, b: cat_fuse_forward(a, b, params))
    out = fwd(x, x_cat)
    jax.block_until_ready(out)

    assert out.shape == (n, c_out, h, w), out.shape
    assert bool(jnp.all(jnp.isfinite(out)))
    assert bool(jnp.all(out >= 0.0))   # sum of two ReLU branches
    print("KERNEL_OK")
</pallas_src>

<mosaic_0001>
module attributes {stable_mosaic.version = 11 : i64} {
  func.func @_cat_fuse_conv_kernel(%arg0: i32, %arg1: memref<1x18x18x4xf32, #tpu.memory_space<vmem>>, %arg2: memref<1x18x18x4xf32, #tpu.memory_space<vmem>>, %arg3: memref<3x3x4x8xbf16, #tpu.memory_space<vmem>>, %arg4: memref<3x3x4x8xbf16, #tpu.memory_space<vmem>>, %arg5: memref<4x8xbf16, #tpu.memory_space<vmem>>, %arg6: memref<4x8xbf16, #tpu.memory_space<vmem>>, %arg7: memref<1x256x8xf32, #tpu.memory_space<vmem>>, %arg8: memref<1x256x8xf32, #tpu.memory_space<vmem>>, %arg9: memref<1x4x8xf32, #tpu.memory_space<vmem>>) attributes {dimension_semantics = [#tpu.dimension_semantics<parallel>], iteration_bounds = array<i64: 2>, scalar_prefetch = 0 : i64, scratch_operands = 0 : i64, tpu.core_type = #tpu.core_type<tc>, window_params = [{transform_indices = @transform_0, window_bounds = array<i64: 1, 18, 18, 4>}, {transform_indices = @transform_1, window_bounds = array<i64: 1, 18, 18, 4>}, {pipeline_mode = #tpu.pipeline_mode<synchronous>, transform_indices = @transform_2, window_bounds = array<i64: 3, 3, 4, 8>}, {pipeline_mode = #tpu.pipeline_mode<synchronous>, transform_indices = @transform_3, window_bounds = array<i64: 3, 3, 4, 8>}, {pipeline_mode = #tpu.pipeline_mode<synchronous>, transform_indices = @transform_4, window_bounds = array<i64: 4, 8>}, {pipeline_mode = #tpu.pipeline_mode<synchronous>, transform_indices = @transform_5, window_bounds = array<i64: 4, 8>}, {transform_indices = @transform_6, window_bounds = array<i64: 1, 256, 8>}, {transform_indices = @transform_7, window_bounds = array<i64: 1, 256, 8>}, {transform_indices = @transform_8, window_bounds = array<i64: 1, 4, 8>}]} {
    %c0 = arith.constant 0 : index
    %c1 = arith.constant 1 : index
    %c1_0 = arith.constant 1 : index
    %c0_1 = arith.constant 0 : index
    %0 = vector.load %arg1[%c0, %c1, %c1_0, %c0_1] : memref<1x18x18x4xf32, #tpu.memory_space<vmem>>, vector<1x16x16x4xf32>
    %1 = vector.shape_cast %0 : vector<1x16x16x4xf32> to vector<16x16x4xf32>
    %2 = vector.shape_cast %1 : vector<16x16x4xf32> to vector<256x4xf32>
    %3 = arith.truncf %2 : vector<256x4xf32> to vector<256x4xbf16>
    %c0_2 = arith.constant 0 : index
    %c0_3 = arith.constant 0 : index
    %4 = vector.load %arg5[%c0_2, %c0_3] : memref<4x8xbf16, #tpu.memory_space<vmem>>, vector<4x8xbf16>
    %cst = arith.constant dense<0.000000e+00> : vector<256x8xf32>
    %5 = tpu.matmul %3, %4, %cst {dimension_numbers = #tpu.dot_dimension_numbers<[1], [0], [0], [1], [0, 0, 1, 1], [], []>} : vector<256x4xbf16>, vector<4x8xbf16>, vector<256x8xf32> -> vector<256x8xf32>
    %c0_4 = arith.constant 0 : index
    %c1_5 = arith.constant 1 : index
    %c1_6 = arith.constant 1 : index
    %c0_7 = arith.constant 0 : index
    %6 = vector.load %arg2[%c0_4, %c1_5, %c1_6, %c0_7] : memref<1x18x18x4xf32, #tpu.memory_space<vmem>>, vector<1x16x16x4xf32>
    %7 = vector.shape_cast %6 : vector<1x16x16x4xf32> to vector<16x16x4xf32>
    %8 = vector.shape_cast %7 : vector<16x16x4xf32> to vector<256x4xf32>
    %9 = arith.truncf %8 : vector<256x4xf32> to vector<256x4xbf16>
    %c0_8 = arith.constant 0 : index
    %c0_9 = arith.constant 0 : index
    %10 = vector.load %arg6[%c0_8, %c0_9] : memref<4x8xbf16, #tpu.memory_space<vmem>>, vector<4x8xbf16>
    %cst_10 = arith.constant dense<0.000000e+00> : vector<256x8xf32>
    %11 = tpu.matmul %9, %10, %cst_10 {dimension_numbers = #tpu.dot_dimension_numbers<[1], [0], [0], [1], [0, 0, 1, 1], [], []>} : vector<256x4xbf16>, vector<4x8xbf16>, vector<256x8xf32> -> vector<256x8xf32>
    %12 = arith.addf %5, %11 : vector<256x8xf32>
    %cst_11 = arith.constant 0.000000e+00 : f32
    %13 = vector.broadcast %cst_11 : f32 to vector<256x8xf32>
    %c0_12 = arith.constant 0 : index
    %c0_13 = arith.constant 0 : index
    %c0_14 = arith.constant 0 : index
    %c0_15 = arith.constant 0 : index
    %14 = vector.load %arg1[%c0_12, %c0_13, %c0_14, %c0_15] : memref<1x18x18x4xf32, #tpu.memory_space<vmem>>, vector<1x16x16x4xf32>
    %15 = vector.shape_cast %14 : vector<1x16x16x4xf32> to vector<16x16x4xf32>
    %16 = vector.shape_cast %15 : vector<16x16x4xf32> to vector<256x4xf32>
    %17 = arith.truncf %16 : vector<256x4xf32> to vector<256x4xbf16>
    %c0_16 = arith.constant 0 : index
    %c0_17 = arith.constant 0 : index
    %c0_18 = arith.constant 0 : index
    %c0_19 = arith.constant 0 : index
    %18 = vector.load %arg3[%c0_16, %c0_17, %c0_18, %c0_19] : memref<3x3x4x8xbf16, #tpu.memory_space<vmem>>, vector<1x1x4x8xbf16>
    %19 = vector.shape_cast %18 : vector<1x1x4x8xbf16> to vector<4x8xbf16>
    %cst_20 = arith.constant dense<0.000000e+00> : vector<256x8xf32>
    %20 = tpu.matmul %17, %19, %cst_20 {dimension_numbers = #tpu.dot_dimension_numbers<[1], [0], [0], [1], [0, 0, 1, 1], [], []>} : vector<256x4xbf16>, vector<4x8xbf16>, vector<256x8xf32> -> vector<256x8xf32>
    %21 = arith.addf %13, %20 : vector<256x8xf32>
    %c0_21 = arith.constant 0 : index
    %c0_22 = arith.constant 0 : index
    %c0_23 = arith.constant 0 : index
    %c0_24 = arith.constant 0 : index
    %22 = vector.load %arg2[%c0_21, %c0_22, %c0_23, %c0_24] : memref<1x18x18x4xf32, #tpu.memory_space<vmem>>, vector<1x16x16x4xf32>
    %23 = vector.shape_cast %22 : vector<1x16x16x4xf32> to vector<16x16x4xf32>
    %24 = vector.shape_cast %23 : vector<16x16x4xf32> to vector<256x4xf32>
    %25 = arith.truncf %24 : vector<256x4xf32> to vector<256x4xbf16>
    %c0_25 = arith.constant 0 : index
    %c0_26 = arith.constant 0 : index
    %c0_27 = arith.constant 0 : index
    %c0_28 = arith.constant 0 : index
    %26 = vector.load %arg4[%c0_25, %c0_26, %c0_27, %c0_28] : memref<3x3x4x8xbf16, #tpu.memory_space<vmem>>, vector<1x1x4x8xbf16>
    %27 = vector.shape_cast %26 : vector<1x1x4x8xbf16> to vector<4x8xbf16>
    %cst_29 = arith.constant dense<0.000000e+00> : vector<256x8xf32>
    %28 = tpu.matmul %25, %27, %cst_29 {dimension_numbers = #tpu.dot_dimension_numbers<[1], [0], [0], [1], [0, 0, 1, 1], [], []>} : vector<256x4xbf16>, vector<4x8xbf16>, vector<256x8xf32> -> vector<256x8xf32>
    %29 = arith.addf %21, %28 : vector<256x8xf32>
    %c0_30 = arith.constant 0 : index
    %c0_31 = arith.constant 0 : index
    %c1_32 = arith.constant 1 : index
    %c0_33 = arith.constant 0 : index
    %30 = vector.load %arg1[%c0_30, %c0_31, %c1_32, %c0_33] : memref<1x18x18x4xf32, #tpu.memory_space<vmem>>, vector<1x16x16x4xf32>
    %31 = vector.shape_cast %30 : vector<1x16x16x4xf32> to vector<16x16x4xf32>
    %32 = vector.shape_cast %31 : vector<16x16x4xf32> to vector<256x4xf32>
    %33 = arith.truncf %32 : vector<256x4xf32> to vector<256x4xbf16>
    %c0_34 = arith.constant 0 : index
    %c1_35 = arith.constant 1 : index
    %c0_36 = arith.constant 0 : index
    %c0_37 = arith.constant 0 : index
    %34 = vector.load %arg3[%c0_34, %c1_35, %c0_36, %c0_37] : memref<3x3x4x8xbf16, #tpu.memory_space<vmem>>, vector<1x1x4x8xbf16>
    %35 = vector.shape_cast %34 : vector<1x1x4x8xbf16> to vector<4x8xbf16>
    %cst_38 = arith.constant dense<0.000000e+00> : vector<256x8xf32>
    %36 = tpu.matmul %33, %35, %cst_38 {dimension_numbers = #tpu.dot_dimension_numbers<[1], [0], [0], [1], [0, 0, 1, 1], [], []>} : vector<256x4xbf16>, vector<4x8xbf16>, vector<256x8xf32> -> vector<256x8xf32>
    %37 = arith.addf %29, %36 : vector<256x8xf32>
    %c0_39 = arith.constant 0 : index
    %c0_40 = arith.constant 0 : index
    %c1_41 = arith.constant 1 : index
    %c0_42 = arith.constant 0 : index
    %38 = vector.load %arg2[%c0_39, %c0_40, %c1_41, %c0_42] : memref<1x18x18x4xf32, #tpu.memory_space<vmem>>, vector<1x16x16x4xf32>
    %39 = vector.shape_cast %38 : vector<1x16x16x4xf32> to vector<16x16x4xf32>
    %40 = vector.shape_cast %39 : vector<16x16x4xf32> to vector<256x4xf32>
    %41 = arith.truncf %40 : vector<256x4xf32> to vector<256x4xbf16>
    %c0_43 = arith.constant 0 : index
    %c1_44 = arith.constant 1 : index
    %c0_45 = arith.constant 0 : index
    %c0_46 = arith.constant 0 : index
    %42 = vector.load %arg4[%c0_43, %c1_44, %c0_45, %c0_46] : memref<3x3x4x8xbf16, #tpu.memory_space<vmem>>, vector<1x1x4x8xbf16>
    %43 = vector.shape_cast %42 : vector<1x1x4x8xbf16> to vector<4x8xbf16>
    %cst_47 = arith.constant dense<0.000000e+00> : vector<256x8xf32>
    %44 = tpu.matmul %41, %43, %cst_47 {dimension_numbers = #tpu.dot_dimension_numbers<[1], [0], [0], [1], [0, 0, 1, 1], [], []>} : vector<256x4xbf16>, vector<4x8xbf16>, vector<256x8xf32> -> vector<256x8xf32>
    %45 = arith.addf %37, %44 : vector<256x8xf32>
    %c0_48 = arith.constant 0 : index
    %c0_49 = arith.constant 0 : index
    %c2 = arith.constant 2 : index
    %c0_50 = arith.constant 0 : index
    %46 = vector.load %arg1[%c0_48, %c0_49, %c2, %c0_50] : memref<1x18x18x4xf32, #tpu.memory_space<vmem>>, vector<1x16x16x4xf32>
    %47 = vector.shape_cast %46 : vector<1x16x16x4xf32> to vector<16x16x4xf32>
    %48 = vector.shape_cast %47 : vector<16x16x4xf32> to vector<256x4xf32>
    %49 = arith.truncf %48 : vector<256x4xf32> to vector<256x4xbf16>
    %c0_51 = arith.constant 0 : index
    %c2_52 = arith.constant 2 : index
    %c0_53 = arith.constant 0 : index
    %c0_54 = arith.constant 0 : index
    %50 = vector.load %arg3[%c0_51, %c2_52, %c0_53, %c0_54] : memref<3x3x4x8xbf16, #tpu.memory_space<vmem>>, vector<1x1x4x8xbf16>
    %51 = vector.shape_cast %50 : vector<1x1x4x8xbf16> to vector<4x8xbf16>
    %cst_55 = arith.constant dense<0.000000e+00> : vector<256x8xf32>
    %52 = tpu.matmul %49, %51, %cst_55 {dimension_numbers = #tpu.dot_dimension_numbers<[1], [0], [0], [1], [0, 0, 1, 1], [], []>} : vector<256x4xbf16>, vector<4x8xbf16>, vector<256x8xf32> -> vector<256x8xf32>
    %53 = arith.addf %45, %52 : vector<256x8xf32>
    %c0_56 = arith.constant 0 : index
    %c0_57 = arith.constant 0 : index
    %c2_58 = arith.constant 2 : index
    %c0_59 = arith.constant 0 : index
    %54 = vector.load %arg2[%c0_56, %c0_57, %c2_58, %c0_59] : memref<1x18x18x4xf32, #tpu.memory_space<vmem>>, vector<1x16x16x4xf32>
    %55 = vector.shape_cast %54 : vector<1x16x16x4xf32> to vector<16x16x4xf32>
    %56 = vector.shape_cast %55 : vector<16x16x4xf32> to vector<256x4xf32>
    %57 = arith.truncf %56 : vector<256x4xf32> to vector<256x4xbf16>
    %c0_60 = arith.constant 0 : index
    %c2_61 = arith.constant 2 : index
    %c0_62 = arith.constant 0 : index
    %c0_63 = arith.constant 0 : index
    %58 = vector.load %arg4[%c0_60, %c2_61, %c0_62, %c0_63] : memref<3x3x4x8xbf16, #tpu.memory_space<vmem>>, vector<1x1x4x8xbf16>
    %59 = vector.shape_cast %58 : vector<1x1x4x8xbf16> to vector<4x8xbf16>
    %cst_64 = arith.constant dense<0.000000e+00> : vector<256x8xf32>
    %60 = tpu.matmul %57, %59, %cst_64 {dimension_numbers = #tpu.dot_dimension_numbers<[1], [0], [0], [1], [0, 0, 1, 1], [], []>} : vector<256x4xbf16>, vector<4x8xbf16>, vector<256x8xf32> -> vector<256x8xf32>
    %61 = arith.addf %53, %60 : vector<256x8xf32>
    %c0_65 = arith.constant 0 : index
    %c1_66 = arith.constant 1 : index
    %c0_67 = arith.constant 0 : index
    %c0_68 = arith.constant 0 : index
    %62 = vector.load %arg1[%c0_65, %c1_66, %c0_67, %c0_68] : memref<1x18x18x4xf32, #tpu.memory_space<vmem>>, vector<1x16x16x4xf32>
    %63 = vector.shape_cast %62 : vector<1x16x16x4xf32> to vector<16x16x4xf32>
    %64 = vector.shape_cast %63 : vector<16x16x4xf32> to vector<256x4xf32>
    %65 = arith.truncf %64 : vector<256x4xf32> to vector<256x4xbf16>
    %c1_69 = arith.constant 1 : index
    %c0_70 = arith.constant 0 : index
    %c0_71 = arith.constant 0 : index
    %c0_72 = arith.constant 0 : index
    %66 = vector.load %arg3[%c1_69, %c0_70, %c0_71, %c0_72] : memref<3x3x4x8xbf16, #tpu.memory_space<vmem>>, vector<1x1x4x8xbf16>
    %67 = vector.shape_cast %66 : vector<1x1x4x8xbf16> to vector<4x8xbf16>
    %cst_73 = arith.constant dense<0.000000e+00> : vector<256x8xf32>
    %68 = tpu.matmul %65, %67, %cst_73 {dimension_numbers = #tpu.dot_dimension_numbers<[1], [0], [0], [1], [0, 0, 1, 1], [], []>} : vector<256x4xbf16>, vector<4x8xbf16>, vector<256x8xf32> -> vector<256x8xf32>
    %69 = arith.addf %61, %68 : vector<256x8xf32>
    %c0_74 = arith.constant 0 : index
    %c1_75 = arith.constant 1 : index
    %c0_76 = arith.constant 0 : index
    %c0_77 = arith.constant 0 : index
    %70 = vector.load %arg2[%c0_74, %c1_75, %c0_76, %c0_77] : memref<1x18x18x4xf32, #tpu.memory_space<vmem>>, vector<1x16x16x4xf32>
    %71 = vector.shape_cast %70 : vector<1x16x16x4xf32> to vector<16x16x4xf32>
    %72 = vector.shape_cast %71 : vector<16x16x4xf32> to vector<256x4xf32>
    %73 = arith.truncf %72 : vector<256x4xf32> to vector<256x4xbf16>
    %c1_78 = arith.constant 1 : index
    %c0_79 = arith.constant 0 : index
    %c0_80 = arith.constant 0 : index
    %c0_81 = arith.constant 0 : index
    %74 = vector.load %arg4[%c1_78, %c0_79, %c0_80, %c0_81] : memref<3x3x4x8xbf16, #tpu.memory_space<vmem>>, vector<1x1x4x8xbf16>
    %75 = vector.shape_cast %74 : vector<1x1x4x8xbf16> to vector<4x8xbf16>
    %cst_82 = arith.constant dense<0.000000e+00> : vector<256x8xf32>
    %76 = tpu.matmul %73, %75, %cst_82 {dimension_numbers = #tpu.dot_dimension_numbers<[1], [0], [0], [1], [0, 0, 1, 1], [], []>} : vector<256x4xbf16>, vector<4x8xbf16>, vector<256x8xf32> -> vector<256x8xf32>
    %77 = arith.addf %69, %76 : vector<256x8xf32>
    %c0_83 = arith.constant 0 : index
    %c1_84 = arith.constant 1 : index
    %c1_85 = arith.constant 1 : index
    %c0_86 = arith.constant 0 : index
    %78 = vector.load %arg1[%c0_83, %c1_84, %c1_85, %c0_86] : memref<1x18x18x4xf32, #tpu.memory_space<vmem>>, vector<1x16x16x4xf32>
    %79 = vector.shape_cast %78 : vector<1x16x16x4xf32> to vector<16x16x4xf32>
    %80 = vector.shape_cast %79 : vector<16x16x4xf32> to vector<256x4xf32>
    %81 = arith.truncf %80 : vector<256x4xf32> to vector<256x4xbf16>
    %c1_87 = arith.constant 1 : index
    %c1_88 = arith.constant 1 : index
    %c0_89 = arith.constant 0 : index
    %c0_90 = arith.constant 0 : index
    %82 = vector.load %arg3[%c1_87, %c1_88, %c0_89, %c0_90] : memref<3x3x4x8xbf16, #tpu.memory_space<vmem>>, vector<1x1x4x8xbf16>
    %83 = vector.shape_cast %82 : vector<1x1x4x8xbf16> to vector<4x8xbf16>
    %cst_91 = arith.constant dense<0.000000e+00> : vector<256x8xf32>
    %84 = tpu.matmul %81, %83, %cst_91 {dimension_numbers = #tpu.dot_dimension_numbers<[1], [0], [0], [1], [0, 0, 1, 1], [], []>} : vector<256x4xbf16>, vector<4x8xbf16>, vector<256x8xf32> -> vector<256x8xf32>
    %85 = arith.addf %77, %84 : vector<256x8xf32>
    %c0_92 = arith.constant 0 : index
    %c1_93 = arith.constant 1 : index
    %c1_94 = arith.constant 1 : index
    %c0_95 = arith.constant 0 : index
    %86 = vector.load %arg2[%c0_92, %c1_93, %c1_94, %c0_95] : memref<1x18x18x4xf32, #tpu.memory_space<vmem>>, vector<1x16x16x4xf32>
    %87 = vector.shape_cast %86 : vector<1x16x16x4xf32> to vector<16x16x4xf32>
    %88 = vector.shape_cast %87 : vector<16x16x4xf32> to vector<256x4xf32>
    %89 = arith.truncf %88 : vector<256x4xf32> to vector<256x4xbf16>
    %c1_96 = arith.constant 1 : index
    %c1_97 = arith.constant 1 : index
    %c0_98 = arith.constant 0 : index
    %c0_99 = arith.constant 0 : index
    %90 = vector.load %arg4[%c1_96, %c1_97, %c0_98, %c0_99] : memref<3x3x4x8xbf16, #tpu.memory_space<vmem>>, vector<1x1x4x8xbf16>
    %91 = vector.shape_cast %90 : vector<1x1x4x8xbf16> to vector<4x8xbf16>
    %cst_100 = arith.constant dense<0.000000e+00> : vector<256x8xf32>
    %92 = tpu.matmul %89, %91, %cst_100 {dimension_numbers = #tpu.dot_dimension_numbers<[1], [0], [0], [1], [0, 0, 1, 1], [], []>} : vector<256x4xbf16>, vector<4x8xbf16>, vector<256x8xf32> -> vector<256x8xf32>
    %93 = arith.addf %85, %92 : vector<256x8xf32>
    %c0_101 = arith.constant 0 : index
    %c1_102 = arith.constant 1 : index
    %c2_103 = arith.constant 2 : index
    %c0_104 = arith.constant 0 : index
    %94 = vector.load %arg1[%c0_101, %c1_102, %c2_103, %c0_104] : memref<1x18x18x4xf32, #tpu.memory_space<vmem>>, vector<1x16x16x4xf32>
    %95 = vector.shape_cast %94 : vector<1x16x16x4xf32> to vector<16x16x4xf32>
    %96 = vector.shape_cast %95 : vector<16x16x4xf32> to vector<256x4xf32>
    %97 = arith.truncf %96 : vector<256x4xf32> to vector<256x4xbf16>
    %c1_105 = arith.constant 1 : index
    %c2_106 = arith.constant 2 : index
    %c0_107 = arith.constant 0 : index
    %c0_108 = arith.constant 0 : index
    %98 = vector.load %arg3[%c1_105, %c2_106, %c0_107, %c0_108] : memref<3x3x4x8xbf16, #tpu.memory_space<vmem>>, vector<1x1x4x8xbf16>
    %99 = vector.shape_cast %98 : vector<1x1x4x8xbf16> to vector<4x8xbf16>
    %cst_109 = arith.constant dense<0.000000e+00> : vector<256x8xf32>
    %100 = tpu.matmul %97, %99, %cst_109 {dimension_numbers = #tpu.dot_dimension_numbers<[1], [0], [0], [1], [0, 0, 1, 1], [], []>} : vector<256x4xbf16>, vector<4x8xbf16>, vector<256x8xf32> -> vector<256x8xf32>
    %101 = arith.addf %93, %100 : vector<256x8xf32>
    %c0_110 = arith.constant 0 : index
    %c1_111 = arith.constant 1 : index
    %c2_112 = arith.constant 2 : index
    %c0_113 = arith.constant 0 : index
    %102 = vector.load %arg2[%c0_110, %c1_111, %c2_112, %c0_113] : memref<1x18x18x4xf32, #tpu.memory_space<vmem>>, vector<1x16x16x4xf32>
    %103 = vector.shape_cast %102 : vector<1x16x16x4xf32> to vector<16x16x4xf32>
    %104 = vector.shape_cast %103 : vector<16x16x4xf32> to vector<256x4xf32>
    %105 = arith.truncf %104 : vector<256x4xf32> to vector<256x4xbf16>
    %c1_114 = arith.constant 1 : index
    %c2_115 = arith.constant 2 : index
    %c0_116 = arith.constant 0 : index
    %c0_117 = arith.constant 0 : index
    %106 = vector.load %arg4[%c1_114, %c2_115, %c0_116, %c0_117] : memref<3x3x4x8xbf16, #tpu.memory_space<vmem>>, vector<1x1x4x8xbf16>
    %107 = vector.shape_cast %106 : vector<1x1x4x8xbf16> to vector<4x8xbf16>
    %cst_118 = arith.constant dense<0.000000e+00> : vector<256x8xf32>
    %108 = tpu.matmul %105, %107, %cst_118 {dimension_numbers = #tpu.dot_dimension_numbers<[1], [0], [0], [1], [0, 0, 1, 1], [], []>} : vector<256x4xbf16>, vector<4x8xbf16>, vector<256x8xf32> -> vector<256x8xf32>
    %109 = arith.addf %101, %108 : vector<256x8xf32>
    %c0_119 = arith.constant 0 : index
    %c2_120 = arith.constant 2 : index
    %c0_121 = arith.constant 0 : index
    %c0_122 = arith.constant 0 : index
    %110 = vector.load %arg1[%c0_119, %c2_120, %c0_121, %c0_122] : memref<1x18x18x4xf32, #tpu.memory_space<vmem>>, vector<1x16x16x4xf32>
    %111 = vector.shape_cast %110 : vector<1x16x16x4xf32> to vector<16x16x4xf32>
    %112 = vector.shape_cast %111 : vector<16x16x4xf32> to vector<256x4xf32>
    %113 = arith.truncf %112 : vector<256x4xf32> to vector<256x4xbf16>
    %c2_123 = arith.constant 2 : index
    %c0_124 = arith.constant 0 : index
    %c0_125 = arith.constant 0 : index
    %c0_126 = arith.constant 0 : index
    %114 = vector.load %arg3[%c2_123, %c0_124, %c0_125, %c0_126] : memref<3x3x4x8xbf16, #tpu.memory_space<vmem>>, vector<1x1x4x8xbf16>
    %115 = vector.shape_cast %114 : vector<1x1x4x8xbf16> to vector<4x8xbf16>
    %cst_127 = arith.constant dense<0.000000e+00> : vector<256x8xf32>
    %116 = tpu.matmul %113, %115, %cst_127 {dimension_numbers = #tpu.dot_dimension_numbers<[1], [0], [0], [1], [0, 0, 1, 1], [], []>} : vector<256x4xbf16>, vector<4x8xbf16>, vector<256x8xf32> -> vector<256x8xf32>
    %117 = arith.addf %109, %116 : vector<256x8xf32>
    %c0_128 = arith.constant 0 : index
    %c2_129 = arith.constant 2 : index
    %c0_130 = arith.constant 0 : index
    %c0_131 = arith.constant 0 : index
    %118 = vector.load %arg2[%c0_128, %c2_129, %c0_130, %c0_131] : memref<1x18x18x4xf32, #tpu.memory_space<vmem>>, vector<1x16x16x4xf32>
    %119 = vector.shape_cast %118 : vector<1x16x16x4xf32> to vector<16x16x4xf32>
    %120 = vector.shape_cast %119 : vector<16x16x4xf32> to vector<256x4xf32>
    %121 = arith.truncf %120 : vector<256x4xf32> to vector<256x4xbf16>
    %c2_132 = arith.constant 2 : index
    %c0_133 = arith.constant 0 : index
    %c0_134 = arith.constant 0 : index
    %c0_135 = arith.constant 0 : index
    %122 = vector.load %arg4[%c2_132, %c0_133, %c0_134, %c0_135] : memref<3x3x4x8xbf16, #tpu.memory_space<vmem>>, vector<1x1x4x8xbf16>
    %123 = vector.shape_cast %122 : vector<1x1x4x8xbf16> to vector<4x8xbf16>
    %cst_136 = arith.constant dense<0.000000e+00> : vector<256x8xf32>
    %124 = tpu.matmul %121, %123, %cst_136 {dimension_numbers = #tpu.dot_dimension_numbers<[1], [0], [0], [1], [0, 0, 1, 1], [], []>} : vector<256x4xbf16>, vector<4x8xbf16>, vector<256x8xf32> -> vector<256x8xf32>
    %125 = arith.addf %117, %124 : vector<256x8xf32>
    %c0_137 = arith.constant 0 : index
    %c2_138 = arith.constant 2 : index
    %c1_139 = arith.constant 1 : index
    %c0_140 = arith.constant 0 : index
    %126 = vector.load %arg1[%c0_137, %c2_138, %c1_139, %c0_140] : memref<1x18x18x4xf32, #tpu.memory_space<vmem>>, vector<1x16x16x4xf32>
    %127 = vector.shape_cast %126 : vector<1x16x16x4xf32> to vector<16x16x4xf32>
    %128 = vector.shape_cast %127 : vector<16x16x4xf32> to vector<256x4xf32>
    %129 = arith.truncf %128 : vector<256x4xf32> to vector<256x4xbf16>
    %c2_141 = arith.constant 2 : index
    %c1_142 = arith.constant 1 : index
    %c0_143 = arith.constant 0 : index
    %c0_144 = arith.constant 0 : index
    %130 = vector.load %arg3[%c2_141, %c1_142, %c0_143, %c0_144] : memref<3x3x4x8xbf16, #tpu.memory_space<vmem>>, vector<1x1x4x8xbf16>
    %131 = vector.shape_cast %130 : vector<1x1x4x8xbf16> to vector<4x8xbf16>
    %cst_145 = arith.constant dense<0.000000e+00> : vector<256x8xf32>
    %132 = tpu.matmul %129, %131, %cst_145 {dimension_numbers = #tpu.dot_dimension_numbers<[1], [0], [0], [1], [0, 0, 1, 1], [], []>} : vector<256x4xbf16>, vector<4x8xbf16>, vector<256x8xf32> -> vector<256x8xf32>
    %133 = arith.addf %125, %132 : vector<256x8xf32>
    %c0_146 = arith.constant 0 : index
    %c2_147 = arith.constant 2 : index
    %c1_148 = arith.constant 1 : index
    %c0_149 = arith.constant 0 : index
    %134 = vector.load %arg2[%c0_146, %c2_147, %c1_148, %c0_149] : memref<1x18x18x4xf32, #tpu.memory_space<vmem>>, vector<1x16x16x4xf32>
    %135 = vector.shape_cast %134 : vector<1x16x16x4xf32> to vector<16x16x4xf32>
    %136 = vector.shape_cast %135 : vector<16x16x4xf32> to vector<256x4xf32>
    %137 = arith.truncf %136 : vector<256x4xf32> to vector<256x4xbf16>
    %c2_150 = arith.constant 2 : index
    %c1_151 = arith.constant 1 : index
    %c0_152 = arith.constant 0 : index
    %c0_153 = arith.constant 0 : index
    %138 = vector.load %arg4[%c2_150, %c1_151, %c0_152, %c0_153] : memref<3x3x4x8xbf16, #tpu.memory_space<vmem>>, vector<1x1x4x8xbf16>
    %139 = vector.shape_cast %138 : vector<1x1x4x8xbf16> to vector<4x8xbf16>
    %cst_154 = arith.constant dense<0.000000e+00> : vector<256x8xf32>
    %140 = tpu.matmul %137, %139, %cst_154 {dimension_numbers = #tpu.dot_dimension_numbers<[1], [0], [0], [1], [0, 0, 1, 1], [], []>} : vector<256x4xbf16>, vector<4x8xbf16>, vector<256x8xf32> -> vector<256x8xf32>
    %141 = arith.addf %133, %140 : vector<256x8xf32>
    %c0_155 = arith.constant 0 : index
    %c2_156 = arith.constant 2 : index
    %c2_157 = arith.constant 2 : index
    %c0_158 = arith.constant 0 : index
    %142 = vector.load %arg1[%c0_155, %c2_156, %c2_157, %c0_158] : memref<1x18x18x4xf32, #tpu.memory_space<vmem>>, vector<1x16x16x4xf32>
    %143 = vector.shape_cast %142 : vector<1x16x16x4xf32> to vector<16x16x4xf32>
    %144 = vector.shape_cast %143 : vector<16x16x4xf32> to vector<256x4xf32>
    %145 = arith.truncf %144 : vector<256x4xf32> to vector<256x4xbf16>
    %c2_159 = arith.constant 2 : index
    %c2_160 = arith.constant 2 : index
    %c0_161 = arith.constant 0 : index
    %c0_162 = arith.constant 0 : index
    %146 = vector.load %arg3[%c2_159, %c2_160, %c0_161, %c0_162] : memref<3x3x4x8xbf16, #tpu.memory_space<vmem>>, vector<1x1x4x8xbf16>
    %147 = vector.shape_cast %146 : vector<1x1x4x8xbf16> to vector<4x8xbf16>
    %cst_163 = arith.constant dense<0.000000e+00> : vector<256x8xf32>
    %148 = tpu.matmul %145, %147, %cst_163 {dimension_numbers = #tpu.dot_dimension_numbers<[1], [0], [0], [1], [0, 0, 1, 1], [], []>} : vector<256x4xbf16>, vector<4x8xbf16>, vector<256x8xf32> -> vector<256x8xf32>
    %149 = arith.addf %141, %148 : vector<256x8xf32>
    %c0_164 = arith.constant 0 : index
    %c2_165 = arith.constant 2 : index
    %c2_166 = arith.constant 2 : index
    %c0_167 = arith.constant 0 : index
    %150 = vector.load %arg2[%c0_164, %c2_165, %c2_166, %c0_167] : memref<1x18x18x4xf32, #tpu.memory_space<vmem>>, vector<1x16x16x4xf32>
    %151 = vector.shape_cast %150 : vector<1x16x16x4xf32> to vector<16x16x4xf32>
    %152 = vector.shape_cast %151 : vector<16x16x4xf32> to vector<256x4xf32>
    %153 = arith.truncf %152 : vector<256x4xf32> to vector<256x4xbf16>
    %c2_168 = arith.constant 2 : index
    %c2_169 = arith.constant 2 : index
    %c0_170 = arith.constant 0 : index
    %c0_171 = arith.constant 0 : index
    %154 = vector.load %arg4[%c2_168, %c2_169, %c0_170, %c0_171] : memref<3x3x4x8xbf16, #tpu.memory_space<vmem>>, vector<1x1x4x8xbf16>
    %155 = vector.shape_cast %154 : vector<1x1x4x8xbf16> to vector<4x8xbf16>
    %cst_172 = arith.constant dense<0.000000e+00> : vector<256x8xf32>
    %156 = tpu.matmul %153, %155, %cst_172 {dimension_numbers = #tpu.dot_dimension_numbers<[1], [0], [0], [1], [0, 0, 1, 1], [], []>} : vector<256x4xbf16>, vector<4x8xbf16>, vector<256x8xf32> -> vector<256x8xf32>
    %157 = arith.addf %149, %156 : vector<256x8xf32>
    %c0_173 = arith.constant 0 : index
    %c0_174 = arith.constant 0 : index
    %c0_175 = arith.constant 0 : index
    %158 = vector.load %arg7[%c0_173, %c0_174, %c0_175] : memref<1x256x8xf32, #tpu.memory_space<vmem>>, vector<1x256x8xf32>
    %159 = vector.shape_cast %158 : vector<1x256x8xf32> to vector<256x8xf32>
    %160 = vector.shape_cast %157 : vector<256x8xf32> to vector<1x256x8xf32>
    tpu.vector_store %arg7[%c0_173, %c0_174, %c0_175], %160 {strides = array<i32>} : memref<1x256x8xf32, #tpu.memory_space<vmem>>, vector<1x256x8xf32>,
    %c0_176 = arith.constant 0 : index
    %c0_177 = arith.constant 0 : index
    %c0_178 = arith.constant 0 : index
    %161 = vector.load %arg8[%c0_176, %c0_177, %c0_178] : memref<1x256x8xf32, #tpu.memory_space<vmem>>, vector<1x256x8xf32>
    %162 = vector.shape_cast %161 : vector<1x256x8xf32> to vector<256x8xf32>
    %163 = vector.shape_cast %12 : vector<256x8xf32> to vector<1x256x8xf32>
    tpu.vector_store %arg8[%c0_176, %c0_177, %c0_178], %163 {strides = array<i32>} : memref<1x256x8xf32, #tpu.memory_space<vmem>>, vector<1x256x8xf32>,
    %cst_179 = arith.constant dense<0.000000e+00> : vector<8xf32>
    %164 = vector.multi_reduction <add>, %157, %cst_179 [0] : vector<256x8xf32> to vector<8xf32>
    %165 = vector.shape_cast %164 : vector<8xf32> to vector<1x8xf32>
    %166 = arith.mulf %157, %157 : vector<256x8xf32>
    %cst_180 = arith.constant dense<0.000000e+00> : vector<8xf32>
    %167 = vector.multi_reduction <add>, %166, %cst_180 [0] : vector<256x8xf32> to vector<8xf32>
    %168 = vector.shape_cast %167 : vector<8xf32> to vector<1x8xf32>
    %cst_181 = arith.constant dense<0.000000e+00> : vector<8xf32>
    %169 = vector.multi_reduction <add>, %12, %cst_181 [0] : vector<256x8xf32> to vector<8xf32>
    %170 = vector.shape_cast %169 : vector<8xf32> to vector<1x8xf32>
    %171 = arith.mulf %12, %12 : vector<256x8xf32>
    %cst_182 = arith.constant dense<0.000000e+00> : vector<8xf32>
    %172 = vector.multi_reduction <add>, %171, %cst_182 [0] : vector<256x8xf32> to vector<8xf32>
    %173 = vector.shape_cast %172 : vector<8xf32> to vector<1x8xf32>
    %174 = tpu.concatenate %165, %168, %170, %173 in 0 : vector<1x8xf32>, vector<1x8xf32>, vector<1x8xf32>, vector<1x8xf32> -> vector<4x8xf32>
    %c0_183 = arith.constant 0 : index
    %c0_184 = arith.constant 0 : index
    %c0_185 = arith.constant 0 : index
    %175 = vector.load %arg9[%c0_183, %c0_184, %c0_185] : memref<1x4x8xf32, #tpu.memory_space<vmem>>, vector<1x4x8xf32>
    %176 = vector.shape_cast %175 : vector<1x4x8xf32> to vector<4x8xf32>
    %177 = vector.shape_cast %174 : vector<4x8xf32> to vector<1x4x8xf32>
    tpu.vector_store %arg9[%c0_183, %c0_184, %c0_185], %177 {strides = array<i32>} : memref<1x4x8xf32, #tpu.memory_space<vmem>>, vector<1x4x8xf32>,
    return
  }
  func.func @transform_0(%arg0: i32) -> (i32, i32, i32, i32) {
    %c0_i32 = arith.constant 0 : i32
    %c0_i32_0 = arith.constant 0 : i32
    %c0_i32_1 = arith.constant 0 : i32
    %c0_i32_2 = arith.constant 0 : i32
    return %arg0, %c0_i32, %c0_i32_0, %c0_i32_1 : i32, i32, i32, i32
  }
  func.func @transform_1(%arg0: i32) -> (i32, i32, i32, i32) {
    %c0_i32 = arith.constant 0 : i32
    %c0_i32_0 = arith.constant 0 : i32
    %c0_i32_1 = arith.constant 0 : i32
    %c0_i32_2 = arith.constant 0 : i32
    return %arg0, %c0_i32, %c0_i32_0, %c0_i32_1 : i32, i32, i32, i32
  }
  func.func @transform_2(%arg0: i32) -> (i32, i32, i32, i32) {
    %c0_i32 = arith.constant 0 : i32
    %c0_i32_0 = arith.constant 0 : i32
    %c0_i32_1 = arith.constant 0 : i32
    %c0_i32_2 = arith.constant 0 : i32
    %c0_i32_3 = arith.constant 0 : i32
    return %c0_i32, %c0_i32_0, %c0_i32_1, %c0_i32_2 : i32, i32, i32, i32
  }
  func.func @transform_3(%arg0: i32) -> (i32, i32, i32, i32) {
    %c0_i32 = arith.constant 0 : i32
    %c0_i32_0 = arith.constant 0 : i32
    %c0_i32_1 = arith.constant 0 : i32
    %c0_i32_2 = arith.constant 0 : i32
    %c0_i32_3 = arith.constant 0 : i32
    return %c0_i32, %c0_i32_0, %c0_i32_1, %c0_i32_2 : i32, i32, i32, i32
  }
  func.func @transform_4(%arg0: i32) -> (i32, i32) {
    %c0_i32 = arith.constant 0 : i32
    %c0_i32_0 = arith.constant 0 : i32
    %c0_i32_1 = arith.constant 0 : i32
    return %c0_i32, %c0_i32_0 : i32, i32
  }
  func.func @transform_5(%arg0: i32) -> (i32, i32) {
    %c0_i32 = arith.constant 0 : i32
    %c0_i32_0 = arith.constant 0 : i32
    %c0_i32_1 = arith.constant 0 : i32
    return %c0_i32, %c0_i32_0 : i32, i32
  }
  func.func @transform_6(%arg0: i32) -> (i32, i32, i32) {
    %c0_i32 = arith.constant 0 : i32
    %c0_i32_0 = arith.constant 0 : i32
    %c0_i32_1 = arith.constant 0 : i32
    return %arg0, %c0_i32, %c0_i32_0 : i32, i32, i32
  }
  func.func @transform_7(%arg0: i32) -> (i32, i32, i32) {
    %c0_i32 = arith.constant 0 : i32
    %c0_i32_0 = arith.constant 0 : i32
    %c0_i32_1 = arith.constant 0 : i32
    return %arg0, %c0_i32, %c0_i32_0 : i32, i32, i32
  }
  func.func @transform_8(%arg0: i32) -> (i32, i32, i32) {
    %c0_i32 = arith.constant 0 : i32
    %c0_i32_0 = arith.constant 0 : i32
    %c0_i32_1 = arith.constant 0 : i32
    return %arg0, %c0_i32, %c0_i32_0 : i32, i32, i32
  }
}

module attributes {stable_mosaic.version = 11 : i64} {
  func.func @_bn_relu_add_kernel(%arg0: i32, %arg1: memref<32x128xf32, #tpu.memory_space<vmem>>, %arg2: memref<32x128xf32, #tpu.memory_space<vmem>>, %arg3: memref<1x128xf32, #tpu.memory_space<vmem>>, %arg4: memref<1x128xf32, #tpu.memory_space<vmem>>, %arg5: memref<1x128xf32, #tpu.memory_space<vmem>>, %arg6: memref<1x128xf32, #tpu.memory_space<vmem>>, %arg7: memref<32x128xf32, #tpu.memory_space<vmem>>) attributes {dimension_semantics = [#tpu.dimension_semantics<parallel>], iteration_bounds = array<i64: 1>, scalar_prefetch = 0 : i64, scratch_operands = 0 : i64, tpu.core_type = #tpu.core_type<tc>, window_params = [{transform_indices = @transform_0, window_bounds = array<i64: 32, 128>}, {transform_indices = @transform_1, window_bounds = array<i64: 32, 128>}, {pipeline_mode = #tpu.pipeline_mode<synchronous>, transform_indices = @transform_2, window_bounds = array<i64: 1, 128>}, {pipeline_mode = #tpu.pipeline_mode<synchronous>, transform_indices = @transform_3, window_bounds = array<i64: 1, 128>}, {pipeline_mode = #tpu.pipeline_mode<synchronous>, transform_indices = @transform_4, window_bounds = array<i64: 1, 128>}, {pipeline_mode = #tpu.pipeline_mode<synchronous>, transform_indices = @transform_5, window_bounds = array<i64: 1, 128>}, {transform_indices = @transform_6, window_bounds = array<i64: 32, 128>}]} {
    %c0 = arith.constant 0 : index
    %c0_0 = arith.constant 0 : index
    %0 = vector.load %arg1[%c0, %c0_0] : memref<32x128xf32, #tpu.memory_space<vmem>>, vector<32x128xf32>
    %c0_1 = arith.constant 0 : index
    %c0_2 = arith.constant 0 : index
    %1 = vector.load %arg3[%c0_1, %c0_2] : memref<1x128xf32, #tpu.memory_space<vmem>>, vector<1x128xf32>
    %2 = vector.broadcast %1 : vector<1x128xf32> to vector<32x128xf32>
    %3 = arith.mulf %0, %2 : vector<32x128xf32>
    %c0_3 = arith.constant 0 : index
    %c0_4 = arith.constant 0 : index
    %4 = vector.load %arg4[%c0_3, %c0_4] : memref<1x128xf32, #tpu.memory_space<vmem>>, vector<1x128xf32>
    %5 = vector.broadcast %4 : vector<1x128xf32> to vector<32x128xf32>
    %6 = arith.addf %3, %5 : vector<32x128xf32>
    %cst = arith.constant 0.000000e+00 : f32
    %7 = vector.broadcast %cst : f32 to vector<32x128xf32>
    %8 = arith.maximumf %6, %7 : vector<32x128xf32>
    %c0_5 = arith.constant 0 : index
    %c0_6 = arith.constant 0 : index
    %9 = vector.load %arg2[%c0_5, %c0_6] : memref<32x128xf32, #tpu.memory_space<vmem>>, vector<32x128xf32>
    %c0_7 = arith.constant 0 : index
    %c0_8 = arith.constant 0 : index
    %10 = vector.load %arg5[%c0_7, %c0_8] : memref<1x128xf32, #tpu.memory_space<vmem>>, vector<1x128xf32>
    %11 = vector.broadcast %10 : vector<1x128xf32> to vector<32x128xf32>
    %12 = arith.mulf %9, %11 : vector<32x128xf32>
    %c0_9 = arith.constant 0 : index
    %c0_10 = arith.constant 0 : index
    %13 = vector.load %arg6[%c0_9, %c0_10] : memref<1x128xf32, #tpu.memory_space<vmem>>, vector<1x128xf32>
    %14 = vector.broadcast %13 : vector<1x128xf32> to vector<32x128xf32>
    %15 = arith.addf %12, %14 : vector<32x128xf32>
    %cst_11 = arith.constant 0.000000e+00 : f32
    %16 = vector.broadcast %cst_11 : f32 to vector<32x128xf32>
    %17 = arith.maximumf %15, %16 : vector<32x128xf32>
    %18 = arith.addf %8, %17 : vector<32x128xf32>
    %c0_12 = arith.constant 0 : index
    %c0_13 = arith.constant 0 : index
    %19 = vector.load %arg7[%c0_12, %c0_13] : memref<32x128xf32, #tpu.memory_space<vmem>>, vector<32x128xf32>
    tpu.vector_store %arg7[%c0_12, %c0_13], %18 {strides = array<i32>} : memref<32x128xf32, #tpu.memory_space<vmem>>, vector<32x128xf32>,
    return
  }
  func.func @transform_0(%arg0: i32) -> (i32, i32) {
    %c0_i32 = arith.constant 0 : i32
    %c0_i32_0 = arith.constant 0 : i32
    return %arg0, %c0_i32 : i32, i32
  }
  func.func @transform_1(%arg0: i32) -> (i32, i32) {
    %c0_i32 = arith.constant 0 : i32
    %c0_i32_0 = arith.constant 0 : i32
    return %arg0, %c0_i32 : i32, i32
  }
  func.func @transform_2(%arg0: i32) -> (i32, i32) {
    %c0_i32 = arith.constant 0 : i32
    %c0_i32_0 = arith.constant 0 : i32
    %c0_i32_1 = arith.constant 0 : i32
    return %c0_i32, %c0_i32_0 : i32, i32
  }
  func.func @transform_3(%arg0: i32) -> (i32, i32) {
    %c0_i32 = arith.constant 0 : i32
    %c0_i32_0 = arith.constant 0 : i32
    %c0_i32_1 = arith.constant 0 : i32
    return %c0_i32, %c0_i32_0 : i32, i32
  }
  func.func @transform_4(%arg0: i32) -> (i32, i32) {
    %c0_i32 = arith.constant 0 : i32
    %c0_i32_0 = arith.constant 0 : i32
    %c0_i32_1 = arith.constant 0 : i32
    return %c0_i32, %c0_i32_0 : i32, i32
  }
  func.func @transform_5(%arg0: i32) -> (i32, i32) {
    %c0_i32 = arith.constant 0 : i32
    %c0_i32_0 = arith.constant 0 : i32
    %c0_i32_1 = arith.constant 0 : i32
    return %c0_i32, %c0_i32_0 : i32, i32
  }
  func.func @transform_6(%arg0: i32) -> (i32, i32) {
    %c0_i32 = arith.constant 0 : i32
    %c0_i32_0 = arith.constant 0 : i32
    return %arg0, %c0_i32 : i32, i32
  }
}

</mosaic_0001>

<llo_original>
// kernel: _lambda_.3
$region0: #{_lambda_.3}
  #allocation0 [shape = 'u32[]', space=smem, size = 0x4, offset = 0x4, fixed_abs, tag = 'smem constant byte address 0x4 - core index']
  #allocation1 [shape = 'u32[144,128]{1,0:T(1,128)}', space=vmem, size = 0x12000, scoped, tag = 'internal scratch']
  %s0 = inlined_call_operand.vmem [shape: f32[32,128], index: 0, kind: input, shape index: {}]
  %s1 = inlined_call_operand.vmem [shape: f32[32,128], index: 1, kind: input, shape index: {}]
  %s2 = inlined_call_operand.vmem [shape: f32[1,128], index: 2, kind: input, shape index: {}]
  %s3 = inlined_call_operand.vmem [shape: f32[1,128], index: 3, kind: input, shape index: {}]
  %s4 = inlined_call_operand.vmem [shape: f32[1,128], index: 4, kind: input, shape index: {}]
  %s5 = inlined_call_operand.vmem [shape: f32[1,128], index: 5, kind: input, shape index: {}]
  %s6 = inlined_call_operand.vmem [shape: f32[32,128], index: 6, kind: output, shape index: {}]
  %s7 = sld [smem:[#allocation0]]
  $region34: #{_lambda_.3} parent=0
    _
  %s9 = ssub.s32 1, %s7
  %s10 = scalar_select 0, %s9, %s7
  // Predicated region
  $region2: #{_lambda_.3} parent=0 // pred_check
    _
  $region3: #{_lambda_.3} parent=0 // pred_check_branch
    %12 = sbr.rel (0) target = $region5
  $region4: #{_lambda_.3} parent=0 // pred_region
    _
  $region5: #{_lambda_.3} parent=0 // pred_fallthru
    _
  // Predicated region
  $region6: #{_lambda_.3} parent=0 // pred_check
    _
  $region7: #{_lambda_.3} parent=0 // pred_check_branch
    %14 = sbr.rel (0) target = $region9
  $region8: #{_lambda_.3} parent=0 // pred_region
    _
  $region9: #{_lambda_.3} parent=0 // pred_fallthru
    _
  // Predicated region
  $region10: #{_lambda_.3} parent=0 // pred_check
    _
  $region11: #{_lambda_.3} parent=0 // pred_check_branch
    %16 = sbr.rel (0) target = $region13
  $region12: #{_lambda_.3} parent=0 // pred_region
    _
  $region13: #{_lambda_.3} parent=0 // pred_fallthru
    _
  // Predicated region
  $region14: #{_lambda_.3} parent=0 // pred_check
    _
  $region15: #{_lambda_.3} parent=0 // pred_check_branch
    %18 = sbr.rel (0) target = $region17
  $region16: #{_lambda_.3} parent=0 // pred_region
    _
  $region17: #{_lambda_.3} parent=0 // pred_fallthru
    _
  // Predicated region
  $region18: #{_lambda_.3} parent=0 // pred_check
    _
  $region19: #{_lambda_.3} parent=0 // pred_check_branch
    %20 = sbr.rel (0) target = $region21
  $region20: #{_lambda_.3} parent=0 // pred_region
    _
  $region21: #{_lambda_.3} parent=0 // pred_fallthru
    _
  // Predicated region
  $region22: #{_lambda_.3} parent=0 // pred_check
    _
  $region23: #{_lambda_.3} parent=0 // pred_check_branch
    %22 = sbr.rel (0) target = $region25
  $region24: #{_lambda_.3} parent=0 // pred_region
    _
  $region25: #{_lambda_.3} parent=0 // pred_fallthru
    _
  %v23 = vld [vmem:[%s0] sm:$0xff]
  %v24 = vld [vmem:[%s0 + $0x8] sm:$0xff]
  %v25 = vld [vmem:[%s0 + $0x10] sm:$0xff]
  %v26 = vld [vmem:[%s0 + $0x18] sm:$0xff]
  %v27 = vld [vmem:[%s2] sm:$0x1]
  %v29 = vlaneseq
  %v30 = vshrl.u32 %v29, 7
  %v31 = vsub.s32 0, %v30
  %v32 = vrot.slane %v27, %v31
  %v34 = vmul.f32 %v23, %v32
  %v35 = vmul.f32 %v24, %v32
  %v36 = vmul.f32 %v25, %v32
  %v37 = vmul.f32 %v26, %v32
  %v38 = vld [vmem:[%s3] sm:$0x1]
  %v40 = vlaneseq
  %v41 = vshrl.u32 %v40, 7
  %v42 = vsub.s32 0, %v41
  %v43 = vrot.slane %v38, %v42
  %v45 = vadd.f32 %v34, %v43
  %v46 = vadd.f32 %v35, %v43
  %v47 = vadd.f32 %v36, %v43
  %v48 = vadd.f32 %v37, %v43
  %v49 = vmax.f32 %v45, 0.0
  %v50 = vmax.f32 %v46, 0.0
  %v51 = vmax.f32 %v47, 0.0
  %v52 = vmax.f32 %v48, 0.0
  %v53 = vld [vmem:[%s1] sm:$0xff]
  %v54 = vld [vmem:[%s1 + $0x8] sm:$0xff]
  %v55 = vld [vmem:[%s1 + $0x10] sm:$0xff]
  %v56 = vld [vmem:[%s1 + $0x18] sm:$0xff]
  %v57 = vld [vmem:[%s4] sm:$0x1]
  %v59 = vlaneseq
  %v60 = vshrl.u32 %v59, 7
  %v61 = vsub.s32 0, %v60
  %v62 = vrot.slane %v57, %v61
  %v64 = vmul.f32 %v53, %v62
  %v65 = vmul.f32 %v54, %v62
  %v66 = vmul.f32 %v55, %v62
  %v67 = vmul.f32 %v56, %v62
  %v68 = vld [vmem:[%s5] sm:$0x1]
  %v70 = vlaneseq
  %v71 = vshrl.u32 %v70, 7
  %v72 = vsub.s32 0, %v71
  %v73 = vrot.slane %v68, %v72
  %v75 = vadd.f32 %v64, %v73
  %v76 = vadd.f32 %v65, %v73
  %v77 = vadd.f32 %v66, %v73
  %v78 = vadd.f32 %v67, %v73
  %v79 = vmax.f32 %v75, 0.0
  %v80 = vmax.f32 %v76, 0.0
  %v81 = vmax.f32 %v77, 0.0
  %v82 = vmax.f32 %v78, 0.0
  %v83 = vadd.f32 %v49, %v79
  %v84 = vadd.f32 %v50, %v80
  %v85 = vadd.f32 %v51, %v81
  %v86 = vadd.f32 %v52, %v82
  %87 = vst [vmem:[%s6] sm:$0xff] %v83
  %88 = vst [vmem:[%s6 + $0x8] sm:$0xff] %v84
  %89 = vst [vmem:[%s6 + $0x10] sm:$0xff] %v85
  %90 = vst [vmem:[%s6 + $0x18] sm:$0xff] %v86
  // Predicated region
  $region26: #{_lambda_.3} parent=0 // pred_check
    _
  $region27: #{_lambda_.3} parent=0 // pred_check_branch
    %92 = sbr.rel (0) target = $region29
  $region28: #{_lambda_.3} parent=0 // pred_region
    _
  $region29: #{_lambda_.3} parent=0 // pred_fallthru
    _
  // Predicated region
  $region30: #{_lambda_.3} parent=0 // pred_check
    _
  $region31: #{_lambda_.3} parent=0 // pred_check_branch
    %94 = sbr.rel (0) target = $region33
  $region32: #{_lambda_.3} parent=0 // pred_region
    _
  $region33: #{_lambda_.3} parent=0 // pred_fallthru
    _

// kernel: _lambda_.2
$region0: #{_lambda_.2}
  #allocation0 [shape = 'u32[]', space=smem, size = 0x4, offset = 0x4, fixed_abs, tag = 'smem constant byte address 0x4 - core index']
  #allocation1 [shape = 'u32[144,128]{1,0:T(1,128)}', space=vmem, size = 0x12000, scoped, tag = 'internal scratch']
  %s0 = inlined_call_operand.vmem [shape: f32[2,18,18,4], index: 0, kind: input, shape index: {}]
  %s1 = inlined_call_operand.vmem [shape: f32[2,18,18,4], index: 1, kind: input, shape index: {}]
  %s2 = inlined_call_operand.vmem [shape: bf16[3,3,4,8], index: 2, kind: input, shape index: {}]
  %s3 = inlined_call_operand.vmem [shape: bf16[3,3,4,8], index: 3, kind: input, shape index: {}]
  %s4 = inlined_call_operand.vmem [shape: bf16[4,8], index: 4, kind: input, shape index: {}]
  %s5 = inlined_call_operand.vmem [shape: bf16[4,8], index: 5, kind: input, shape index: {}]
  %s6 = inlined_call_operand.vmem [shape: f32[2,256,8], index: 6, kind: output, shape index: {0}]
  %s7 = inlined_call_operand.vmem [shape: f32[2,256,8], index: 7, kind: output, shape index: {1}]
  %s8 = inlined_call_operand.vmem [shape: f32[2,4,8], index: 8, kind: output, shape index: {2}]
  %9 = xla_tuple %s6, %s7, %s8
  %s10 = sld [smem:[#allocation0]]
  $region73: #{_lambda_.2} parent=0
    _
  %s12 = ssub.s32 1, %s10
  %s13 = scalar_select 0, %s12, %s10
  loop: start=0, step=1, limit=4
  $region2: #{_lambda_.2} parent=0 // loop_pre_header
    _
  $region3: #{_lambda_.2} parent=0 // loop_header
    %s15 = sphi 0, %s19
    %p16 = scmp.ge.s32.totalorder %s15, 4
    %s25 = sphi 0, %s27
    %s28 = sphi 0, %s25
    %s29 = sphi 0, %s28
    %s45 = sphi 0, %s29
    %s51 = sphi 0, %s53
    %s54 = sphi 0, %s51
    %s55 = sphi 0, %s54
    %s71 = sphi 0, %s55
    %s75 = sphi 0, %s75
    %s77 = sphi 0, %s75
    %s78 = sphi 0, %s77
    %s92 = sphi 0, %s78
    %s96 = sphi 0, %s96
    %s98 = sphi 0, %s96
    %s99 = sphi 0, %s98
    %s113 = sphi 0, %s99
    %s117 = sphi 0, %s117
    %s119 = sphi 0, %s117
    %s120 = sphi 0, %s119
    %s134 = sphi 0, %s120
    %s138 = sphi 0, %s138
    %s140 = sphi 0, %s138
    %s141 = sphi 0, %s140
    %s155 = sphi 0, %s141
    %s161 = sphi 0, %s163
    %s164 = sphi 0, %s161
    %s165 = sphi 0, %s164
    %s181 = sphi 0, %s165
    %s187 = sphi 0, %s189
    %s190 = sphi 0, %s187
    %s191 = sphi 0, %s190
    %s207 = sphi 0, %s191
    %s213 = sphi 0, %s215
    %s216 = sphi 0, %s213
    %s217 = sphi 0, %s216
    %s233 = sphi 0, %s217
  $region4: #{_lambda_.2} parent=0 // loop_header_branch
    %18 = sbr.rel (%p16) target = $region8
  $region5: #{_lambda_.2} parent=0 // loop_body
    %s20 = ssub.s32 %s15, 1
    %s21 = ssub.s32 %s15, 2
    %s22 = sadd.s32 %s15, 1
    %s23 = ssub.s32 %s15, %s22
    %p24 = scmp.eq.s32.totalorder %s23, 0
    %s26 = sadd.s32 %s25, 1
    %s27 = scalar_select %p24, %s25, %s26
    %p30 = pneg %p24
    %p31 = scmp.eq.s32.totalorder %s15, 1
    %p32 = por %p30, %p31
    %p33 = scmp.ne.s32.totalorder %s25, %s28
    %p34 = scmp.eq.s32.totalorder %s15, 0
    %p35 = por %p33, %p34
    %p36 = scmp.ne.s32.totalorder %s25, %s28
    %p37 = scmp.eq.s32.totalorder %s20, 1
    %p38 = por %p36, %p37
    %p39 = scmp.ne.s32.totalorder %s28, %s29
    %p40 = scmp.eq.s32.totalorder %s20, 0
    %p41 = por %p39, %p40
    %p42 = scmp.ne.s32.totalorder %s28, %s29
    %p43 = scmp.eq.s32.totalorder %s21, 1
    %p44 = por %p42, %p43
    %p46 = scmp.ne.s32.totalorder %s29, %s45
    %p47 = scmp.eq.s32.totalorder %s21, 0
    %p48 = por %p46, %p47
    %s49 = ssub.s32 %s15, %s22
    %p50 = scmp.eq.s32.totalorder %s49, 0
    %s52 = sadd.s32 %s51, 1
    %s53 = scalar_select %p50, %s51, %s52
    %p56 = pneg %p50
    %p57 = scmp.eq.s32.totalorder %s15, 1
    %p58 = por %p56, %p57
    %p59 = scmp.ne.s32.totalorder %s51, %s54
    %p60 = scmp.eq.s32.totalorder %s15, 0
    %p61 = por %p59, %p60
    %p62 = scmp.ne.s32.totalorder %s51, %s54
    %p63 = scmp.eq.s32.totalorder %s20, 1
    %p64 = por %p62, %p63
    %p65 = scmp.ne.s32.totalorder %s54, %s55
    %p66 = scmp.eq.s32.totalorder %s20, 0
    %p67 = por %p65, %p66
    %p68 = scmp.ne.s32.totalorder %s54, %s55
    %p69 = scmp.eq.s32.totalorder %s21, 1
    %p70 = por %p68, %p69
    %p72 = scmp.ne.s32.totalorder %s55, %s71
    %p73 = scmp.eq.s32.totalorder %s21, 0
    %p74 = por %p72, %p73
    %s76 = sadd.s32 %s75, 1
    %p79 = scmp.eq.s32.totalorder %s15, 1
    %p80 = scmp.ne.s32.totalorder %s75, %s77
    %p81 = scmp.eq.s32.totalorder %s15, 0
    %p82 = por %p80, %p81
    %p83 = scmp.ne.s32.totalorder %s75, %s77
    %p84 = scmp.eq.s32.totalorder %s20, 1
    %p85 = por %p83, %p84
    %p86 = scmp.ne.s32.totalorder %s77, %s78
    %p87 = scmp.eq.s32.totalorder %s20, 0
    %p88 = por %p86, %p87
    %p89 = scmp.ne.s32.totalorder %s77, %s78
    %p90 = scmp.eq.s32.totalorder %s21, 1
    %p91 = por %p89, %p90
    %p93 = scmp.ne.s32.totalorder %s78, %s92
    %p94 = scmp.eq.s32.totalorder %s21, 0
    %p95 = por %p93, %p94
    %s97 = sadd.s32 %s96, 1
    %p100 = scmp.eq.s32.totalorder %s15, 1
    %p101 = scmp.ne.s32.totalorder %s96, %s98
    %p102 = scmp.eq.s32.totalorder %s15, 0
    %p103 = por %p101, %p102
    %p104 = scmp.ne.s32.totalorder %s96, %s98
    %p105 = scmp.eq.s32.totalorder %s20, 1
    %p106 = por %p104, %p105
    %p107 = scmp.ne.s32.totalorder %s98, %s99
    %p108 = scmp.eq.s32.totalorder %s20, 0
    %p109 = por %p107, %p108
    %p110 = scmp.ne.s32.totalorder %s98, %s99
    %p111 = scmp.eq.s32.totalorder %s21, 1
    %p112 = por %p110, %p111
    %p114 = scmp.ne.s32.totalorder %s99, %s113
    %p115 = scmp.eq.s32.totalorder %s21, 0
    %p116 = por %p114, %p115
    %s118 = sadd.s32 %s117, 1
    %p121 = scmp.eq.s32.totalorder %s15, 1
    %p122 = scmp.ne.s32.totalorder %s117, %s119
    %p123 = scmp.eq.s32.totalorder %s15, 0
    %p124 = por %p122, %p123
    %p125 = scmp.ne.s32.totalorder %s117, %s119
    %p126 = scmp.eq.s32.totalorder %s20, 1
    %p127 = por %p125, %p126
    %p128 = scmp.ne.s32.totalorder %s119, %s120
    %p129 = scmp.eq.s32.totalorder %s20, 0
    %p130 = por %p128, %p129
    %p131 = scmp.ne.s32.totalorder %s119, %s120
    %p132 = scmp.eq.s32.totalorder %s21, 1
    %p133 = por %p131, %p132
    %p135 = scmp.ne.s32.totalorder %s120, %s134
    %p136 = scmp.eq.s32.totalorder %s21, 0
    %p137 = por %p135, %p136
    %s139 = sadd.s32 %s138, 1
    %p142 = scmp.eq.s32.totalorder %s15, 1
    %p143 = scmp.ne.s32.totalorder %s138, %s140
    %p144 = scmp.eq.s32.totalorder %s15, 0
    %p145 = por %p143, %p144
    %p146 = scmp.ne.s32.totalorder %s138, %s140
    %p147 = scmp.eq.s32.totalorder %s20, 1
    %p148 = por %p146, %p147
    %p149 = scmp.ne.s32.totalorder %s140, %s141
    %p150 = scmp.eq.s32.totalorder %s20, 0
    %p151 = por %p149, %p150
    %p152 = scmp.ne.s32.totalorder %s140, %s141
    %p153 = scmp.eq.s32.totalorder %s21, 1
    %p154 = por %p152, %p153
    %p156 = scmp.ne.s32.totalorder %s141, %s155
    %p157 = scmp.eq.s32.totalorder %s21, 0
    %p158 = por %p156, %p157
    %s159 = ssub.s32 %s15, %s22
    %p160 = scmp.eq.s32.totalorder %s159, 0
    %s162 = sadd.s32 %s161, 1
    %s163 = scalar_select %p160, %s161, %s162
    %p166 = pneg %p160
    %p167 = scmp.eq.s32.totalorder %s15, 1
    %p168 = por %p166, %p167
    %p169 = scmp.ne.s32.totalorder %s161, %s164
    %p170 = scmp.eq.s32.totalorder %s15, 0
    %p171 = por %p169, %p170
    %p172 = scmp.ne.s32.totalorder %s161, %s164
    %p173 = scmp.eq.s32.totalorder %s20, 1
    %p174 = por %p172, %p173
    %p175 = scmp.ne.s32.totalorder %s164, %s165
    %p176 = scmp.eq.s32.totalorder %s20, 0
    %p177 = por %p175, %p176
    %p178 = scmp.ne.s32.totalorder %s164, %s165
    %p179 = scmp.eq.s32.totalorder %s21, 1
    %p180 = por %p178, %p179
    %p182 = scmp.ne.s32.totalorder %s165, %s181
    %p183 = scmp.eq.s32.totalorder %s21, 0
    %p184 = por %p182, %p183
    %s185 = ssub.s32 %s15, %s22
    %p186 = scmp.eq.s32.totalorder %s185, 0
    %s188 = sadd.s32 %s187, 1
    %s189 = scalar_select %p186, %s187, %s188
    %p192 = pneg %p186
    %p193 = scmp.eq.s32.totalorder %s15, 1
    %p194 = por %p192, %p193
    %p195 = scmp.ne.s32.totalorder %s187, %s190
    %p196 = scmp.eq.s32.totalorder %s15, 0
    %p197 = por %p195, %p196
    %p198 = scmp.ne.s32.totalorder %s187, %s190
    %p199 = scmp.eq.s32.totalorder %s20, 1
    %p200 = por %p198, %p199
    %p201 = scmp.ne.s32.totalorder %s190, %s191
    %p202 = scmp.eq.s32.totalorder %s20, 0
    %p203 = por %p201, %p202
    %p204 = scmp.ne.s32.totalorder %s190, %s191
    %p205 = scmp.eq.s32.totalorder %s21, 1
    %p206 = por %p204, %p205
    %p208 = scmp.ne.s32.totalorder %s191, %s207
    %p209 = scmp.eq.s32.totalorder %s21, 0
    %p210 = por %p208, %p209
    %s211 = ssub.s32 %s15, %s22
    %p212 = scmp.eq.s32.totalorder %s211, 0
    %s214 = sadd.s32 %s213, 1
    %s215 = scalar_select %p212, %s213, %s214
    %p218 = pneg %p212
    %p219 = scmp.eq.s32.totalorder %s15, 1
    %p220 = por %p218, %p219
    %p221 = scmp.ne.s32.totalorder %s213, %s216
    %p222 = scmp.eq.s32.totalorder %s15, 0
    %p223 = por %p221, %p222
    %p224 = scmp.ne.s32.totalorder %s213, %s216
    %p225 = scmp.eq.s32.totalorder %s20, 1
    %p226 = por %p224, %p225
    %p227 = scmp.ne.s32.totalorder %s216, %s217
    %p228 = scmp.eq.s32.totalorder %s20, 0
    %p229 = por %p227, %p228
    %p230 = scmp.ne.s32.totalorder %s216, %s217
    %p231 = scmp.eq.s32.totalorder %s21, 1
    %p232 = por %p230, %p231
    %p234 = scmp.ne.s32.totalorder %s217, %s233
    %p235 = scmp.eq.s32.totalorder %s21, 0
    %p236 = por %p234, %p235
    %p237 = scmp.le.s32.totalorder 1, %s15
    %p238 = scmp.lt.s32.totalorder %s15, 3
    %p239 = pnand %p237, %p238
    %p240 = pneg %p239
    // Predicated region
    $region9: #{_lambda_.2} parent=5 // pred_check
      _
    $region10: #{_lambda_.2} parent=5 // pred_check_branch
      %242 = sbr.rel (%p239) target = $region12
    $region11: #{_lambda_.2} parent=5 // pred_region
      %s243 = ssub.s32 %s15, 1
      // Predicated region
      $region13: #{_lambda_.2} parent=11 // pred_check
        %p244 = pneg %p88
      $region14: #{_lambda_.2} parent=11 // pred_check_branch
        %246 = sbr.rel (%p244) target = $region16
      $region15: #{_lambda_.2} parent=11 // pred_region
        _
      $region16: #{_lambda_.2} parent=11 // pred_fallthru
        _
      // Predicated region
      $region17: #{_lambda_.2} parent=11 // pred_check
        %p247 = pneg %p109
      $region18: #{_lambda_.2} parent=11 // pred_check_branch
        %249 = sbr.rel (%p247) target = $region20
      $region19: #{_lambda_.2} parent=11 // pred_region
        _
      $region20: #{_lambda_.2} parent=11 // pred_fallthru
        _
      // Predicated region
      $region21: #{_lambda_.2} parent=11 // pred_check
        %p250 = pneg %p130
      $region22: #{_lambda_.2} parent=11 // pred_check_branch
        %252 = sbr.rel (%p250) target = $region24
      $region23: #{_lambda_.2} parent=11 // pred_region
        _
      $region24: #{_lambda_.2} parent=11 // pred_fallthru
        _
      // Predicated region
      $region25: #{_lambda_.2} parent=11 // pred_check
        %p253 = pneg %p151
      $region26: #{_lambda_.2} parent=11 // pred_check_branch
        %255 = sbr.rel (%p253) target = $region28
      $region27: #{_lambda_.2} parent=11 // pred_region
        _
      $region28: #{_lambda_.2} parent=11 // pred_fallthru
        _
    $region12: #{_lambda_.2} parent=5 // pred_fallthru
      _
    %p256 = scmp.lt.s32.totalorder %s15, 2
    // Predicated region
    $region29: #{_lambda_.2} parent=5 // pred_check
      %p257 = pneg %p256
    $region30: #{_lambda_.2} parent=5 // pred_check_branch
      %259 = sbr.rel (%p257) target = $region32
    $region31: #{_lambda_.2} parent=5 // pred_region
      // Predicated region
      $region33: #{_lambda_.2} parent=31 // pred_check
        %p260 = pneg %p35
      $region34: #{_lambda_.2} parent=31 // pred_check_branch
        %262 = sbr.rel (%p260) target = $region36
      $region35: #{_lambda_.2} parent=31 // pred_region
        %p263 = scmp.lt.s32.totalorder %s15, 1
        %s264 = scalar_select %p263, %s15, 1
        %s265 = smul.addr %s264, 54
        %s266 = smul.addr %s265, 8
        %s267 = scalar_lea.vmem %s0, %s266
      $region36: #{_lambda_.2} parent=31 // pred_fallthru
        _
      // Predicated region
      $region37: #{_lambda_.2} parent=31 // pred_check
        %p268 = pneg %p61
      $region38: #{_lambda_.2} parent=31 // pred_check_branch
        %270 = sbr.rel (%p268) target = $region40
      $region39: #{_lambda_.2} parent=31 // pred_region
        %p271 = scmp.lt.s32.totalorder %s15, 1
        %s272 = scalar_select %p271, %s15, 1
        %s273 = smul.addr %s272, 54
        %s274 = smul.addr %s273, 8
        %s275 = scalar_lea.vmem %s1, %s274
      $region40: #{_lambda_.2} parent=31 // pred_fallthru
        _
    $region32: #{_lambda_.2} parent=5 // pred_fallthru
      _
    %p276 = scmp.le.s32.totalorder 1, %s15
    %p277 = scmp.lt.s32.totalorder %s15, 3
    %p278 = pnand %p276, %p277
    %p279 = pneg %p278
    // Predicated region
    $region41: #{_lambda_.2} parent=5 // pred_check
      _
    $region42: #{_lambda_.2} parent=5 // pred_check_branch
      %281 = sbr.rel (%p278) target = $region44
    $region43: #{_lambda_.2} parent=5 // pred_region
      %s282 = ssub.s32 %s15, 1
      %p283 = scmp.lt.s32.totalorder %s20, 1
      %s284 = scalar_select %p283, %s20, 1
      %s285 = smul.addr %s284, 54
      %s286 = smul.addr %s285, 8
      %s287 = scalar_lea.vmem %s0, %s286
      %p288 = pneg %p41
      %p289 = pneg %p38
      %p290 = scmp.lt.s32.totalorder %s20, 1
      %s291 = scalar_select %p290, %s20, 1
      %s292 = smul.addr %s291, 54
      %s293 = smul.addr %s292, 8
      %s294 = scalar_lea.vmem %s1, %s293
      %p295 = pneg %p67
      %p296 = pneg %p64
      %p297 = pneg %p88
      %p298 = pneg %p85
      %p299 = pneg %p109
      %p300 = pneg %p106
      %p301 = pneg %p130
      %p302 = pneg %p127
      %p303 = pneg %p151
      %p304 = pneg %p148
      %p305 = pneg %p177
      %p306 = pneg %p174
      %p307 = scmp.lt.s32.totalorder %s20, 1
      %s308 = scalar_select %p307, %s20, 1
      %s309 = smul.addr %s308, 32
      %s310 = smul.addr %s309, 8
      %s311 = scalar_lea.vmem %s6, %s310
      %p312 = pneg %p203
      %p313 = pneg %p200
      %p314 = scmp.lt.s32.totalorder %s20, 1
      %s315 = scalar_select %p314, %s20, 1
      %s316 = smul.addr %s315, 32
      %s317 = smul.addr %s316, 8
      %s318 = scalar_lea.vmem %s7, %s317
      %p319 = pneg %p229
      %p320 = pneg %p226
      %p321 = scmp.lt.s32.totalorder %s20, 1
      %s322 = scalar_select %p321, %s20, 1
      %s323 = smul.addr %s322, 4
      %s324 = scalar_lea.vmem %s8, %s323
      %p325 = scmp.lt.s32.totalorder %s20, 1
      %s326 = scalar_select %p325, %s20, 1
      %s327 = smul.addr %s326, 54
      %s328 = smul.addr %s327, 8
      %s329 = scalar_lea.vmem %s0, %s328
      %p330 = scmp.lt.s32.totalorder %s20, 1
      %s331 = scalar_select %p330, %s20, 1
      %s332 = smul.addr %s331, 54
      %s333 = smul.addr %s332, 8
      %s334 = scalar_lea.vmem %s1, %s333
      %p335 = scmp.lt.s32.totalorder %s20, 1
      %s336 = scalar_select %p335, %s20, 1
      %s337 = smul.addr %s336, 32
      %s338 = smul.addr %s337, 8
      %s339 = scalar_lea.vmem %s6, %s338
      %p340 = scmp.lt.s32.totalorder %s20, 1
      %s341 = scalar_select %p340, %s20, 1
      %s342 = smul.addr %s341, 32
      %s343 = smul.addr %s342, 8
      %s344 = scalar_lea.vmem %s7, %s343
      %p345 = scmp.lt.s32.totalorder %s20, 1
      %s346 = scalar_select %p345, %s20, 1
      %s347 = smul.addr %s346, 4
      %s348 = scalar_lea.vmem %s8, %s347
      %s350 = scalar_lea.vmem %s329, 24
      %v351 = vld [vmem:[%s350 + $0x1] sm:$0xff]
      %v352 = vld [vmem:[%s350 + $0x9] sm:$0xff]
      %v353 = vld [vmem:[%s350 + $0x19] sm:$0xff]
      %v354 = vld [vmem:[%s350 + $0x21] sm:$0xff]
      %v355 = vld [vmem:[%s350 + $0x31] sm:$0xff]
      %v356 = vld [vmem:[%s350 + $0x39] sm:$0xff]
      %v357 = vld [vmem:[%s350 + $0x49] sm:$0xff]
      %v358 = vld [vmem:[%s350 + $0x51] sm:$0xff]
      %v359 = vld [vmem:[%s350 + $0x61] sm:$0xff]
      %v360 = vld [vmem:[%s350 + $0x69] sm:$0xff]
      %v361 = vld [vmem:[%s350 + $0x79] sm:$0xff]
      %v362 = vld [vmem:[%s350 + $0x81] sm:$0xff]
      %v363 = vld [vmem:[%s350 + $0x91] sm:$0xff]
      %v364 = vld [vmem:[%s350 + $0x99] sm:$0xff]
      %v365 = vld [vmem:[%s350 + $0xa9] sm:$0xff]
      %v366 = vld [vmem:[%s350 + $0xb1] sm:$0xff]
      %v367 = vld [vmem:[%s350 + $0xc1] sm:$0xff]
      %v368 = vld [vmem:[%s350 + $0xc9] sm:$0xff]
      %v369 = vld [vmem:[%s350 + $0xd9] sm:$0xff]
      %v370 = vld [vmem:[%s350 + $0xe1] sm:$0xff]
      %v371 = vld [vmem:[%s350 + $0xf1] sm:$0xff]
      %v372 = vld [vmem:[%s350 + $0xf9] sm:$0xff]
      %v373 = vld [vmem:[%s350 + $0x109] sm:$0xff]
      %v374 = vld [vmem:[%s350 + $0x111] sm:$0xff]
      %v375 = vld [vmem:[%s350 + $0x121] sm:$0xff]
      %v376 = vld [vmem:[%s350 + $0x129] sm:$0xff]
      %v377 = vld [vmem:[%s350 + $0x139] sm:$0xff]
      %v378 = vld [vmem:[%s350 + $0x141] sm:$0xff]
      %v379 = vld [vmem:[%s350 + $0x151] sm:$0xff]
      %v380 = vld [vmem:[%s350 + $0x159] sm:$0xff]
      %v381 = vld [vmem:[%s350 + $0x169] sm:$0xff]
      %v382 = vld [vmem:[%s350 + $0x171] sm:$0xff]
      %v383 = vpack.c.bf16 %v352, %v351
      %v384 = vpack.c.bf16 %v354, %v353
      %v385 = vpack.c.bf16 %v356, %v355
      %v386 = vpack.c.bf16 %v358, %v357
      %v387 = vpack.c.bf16 %v360, %v359
      %v388 = vpack.c.bf16 %v362, %v361
      %v389 = vpack.c.bf16 %v364, %v363
      %v390 = vpack.c.bf16 %v366, %v365
      %v391 = vpack.c.bf16 %v368, %v367
      %v392 = vpack.c.bf16 %v370, %v369
      %v393 = vpack.c.bf16 %v372, %v371
      %v394 = vpack.c.bf16 %v374, %v373
      %v395 = vpack.c.bf16 %v376, %v375
      %v396 = vpack.c.bf16 %v378, %v377
      %v397 = vpack.c.bf16 %v380, %v379
      %v398 = vpack.c.bf16 %v382, %v381
      %v399 = vld [vmem:[%s4] sm:$0x3]
      %s400 = scalar_lea.vmem %s334, 24
      %v401 = vld [vmem:[%s400 + $0x1] sm:$0xff]
      %v402 = vld [vmem:[%s400 + $0x9] sm:$0xff]
      %v403 = vld [vmem:[%s400 + $0x19] sm:$0xff]
      %v404 = vld [vmem:[%s400 + $0x21] sm:$0xff]
      %v405 = vld [vmem:[%s400 + $0x31] sm:$0xff]
      %v406 = vld [vmem:[%s400 + $0x39] sm:$0xff]
      %v407 = vld [vmem:[%s400 + $0x49] sm:$0xff]
      %v408 = vld [vmem:[%s400 + $0x51] sm:$0xff]
      %v409 = vld [vmem:[%s400 + $0x61] sm:$0xff]
      %v410 = vld [vmem:[%s400 + $0x69] sm:$0xff]
      %v411 = vld [vmem:[%s400 + $0x79] sm:$0xff]
      %v412 = vld [vmem:[%s400 + $0x81] sm:$0xff]
      %v413 = vld [vmem:[%s400 + $0x91] sm:$0xff]
      %v414 = vld [vmem:[%s400 + $0x99] sm:$0xff]
      %v415 = vld [vmem:[%s400 + $0xa9] sm:$0xff]
      %v416 = vld [vmem:[%s400 + $0xb1] sm:$0xff]
      %v417 = vld [vmem:[%s400 + $0xc1] sm:$0xff]
      %v418 = vld [vmem:[%s400 + $0xc9] sm:$0xff]
      %v419 = vld [vmem:[%s400 + $0xd9] sm:$0xff]
      %v420 = vld [vmem:[%s400 + $0xe1] sm:$0xff]
      %v421 = vld [vmem:[%s400 + $0xf1] sm:$0xff]
      %v422 = vld [vmem:[%s400 + $0xf9] sm:$0xff]
      %v423 = vld [vmem:[%s400 + $0x109] sm:$0xff]
      %v424 = vld [vmem:[%s400 + $0x111] sm:$0xff]
      %v425 = vld [vmem:[%s400 + $0x121] sm:$0xff]
      %v426 = vld [vmem:[%s400 + $0x129] sm:$0xff]
      %v427 = vld [vmem:[%s400 + $0x139] sm:$0xff]
      %v428 = vld [vmem:[%s400 + $0x141] sm:$0xff]
      %v429 = vld [vmem:[%s400 + $0x151] sm:$0xff]
      %v430 = vld [vmem:[%s400 + $0x159] sm:$0xff]
      %v431 = vld [vmem:[%s400 + $0x169] sm:$0xff]
      %v432 = vld [vmem:[%s400 + $0x171] sm:$0xff]
      %v433 = vpack.c.bf16 %v402, %v401
      %v434 = vpack.c.bf16 %v404, %v403
      %v435 = vpack.c.bf16 %v406, %v405
      %v436 = vpack.c.bf16 %v408, %v407
      %v437 = vpack.c.bf16 %v410, %v409
      %v438 = vpack.c.bf16 %v412, %v411
      %v439 = vpack.c.bf16 %v414, %v413
      %v440 = vpack.c.bf16 %v416, %v415
      %v441 = vpack.c.bf16 %v418, %v417
      %v442 = vpack.c.bf16 %v420, %v419
      %v443 = vpack.c.bf16 %v422, %v421
      %v444 = vpack.c.bf16 %v424, %v423
      %v445 = vpack.c.bf16 %v426, %v425
      %v446 = vpack.c.bf16 %v428, %v427
      %v447 = vpack.c.bf16 %v430, %v429
      %v448 = vpack.c.bf16 %v432, %v431
      %v449 = vld [vmem:[%s5] sm:$0x3]
      %vm450 = vcmask 31744
      %v452 = vsel %vm450, %v433, 0
      %v455 = vsel %vm450, %v434, 0
      %v458 = vsel %vm450, %v435, 0
      %v461 = vsel %vm450, %v436, 0
      %v464 = vsel %vm450, %v437, 0
      %v467 = vsel %vm450, %v438, 0
      %v470 = vsel %vm450, %v439, 0
      %v473 = vsel %vm450, %v440, 0
      %v476 = vsel %vm450, %v441, 0
      %v479 = vsel %vm450, %v442, 0
      %v482 = vsel %vm450, %v443, 0
      %v485 = vsel %vm450, %v444, 0
      %v488 = vsel %vm450, %v445, 0
      %v491 = vsel %vm450, %v446, 0
      %v494 = vsel %vm450, %v447, 0
      %v497 = vsel %vm450, %v448, 0
      %vm499 = vcmask 1041408
      %v501 = vsel %vm499, %v449, 0
      %503 = vmatprep.subr.bf16.mxu0 0
      %504 = vmatpush1.bf16.msra.mxu0 %v501
      %505 = vmatprep.subr.bf16.mxu0 0
      %506 = vmatpush1.bf16.msra.mxu0 0
      %507 = vmatprep.subr.bf16.mxu0 0
      %508 = vmatpush1.bf16.msra.mxu0 0
      %509 = vmatprep.subr.bf16.mxu0 0
      %510 = vmatpush1.bf16.msra.mxu0 0
      %511 = vmatprep.subr.bf16.mxu0 0
      %512 = vmatpush1.bf16.msra.mxu0 0
      %513 = vmatprep.subr.bf16.mxu0 0
      %514 = vmatpush1.bf16.msra.mxu0 0
      %515 = vmatprep.subr.bf16.mxu0 0
      %516 = vmatpush1.bf16.msra.mxu0 0
      %517 = vmatprep.subr.bf16.mxu0 0
      %518 = vmatpush1.bf16.msra.mxu0 0
      %519 = vmatprep.subr.bf16.mxu0 0
      %520 = vmatpush1.bf16.msra.mxu0 0
      %521 = vmatprep.subr.bf16.mxu0 0
      %522 = vmatpush1.bf16.msra.mxu0 0
      %523 = vmatprep.subr.bf16.mxu0 0
      %524 = vmatpush1.bf16.msra.mxu0 0
      %525 = vmatprep.subr.bf16.mxu0 0
      %526 = vmatpush1.bf16.msra.mxu0 0
      %527 = vmatprep.subr.bf16.mxu0 0
      %528 = vmatpush1.bf16.msra.mxu0 0
      %529 = vmatprep.subr.bf16.mxu0 0
      %530 = vmatpush1.bf16.msra.mxu0 0
      %531 = vmatprep.subr.bf16.mxu0 0
      %532 = vmatpush1.bf16.msra.mxu0 0
      %533 = vmatprep.subr.bf16.mxu0 0
      %534 = vmatpush1.bf16.msra.mxu0 0
      %535 = vmatprep.mubr.bf16.mxu0 0
      %536 = vmatmul.mubr.bf16.gmra.mrb[0].mxu0 %v452
      %v537 = vpop.f32.mrb[0].mxu0
      %v538 = vadd.f32 0.0, %v537
      %v539 = vpop.f32.mrb[0].mxu0
      %v540 = vpop.f32.mrb[0].mxu0
      %v541 = vadd.f32 0.0, %v540
      %v542 = vpop.f32.mrb[0].mxu0
      %543 = vmatprep.mubr.bf16.mxu0 0
      %544 = vmatmul.mubr.bf16.gmra.mrb[0].mxu0 %v455
      %v545 = vpop.f32.mrb[0].mxu0
      %v546 = vadd.f32 0.0, %v545
      %v547 = vpop.f32.mrb[0].mxu0
      %v548 = vpop.f32.mrb[0].mxu0
      %v549 = vadd.f32 0.0, %v548
      %v550 = vpop.f32.mrb[0].mxu0
      %551 = vmatprep.mubr.bf16.mxu0 0
      %552 = vmatmul.mubr.bf16.gmra.mrb[0].mxu0 %v458
      %v553 = vpop.f32.mrb[0].mxu0
      %v554 = vadd.f32 0.0, %v553
      %v555 = vpop.f32.mrb[0].mxu0
      %v556 = vpop.f32.mrb[0].mxu0
      %v557 = vadd.f32 0.0, %v556
      %v558 = vpop.f32.mrb[0].mxu0
      %559 = vmatprep.mubr.bf16.mxu0 0
      %560 = vmatmul.mubr.bf16.gmra.mrb[0].mxu0 %v461
      %v561 = vpop.f32.mrb[0].mxu0
      %v562 = vadd.f32 0.0, %v561
      %v563 = vpop.f32.mrb[0].mxu0
      %v564 = vpop.f32.mrb[0].mxu0
      %v565 = vadd.f32 0.0, %v564
      %v566 = vpop.f32.mrb[0].mxu0
      %567 = vmatprep.mubr.bf16.mxu0 0
      %568 = vmatmul.mubr.bf16.gmra.mrb[0].mxu0 %v464
      %v569 = vpop.f32.mrb[0].mxu0
      %v570 = vadd.f32 0.0, %v569
      %v571 = vpop.f32.mrb[0].mxu0
      %v572 = vpop.f32.mrb[0].mxu0
      %v573 = vadd.f32 0.0, %v572
      %v574 = vpop.f32.mrb[0].mxu0
      %575 = vmatprep.mubr.bf16.mxu0 0
      %576 = vmatmul.mubr.bf16.gmra.mrb[0].mxu0 %v467
      %v577 = vpop.f32.mrb[0].mxu0
      %v578 = vadd.f32 0.0, %v577
      %v579 = vpop.f32.mrb[0].mxu0
      %v580 = vpop.f32.mrb[0].mxu0
      %v581 = vadd.f32 0.0, %v580
      %v582 = vpop.f32.mrb[0].mxu0
      %583 = vmatprep.mubr.bf16.mxu0 0
      %584 = vmatmul.mubr.bf16.gmra.mrb[0].mxu0 %v470
      %v585 = vpop.f32.mrb[0].mxu0
      %v586 = vadd.f32 0.0, %v585
      %v587 = vpop.f32.mrb[0].mxu0
      %v588 = vpop.f32.mrb[0].mxu0
      %v589 = vadd.f32 0.0, %v588
      %v590 = vpop.f32.mrb[0].mxu0
      %591 = vmatprep.mubr.bf16.mxu0 0
      %592 = vmatmul.mubr.bf16.gmra.mrb[0].mxu0 %v473
      %v593 = vpop.f32.mrb[0].mxu0
      %v594 = vadd.f32 0.0, %v593
      %v595 = vpop.f32.mrb[0].mxu0
      %v596 = vpop.f32.mrb[0].mxu0
      %v597 = vadd.f32 0.0, %v596
      %v598 = vpop.f32.mrb[0].mxu0
      %599 = vmatprep.mubr.bf16.mxu0 0
      %600 = vmatmul.mubr.bf16.gmra.mrb[0].mxu0 %v476
      %v601 = vpop.f32.mrb[0].mxu0
      %v602 = vadd.f32 0.0, %v601
      %v603 = vpop.f32.mrb[0].mxu0
      %v604 = vpop.f32.mrb[0].mxu0
      %v605 = vadd.f32 0.0, %v604
      %v606 = vpop.f32.mrb[0].mxu0
      %607 = vmatprep.mubr.bf16.mxu0 0
      %608 = vmatmul.mubr.bf16.gmra.mrb[0].mxu0 %v479
      %v609 = vpop.f32.mrb[0].mxu0
      %v610 = vadd.f32 0.0, %v609
      %v611 = vpop.f32.mrb[0].mxu0
      %v612 = vpop.f32.mrb[0].mxu0
      %v613 = vadd.f32 0.0, %v612
      %v614 = vpop.f32.mrb[0].mxu0
      %615 = vmatprep.mubr.bf16.mxu0 0
      %616 = vmatmul.mubr.bf16.gmra.mrb[0].mxu0 %v482
      %v617 = vpop.f32.mrb[0].mxu0
      %v618 = vadd.f32 0.0, %v617
      %v619 = vpop.f32.mrb[0].mxu0
      %v620 = vpop.f32.mrb[0].mxu0
      %v621 = vadd.f32 0.0, %v620
      %v622 = vpop.f32.mrb[0].mxu0
      %623 = vmatprep.mubr.bf16.mxu0 0
      %624 = vmatmul.mubr.bf16.gmra.mrb[0].mxu0 %v485
      %v625 = vpop.f32.mrb[0].mxu0
      %v626 = vadd.f32 0.0, %v625
      %v627 = vpop.f32.mrb[0].mxu0
      %v628 = vpop.f32.mrb[0].mxu0
      %v629 = vadd.f32 0.0, %v628
      %v630 = vpop.f32.mrb[0].mxu0
      %631 = vmatprep.mubr.bf16.mxu0 0
      %632 = vmatmul.mubr.bf16.gmra.mrb[0].mxu0 %v488
      %v633 = vpop.f32.mrb[0].mxu0
      %v634 = vadd.f32 0.0, %v633
      %v635 = vpop.f32.mrb[0].mxu0
      %v636 = vpop.f32.mrb[0].mxu0
      %v637 = vadd.f32 0.0, %v636
      %v638 = vpop.f32.mrb[0].mxu0
      %639 = vmatprep.mubr.bf16.mxu0 0
      %640 = vmatmul.mubr.bf16.gmra.mrb[0].mxu0 %v491
      %v641 = vpop.f32.mrb[0].mxu0
      %v642 = vadd.f32 0.0, %v641
      %v643 = vpop.f32.mrb[0].mxu0
      %v644 = vpop.f32.mrb[0].mxu0
      %v645 = vadd.f32 0.0, %v644
      %v646 = vpop.f32.mrb[0].mxu0
      %647 = vmatprep.mubr.bf16.mxu0 0
      %648 = vmatmul.mubr.bf16.gmra.mrb[0].mxu0 %v494
      %v649 = vpop.f32.mrb[0].mxu0
      %v650 = vadd.f32 0.0, %v649
      %v651 = vpop.f32.mrb[0].mxu0
      %v652 = vpop.f32.mrb[0].mxu0
      %v653 = vadd.f32 0.0, %v652
      %v654 = vpop.f32.mrb[0].mxu0
      %655 = vmatprep.mubr.bf16.mxu0 0
      %656 = vmatmul.mubr.bf16.gmra.mrb[0].mxu0 %v497
      %v657 = vpop.f32.mrb[0].mxu0
      %v658 = vadd.f32 0.0, %v657
      %v659 = vpop.f32.mrb[0].mxu0
      %v660 = vpop.f32.mrb[0].mxu0
      %v661 = vadd.f32 0.0, %v660
      %v662 = vpop.f32.mrb[0].mxu0
      %663 = vdwg.mxu0
      %v665 = vsel %vm450, %v383, 0
      %v668 = vsel %vm450, %v384, 0
      %v671 = vsel %vm450, %v385, 0
      %v674 = vsel %vm450, %v386, 0
      %v677 = vsel %vm450, %v387, 0
      %v680 = vsel %vm450, %v388, 0
      %v683 = vsel %vm450, %v389, 0
      %v686 = vsel %vm450, %v390, 0
      %v689 = vsel %vm450, %v391, 0
      %v692 = vsel %vm450, %v392, 0
      %v695 = vsel %vm450, %v393, 0
      %v698 = vsel %vm450, %v394, 0
      %v701 = vsel %vm450, %v395, 0
      %v704 = vsel %vm450, %v396, 0
      %v707 = vsel %vm450, %v397, 0
      %v710 = vsel %vm450, %v398, 0
      %v713 = vsel %vm499, %v399, 0
      %715 = vmatprep.subr.bf16.mxu0 0
      %716 = vmatpush1.bf16.msra.mxu0 %v713
      %717 = vmatprep.subr.bf16.mxu0 0
      %718 = vmatpush1.bf16.msra.mxu0 0
      %719 = vmatprep.subr.bf16.mxu0 0
      %720 = vmatpush1.bf16.msra.mxu0 0
      %721 = vmatprep.subr.bf16.mxu0 0
      %722 = vmatpush1.bf16.msra.mxu0 0
      %723 = vmatprep.subr.bf16.mxu0 0
      %724 = vmatpush1.bf16.msra.mxu0 0
      %725 = vmatprep.subr.bf16.mxu0 0
      %726 = vmatpush1.bf16.msra.mxu0 0
      %727 = vmatprep.subr.bf16.mxu0 0
      %728 = vmatpush1.bf16.msra.mxu0 0
      %729 = vmatprep.subr.bf16.mxu0 0
      %730 = vmatpush1.bf16.msra.mxu0 0
      %731 = vmatprep.subr.bf16.mxu0 0
      %732 = vmatpush1.bf16.msra.mxu0 0
      %733 = vmatprep.subr.bf16.mxu0 0
      %734 = vmatpush1.bf16.msra.mxu0 0
      %735 = vmatprep.subr.bf16.mxu0 0
      %736 = vmatpush1.bf16.msra.mxu0 0
      %737 = vmatprep.subr.bf16.mxu0 0
      %738 = vmatpush1.bf16.msra.mxu0 0
      %739 = vmatprep.subr.bf16.mxu0 0
      %740 = vmatpush1.bf16.msra.mxu0 0
      %741 = vmatprep.subr.bf16.mxu0 0
      %742 = vmatpush1.bf16.msra.mxu0 0
      %743 = vmatprep.subr.bf16.mxu0 0
      %744 = vmatpush1.bf16.msra.mxu0 0
      %745 = vmatprep.subr.bf16.mxu0 0
      %746 = vmatpush1.bf16.msra.mxu0 0
      %747 = vmatprep.mubr.bf16.mxu0 0
      %748 = vmatmul.mubr.bf16.gmra.mrb[0].mxu0 %v665
      %v749 = vpop.f32.mrb[0].mxu0
      %v750 = vadd.f32 %v538, %v749
      %v751 = vpop.f32.mrb[0].mxu0
      %v752 = vpop.f32.mrb[0].mxu0
      %v753 = vadd.f32 %v541, %v752
      %v754 = vpop.f32.mrb[0].mxu0
      %755 = vmatprep.mubr.bf16.mxu0 0
      %756 = vmatmul.mubr.bf16.gmra.mrb[0].mxu0 %v668
      %v757 = vpop.f32.mrb[0].mxu0
      %v758 = vadd.f32 %v546, %v757
      %v759 = vpop.f32.mrb[0].mxu0
      %v760 = vpop.f32.mrb[0].mxu0
      %v761 = vadd.f32 %v549, %v760
      %v762 = vpop.f32.mrb[0].mxu0
      %763 = vmatprep.mubr.bf16.mxu0 0
      %764 = vmatmul.mubr.bf16.gmra.mrb[0].mxu0 %v671
      %v765 = vpop.f32.mrb[0].mxu0
      %v766 = vadd.f32 %v554, %v765
      %v767 = vpop.f32.mrb[0].mxu0
      %v768 = vpop.f32.mrb[0].mxu0
      %v769 = vadd.f32 %v557, %v768
      %v770 = vpop.f32.mrb[0].mxu0
      %771 = vmatprep.mubr.bf16.mxu0 0
      %772 = vmatmul.mubr.bf16.gmra.mrb[0].mxu0 %v674
      %v773 = vpop.f32.mrb[0].mxu0
      %v774 = vadd.f32 %v562, %v773
      %v775 = vpop.f32.mrb[0].mxu0
      %v776 = vpop.f32.mrb[0].mxu0
      %v777 = vadd.f32 %v565, %v776
      %v778 = vpop.f32.mrb[0].mxu0
      %779 = vmatprep.mubr.bf16.mxu0 0
      %780 = vmatmul.mubr.bf16.gmra.mrb[0].mxu0 %v677
      %v781 = vpop.f32.mrb[0].mxu0
      %v782 = vadd.f32 %v570, %v781
      %v783 = vpop.f32.mrb[0].mxu0
      %v784 = vpop.f32.mrb[0].mxu0
      %v785 = vadd.f32 %v573, %v784
      %v786 = vpop.f32.mrb[0].mxu0
      %787 = vmatprep.mubr.bf16.mxu0 0
      %788 = vmatmul.mubr.bf16.gmra.mrb[0].mxu0 %v680
      %v789 = vpop.f32.mrb[0].mxu0
      %v790 = vadd.f32 %v578, %v789
      %v791 = vpop.f32.mrb[0].mxu0
      %v792 = vpop.f32.mrb[0].mxu0
      %v793 = vadd.f32 %v581, %v792
      %v794 = vpop.f32.mrb[0].mxu0
      %795 = vmatprep.mubr.bf16.mxu0 0
      %796 = vmatmul.mubr.bf16.gmra.mrb[0].mxu0 %v683
      %v797 = vpop.f32.mrb[0].mxu0
      %v798 = vadd.f32 %v586, %v797
      %v799 = vpop.f32.mrb[0].mxu0
      %v800 = vpop.f32.mrb[0].mxu0
      %v801 = vadd.f32 %v589, %v800
      %v802 = vpop.f32.mrb[0].mxu0
      %803 = vmatprep.mubr.bf16.mxu0 0
      %804 = vmatmul.mubr.bf16.gmra.mrb[0].mxu0 %v686
      %v805 = vpop.f32.mrb[0].mxu0
      %v806 = vadd.f32 %v594, %v805
      %v807 = vpop.f32.mrb[0].mxu0
      %v808 = vpop.f32.mrb[0].mxu0
      %v809 = vadd.f32 %v597, %v808
      %v810 = vpop.f32.mrb[0].mxu0
      %811 = vmatprep.mubr.bf16.mxu0 0
      %812 = vmatmul.mubr.bf16.gmra.mrb[0].mxu0 %v689
      %v813 = vpop.f32.mrb[0].mxu0
      %v814 = vadd.f32 %v602, %v813
      %v815 = vpop.f32.mrb[0].mxu0
      %v816 = vpop.f32.mrb[0].mxu0
      %v817 = vadd.f32 %v605, %v816
      %v818 = vpop.f32.mrb[0].mxu0
      %819 = vmatprep.mubr.bf16.mxu0 0
      %820 = vmatmul.mubr.bf16.gmra.mrb[0].mxu0 %v692
      %v821 = vpop.f32.mrb[0].mxu0
      %v822 = vadd.f32 %v610, %v821
      %v823 = vpop.f32.mrb[0].mxu0
      %v824 = vpop.f32.mrb[0].mxu0
      %v825 = vadd.f32 %v613, %v824
      %v826 = vpop.f32.mrb[0].mxu0
      %827 = vmatprep.mubr.bf16.mxu0 0
      %828 = vmatmul.mubr.bf16.gmra.mrb[0].mxu0 %v695
      %v829 = vpop.f32.mrb[0].mxu0
      %v830 = vadd.f32 %v618, %v829
      %v831 = vpop.f32.mrb[0].mxu0
      %v832 = vpop.f32.mrb[0].mxu0
      %v833 = vadd.f32 %v621, %v832
      %v834 = vpop.f32.mrb[0].mxu0
      %835 = vmatprep.mubr.bf16.mxu0 0
      %836 = vmatmul.mubr.bf16.gmra.mrb[0].mxu0 %v698
      %v837 = vpop.f32.mrb[0].mxu0
      %v838 = vadd.f32 %v626, %v837
      %v839 = vpop.f32.mrb[0].mxu0
      %v840 = vpop.f32.mrb[0].mxu0
      %v841 = vadd.f32 %v629, %v840
      %v842 = vpop.f32.mrb[0].mxu0
      %843 = vmatprep.mubr.bf16.mxu0 0
      %844 = vmatmul.mubr.bf16.gmra.mrb[0].mxu0 %v701
      %v845 = vpop.f32.mrb[0].mxu0
      %v846 = vadd.f32 %v634, %v845
      %v847 = vpop.f32.mrb[0].mxu0
      %v848 = vpop.f32.mrb[0].mxu0
      %v849 = vadd.f32 %v637, %v848
      %v850 = vpop.f32.mrb[0].mxu0
      %851 = vmatprep.mubr.bf16.mxu0 0
      %852 = vmatmul.mubr.bf16.gmra.mrb[0].mxu0 %v704
      %v853 = vpop.f32.mrb[0].mxu0
      %v854 = vadd.f32 %v642, %v853
      %v855 = vpop.f32.mrb[0].mxu0
      %v856 = vpop.f32.mrb[0].mxu0
      %v857 = vadd.f32 %v645, %v856
      %v858 = vpop.f32.mrb[0].mxu0
      %859 = vmatprep.mubr.bf16.mxu0 0
      %860 = vmatmul.mubr.bf16.gmra.mrb[0].mxu0 %v707
      %v861 = vpop.f32.mrb[0].mxu0
      %v862 = vadd.f32 %v650, %v861
      %v863 = vpop.f32.mrb[0].mxu0
      %v864 = vpop.f32.mrb[0].mxu0
      %v865 = vadd.f32 %v653, %v864
      %v866 = vpop.f32.mrb[0].mxu0
      %867 = vmatprep.mubr.bf16.mxu0 0
      %868 = vmatmul.mubr.bf16.gmra.mrb[0].mxu0 %v710
      %v869 = vpop.f32.mrb[0].mxu0
      %v870 = vadd.f32 %v658, %v869
      %v871 = vpop.f32.mrb[0].mxu0
      %v872 = vpop.f32.mrb[0].mxu0
      %v873 = vadd.f32 %v661, %v872
      %v874 = vpop.f32.mrb[0].mxu0
      %875 = vdwg.mxu0
      %v876 = vld [vmem:[%s329] sm:$0xff]
      %v877 = vld [vmem:[%s329 + $0x8] sm:$0xff]
      %v878 = vld [vmem:[%s329 + $0x18] sm:$0xff]
      %v879 = vld [vmem:[%s329 + $0x20] sm:$0xff]
      %v880 = vld [vmem:[%s329 + $0x30] sm:$0xff]
      %v881 = vld [vmem:[%s329 + $0x38] sm:$0xff]
      %v882 = vld [vmem:[%s329 + $0x48] sm:$0xff]
      %v883 = vld [vmem:[%s329 + $0x50] sm:$0xff]
      %v884 = vld [vmem:[%s329 + $0x60] sm:$0xff]
      %v885 = vld [vmem:[%s329 + $0x68] sm:$0xff]
      %v886 = vld [vmem:[%s329 + $0x78] sm:$0xff]
      %v887 = vld [vmem:[%s329 + $0x80] sm:$0xff]
      %v888 = vld [vmem:[%s329 + $0x90] sm:$0xff]
      %v889 = vld [vmem:[%s329 + $0x98] sm:$0xff]
      %v890 = vld [vmem:[%s329 + $0xa8] sm:$0xff]
      %v891 = vld [vmem:[%s329 + $0xb0] sm:$0xff]
      %v892 = vld [vmem:[%s329 + $0xc0] sm:$0xff]
      %v893 = vld [vmem:[%s329 + $0xc8] sm:$0xff]
      %v894 = vld [vmem:[%s329 + $0xd8] sm:$0xff]
      %v895 = vld [vmem:[%s329 + $0xe0] sm:$0xff]
      %v896 = vld [vmem:[%s329 + $0xf0] sm:$0xff]
      %v897 = vld [vmem:[%s329 + $0xf8] sm:$0xff]
      %v898 = vld [vmem:[%s329 + $0x108] sm:$0xff]
      %v899 = vld [vmem:[%s329 + $0x110] sm:$0xff]
      %v900 = vld [vmem:[%s329 + $0x120] sm:$0xff]
      %v901 = vld [vmem:[%s329 + $0x128] sm:$0xff]
      %v902 = vld [vmem:[%s329 + $0x138] sm:$0xff]
      %v903 = vld [vmem:[%s329 + $0x140] sm:$0xff]
      %v904 = vld [vmem:[%s329 + $0x150] sm:$0xff]
      %v905 = vld [vmem:[%s329 + $0x158] sm:$0xff]
      %v906 = vld [vmem:[%s329 + $0x168] sm:$0xff]
      %v907 = vld [vmem:[%s329 + $0x170] sm:$0xff]
      %v908 = vpack.c.bf16 %v877, %v876
      %v909 = vpack.c.bf16 %v879, %v878
      %v910 = vpack.c.bf16 %v881, %v880
      %v911 = vpack.c.bf16 %v883, %v882
      %v912 = vpack.c.bf16 %v885, %v884
      %v913 = vpack.c.bf16 %v887, %v886
      %v914 = vpack.c.bf16 %v889, %v888
      %v915 = vpack.c.bf16 %v891, %v890
      %v916 = vpack.c.bf16 %v893, %v892
      %v917 = vpack.c.bf16 %v895, %v894
      %v918 = vpack.c.bf16 %v897, %v896
      %v919 = vpack.c.bf16 %v899, %v898
      %v920 = vpack.c.bf16 %v901, %v900
      %v921 = vpack.c.bf16 %v903, %v902
      %v922 = vpack.c.bf16 %v905, %v904
      %v923 = vpack.c.bf16 %v907, %v906
      %v924 = vld [vmem:[%s2] sm:$0x3]
      %v925 = vld [vmem:[%s334] sm:$0xff]
      %v926 = vld [vmem:[%s334 + $0x8] sm:$0xff]
      %v927 = vld [vmem:[%s334 + $0x18] sm:$0xff]
      %v928 = vld [vmem:[%s334 + $0x20] sm:$0xff]
      %v929 = vld [vmem:[%s334 + $0x30] sm:$0xff]
      %v930 = vld [vmem:[%s334 + $0x38] sm:$0xff]
      %v931 = vld [vmem:[%s334 + $0x48] sm:$0xff]
      %v932 = vld [vmem:[%s334 + $0x50] sm:$0xff]
      %v933 = vld [vmem:[%s334 + $0x60] sm:$0xff]
      %v934 = vld [vmem:[%s334 + $0x68] sm:$0xff]
      %v935 = vld [vmem:[%s334 + $0x78] sm:$0xff]
      %v936 = vld [vmem:[%s334 + $0x80] sm:$0xff]
      %v937 = vld [vmem:[%s334 + $0x90] sm:$0xff]
      %v938 = vld [vmem:[%s334 + $0x98] sm:$0xff]
      %v939 = vld [vmem:[%s334 + $0xa8] sm:$0xff]
      %v940 = vld [vmem:[%s334 + $0xb0] sm:$0xff]
      %v941 = vld [vmem:[%s334 + $0xc0] sm:$0xff]
      %v942 = vld [vmem:[%s334 + $0xc8] sm:$0xff]
      %v943 = vld [vmem:[%s334 + $0xd8] sm:$0xff]
      %v944 = vld [vmem:[%s334 + $0xe0] sm:$0xff]
      %v945 = vld [vmem:[%s334 + $0xf0] sm:$0xff]
      %v946 = vld [vmem:[%s334 + $0xf8] sm:$0xff]
      %v947 = vld [vmem:[%s334 + $0x108] sm:$0xff]
      %v948 = vld [vmem:[%s334 + $0x110] sm:$0xff]
      %v949 = vld [vmem:[%s334 + $0x120] sm:$0xff]
      %v950 = vld [vmem:[%s334 + $0x128] sm:$0xff]
      %v951 = vld [vmem:[%s334 + $0x138] sm:$0xff]
      %v952 = vld [vmem:[%s334 + $0x140] sm:$0xff]
      %v953 = vld [vmem:[%s334 + $0x150] sm:$0xff]
      %v954 = vld [vmem:[%s334 + $0x158] sm:$0xff]
      %v955 = vld [vmem:[%s334 + $0x168] sm:$0xff]
      %v956 = vld [vmem:[%s334 + $0x170] sm:$0xff]
      %v957 = vpack.c.bf16 %v926, %v925
      %v958 = vpack.c.bf16 %v928, %v927
      %v959 = vpack.c.bf16 %v930, %v929
      %v960 = vpack.c.bf16 %v932, %v931
      %v961 = vpack.c.bf16 %v934, %v933
      %v962 = vpack.c.bf16 %v936, %v935
      %v963 = vpack.c.bf16 %v938, %v937
      %v964 = vpack.c.bf16 %v940, %v939
      %v965 = vpack.c.bf16 %v942, %v941
      %v966 = vpack.c.bf16 %v944, %v943
      %v967 = vpack.c.bf16 %v946, %v945
      %v968 = vpack.c.bf16 %v948, %v947
      %v969 = vpack.c.bf16 %v950, %v949
      %v970 = vpack.c.bf16 %v952, %v951
      %v971 = vpack.c.bf16 %v954, %v953
      %v972 = vpack.c.bf16 %v956, %v955
      %v973 = vld [vmem:[%s3] sm:$0x3]
      %v975 = vsel %vm450, %v957, 0
      %v978 = vsel %vm450, %v958, 0
      %v981 = vsel %vm450, %v959, 0
      %v984 = vsel %vm450, %v960, 0
      %v987 = vsel %vm450, %v961, 0
      %v990 = vsel %vm450, %v962, 0
      %v993 = vsel %vm450, %v963, 0
      %v996 = vsel %vm450, %v964, 0
      %v999 = vsel %vm450, %v965, 0
      %v1002 = vsel %vm450, %v966, 0
      %v1005 = vsel %vm450, %v967, 0
      %v1008 = vsel %vm450, %v968, 0
      %v1011 = vsel %vm450, %v969, 0
      %v1014 = vsel %vm450, %v970, 0
      %v1017 = vsel %vm450, %v971, 0
      %v1020 = vsel %vm450, %v972, 0
      %v1023 = vsel %vm499, %v973, 0
      %1025 = vmatprep.subr.bf16.mxu0 0
      %1026 = vmatpush1.bf16.msra.mxu0 %v1023
      %1027 = vmatprep.subr.bf16.mxu0 0
      %1028 = vmatpush1.bf16.msra.mxu0 0
      %1029 = vmatprep.subr.bf16.mxu0 0
      %1030 = vmatpush1.bf16.msra.mxu0 0
      %1031 = vmatprep.subr.bf16.mxu0 0
      %1032 = vmatpush1.bf16.msra.mxu0 0
      %1033 = vmatprep.subr.bf16.mxu0 0
      %1034 = vmatpush1.bf16.msra.mxu0 0
      %1035 = vmatprep.subr.bf16.mxu0 0
      %1036 = vmatpush1.bf16.msra.mxu0 0
      %1037 = vmatprep.subr.bf16.mxu0 0
      %1038 = vmatpush1.bf16.msra.mxu0 0
      %1039 = vmatprep.subr.bf16.mxu0 0
      %1040 = vmatpush1.bf16.msra.mxu0 0
      %1041 = vmatprep.subr.bf16.mxu0 0
      %1042 = vmatpush1.bf16.msra.mxu0 0
      %1043 = vmatprep.subr.bf16.mxu0 0
      %1044 = vmatpush1.bf16.msra.mxu0 0
      %1045 = vmatprep.subr.bf16.mxu0 0
      %1046 = vmatpush1.bf16.msra.mxu0 0
      %1047 = vmatprep.subr.bf16.mxu0 0
      %1048 = vmatpush1.bf16.msra.mxu0 0
      %1049 = vmatprep.subr.bf16.mxu0 0
      %1050 = vmatpush1.bf16.msra.mxu0 0
      %1051 = vmatprep.subr.bf16.mxu0 0
      %1052 = vmatpush1.bf16.msra.mxu0 0
      %1053 = vmatprep.subr.bf16.mxu0 0
      %1054 = vmatpush1.bf16.msra.mxu0 0
      %1055 = vmatprep.subr.bf16.mxu0 0
      %1056 = vmatpush1.bf16.msra.mxu0 0
      %1057 = vmatprep.mubr.bf16.mxu0 0
      %1058 = vmatmul.mubr.bf16.gmra.mrb[0].mxu0 %v975
      %v1059 = vpop.f32.mrb[0].mxu0
      %v1060 = vadd.f32 0.0, %v1059
      %v1061 = vpop.f32.mrb[0].mxu0
      %v1062 = vpop.f32.mrb[0].mxu0
      %v1063 = vadd.f32 0.0, %v1062
      %v1064 = vpop.f32.mrb[0].mxu0
      %1065 = vmatprep.mubr.bf16.mxu0 0
      %1066 = vmatmul.mubr.bf16.gmra.mrb[0].mxu0 %v978
      %v1067 = vpop.f32.mrb[0].mxu0
      %v1068 = vadd.f32 0.0, %v1067
      %v1069 = vpop.f32.mrb[0].mxu0
      %v1070 = vpop.f32.mrb[0].mxu0
      %v1071 = vadd.f32 0.0, %v1070
      %v1072 = vpop.f32.mrb[0].mxu0
      %1073 = vmatprep.mubr.bf16.mxu0 0
      %1074 = vmatmul.mubr.bf16.gmra.mrb[0].mxu0 %v981
      %v1075 = vpop.f32.mrb[0].mxu0
      %v1076 = vadd.f32 0.0, %v1075
      %v1077 = vpop.f32.mrb[0].mxu0
      %v1078 = vpop.f32.mrb[0].mxu0
      %v1079 = vadd.f32 0.0, %v1078
      %v1080 = vpop.f32.mrb[0].mxu0
      %1081 = vmatprep.mubr.bf16.mxu0 0
      %1082 = vmatmul.mubr.bf16.gmra.mrb[0].mxu0 %v984
      %v1083 = vpop.f32.mrb[0].mxu0
      %v1084 = vadd.f32 0.0, %v1083
      %v1085 = vpop.f32.mrb[0].mxu0
      %v1086 = vpop.f32.mrb[0].mxu0
      %v1087 = vadd.f32 0.0, %v1086
      %v1088 = vpop.f32.mrb[0].mxu0
      %1089 = vmatprep.mubr.bf16.mxu0 0
      %1090 = vmatmul.mubr.bf16.gmra.mrb[0].mxu0 %v987
      %v1091 = vpop.f32.mrb[0].mxu0
      %v1092 = vadd.f32 0.0, %v1091
      %v1093 = vpop.f32.mrb[0].mxu0
      %v1094 = vpop.f32.mrb[0].mxu0
      %v1095 = vadd.f32 0.0, %v1094
      %v1096 = vpop.f32.mrb[0].mxu0
      %1097 = vmatprep.mubr.bf16.mxu0 0
      %1098 = vmatmul.mubr.bf16.gmra.mrb[0].mxu0 %v990
      %v1099 = vpop.f32.mrb[0].mxu0
      %v1100 = vadd.f32 0.0, %v1099
      %v1101 = vpop.f32.mrb[0].mxu0
      %v1102 = vpop.f32.mrb[0].mxu0
      %v1103 = vadd.f32 0.0, %v1102
      %v1104 = vpop.f32.mrb[0].mxu0
      %1105 = vmatprep.mubr.bf16.mxu0 0
      %1106 = vmatmul.mubr.bf16.gmra.mrb[0].mxu0 %v993
      %v1107 = vpop.f32.mrb[0].mxu0
      %v1108 = vadd.f32 0.0, %v1107
      %v1109 = vpop.f32.mrb[0].mxu0
      %v1110 = vpop.f32.mrb[0].mxu0
      %v1111 = vadd.f32 0.0, %v1110
      %v1112 = vpop.f32.mrb[0].mxu0
      %1113 = vmatprep.mubr.bf16.mxu0 0
      %1114 = vmatmul.mubr.bf16.gmra.mrb[0].mxu0 %v996
      %v1115 = vpop.f32.mrb[0].mxu0
      %v1116 = vadd.f32 0.0, %v1115
      %v1117 = vpop.f32.mrb[0].mxu0
      %v1118 = vpop.f32.mrb[0].mxu0
      %v1119 = vadd.f32 0.0, %v1118
      %v1120 = vpop.f32.mrb[0].mxu0
      %1121 = vmatprep.mubr.bf16.mxu0 0
      %1122 = vmatmul.mubr.bf16.gmra.mrb[0].mxu0 %v999
      %v1123 = vpop.f32.mrb[0].mxu0
      %v1124 = vadd.f32 0.0, %v1123
      %v1125 = vpop.f32.mrb[0].mxu0
      %v1126 = vpop.f32.mrb[0].mxu0
      %v1127 = vadd.f32 0.0, %v1126
      %v1128 = vpop.f32.mrb[0].mxu0
      %1129 = vmatprep.mubr.bf16.mxu0 0
      %1130 = vmatmul.mubr.bf16.gmra.mrb[0].mxu0 %v1002
      %v1131 = vpop.f32.mrb[0].mxu0
      %v1132 = vadd.f32 0.0, %v1131
      %v1133 = vpop.f32.mrb[0].mxu0
      %v1134 = vpop.f32.mrb[0].mxu0
      %v1135 = vadd.f32 0.0, %v1134
      %v1136 = vpop.f32.mrb[0].mxu0
      %1137 = vmatprep.mubr.bf16.mxu0 0
      %1138 = vmatmul.mubr.bf16.gmra.mrb[0].mxu0 %v1005
      %v1139 = vpop.f32.mrb[0].mxu0
      %v1140 = vadd.f32 0.0, %v1139
      %v1141 = vpop.f32.mrb[0].mxu0
      %v1142 = vpop.f32.mrb[0].mxu0
      %v1143 = vadd.f32 0.0, %v1142
      %v1144 = vpop.f32.mrb[0].mxu0
      %1145 = vmatprep.mubr.bf16.mxu0 0
      %1146 = vmatmul.mubr.bf16.gmra.mrb[0].mxu0 %v1008
      %v1147 = vpop.f32.mrb[0].mxu0
      %v1148 = vadd.f32 0.0, %v1147
      %v1149 = vpop.f32.mrb[0].mxu0
      %v1150 = vpop.f32.mrb[0].mxu0
      %v1151 = vadd.f32 0.0, %v1150
      %v1152 = vpop.f32.mrb[0].mxu0
      %1153 = vmatprep.mubr.bf16.mxu0 0
      %1154 = vmatmul.mubr.bf16.gmra.mrb[0].mxu0 %v1011
      %v1155 = vpop.f32.mrb[0].mxu0
      %v1156 = vadd.f32 0.0, %v1155
      %v1157 = vpop.f32.mrb[0].mxu0
      %v1158 = vpop.f32.mrb[0].mxu0
      %v1159 = vadd.f32 0.0, %v1158
      %v1160 = vpop.f32.mrb[0].mxu0
      %1161 = vmatprep.mubr.bf16.mxu0 0
      %1162 = vmatmul.mubr.bf16.gmra.mrb[0].mxu0 %v1014
      %v1163 = vpop.f32.mrb[0].mxu0
      %v1164 = vadd.f32 0.0, %v1163
      %v1165 = vpop.f32.mrb[0].mxu0
      %v1166 = vpop.f32.mrb[0].mxu0
      %v1167 = vadd.f32 0.0, %v1166
      %v1168 = vpop.f32.mrb[0].mxu0
      %1169 = vmatprep.mubr.bf16.mxu0 0
      %1170 = vmatmul.mubr.bf16.gmra.mrb[0].mxu0 %v1017
      %v1171 = vpop.f32.mrb[0].mxu0
      %v1172 = vadd.f32 0.0, %v1171
      %v1173 = vpop.f32.mrb[0].mxu0
      %v1174 = vpop.f32.mrb[0].mxu0
      %v1175 = vadd.f32 0.0, %v1174
      %v1176 = vpop.f32.mrb[0].mxu0
      %1177 = vmatprep.mubr.bf16.mxu0 0
      %1178 = vmatmul.mubr.bf16.gmra.mrb[0].mxu0 %v1020
      %v1179 = vpop.f32.mrb[0].mxu0
      %v1180 = vadd.f32 0.0, %v1179
      %v1181 = vpop.f32.mrb[0].mxu0
      %v1182 = vpop.f32.mrb[0].mxu0
      %v1183 = vadd.f32 0.0, %v1182
      %v1184 = vpop.f32.mrb[0].mxu0
      %1185 = vdwg.mxu0
      %v1187 = vsel %vm450, %v908, 0
      %v1190 = vsel %vm450, %v909, 0
      %v1193 = vsel %vm450, %v910, 0
      %v1196 = vsel %vm450, %v911, 0
      %v1199 = vsel %vm450, %v912, 0
      %v1202 = vsel %vm450, %v913, 0
      %v1205 = vsel %vm450, %v914, 0
      %v1208 = vsel %vm450, %v915, 0
      %v1211 = vsel %vm450, %v916, 0
      %v1214 = vsel %vm450, %v917, 0
      %v1217 = vsel %vm450, %v918, 0
      %v1220 = vsel %vm450, %v919, 0
      %v1223 = vsel %vm450, %v920, 0
      %v1226 = vsel %vm450, %v921, 0
      %v1229 = vsel %vm450, %v922, 0
      %v1232 = vsel %vm450, %v923, 0
      %v1235 = vsel %vm499, %v924, 0
      %1237 = vmatprep.subr.bf16.mxu0 0
      %1238 = vmatpush1.bf16.msra.mxu0 %v1235
      %1239 = vmatprep.subr.bf16.mxu0 0
      %1240 = vmatpush1.bf16.msra.mxu0 0
      %1241 = vmatprep.subr.bf16.mxu0 0
      %1242 = vmatpush1.bf16.msra.mxu0 0
      %1243 = vmatprep.subr.bf16.mxu0 0
      %1244 = vmatpush1.bf16.msra.mxu0 0
      %1245 = vmatprep.subr.bf16.mxu0 0
      %1246 = vmatpush1.bf16.msra.mxu0 0
      %1247 = vmatprep.subr.bf16.mxu0 0
      %1248 = vmatpush1.bf16.msra.mxu0 0
      %1249 = vmatprep.subr.bf16.mxu0 0
      %1250 = vmatpush1.bf16.msra.mxu0 0
      %1251 = vmatprep.subr.bf16.mxu0 0
      %1252 = vmatpush1.bf16.msra.mxu0 0
      %1253 = vmatprep.subr.bf16.mxu0 0
      %1254 = vmatpush1.bf16.msra.mxu0 0
      %1255 = vmatprep.subr.bf16.mxu0 0
      %1256 = vmatpush1.bf16.msra.mxu0 0
      %1257 = vmatprep.subr.bf16.mxu0 0
      %1258 = vmatpush1.bf16.msra.mxu0 0
      %1259 = vmatprep.subr.bf16.mxu0 0
      %1260 = vmatpush1.bf16.msra.mxu0 0
      %1261 = vmatprep.subr.bf16.mxu0 0
      %1262 = vmatpush1.bf16.msra.mxu0 0
      %1263 = vmatprep.subr.bf16.mxu0 0
      %1264 = vmatpush1.bf16.msra.mxu0 0
      %1265 = vmatprep.subr.bf16.mxu0 0
      %1266 = vmatpush1.bf16.msra.mxu0 0
      %1267 = vmatprep.subr.bf16.mxu0 0
      %1268 = vmatpush1.bf16.msra.mxu0 0
      %1269 = vmatprep.mubr.bf16.mxu0 0
      %1270 = vmatmul.mubr.bf16.gmra.mrb[0].mxu0 %v1187
      %v1271 = vpop.f32.mrb[0].mxu0
      %v1272 = vadd.f32 %v1060, %v1271
      %v1273 = vpop.f32.mrb[0].mxu0
      %v1274 = vpop.f32.mrb[0].mxu0
      %v1275 = vadd.f32 %v1063, %v1274
      %v1276 = vpop.f32.mrb[0].mxu0
      %1277 = vmatprep.mubr.bf16.mxu0 0
      %1278 = vmatmul.mubr.bf16.gmra.mrb[0].mxu0 %v1190
      %v1279 = vpop.f32.mrb[0].mxu0
      %v1280 = vadd.f32 %v1068, %v1279
      %v1281 = vpop.f32.mrb[0].mxu0
      %v1282 = vpop.f32.mrb[0].mxu0
      %v1283 = vadd.f32 %v1071, %v1282
      %v1284 = vpop.f32.mrb[0].mxu0
      %1285 = vmatprep.mubr.bf16.mxu0 0
      %1286 = vmatmul.mubr.bf16.gmra.mrb[0].mxu0 %v1193
      %v1287 = vpop.f32.mrb[0].mxu0
      %v1288 = vadd.f32 %v1076, %v1287
      %v1289 = vpop.f32.mrb[0].mxu0
      %v1290 = vpop.f32.mrb[0].mxu0
      %v1291 = vadd.f32 %v1079, %v1290
      %v1292 = vpop.f32.mrb[0].mxu0
      %1293 = vmatprep.mubr.bf16.mxu0 0
      %1294 = vmatmul.mubr.bf16.gmra.mrb[0].mxu0 %v1196
      %v1295 = vpop.f32.mrb[0].mxu0
      %v1296 = vadd.f32 %v1084, %v1295
      %v1297 = vpop.f32.mrb[0].mxu0
      %v1298 = vpop.f32.mrb[0].mxu0
      %v1299 = vadd.f32 %v1087, %v1298
      %v1300 = vpop.f32.mrb[0].mxu0
      %1301 = vmatprep.mubr.bf16.mxu0 0
      %1302 = vmatmul.mubr.bf16.gmra.mrb[0].mxu0 %v1199
      %v1303 = vpop.f32.mrb[0].mxu0
      %v1304 = vadd.f32 %v1092, %v1303
      %v1305 = vpop.f32.mrb[0].mxu0
      %v1306 = vpop.f32.mrb[0].mxu0
      %v1307 = vadd.f32 %v1095, %v1306
      %v1308 = vpop.f32.mrb[0].mxu0
      %1309 = vmatprep.mubr.bf16.mxu0 0
      %1310 = vmatmul.mubr.bf16.gmra.mrb[0].mxu0 %v1202
      %v1311 = vpop.f32.mrb[0].mxu0
      %v1312 = vadd.f32 %v1100, %v1311
      %v1313 = vpop.f32.mrb[0].mxu0
      %v1314 = vpop.f32.mrb[0].mxu0
      %v1315 = vadd.f32 %v1103, %v1314
      %v1316 = vpop.f32.mrb[0].mxu0
      %1317 = vmatprep.mubr.bf16.mxu0 0
      %1318 = vmatmul.mubr.bf16.gmra.mrb[0].mxu0 %v1205
      %v1319 = vpop.f32.mrb[0].mxu0
      %v1320 = vadd.f32 %v1108, %v1319
      %v1321 = vpop.f32.mrb[0].mxu0
      %v1322 = vpop.f32.mrb[0].mxu0
      %v1323 = vadd.f32 %v1111, %v1322
      %v1324 = vpop.f32.mrb[0].mxu0
      %1325 = vmatprep.mubr.bf16.mxu0 0
      %1326 = vmatmul.mubr.bf16.gmra.mrb[0].mxu0 %v1208
      %v1327 = vpop.f32.mrb[0].mxu0
      %v1328 = vadd.f32 %v1116, %v1327
      %v1329 = vpop.f32.mrb[0].mxu0
      %v1330 = vpop.f32.mrb[0].mxu0
      %v1331 = vadd.f32 %v1119, %v1330
      %v1332 = vpop.f32.mrb[0].mxu0
      %1333 = vmatprep.mubr.bf16.mxu0 0
      %1334 = vmatmul.mubr.bf16.gmra.mrb[0].mxu0 %v1211
      %v1335 = vpop.f32.mrb[0].mxu0
      %v1336 = vadd.f32 %v1124, %v1335
      %v1337 = vpop.f32.mrb[0].mxu0
      %v1338 = vpop.f32.mrb[0].mxu0
      %v1339 = vadd.f32 %v1127, %v1338
      %v1340 = vpop.f32.mrb[0].mxu0
      %1341 = vmatprep.mubr.bf16.mxu0 0
      %1342 = vmatmul.mubr.bf16.gmra.mrb[0].mxu0 %v1214
      %v1343 = vpop.f32.mrb[0].mxu0
      %v1344 = vadd.f32 %v1132, %v1343
      %v1345 = vpop.f32.mrb[0].mxu0
      %v1346 = vpop.f32.mrb[0].mxu0
      %v1347 = vadd.f32 %v1135, %v1346
      %v1348 = vpop.f32.mrb[0].mxu0
      %1349 = vmatprep.mubr.bf16.mxu0 0
      %1350 = vmatmul.mubr.bf16.gmra.mrb[0].mxu0 %v1217
      %v1351 = vpop.f32.mrb[0].mxu0
      %v1352 = vadd.f32 %v1140, %v1351
      %v1353 = vpop.f32.mrb[0].mxu0
      %v1354 = vpop.f32.mrb[0].mxu0
      %v1355 = vadd.f32 %v1143, %v1354
      %v1356 = vpop.f32.mrb[0].mxu0
      %1357 = vmatprep.mubr.bf16.mxu0 0
      %1358 = vmatmul.mubr.bf16.gmra.mrb[0].mxu0 %v1220
      %v1359 = vpop.f32.mrb[0].mxu0
      %v1360 = vadd.f32 %v1148, %v1359
      %v1361 = vpop.f32.mrb[0].mxu0
      %v1362 = vpop.f32.mrb[0].mxu0
      %v1363 = vadd.f32 %v1151, %v1362
      %v1364 = vpop.f32.mrb[0].mxu0
      %1365 = vmatprep.mubr.bf16.mxu0 0
      %1366 = vmatmul.mubr.bf16.gmra.mrb[0].mxu0 %v1223
      %v1367 = vpop.f32.mrb[0].mxu0
      %v1368 = vadd.f32 %v1156, %v1367
      %v1369 = vpop.f32.mrb[0].mxu0
      %v1370 = vpop.f32.mrb[0].mxu0
      %v1371 = vadd.f32 %v1159, %v1370
      %v1372 = vpop.f32.mrb[0].mxu0
      %1373 = vmatprep.mubr.bf16.mxu0 0
      %1374 = vmatmul.mubr.bf16.gmra.mrb[0].mxu0 %v1226
      %v1375 = vpop.f32.mrb[0].mxu0
      %v1376 = vadd.f32 %v1164, %v1375
      %v1377 = vpop.f32.mrb[0].mxu0
      %v1378 = vpop.f32.mrb[0].mxu0
      %v1379 = vadd.f32 %v1167, %v1378
      %v1380 = vpop.f32.mrb[0].mxu0
      %1381 = vmatprep.mubr.bf16.mxu0 0
      %1382 = vmatmul.mubr.bf16.gmra.mrb[0].mxu0 %v1229
      %v1383 = vpop.f32.mrb[0].mxu0
      %v1384 = vadd.f32 %v1172, %v1383
      %v1385 = vpop.f32.mrb[0].mxu0
      %v1386 = vpop.f32.mrb[0].mxu0
      %v1387 = vadd.f32 %v1175, %v1386
      %v1388 = vpop.f32.mrb[0].mxu0
      %1389 = vmatprep.mubr.bf16.mxu0 0
      %1390 = vmatmul.mubr.bf16.gmra.mrb[0].mxu0 %v1232
      %v1391 = vpop.f32.mrb[0].mxu0
      %v1392 = vadd.f32 %v1180, %v1391
      %v1393 = vpop.f32.mrb[0].mxu0
      %v1394 = vpop.f32.mrb[0].mxu0
      %v1395 = vadd.f32 %v1183, %v1394
      %v1396 = vpop.f32.mrb[0].mxu0
      %1397 = vdwg.mxu0
      %v1398 = vld [vmem:[%s329 + $0x1] sm:$0xff]
      %v1399 = vld [vmem:[%s329 + $0x9] sm:$0xff]
      %v1400 = vld [vmem:[%s329 + $0x19] sm:$0xff]
      %v1401 = vld [vmem:[%s329 + $0x21] sm:$0xff]
      %v1402 = vld [vmem:[%s329 + $0x31] sm:$0xff]
      %v1403 = vld [vmem:[%s329 + $0x39] sm:$0xff]
      %v1404 = vld [vmem:[%s329 + $0x49] sm:$0xff]
      %v1405 = vld [vmem:[%s329 + $0x51] sm:$0xff]
      %v1406 = vld [vmem:[%s329 + $0x61] sm:$0xff]
      %v1407 = vld [vmem:[%s329 + $0x69] sm:$0xff]
      %v1408 = vld [vmem:[%s329 + $0x79] sm:$0xff]
      %v1409 = vld [vmem:[%s329 + $0x81] sm:$0xff]
      %v1410 = vld [vmem:[%s329 + $0x91] sm:$0xff]
      %v1411 = vld [vmem:[%s329 + $0x99] sm:$0xff]
      %v1412 = vld [vmem:[%s329 + $0xa9] sm:$0xff]
      %v1413 = vld [vmem:[%s329 + $0xb1] sm:$0xff]
      %v1414 = vld [vmem:[%s329 + $0xc1] sm:$0xff]
      %v1415 = vld [vmem:[%s329 + $0xc9] sm:$0xff]
      %v1416 = vld [vmem:[%s329 + $0xd9] sm:$0xff]
      %v1417 = vld [vmem:[%s329 + $0xe1] sm:$0xff]
      %v1418 = vld [vmem:[%s329 + $0xf1] sm:$0xff]
      %v1419 = vld [vmem:[%s329 + $0xf9] sm:$0xff]
      %v1420 = vld [vmem:[%s329 + $0x109] sm:$0xff]
      %v1421 = vld [vmem:[%s329 + $0x111] sm:$0xff]
      %v1422 = vld [vmem:[%s329 + $0x121] sm:$0xff]
      %v1423 = vld [vmem:[%s329 + $0x129] sm:$0xff]
      %v1424 = vld [vmem:[%s329 + $0x139] sm:$0xff]
      %v1425 = vld [vmem:[%s329 + $0x141] sm:$0xff]
      %v1426 = vld [vmem:[%s329 + $0x151] sm:$0xff]
      %v1427 = vld [vmem:[%s329 + $0x159] sm:$0xff]
      %v1428 = vld [vmem:[%s329 + $0x169] sm:$0xff]
      %v1429 = vld [vmem:[%s329 + $0x171] sm:$0xff]
      %v1430 = vpack.c.bf16 %v1399, %v1398
      %v1431 = vpack.c.bf16 %v1401, %v1400
      %v1432 = vpack.c.bf16 %v1403, %v1402
      %v1433 = vpack.c.bf16 %v1405, %v1404
      %v1434 = vpack.c.bf16 %v1407, %v1406
      %v1435 = vpack.c.bf16 %v1409, %v1408
      %v1436 = vpack.c.bf16 %v1411, %v1410
      %v1437 = vpack.c.bf16 %v1413, %v1412
      %v1438 = vpack.c.bf16 %v1415, %v1414
      %v1439 = vpack.c.bf16 %v1417, %v1416
      %v1440 = vpack.c.bf16 %v1419, %v1418
      %v1441 = vpack.c.bf16 %v1421, %v1420
      %v1442 = vpack.c.bf16 %v1423, %v1422
      %v1443 = vpack.c.bf16 %v1425, %v1424
      %v1444 = vpack.c.bf16 %v1427, %v1426
      %v1445 = vpack.c.bf16 %v1429, %v1428
      %s1446 = scalar_lea.vmem %s2, 2
      %v1447 = vld [vmem:[%s1446] sm:$0x3]
      %v1449 = vsel %vm450, %v1430, 0
      %v1452 = vsel %vm450, %v1431, 0
      %v1455 = vsel %vm450, %v1432, 0
      %v1458 = vsel %vm450, %v1433, 0
      %v1461 = vsel %vm450, %v1434, 0
      %v1464 = vsel %vm450, %v1435, 0
      %v1467 = vsel %vm450, %v1436, 0
      %v1470 = vsel %vm450, %v1437, 0
      %v1473 = vsel %vm450, %v1438, 0
      %v1476 = vsel %vm450, %v1439, 0
      %v1479 = vsel %vm450, %v1440, 0
      %v1482 = vsel %vm450, %v1441, 0
      %v1485 = vsel %vm450, %v1442, 0
      %v1488 = vsel %vm450, %v1443, 0
      %v1491 = vsel %vm450, %v1444, 0
      %v1494 = vsel %vm450, %v1445, 0
      %v1497 = vsel %vm499, %v1447, 0
      %1499 = vmatprep.subr.bf16.mxu0 0
      %1500 = vmatpush1.bf16.msra.mxu0 %v1497
      %1501 = vmatprep.subr.bf16.mxu0 0
      %1502 = vmatpush1.bf16.msra.mxu0 0
      %1503 = vmatprep.subr.bf16.mxu0 0
      %1504 = vmatpush1.bf16.msra.mxu0 0
      %1505 = vmatprep.subr.bf16.mxu0 0
      %1506 = vmatpush1.bf16.msra.mxu0 0
      %1507 = vmatprep.subr.bf16.mxu0 0
      %1508 = vmatpush1.bf16.msra.mxu0 0
      %1509 = vmatprep.subr.bf16.mxu0 0
      %1510 = vmatpush1.bf16.msra.mxu0 0
      %1511 = vmatprep.subr.bf16.mxu0 0
      %1512 = vmatpush1.bf16.msra.mxu0 0
      %1513 = vmatprep.subr.bf16.mxu0 0
      %1514 = vmatpush1.bf16.msra.mxu0 0
      %1515 = vmatprep.subr.bf16.mxu0 0
      %1516 = vmatpush1.bf16.msra.mxu0 0
      %1517 = vmatprep.subr.bf16.mxu0 0
      %1518 = vmatpush1.bf16.msra.mxu0 0
      %1519 = vmatprep.subr.bf16.mxu0 0
      %1520 = vmatpush1.bf16.msra.mxu0 0
      %1521 = vmatprep.subr.bf16.mxu0 0
      %1522 = vmatpush1.bf16.msra.mxu0 0
      %1523 = vmatprep.subr.bf16.mxu0 0
      %1524 = vmatpush1.bf16.msra.mxu0 0
      %1525 = vmatprep.subr.bf16.mxu0 0
      %1526 = vmatpush1.bf16.msra.mxu0 0
      %1527 = vmatprep.subr.bf16.mxu0 0
      %1528 = vmatpush1.bf16.msra.mxu0 0
      %1529 = vmatprep.subr.bf16.mxu0 0
      %1530 = vmatpush1.bf16.msra.mxu0 0
      %1531 = vmatprep.mubr.bf16.mxu0 0
      %1532 = vmatmul.mubr.bf16.gmra.mrb[0].mxu0 %v1449
      %v1533 = vpop.f32.mrb[0].mxu0
      %v1534 = vadd.f32 0.0, %v1533
      %v1535 = vpop.f32.mrb[0].mxu0
      %v1536 = vpop.f32.mrb[0].mxu0
      %v1537 = vadd.f32 0.0, %v1536
      %v1538 = vpop.f32.mrb[0].mxu0
      %1539 = vmatprep.mubr.bf16.mxu0 0
      %1540 = vmatmul.mubr.bf16.gmra.mrb[0].mxu0 %v1452
      %v1541 = vpop.f32.mrb[0].mxu0
      %v1542 = vadd.f32 0.0, %v1541
      %v1543 = vpop.f32.mrb[0].mxu0
      %v1544 = vpop.f32.mrb[0].mxu0
      %v1545 = vadd.f32 0.0, %v1544
      %v1546 = vpop.f32.mrb[0].mxu0
      %1547 = vmatprep.mubr.bf16.mxu0 0
      %1548 = vmatmul.mubr.bf16.gmra.mrb[0].mxu0 %v1455
      %v1549 = vpop.f32.mrb[0].mxu0
      %v1550 = vadd.f32 0.0, %v1549
      %v1551 = vpop.f32.mrb[0].mxu0
      %v1552 = vpop.f32.mrb[0].mxu0
      %v1553 = vadd.f32 0.0, %v1552
      %v1554 = vpop.f32.mrb[0].mxu0
      %1555 = vmatprep.mubr.bf16.mxu0 0
      %1556 = vmatmul.mubr.bf16.gmra.mrb[0].mxu0 %v1458
      %v1557 = vpop.f32.mrb[0].mxu0
      %v1558 = vadd.f32 0.0, %v1557
      %v1559 = vpop.f32.mrb[0].mxu0
      %v1560 = vpop.f32.mrb[0].mxu0
      %v1561 = vadd.f32 0.0, %v1560
      %v1562 = vpop.f32.mrb[0].mxu0
      %1563 = vmatprep.mubr.bf16.mxu0 0
      %1564 = vmatmul.mubr.bf16.gmra.mrb[0].mxu0 %v1461
      %v1565 = vpop.f32.mrb[0].mxu0
      %v1566 = vadd.f32 0.0, %v1565
      %v1567 = vpop.f32.mrb[0].mxu0
      %v1568 = vpop.f32.mrb[0].mxu0
      %v1569 = vadd.f32 0.0, %v1568
      %v1570 = vpop.f32.mrb[0].mxu0
      %1571 = vmatprep.mubr.bf16.mxu0 0
      %1572 = vmatmul.mubr.bf16.gmra.mrb[0].mxu0 %v1464
      %v1573 = vpop.f32.mrb[0].mxu0
      %v1574 = vadd.f32 0.0, %v1573
      %v1575 = vpop.f32.mrb[0].mxu0
      %v1576 = vpop.f32.mrb[0].mxu0
      %v1577 = vadd.f32 0.0, %v1576
      %v1578 = vpop.f32.mrb[0].mxu0
      %1579 = vmatprep.mubr.bf16.mxu0 0
      %1580 = vmatmul.mubr.bf16.gmra.mrb[0].mxu0 %v1467
      %v1581 = vpop.f32.mrb[0].mxu0
      %v1582 = vadd.f32 0.0, %v1581
      %v1583 = vpop.f32.mrb[0].mxu0
      %v1584 = vpop.f32.mrb[0].mxu0
      %v1585 = vadd.f32 0.0, %v1584
      %v1586 = vpop.f32.mrb[0].mxu0
      %1587 = vmatprep.mubr.bf16.mxu0 0
      %1588 = vmatmul.mubr.bf16.gmra.mrb[0].mxu0 %v1470
      %v1589 = vpop.f32.mrb[0].mxu0
      %v1590 = vadd.f32 0.0, %v1589
      %v1591 = vpop.f32.mrb[0].mxu0
      %v1592 = vpop.f32.mrb[0].mxu0
      %v1593 = vadd.f32 0.0, %v1592
      %v1594 = vpop.f32.mrb[0].mxu0
      %1595 = vmatprep.mubr.bf16.mxu0 0
      %1596 = vmatmul.mubr.bf16.gmra.mrb[0].mxu0 %v1473
      %v1597 = vpop.f32.mrb[0].mxu0
      %v1598 = vadd.f32 0.0, %v1597
      %v1599 = vpop.f32.mrb[0].mxu0
      %v1600 = vpop.f32.mrb[0].mxu0
      %v1601 = vadd.f32 0.0, %v1600
      %v1602 = vpop.f32.mrb[0].mxu0
      %1603 = vmatprep.mubr.bf16.mxu0 0
      %1604 = vmatmul.mubr.bf16.gmra.mrb[0].mxu0 %v1476
      %v1605 = vpop.f32.mrb[0].mxu0
      %v1606 = vadd.f32 0.0, %v1605
      %v1607 = vpop.f32.mrb[0].mxu0
      %v1608 = vpop.f32.mrb[0].mxu0
      %v1609 = vadd.f32 0.0, %v1608
      %v1610 = vpop.f32.mrb[0].mxu0
      %1611 = vmatprep.mubr.bf16.mxu0 0
      %1612 = vmatmul.mubr.bf16.gmra.mrb[0].mxu0 %v1479
      %v1613 = vpop.f32.mrb[0].mxu0
      %v1614 = vadd.f32 0.0, %v1613
      %v1615 = vpop.f32.mrb[0].mxu0
      %v1616 = vpop.f32.mrb[0].mxu0
      %v1617 = vadd.f32 0.0, %v1616
      %v1618 = vpop.f32.mrb[0].mxu0
      %1619 = vmatprep.mubr.bf16.mxu0 0
      %1620 = vmatmul.mubr.bf16.gmra.mrb[0].mxu0 %v1482
      %v1621 = vpop.f32.mrb[0].mxu0
      %v1622 = vadd.f32 0.0, %v1621
      %v1623 = vpop.f32.mrb[0].mxu0
      %v1624 = vpop.f32.mrb[0].mxu0
      %v1625 = vadd.f32 0.0, %v1624
      %v1626 = vpop.f32.mrb[0].mxu0
      %1627 = vmatprep.mubr.bf16.mxu0 0
      %1628 = vmatmul.mubr.bf16.gmra.mrb[0].mxu0 %v1485
      %v1629 = vpop.f32.mrb[0].mxu0
      %v1630 = vadd.f32 0.0, %v1629
      %v1631 = vpop.f32.mrb[0].mxu0
      %v1632 = vpop.f32.mrb[0].mxu0
      %v1633 = vadd.f32 0.0, %v1632
      %v1634 = vpop.f32.mrb[0].mxu0
      %1635 = vmatprep.mubr.bf16.mxu0 0
      %1636 = vmatmul.mubr.bf16.gmra.mrb[0].mxu0 %v1488
      %v1637 = vpop.f32.mrb[0].mxu0
      %v1638 = vadd.f32 0.0, %v1637
      %v1639 = vpop.f32.mrb[0].mxu0
      %v1640 = vpop.f32.mrb[0].mxu0
      %v1641 = vadd.f32 0.0, %v1640
      %v1642 = vpop.f32.mrb[0].mxu0
      %1643 = vmatprep.mubr.bf16.mxu0 0
      %1644 = vmatmul.mubr.bf16.gmra.mrb[0].mxu0 %v1491
      %v1645 = vpop.f32.mrb[0].mxu0
      %v1646 = vadd.f32 0.0, %v1645
      %v1647 = vpop.f32.mrb[0].mxu0
      %v1648 = vpop.f32.mrb[0].mxu0
      %v1649 = vadd.f32 0.0, %v1648
      %v1650 = vpop.f32.mrb[0].mxu0
      %1651 = vmatprep.mubr.bf16.mxu0 0
      %1652 = vmatmul.mubr.bf16.gmra.mrb[0].mxu0 %v1494
      %v1653 = vpop.f32.mrb[0].mxu0
      %v1654 = vadd.f32 0.0, %v1653
      %v1655 = vpop.f32.mrb[0].mxu0
      %v1656 = vpop.f32.mrb[0].mxu0
      %v1657 = vadd.f32 0.0, %v1656
      %v1658 = vpop.f32.mrb[0].mxu0
      %1659 = vdwg.mxu0
      %v1660 = vadd.f32 %v1272, %v1534
      %v1661 = vadd.f32 %v1275, %v1537
      %v1662 = vadd.f32 %v1280, %v1542
      %v1663 = vadd.f32 %v1283, %v1545
      %v1664 = vadd.f32 %v1288, %v1550
      %v1665 = vadd.f32 %v1291, %v1553
      %v1666 = vadd.f32 %v1296, %v1558
      %v1667 = vadd.f32 %v1299, %v1561
      %v1668 = vadd.f32 %v1304, %v1566
      %v1669 = vadd.f32 %v1307, %v1569
      %v1670 = vadd.f32 %v1312, %v1574
      %v1671 = vadd.f32 %v1315, %v1577
      %v1672 = vadd.f32 %v1320, %v1582
      %v1673 = vadd.f32 %v1323, %v1585
      %v1674 = vadd.f32 %v1328, %v1590
      %v1675 = vadd.f32 %v1331, %v1593
      %v1676 = vadd.f32 %v1336, %v1598
      %v1677 = vadd.f32 %v1339, %v1601
      %v1678 = vadd.f32 %v1344, %v1606
      %v1679 = vadd.f32 %v1347, %v1609
      %v1680 = vadd.f32 %v1352, %v1614
      %v1681 = vadd.f32 %v1355, %v1617
      %v1682 = vadd.f32 %v1360, %v1622
      %v1683 = vadd.f32 %v1363, %v1625
      %v1684 = vadd.f32 %v1368, %v1630
      %v1685 = vadd.f32 %v1371, %v1633
      %v1686 = vadd.f32 %v1376, %v1638
      %v1687 = vadd.f32 %v1379, %v1641
      %v1688 = vadd.f32 %v1384, %v1646
      %v1689 = vadd.f32 %v1387, %v1649
      %v1690 = vadd.f32 %v1392, %v1654
      %v1691 = vadd.f32 %v1395, %v1657
      %v1692 = vld [vmem:[%s334 + $0x1] sm:$0xff]
      %v1693 = vld [vmem:[%s334 + $0x9] sm:$0xff]
      %v1694 = vld [vmem:[%s334 + $0x19] sm:$0xff]
      %v1695 = vld [vmem:[%s334 + $0x21] sm:$0xff]
      %v1696 = vld [vmem:[%s334 + $0x31] sm:$0xff]
      %v1697 = vld [vmem:[%s334 + $0x39] sm:$0xff]
      %v1698 = vld [vmem:[%s334 + $0x49] sm:$0xff]
      %v1699 = vld [vmem:[%s334 + $0x51] sm:$0xff]
      %v1700 = vld [vmem:[%s334 + $0x61] sm:$0xff]
      %v1701 = vld [vmem:[%s334 + $0x69] sm:$0xff]
      %v1702 = vld [vmem:[%s334 + $0x79] sm:$0xff]
      %v1703 = vld [vmem:[%s334 + $0x81] sm:$0xff]
      %v1704 = vld [vmem:[%s334 + $0x91] sm:$0xff]
      %v1705 = vld [vmem:[%s334 + $0x99] sm:$0xff]
      %v1706 = vld [vmem:[%s334 + $0xa9] sm:$0xff]
      %v1707 = vld [vmem:[%s334 + $0xb1] sm:$0xff]
      %v1708 = vld [vmem:[%s334 + $0xc1] sm:$0xff]
      %v1709 = vld [vmem:[%s334 + $0xc9] sm:$0xff]
      %v1710 = vld [vmem:[%s334 + $0xd9] sm:$0xff]
      %v1711 = vld [vmem:[%s334 + $0xe1] sm:$0xff]
      %v1712 = vld [vmem:[%s334 + $0xf1] sm:$0xff]
      %v1713 = vld [vmem:[%s334 + $0xf9] sm:$0xff]
      %v1714 = vld [vmem:[%s334 + $0x109] sm:$0xff]
      %v1715 = vld [vmem:[%s334 + $0x111] sm:$0xff]
      %v1716 = vld [vmem:[%s334 + $0x121] sm:$0xff]
      %v1717 = vld [vmem:[%s334 + $0x129] sm:$0xff]
      %v1718 = vld [vmem:[%s334 + $0x139] sm:$0xff]
      %v1719 = vld [vmem:[%s334 + $0x141] sm:$0xff]
      %v1720 = vld [vmem:[%s334 + $0x151] sm:$0xff]
      %v1721 = vld [vmem:[%s334 + $0x159] sm:$0xff]
      %v1722 = vld [vmem:[%s334 + $0x169] sm:$0xff]
      %v1723 = vld [vmem:[%s334 + $0x171] sm:$0xff]
      %v1724 = vpack.c.bf16 %v1693, %v1692
      %v1725 = vpack.c.bf16 %v1695, %v1694
      %v1726 = vpack.c.bf16 %v1697, %v1696
      %v1727 = vpack.c.bf16 %v1699, %v1698
      %v1728 = vpack.c.bf16 %v1701, %v1700
      %v1729 = vpack.c.bf16 %v1703, %v1702
      %v1730 = vpack.c.bf16 %v1705, %v1704
      %v1731 = vpack.c.bf16 %v1707, %v1706
      %v1732 = vpack.c.bf16 %v1709, %v1708
      %v1733 = vpack.c.bf16 %v1711, %v1710
      %v1734 = vpack.c.bf16 %v1713, %v1712
      %v1735 = vpack.c.bf16 %v1715, %v1714
      %v1736 = vpack.c.bf16 %v1717, %v1716
      %v1737 = vpack.c.bf16 %v1719, %v1718
      %v1738 = vpack.c.bf16 %v1721, %v1720
      %v1739 = vpack.c.bf16 %v1723, %v1722
      %s1740 = scalar_lea.vmem %s3, 2
      %v1741 = vld [vmem:[%s1740] sm:$0x3]
      %v1743 = vsel %vm450, %v1724, 0
      %v1746 = vsel %vm450, %v1725, 0
      %v1749 = vsel %vm450, %v1726, 0
      %v1752 = vsel %vm450, %v1727, 0
      %v1755 = vsel %vm450, %v1728, 0
      %v1758 = vsel %vm450, %v1729, 0
      %v1761 = vsel %vm450, %v1730, 0
      %v1764 = vsel %vm450, %v1731, 0
      %v1767 = vsel %vm450, %v1732, 0
      %v1770 = vsel %vm450, %v1733, 0
      %v1773 = vsel %vm450, %v1734, 0
      %v1776 = vsel %vm450, %v1735, 0
      %v1779 = vsel %vm450, %v1736, 0
      %v1782 = vsel %vm450, %v1737, 0
      %v1785 = vsel %vm450, %v1738, 0
      %v1788 = vsel %vm450, %v1739, 0
      %v1791 = vsel %vm499, %v1741, 0
      %1793 = vmatprep.subr.bf16.mxu0 0
      %1794 = vmatpush1.bf16.msra.mxu0 %v1791
      %1795 = vmatprep.subr.bf16.mxu0 0
      %1796 = vmatpush1.bf16.msra.mxu0 0
      %1797 = vmatprep.subr.bf16.mxu0 0
      %1798 = vmatpush1.bf16.msra.mxu0 0
      %1799 = vmatprep.subr.bf16.mxu0 0
      %1800 = vmatpush1.bf16.msra.mxu0 0
      %1801 = vmatprep.subr.bf16.mxu0 0
      %1802 = vmatpush1.bf16.msra.mxu0 0
      %1803 = vmatprep.subr.bf16.mxu0 0
      %1804 = vmatpush1.bf16.msra.mxu0 0
      %1805 = vmatprep.subr.bf16.mxu0 0
      %1806 = vmatpush1.bf16.msra.mxu0 0
      %1807 = vmatprep.subr.bf16.mxu0 0
      %1808 = vmatpush1.bf16.msra.mxu0 0
      %1809 = vmatprep.subr.bf16.mxu0 0
      %1810 = vmatpush1.bf16.msra.mxu0 0
      %1811 = vmatprep.subr.bf16.mxu0 0
      %1812 = vmatpush1.bf16.msra.mxu0 0
      %1813 = vmatprep.subr.bf16.mxu0 0
      %1814 = vmatpush1.bf16.msra.mxu0 0
      %1815 = vmatprep.subr.bf16.mxu0 0
      %1816 = vmatpush1.bf16.msra.mxu0 0
      %1817 = vmatprep.subr.bf16.mxu0 0
      %1818 = vmatpush1.bf16.msra.mxu0 0
      %1819 = vmatprep.subr.bf16.mxu0 0
      %1820 = vmatpush1.bf16.msra.mxu0 0
      %1821 = vmatprep.subr.bf16.mxu0 0
      %1822 = vmatpush1.bf16.msra.mxu0 0
      %1823 = vmatprep.subr.bf16.mxu0 0
      %1824 = vmatpush1.bf16.msra.mxu0 0
      %1825 = vmatprep.mubr.bf16.mxu0 0
      %1826 = vmatmul.mubr.bf16.gmra.mrb[0].mxu0 %v1743
      %v1827 = vpop.f32.mrb[0].mxu0
      %v1828 = vadd.f32 0.0, %v1827
      %v1829 = vpop.f32.mrb[0].mxu0
      %v1830 = vpop.f32.mrb[0].mxu0
      %v1831 = vadd.f32 0.0, %v1830
      %v1832 = vpop.f32.mrb[0].mxu0
      %1833 = vmatprep.mubr.bf16.mxu0 0
      %1834 = vmatmul.mubr.bf16.gmra.mrb[0].mxu0 %v1746
      %v1835 = vpop.f32.mrb[0].mxu0
      %v1836 = vadd.f32 0.0, %v1835
      %v1837 = vpop.f32.mrb[0].mxu0
      %v1838 = vpop.f32.mrb[0].mxu0
      %v1839 = vadd.f32 0.0, %v1838
      %v1840 = vpop.f32.mrb[0].mxu0
      %1841 = vmatprep.mubr.bf16.mxu0 0
      %1842 = vmatmul.mubr.bf16.gmra.mrb[0].mxu0 %v1749
      %v1843 = vpop.f32.mrb[0].mxu0
      %v1844 = vadd.f32 0.0, %v1843
      %v1845 = vpop.f32.mrb[0].mxu0
      %v1846 = vpop.f32.mrb[0].mxu0
      %v1847 = vadd.f32 0.0, %v1846
      %v1848 = vpop.f32.mrb[0].mxu0
      %1849 = vmatprep.mubr.bf16.mxu0 0
      %1850 = vmatmul.mubr.bf16.gmra.mrb[0].mxu0 %v1752
      %v1851 = vpop.f32.mrb[0].mxu0
      %v1852 = vadd.f32 0.0, %v1851
      %v1853 = vpop.f32.mrb[0].mxu0
      %v1854 = vpop.f32.mrb[0].mxu0
      %v1855 = vadd.f32 0.0, %v1854
      %v1856 = vpop.f32.mrb[0].mxu0
      %1857 = vmatprep.mubr.bf16.mxu0 0
      %1858 = vmatmul.mubr.bf16.gmra.mrb[0].mxu0 %v1755
      %v1859 = vpop.f32.mrb[0].mxu0
      %v1860 = vadd.f32 0.0, %v1859
      %v1861 = vpop.f32.mrb[0].mxu0
      %v1862 = vpop.f32.mrb[0].mxu0
      %v1863 = vadd.f32 0.0, %v1862
      %v1864 = vpop.f32.mrb[0].mxu0
      %1865 = vmatprep.mubr.bf16.mxu0 0
      %1866 = vmatmul.mubr.bf16.gmra.mrb[0].mxu0 %v1758
      %v1867 = vpop.f32.mrb[0].mxu0
      %v1868 = vadd.f32 0.0, %v1867
      %v1869 = vpop.f32.mrb[0].mxu0
      %v1870 = vpop.f32.mrb[0].mxu0
      %v1871 = vadd.f32 0.0, %v1870
      %v1872 = vpop.f32.mrb[0].mxu0
      %1873 = vmatprep.mubr.bf16.mxu0 0
      %1874 = vmatmul.mubr.bf16.gmra.mrb[0].mxu0 %v1761
      %v1875 = vpop.f32.mrb[0].mxu0
      %v1876 = vadd.f32 0.0, %v1875
      %v1877 = vpop.f32.mrb[0].mxu0
      %v1878 = vpop.f32.mrb[0].mxu0
      %v1879 = vadd.f32 0.0, %v1878
      %v1880 = vpop.f32.mrb[0].mxu0
      %1881 = vmatprep.mubr.bf16.mxu0 0
      %1882 = vmatmul.mubr.bf16.gmra.mrb[0].mxu0 %v1764
      %v1883 = vpop.f32.mrb[0].mxu0
      %v1884 = vadd.f32 0.0, %v1883
      %v1885 = vpop.f32.mrb[0].mxu0
      %v1886 = vpop.f32.mrb[0].mxu0
      %v1887 = vadd.f32 0.0, %v1886
      %v1888 = vpop.f32.mrb[0].mxu0
      %1889 = vmatprep.mubr.bf16.mxu0 0
      %1890 = vmatmul.mubr.bf16.gmra.mrb[0].mxu0 %v1767
      %v1891 = vpop.f32.mrb[0].mxu0
      %v1892 = vadd.f32 0.0, %v1891
      %v1893 = vpop.f32.mrb[0].mxu0
      %v1894 = vpop.f32.mrb[0].mxu0
      %v1895 = vadd.f32 0.0, %v1894
      %v1896 = vpop.f32.mrb[0].mxu0
      %1897 = vmatprep.mubr.bf16.mxu0 0
      %1898 = vmatmul.mubr.bf16.gmra.mrb[0].mxu0 %v1770
      %v1899 = vpop.f32.mrb[0].mxu0
      %v1900 = vadd.f32 0.0, %v1899
      %v1901 = vpop.f32.mrb[0].mxu0
      %v1902 = vpop.f32.mrb[0].mxu0
      %v1903 = vadd.f32 0.0, %v1902
      %v1904 = vpop.f32.mrb[0].mxu0
      %1905 = vmatprep.mubr.bf16.mxu0 0
      %1906 = vmatmul.mubr.bf16.gmra.mrb[0].mxu0 %v1773
      %v1907 = vpop.f32.mrb[0].mxu0
      %v1908 = vadd.f32 0.0, %v1907
      %v1909 = vpop.f32.mrb[0].mxu0
      %v1910 = vpop.f32.mrb[0].mxu0
      %v1911 = vadd.f32 0.0, %v1910
      %v1912 = vpop.f32.mrb[0].mxu0
      %1913 = vmatprep.mubr.bf16.mxu0 0
      %1914 = vmatmul.mubr.bf16.gmra.mrb[0].mxu0 %v1776
      %v1915 = vpop.f32.mrb[0].mxu0
      %v1916 = vadd.f32 0.0, %v1915
      %v1917 = vpop.f32.mrb[0].mxu0
      %v1918 = vpop.f32.mrb[0].mxu0
      %v1919 = vadd.f32 0.0, %v1918
      %v1920 = vpop.f32.mrb[0].mxu0
      %1921 = vmatprep.mubr.bf16.mxu0 0
      %1922 = vmatmul.mubr.bf16.gmra.mrb[0].mxu0 %v1779
      %v1923 = vpop.f32.mrb[0].mxu0
      %v1924 = vadd.f32 0.0, %v1923
      %v1925 = vpop.f32.mrb[0].mxu0
      %v1926 = vpop.f32.mrb[0].mxu0
      %v1927 = vadd.f32 0.0, %v1926
      %v1928 = vpop.f32.mrb[0].mxu0
      %1929 = vmatprep.mubr.bf16.mxu0 0
      %1930 = vmatmul.mubr.bf16.gmra.mrb[0].mxu0 %v1782
      %v1931 = vpop.f32.mrb[0].mxu0
      %v1932 = vadd.f32 0.0, %v1931
      %v1933 = vpop.f32.mrb[0].mxu0
      %v1934 = vpop.f32.mrb[0].mxu0
      %v1935 = vadd.f32 0.0, %v1934
      %v1936 = vpop.f32.mrb[0].mxu0
      %1937 = vmatprep.mubr.bf16.mxu0 0
      %1938 = vmatmul.mubr.bf16.gmra.mrb[0].mxu0 %v1785
      %v1939 = vpop.f32.mrb[0].mxu0
      %v1940 = vadd.f32 0.0, %v1939
      %v1941 = vpop.f32.mrb[0].mxu0
      %v1942 = vpop.f32.mrb[0].mxu0
      %v1943 = vadd.f32 0.0, %v1942
      %v1944 = vpop.f32.mrb[0].mxu0
      %1945 = vmatprep.mubr.bf16.mxu0 0
      %1946 = vmatmul.mubr.bf16.gmra.mrb[0].mxu0 %v1788
      %v1947 = vpop.f32.mrb[0].mxu0
      %v1948 = vadd.f32 0.0, %v1947
      %v1949 = vpop.f32.mrb[0].mxu0
      %v1950 = vpop.f32.mrb[0].mxu0
      %v1951 = vadd.f32 0.0, %v1950
      %v1952 = vpop.f32.mrb[0].mxu0
      %1953 = vdwg.mxu0
      %v1954 = vadd.f32 %v1660, %v1828
      %v1955 = vadd.f32 %v1661, %v1831
      %v1956 = vadd.f32 %v1662, %v1836
      %v1957 = vadd.f32 %v1663, %v1839
      %v1958 = vadd.f32 %v1664, %v1844
      %v1959 = vadd.f32 %v1665, %v1847
      %v1960 = vadd.f32 %v1666, %v1852
      %v1961 = vadd.f32 %v1667, %v1855
      %v1962 = vadd.f32 %v1668, %v1860
      %v1963 = vadd.f32 %v1669, %v1863
      %v1964 = vadd.f32 %v1670, %v1868
      %v1965 = vadd.f32 %v1671, %v1871
      %v1966 = vadd.f32 %v1672, %v1876
      %v1967 = vadd.f32 %v1673, %v1879
      %v1968 = vadd.f32 %v1674, %v1884
      %v1969 = vadd.f32 %v1675, %v1887
      %v1970 = vadd.f32 %v1676, %v1892
      %v1971 = vadd.f32 %v1677, %v1895
      %v1972 = vadd.f32 %v1678, %v1900
      %v1973 = vadd.f32 %v1679, %v1903
      %v1974 = vadd.f32 %v1680, %v1908
      %v1975 = vadd.f32 %v1681, %v1911
      %v1976 = vadd.f32 %v1682, %v1916
      %v1977 = vadd.f32 %v1683, %v1919
      %v1978 = vadd.f32 %v1684, %v1924
      %v1979 = vadd.f32 %v1685, %v1927
      %v1980 = vadd.f32 %v1686, %v1932
      %v1981 = vadd.f32 %v1687, %v1935
      %v1982 = vadd.f32 %v1688, %v1940
      %v1983 = vadd.f32 %v1689, %v1943
      %v1984 = vadd.f32 %v1690, %v1948
      %v1985 = vadd.f32 %v1691, %v1951
      %v1986 = vld [vmem:[%s329 + $0x2] sm:$0xff]
      %v1987 = vld [vmem:[%s329 + $0xa] sm:$0xff]
      %v1988 = vld [vmem:[%s329 + $0x1a] sm:$0xff]
      %v1989 = vld [vmem:[%s329 + $0x22] sm:$0xff]
      %v1990 = vld [vmem:[%s329 + $0x32] sm:$0xff]
      %v1991 = vld [vmem:[%s329 + $0x3a] sm:$0xff]
      %v1992 = vld [vmem:[%s329 + $0x4a] sm:$0xff]
      %v1993 = vld [vmem:[%s329 + $0x52] sm:$0xff]
      %v1994 = vld [vmem:[%s329 + $0x62] sm:$0xff]
      %v1995 = vld [vmem:[%s329 + $0x6a] sm:$0xff]
      %v1996 = vld [vmem:[%s329 + $0x7a] sm:$0xff]
      %v1997 = vld [vmem:[%s329 + $0x82] sm:$0xff]
      %v1998 = vld [vmem:[%s329 + $0x92] sm:$0xff]
      %v1999 = vld [vmem:[%s329 + $0x9a] sm:$0xff]
      %v2000 = vld [vmem:[%s329 + $0xaa] sm:$0xff]
      %v2001 = vld [vmem:[%s329 + $0xb2] sm:$0xff]
      %v2002 = vld [vmem:[%s329 + $0xc2] sm:$0xff]
      %v2003 = vld [vmem:[%s329 + $0xca] sm:$0xff]
      %v2004 = vld [vmem:[%s329 + $0xda] sm:$0xff]
      %v2005 = vld [vmem:[%s329 + $0xe2] sm:$0xff]
      %v2006 = vld [vmem:[%s329 + $0xf2] sm:$0xff]
      %v2007 = vld [vmem:[%s329 + $0xfa] sm:$0xff]
      %v2008 = vld [vmem:[%s329 + $0x10a] sm:$0xff]
      %v2009 = vld [vmem:[%s329 + $0x112] sm:$0xff]
      %v2010 = vld [vmem:[%s329 + $0x122] sm:$0xff]
      %v2011 = vld [vmem:[%s329 + $0x12a] sm:$0xff]
      %v2012 = vld [vmem:[%s329 + $0x13a] sm:$0xff]
      %v2013 = vld [vmem:[%s329 + $0x142] sm:$0xff]
      %v2014 = vld [vmem:[%s329 + $0x152] sm:$0xff]
      %v2015 = vld [vmem:[%s329 + $0x15a] sm:$0xff]
      %v2016 = vld [vmem:[%s329 + $0x16a] sm:$0xff]
      %v2017 = vld [vmem:[%s329 + $0x172] sm:$0xff]
      %v2018 = vpack.c.bf16 %v1987, %v1986
      %v2019 = vpack.c.bf16 %v1989, %v1988
      %v2020 = vpack.c.bf16 %v1991, %v1990
      %v2021 = vpack.c.bf16 %v1993, %v1992
      %v2022 = vpack.c.bf16 %v1995, %v1994
      %v2023 = vpack.c.bf16 %v1997, %v1996
      %v2024 = vpack.c.bf16 %v1999, %v1998
      %v2025 = vpack.c.bf16 %v2001, %v2000
      %v2026 = vpack.c.bf16 %v2003, %v2002
      %v2027 = vpack.c.bf16 %v2005, %v2004
      %v2028 = vpack.c.bf16 %v2007, %v2006
      %v2029 = vpack.c.bf16 %v2009, %v2008
      %v2030 = vpack.c.bf16 %v2011, %v2010
      %v2031 = vpack.c.bf16 %v2013, %v2012
      %v2032 = vpack.c.bf16 %v2015, %v2014
      %v2033 = vpack.c.bf16 %v2017, %v2016
      %s2034 = scalar_lea.vmem %s2, 4
      %v2035 = vld [vmem:[%s2034] sm:$0x3]
      %v2037 = vsel %vm450, %v2018, 0
      %v2040 = vsel %vm450, %v2019, 0
      %v2043 = vsel %vm450, %v2020, 0
      %v2046 = vsel %vm450, %v2021, 0
      %v2049 = vsel %vm450, %v2022, 0
      %v2052 = vsel %vm450, %v2023, 0
      %v2055 = vsel %vm450, %v2024, 0
      %v2058 = vsel %vm450, %v2025, 0
      %v2061 = vsel %vm450, %v2026, 0
      %v2064 = vsel %vm450, %v2027, 0
      %v2067 = vsel %vm450, %v2028, 0
      %v2070 = vsel %vm450, %v2029, 0
      %v2073 = vsel %vm450, %v2030, 0
      %v2076 = vsel %vm450, %v2031, 0
      %v2079 = vsel %vm450, %v2032, 0
      %v2082 = vsel %vm450, %v2033, 0
      %v2085 = vsel %vm499, %v2035, 0
      %2087 = vmatprep.subr.bf16.mxu0 0
      %2088 = vmatpush1.bf16.msra.mxu0 %v2085
      %2089 = vmatprep.subr.bf16.mxu0 0
      %2090 = vmatpush1.bf16.msra.mxu0 0
      %2091 = vmatprep.subr.bf16.mxu0 0
      %2092 = vmatpush1.bf16.msra.mxu0 0
      %2093 = vmatprep.subr.bf16.mxu0 0
      %2094 = vmatpush1.bf16.msra.mxu0 0
      %2095 = vmatprep.subr.bf16.mxu0 0
      %2096 = vmatpush1.bf16.msra.mxu0 0
      %2097 = vmatprep.subr.bf16.mxu0 0
      %2098 = vmatpush1.bf16.msra.mxu0 0
      %2099 = vmatprep.subr.bf16.mxu0 0
      %2100 = vmatpush1.bf16.msra.mxu0 0
      %2101 = vmatprep.subr.bf16.mxu0 0
      %2102 = vmatpush1.bf16.msra.mxu0 0
      %2103 = vmatprep.subr.bf16.mxu0 0
      %2104 = vmatpush1.bf16.msra.mxu0 0
      %2105 = vmatprep.subr.bf16.mxu0 0
      %2106 = vmatpush1.bf16.msra.mxu0 0
      %2107 = vmatprep.subr.bf16.mxu0 0
      %2108 = vmatpush1.bf16.msra.mxu0 0
      %2109 = vmatprep.subr.bf16.mxu0 0
      %2110 = vmatpush1.bf16.msra.mxu0 0
      %2111 = vmatprep.subr.bf16.mxu0 0
      %2112 = vmatpush1.bf16.msra.mxu0 0
      %2113 = vmatprep.subr.bf16.mxu0 0
      %2114 = vmatpush1.bf16.msra.mxu0 0
      %2115 = vmatprep.subr.bf16.mxu0 0
      %2116 = vmatpush1.bf16.msra.mxu0 0
      %2117 = vmatprep.subr.bf16.mxu0 0
      %2118 = vmatpush1.bf16.msra.mxu0 0
      %2119 = vmatprep.mubr.bf16.mxu0 0
      %2120 = vmatmul.mubr.bf16.gmra.mrb[0].mxu0 %v2037
      %v2121 = vpop.f32.mrb[0].mxu0
      %v2122 = vadd.f32 0.0, %v2121
      %v2123 = vpop.f32.mrb[0].mxu0
      %v2124 = vpop.f32.mrb[0].mxu0
      %v2125 = vadd.f32 0.0, %v2124
      %v2126 = vpop.f32.mrb[0].mxu0
      %2127 = vmatprep.mubr.bf16.mxu0 0
      %2128 = vmatmul.mubr.bf16.gmra.mrb[0].mxu0 %v2040
      %v2129 = vpop.f32.mrb[0].mxu0
      %v2130 = vadd.f32 0.0, %v2129
      %v2131 = vpop.f32.mrb[0].mxu0
      %v2132 = vpop.f32.mrb[0].mxu0
      %v2133 = vadd.f32 0.0, %v2132
      %v2134 = vpop.f32.mrb[0].mxu0
      %2135 = vmatprep.mubr.bf16.mxu0 0
      %2136 = vmatmul.mubr.bf16.gmra.mrb[0].mxu0 %v2043
      %v2137 = vpop.f32.mrb[0].mxu0
      %v2138 = vadd.f32 0.0, %v2137
      %v2139 = vpop.f32.mrb[0].mxu0
      %v2140 = vpop.f32.mrb[0].mxu0
      %v2141 = vadd.f32 0.0, %v2140
      %v2142 = vpop.f32.mrb[0].mxu0
      %2143 = vmatprep.mubr.bf16.mxu0 0
      %2144 = vmatmul.mubr.bf16.gmra.mrb[0].mxu0 %v2046
      %v2145 = vpop.f32.mrb[0].mxu0
      %v2146 = vadd.f32 0.0, %v2145
      %v2147 = vpop.f32.mrb[0].mxu0
      %v2148 = vpop.f32.mrb[0].mxu0
      %v2149 = vadd.f32 0.0, %v2148
      %v2150 = vpop.f32.mrb[0].mxu0
      %2151 = vmatprep.mubr.bf16.mxu0 0
      %2152 = vmatmul.mubr.bf16.gmra.mrb[0].mxu0 %v2049
      %v2153 = vpop.f32.mrb[0].mxu0
      %v2154 = vadd.f32 0.0, %v2153
      %v2155 = vpop.f32.mrb[0].mxu0
      %v2156 = vpop.f32.mrb[0].mxu0
      %v2157 = vadd.f32 0.0, %v2156
      %v2158 = vpop.f32.mrb[0].mxu0
      %2159 = vmatprep.mubr.bf16.mxu0 0
      %2160 = vmatmul.mubr.bf16.gmra.mrb[0].mxu0 %v2052
      %v2161 = vpop.f32.mrb[0].mxu0
      %v2162 = vadd.f32 0.0, %v2161
      %v2163 = vpop.f32.mrb[0].mxu0
      %v2164 = vpop.f32.mrb[0].mxu0
      %v2165 = vadd.f32 0.0, %v2164
      %v2166 = vpop.f32.mrb[0].mxu0
      %2167 = vmatprep.mubr.bf16.mxu0 0
      %2168 = vmatmul.mubr.bf16.gmra.mrb[0].mxu0 %v2055
      %v2169 = vpop.f32.mrb[0].mxu0
      %v2170 = vadd.f32 0.0, %v2169
      %v2171 = vpop.f32.mrb[0].mxu0
      %v2172 = vpop.f32.mrb[0].mxu0
      %v2173 = vadd.f32 0.0, %v2172
      %v2174 = vpop.f32.mrb[0].mxu0
      %2175 = vmatprep.mubr.bf16.mxu0 0
      %2176 = vmatmul.mubr.bf16.gmra.mrb[0].mxu0 %v2058
      %v2177 = vpop.f32.mrb[0].mxu0
      %v2178 = vadd.f32 0.0, %v2177
      %v2179 = vpop.f32.mrb[0].mxu0
      %v2180 = vpop.f32.mrb[0].mxu0
      %v2181 = vadd.f32 0.0, %v2180
      %v2182 = vpop.f32.mrb[0].mxu0
      %2183 = vmatprep.mubr.bf16.mxu0 0
      %2184 = vmatmul.mubr.bf16.gmra.mrb[0].mxu0 %v2061
      %v2185 = vpop.f32.mrb[0].mxu0
      %v2186 = vadd.f32 0.0, %v2185
      %v2187 = vpop.f32.mrb[0].mxu0
      %v2188 = vpop.f32.mrb[0].mxu0
      %v2189 = vadd.f32 0.0, %v2188
      %v2190 = vpop.f32.mrb[0].mxu0
      %2191 = vmatprep.mubr.bf16.mxu0 0
      %2192 = vmatmul.mubr.bf16.gmra.mrb[0].mxu0 %v2064
      %v2193 = vpop.f32.mrb[0].mxu0
      %v2194 = vadd.f32 0.0, %v2193
      %v2195 = vpop.f32.mrb[0].mxu0
      %v2196 = vpop.f32.mrb[0].mxu0
      %v2197 = vadd.f32 0.0, %v2196
      %v2198 = vpop.f32.mrb[0].mxu0
      %2199 = vmatprep.mubr.bf16.mxu0 0
      %2200 = vmatmul.mubr.bf16.gmra.mrb[0].mxu0 %v2067
      %v2201 = vpop.f32.mrb[0].mxu0
      %v2202 = vadd.f32 0.0, %v2201
      %v2203 = vpop.f32.mrb[0].mxu0
      %v2204 = vpop.f32.mrb[0].mxu0
      %v2205 = vadd.f32 0.0, %v2204
      %v2206 = vpop.f32.mrb[0].mxu0
      %2207 = vmatprep.mubr.bf16.mxu0 0
      %2208 = vmatmul.mubr.bf16.gmra.mrb[0].mxu0 %v2070
      %v2209 = vpop.f32.mrb[0].mxu0
      %v2210 = vadd.f32 0.0, %v2209
      %v2211 = vpop.f32.mrb[0].mxu0
      %v2212 = vpop.f32.mrb[0].mxu0
      %v2213 = vadd.f32 0.0, %v2212
      %v2214 = vpop.f32.mrb[0].mxu0
      %2215 = vmatprep.mubr.bf16.mxu0 0
      %2216 = vmatmul.mubr.bf16.gmra.mrb[0].mxu0 %v2073
      %v2217 = vpop.f32.mrb[0].mxu0
      %v2218 = vadd.f32 0.0, %v2217
      %v2219 = vpop.f32.mrb[0].mxu0
      %v2220 = vpop.f32.mrb[0].mxu0
      %v2221 = vadd.f32 0.0, %v2220
      %v2222 = vpop.f32.mrb[0].mxu0
      %2223 = vmatprep.mubr.bf16.mxu0 0
      %2224 = vmatmul.mubr.bf16.gmra.mrb[0].mxu0 %v2076
      %v2225 = vpop.f32.mrb[0].mxu0
      %v2226 = vadd.f32 0.0, %v2225
      %v2227 = vpop.f32.mrb[0].mxu0
      %v2228 = vpop.f32.mrb[0].mxu0
      %v2229 = vadd.f32 0.0, %v2228
      %v2230 = vpop.f32.mrb[0].mxu0
      %2231 = vmatprep.mubr.bf16.mxu0 0
      %2232 = vmatmul.mubr.bf16.gmra.mrb[0].mxu0 %v2079
      %v2233 = vpop.f32.mrb[0].mxu0
      %v2234 = vadd.f32 0.0, %v2233
      %v2235 = vpop.f32.mrb[0].mxu0
      %v2236 = vpop.f32.mrb[0].mxu0
      %v2237 = vadd.f32 0.0, %v2236
      %v2238 = vpop.f32.mrb[0].mxu0
      %2239 = vmatprep.mubr.bf16.mxu0 0
      %2240 = vmatmul.mubr.bf16.gmra.mrb[0].mxu0 %v2082
      %v2241 = vpop.f32.mrb[0].mxu0
      %v2242 = vadd.f32 0.0, %v2241
      %v2243 = vpop.f32.mrb[0].mxu0
      %v2244 = vpop.f32.mrb[0].mxu0
      %v2245 = vadd.f32 0.0, %v2244
      %v2246 = vpop.f32.mrb[0].mxu0
      %2247 = vdwg.mxu0
      %v2248 = vadd.f32 %v1954, %v2122
      %v2249 = vadd.f32 %v1955, %v2125
      %v2250 = vadd.f32 %v1956, %v2130
      %v2251 = vadd.f32 %v1957, %v2133
      %v2252 = vadd.f32 %v1958, %v2138
      %v2253 = vadd.f32 %v1959, %v2141
      %v2254 = vadd.f32 %v1960, %v2146
      %v2255 = vadd.f32 %v1961, %v2149
      %v2256 = vadd.f32 %v1962, %v2154
      %v2257 = vadd.f32 %v1963, %v2157
      %v2258 = vadd.f32 %v1964, %v2162
      %v2259 = vadd.f32 %v1965, %v2165
      %v2260 = vadd.f32 %v1966, %v2170
      %v2261 = vadd.f32 %v1967, %v2173
      %v2262 = vadd.f32 %v1968, %v2178
      %v2263 = vadd.f32 %v1969, %v2181
      %v2264 = vadd.f32 %v1970, %v2186
      %v2265 = vadd.f32 %v1971, %v2189
      %v2266 = vadd.f32 %v1972, %v2194
      %v2267 = vadd.f32 %v1973, %v2197
      %v2268 = vadd.f32 %v1974, %v2202
      %v2269 = vadd.f32 %v1975, %v2205
      %v2270 = vadd.f32 %v1976, %v2210
      %v2271 = vadd.f32 %v1977, %v2213
      %v2272 = vadd.f32 %v1978, %v2218
      %v2273 = vadd.f32 %v1979, %v2221
      %v2274 = vadd.f32 %v1980, %v2226
      %v2275 = vadd.f32 %v1981, %v2229
      %v2276 = vadd.f32 %v1982, %v2234
      %v2277 = vadd.f32 %v1983, %v2237
      %v2278 = vadd.f32 %v1984, %v2242
      %v2279 = vadd.f32 %v1985, %v2245
      %v2280 = vld [vmem:[%s334 + $0x2] sm:$0xff]
      %v2281 = vld [vmem:[%s334 + $0xa] sm:$0xff]
      %v2282 = vld [vmem:[%s334 + $0x1a] sm:$0xff]
      %v2283 = vld [vmem:[%s334 + $0x22] sm:$0xff]
      %v2284 = vld [vmem:[%s334 + $0x32] sm:$0xff]
      %v2285 = vld [vmem:[%s334 + $0x3a] sm:$0xff]
      %v2286 = vld [vmem:[%s334 + $0x4a] sm:$0xff]
      %v2287 = vld [vmem:[%s334 + $0x52] sm:$0xff]
      %v2288 = vld [vmem:[%s334 + $0x62] sm:$0xff]
      %v2289 = vld [vmem:[%s334 + $0x6a] sm:$0xff]
      %v2290 = vld [vmem:[%s334 + $0x7a] sm:$0xff]
      %v2291 = vld [vmem:[%s334 + $0x82] sm:$0xff]
      %v2292 = vld [vmem:[%s334 + $0x92] sm:$0xff]
      %v2293 = vld [vmem:[%s334 + $0x9a] sm:$0xff]
      %v2294 = vld [vmem:[%s334 + $0xaa] sm:$0xff]
      %v2295 = vld [vmem:[%s334 + $0xb2] sm:$0xff]
      %v2296 = vld [vmem:[%s334 + $0xc2] sm:$0xff]
      %v2297 = vld [vmem:[%s334 + $0xca] sm:$0xff]
      %v2298 = vld [vmem:[%s334 + $0xda] sm:$0xff]
      %v2299 = vld [vmem:[%s334 + $0xe2] sm:$0xff]
      %v2300 = vld [vmem:[%s334 + $0xf2] sm:$0xff]
      %v2301 = vld [vmem:[%s334 + $0xfa] sm:$0xff]
      %v2302 = vld [vmem:[%s334 + $0x10a] sm:$0xff]
      %v2303 = vld [vmem:[%s334 + $0x112] sm:$0xff]
      %v2304 = vld [vmem:[%s334 + $0x122] sm:$0xff]
      %v2305 = vld [vmem:[%s334 + $0x12a] sm:$0xff]
      %v2306 = vld [vmem:[%s334 + $0x13a] sm:$0xff]
      %v2307 = vld [vmem:[%s334 + $0x142] sm:$0xff]
      %v2308 = vld [vmem:[%s334 + $0x152] sm:$0xff]
      %v2309 = vld [vmem:[%s334 + $0x15a] sm:$0xff]
      %v2310 = vld [vmem:[%s334 + $0x16a] sm:$0xff]
      %v2311 = vld [vmem:[%s334 + $0x172] sm:$0xff]
      %v2312 = vpack.c.bf16 %v2281, %v2280
      %v2313 = vpack.c.bf16 %v2283, %v2282
      %v2314 = vpack.c.bf16 %v2285, %v2284
      %v2315 = vpack.c.bf16 %v2287, %v2286
      %v2316 = vpack.c.bf16 %v2289, %v2288
      %v2317 = vpack.c.bf16 %v2291, %v2290
      %v2318 = vpack.c.bf16 %v2293, %v2292
      %v2319 = vpack.c.bf16 %v2295, %v2294
      %v2320 = vpack.c.bf16 %v2297, %v2296
      %v2321 = vpack.c.bf16 %v2299, %v2298
      %v2322 = vpack.c.bf16 %v2301, %v2300
      %v2323 = vpack.c.bf16 %v2303, %v2302
      %v2324 = vpack.c.bf16 %v2305, %v2304
      %v2325 = vpack.c.bf16 %v2307, %v2306
      %v2326 = vpack.c.bf16 %v2309, %v2308
      %v2327 = vpack.c.bf16 %v2311, %v2310
      %s2328 = scalar_lea.vmem %s3, 4
      %v2329 = vld [vmem:[%s2328] sm:$0x3]
      %v2331 = vsel %vm450, %v2312, 0
      %v2334 = vsel %vm450, %v2313, 0
      %v2337 = vsel %vm450, %v2314, 0
      %v2340 = vsel %vm450, %v2315, 0
      %v2343 = vsel %vm450, %v2316, 0
      %v2346 = vsel %vm450, %v2317, 0
      %v2349 = vsel %vm450, %v2318, 0
      %v2352 = vsel %vm450, %v2319, 0
      %v2355 = vsel %vm450, %v2320, 0
      %v2358 = vsel %vm450, %v2321, 0
      %v2361 = vsel %vm450, %v2322, 0
      %v2364 = vsel %vm450, %v2323, 0
      %v2367 = vsel %vm450, %v2324, 0
      %v2370 = vsel %vm450, %v2325, 0
      %v2373 = vsel %vm450, %v2326, 0
      %v2376 = vsel %vm450, %v2327, 0
      %v2379 = vsel %vm499, %v2329, 0
      %2381 = vmatprep.subr.bf16.mxu0 0
      %2382 = vmatpush1.bf16.msra.mxu0 %v2379
      %2383 = vmatprep.subr.bf16.mxu0 0
      %2384 = vmatpush1.bf16.msra.mxu0 0
      %2385 = vmatprep.subr.bf16.mxu0 0
      %2386 = vmatpush1.bf16.msra.mxu0 0
      %2387 = vmatprep.subr.bf16.mxu0 0
      %2388 = vmatpush1.bf16.msra.mxu0 0
      %2389 = vmatprep.subr.bf16.mxu0 0
      %2390 = vmatpush1.bf16.msra.mxu0 0
      %2391 = vmatprep.subr.bf16.mxu0 0
      %2392 = vmatpush1.bf16.msra.mxu0 0
      %2393 = vmatprep.subr.bf16.mxu0 0
      %2394 = vmatpush1.bf16.msra.mxu0 0
      %2395 = vmatprep.subr.bf16.mxu0 0
      %2396 = vmatpush1.bf16.msra.mxu0 0
      %2397 = vmatprep.subr.bf16.mxu0 0
      %2398 = vmatpush1.bf16.msra.mxu0 0
      %2399 = vmatprep.subr.bf16.mxu0 0
      %2400 = vmatpush1.bf16.msra.mxu0 0
      %2401 = vmatprep.subr.bf16.mxu0 0
      %2402 = vmatpush1.bf16.msra.mxu0 0
      %2403 = vmatprep.subr.bf16.mxu0 0
      %2404 = vmatpush1.bf16.msra.mxu0 0
      %2405 = vmatprep.subr.bf16.mxu0 0
      %2406 = vmatpush1.bf16.msra.mxu0 0
      %2407 = vmatprep.subr.bf16.mxu0 0
      %2408 = vmatpush1.bf16.msra.mxu0 0
      %2409 = vmatprep.subr.bf16.mxu0 0
      %2410 = vmatpush1.bf16.msra.mxu0 0
      %2411 = vmatprep.subr.bf16.mxu0 0
      %2412 = vmatpush1.bf16.msra.mxu0 0
      %2413 = vmatprep.mubr.bf16.mxu0 0
      %2414 = vmatmul.mubr.bf16.gmra.mrb[0].mxu0 %v2331
      %v2415 = vpop.f32.mrb[0].mxu0
      %v2416 = vadd.f32 0.0, %v2415
      %v2417 = vpop.f32.mrb[0].mxu0
      %v2418 = vpop.f32.mrb[0].mxu0
      %v2419 = vadd.f32 0.0, %v2418
      %v2420 = vpop.f32.mrb[0].mxu0
      %2421 = vmatprep.mubr.bf16.mxu0 0
      %2422 = vmatmul.mubr.bf16.gmra.mrb[0].mxu0 %v2334
      %v2423 = vpop.f32.mrb[0].mxu0
      %v2424 = vadd.f32 0.0, %v2423
      %v2425 = vpop.f32.mrb[0].mxu0
      %v2426 = vpop.f32.mrb[0].mxu0
      %v2427 = vadd.f32 0.0, %v2426
      %v2428 = vpop.f32.mrb[0].mxu0
      %2429 = vmatprep.mubr.bf16.mxu0 0
      %2430 = vmatmul.mubr.bf16.gmra.mrb[0].mxu0 %v2337
      %v2431 = vpop.f32.mrb[0].mxu0
      %v2432 = vadd.f32 0.0, %v2431
      %v2433 = vpop.f32.mrb[0].mxu0
      %v2434 = vpop.f32.mrb[0].mxu0
      %v2435 = vadd.f32 0.0, %v2434
      %v2436 = vpop.f32.mrb[0].mxu0
      %2437 = vmatprep.mubr.bf16.mxu0 0
      %2438 = vmatmul.mubr.bf16.gmra.mrb[0].mxu0 %v2340
      %v2439 = vpop.f32.mrb[0].mxu0
      %v2440 = vadd.f32 0.0, %v2439
      %v2441 = vpop.f32.mrb[0].mxu0
      %v2442 = vpop.f32.mrb[0].mxu0
      %v2443 = vadd.f32 0.0, %v2442
      %v2444 = vpop.f32.mrb[0].mxu0
      %2445 = vmatprep.mubr.bf16.mxu0 0
      %2446 = vmatmul.mubr.bf16.gmra.mrb[0].mxu0 %v2343
      %v2447 = vpop.f32.mrb[0].mxu0
      %v2448 = vadd.f32 0.0, %v2447
      %v2449 = vpop.f32.mrb[0].mxu0
      %v2450 = vpop.f32.mrb[0].mxu0
      %v2451 = vadd.f32 0.0, %v2450
      %v2452 = vpop.f32.mrb[0].mxu0
      %2453 = vmatprep.mubr.bf16.mxu0 0
      %2454 = vmatmul.mubr.bf16.gmra.mrb[0].mxu0 %v2346
      %v2455 = vpop.f32.mrb[0].mxu0
      %v2456 = vadd.f32 0.0, %v2455
      %v2457 = vpop.f32.mrb[0].mxu0
      %v2458 = vpop.f32.mrb[0].mxu0
      %v2459 = vadd.f32 0.0, %v2458
      %v2460 = vpop.f32.mrb[0].mxu0
      %2461 = vmatprep.mubr.bf16.mxu0 0
      %2462 = vmatmul.mubr.bf16.gmra.mrb[0].mxu0 %v2349
      %v2463 = vpop.f32.mrb[0].mxu0
      %v2464 = vadd.f32 0.0, %v2463
      %v2465 = vpop.f32.mrb[0].mxu0
      %v2466 = vpop.f32.mrb[0].mxu0
      %v2467 = vadd.f32 0.0, %v2466
      %v2468 = vpop.f32.mrb[0].mxu0
      %2469 = vmatprep.mubr.bf16.mxu0 0
      %2470 = vmatmul.mubr.bf16.gmra.mrb[0].mxu0 %v2352
      %v2471 = vpop.f32.mrb[0].mxu0
      %v2472 = vadd.f32 0.0, %v2471
      %v2473 = vpop.f32.mrb[0].mxu0
      %v2474 = vpop.f32.mrb[0].mxu0
      %v2475 = vadd.f32 0.0, %v2474
      %v2476 = vpop.f32.mrb[0].mxu0
      %2477 = vmatprep.mubr.bf16.mxu0 0
      %2478 = vmatmul.mubr.bf16.gmra.mrb[0].mxu0 %v2355
      %v2479 = vpop.f32.mrb[0].mxu0
      %v2480 = vadd.f32 0.0, %v2479
      %v2481 = vpop.f32.mrb[0].mxu0
      %v2482 = vpop.f32.mrb[0].mxu0
      %v2483 = vadd.f32 0.0, %v2482
      %v2484 = vpop.f32.mrb[0].mxu0
      %2485 = vmatprep.mubr.bf16.mxu0 0
      %2486 = vmatmul.mubr.bf16.gmra.mrb[0].mxu0 %v2358
      %v2487 = vpop.f32.mrb[0].mxu0
      %v2488 = vadd.f32 0.0, %v2487
      %v2489 = vpop.f32.mrb[0].mxu0
      %v2490 = vpop.f32.mrb[0].mxu0
      %v2491 = vadd.f32 0.0, %v2490
      %v2492 = vpop.f32.mrb[0].mxu0
      %2493 = vmatprep.mubr.bf16.mxu0 0
      %2494 = vmatmul.mubr.bf16.gmra.mrb[0].mxu0 %v2361
      %v2495 = vpop.f32.mrb[0].mxu0
      %v2496 = vadd.f32 0.0, %v2495
      %v2497 = vpop.f32.mrb[0].mxu0
      %v2498 = vpop.f32.mrb[0].mxu0
      %v2499 = vadd.f32 0.0, %v2498
      %v2500 = vpop.f32.mrb[0].mxu0
      %2501 = vmatprep.mubr.bf16.mxu0 0
      %2502 = vmatmul.mubr.bf16.gmra.mrb[0].mxu0 %v2364
      %v2503 = vpop.f32.mrb[0].mxu0
      %v2504 = vadd.f32 0.0, %v2503
      %v2505 = vpop.f32.mrb[0].mxu0
      %v2506 = vpop.f32.mrb[0].mxu0
      %v2507 = vadd.f32 0.0, %v2506
      %v2508 = vpop.f32.mrb[0].mxu0
      %2509 = vmatprep.mubr.bf16.mxu0 0
      %2510 = vmatmul.mubr.bf16.gmra.mrb[0].mxu0 %v2367
      %v2511 = vpop.f32.mrb[0].mxu0
      %v2512 = vadd.f32 0.0, %v2511
      %v2513 = vpop.f32.mrb[0].mxu0
      %v2514 = vpop.f32.mrb[0].mxu0
      %v2515 = vadd.f32 0.0, %v2514
      %v2516 = vpop.f32.mrb[0].mxu0
      %2517 = vmatprep.mubr.bf16.mxu0 0
      %2518 = vmatmul.mubr.bf16.gmra.mrb[0].mxu0 %v2370
      %v2519 = vpop.f32.mrb[0].mxu0
      %v2520 = vadd.f32 0.0, %v2519
      %v2521 = vpop.f32.mrb[0].mxu0
      %v2522 = vpop.f32.mrb[0].mxu0
      %v2523 = vadd.f32 0.0, %v2522
      %v2524 = vpop.f32.mrb[0].mxu0
      %2525 = vmatprep.mubr.bf16.mxu0 0
      %2526 = vmatmul.mubr.bf16.gmra.mrb[0].mxu0 %v2373
      %v2527 = vpop.f32.mrb[0].mxu0
      %v2528 = vadd.f32 0.0, %v2527
      %v2529 = vpop.f32.mrb[0].mxu0
      %v2530 = vpop.f32.mrb[0].mxu0
      %v2531 = vadd.f32 0.0, %v2530
      %v2532 = vpop.f32.mrb[0].mxu0
      %2533 = vmatprep.mubr.bf16.mxu0 0
      %2534 = vmatmul.mubr.bf16.gmra.mrb[0].mxu0 %v2376
      %v2535 = vpop.f32.mrb[0].mxu0
      %v2536 = vadd.f32 0.0, %v2535
      %v2537 = vpop.f32.mrb[0].mxu0
      %v2538 = vpop.f32.mrb[0].mxu0
      %v2539 = vadd.f32 0.0, %v2538
      %v2540 = vpop.f32.mrb[0].mxu0
      %2541 = vdwg.mxu0
      %v2542 = vadd.f32 %v2248, %v2416
      %v2543 = vadd.f32 %v2249, %v2419
      %v2544 = vadd.f32 %v2250, %v2424
      %v2545 = vadd.f32 %v2251, %v2427
      %v2546 = vadd.f32 %v2252, %v2432
      %v2547 = vadd.f32 %v2253, %v2435
      %v2548 = vadd.f32 %v2254, %v2440
      %v2549 = vadd.f32 %v2255, %v2443
      %v2550 = vadd.f32 %v2256, %v2448
      %v2551 = vadd.f32 %v2257, %v2451
      %v2552 = vadd.f32 %v2258, %v2456
      %v2553 = vadd.f32 %v2259, %v2459
      %v2554 = vadd.f32 %v2260, %v2464
      %v2555 = vadd.f32 %v2261, %v2467
      %v2556 = vadd.f32 %v2262, %v2472
      %v2557 = vadd.f32 %v2263, %v2475
      %v2558 = vadd.f32 %v2264, %v2480
      %v2559 = vadd.f32 %v2265, %v2483
      %v2560 = vadd.f32 %v2266, %v2488
      %v2561 = vadd.f32 %v2267, %v2491
      %v2562 = vadd.f32 %v2268, %v2496
      %v2563 = vadd.f32 %v2269, %v2499
      %v2564 = vadd.f32 %v2270, %v2504
      %v2565 = vadd.f32 %v2271, %v2507
      %v2566 = vadd.f32 %v2272, %v2512
      %v2567 = vadd.f32 %v2273, %v2515
      %v2568 = vadd.f32 %v2274, %v2520
      %v2569 = vadd.f32 %v2275, %v2523
      %v2570 = vadd.f32 %v2276, %v2528
      %v2571 = vadd.f32 %v2277, %v2531
      %v2572 = vadd.f32 %v2278, %v2536
      %v2573 = vadd.f32 %v2279, %v2539
      %v2574 = vld [vmem:[%s350] sm:$0xff]
      %v2575 = vld [vmem:[%s350 + $0x8] sm:$0xff]
      %v2576 = vld [vmem:[%s350 + $0x18] sm:$0xff]
      %v2577 = vld [vmem:[%s350 + $0x20] sm:$0xff]
      %v2578 = vld [vmem:[%s350 + $0x30] sm:$0xff]
      %v2579 = vld [vmem:[%s350 + $0x38] sm:$0xff]
      %v2580 = vld [vmem:[%s350 + $0x48] sm:$0xff]
      %v2581 = vld [vmem:[%s350 + $0x50] sm:$0xff]
      %v2582 = vld [vmem:[%s350 + $0x60] sm:$0xff]
      %v2583 = vld [vmem:[%s350 + $0x68] sm:$0xff]
      %v2584 = vld [vmem:[%s350 + $0x78] sm:$0xff]
      %v2585 = vld [vmem:[%s350 + $0x80] sm:$0xff]
      %v2586 = vld [vmem:[%s350 + $0x90] sm:$0xff]
      %v2587 = vld [vmem:[%s350 + $0x98] sm:$0xff]
      %v2588 = vld [vmem:[%s350 + $0xa8] sm:$0xff]
      %v2589 = vld [vmem:[%s350 + $0xb0] sm:$0xff]
      %v2590 = vld [vmem:[%s350 + $0xc0] sm:$0xff]
      %v2591 = vld [vmem:[%s350 + $0xc8] sm:$0xff]
      %v2592 = vld [vmem:[%s350 + $0xd8] sm:$0xff]
      %v2593 = vld [vmem:[%s350 + $0xe0] sm:$0xff]
      %v2594 = vld [vmem:[%s350 + $0xf0] sm:$0xff]
      %v2595 = vld [vmem:[%s350 + $0xf8] sm:$0xff]
      %v2596 = vld [vmem:[%s350 + $0x108] sm:$0xff]
      %v2597 = vld [vmem:[%s350 + $0x110] sm:$0xff]
      %v2598 = vld [vmem:[%s350 + $0x120] sm:$0xff]
      %v2599 = vld [vmem:[%s350 + $0x128] sm:$0xff]
      %v2600 = vld [vmem:[%s350 + $0x138] sm:$0xff]
      %v2601 = vld [vmem:[%s350 + $0x140] sm:$0xff]
      %v2602 = vld [vmem:[%s350 + $0x150] sm:$0xff]
      %v2603 = vld [vmem:[%s350 + $0x158] sm:$0xff]
      %v2604 = vld [vmem:[%s350 + $0x168] sm:$0xff]
      %v2605 = vld [vmem:[%s350 + $0x170] sm:$0xff]
      %v2606 = vpack.c.bf16 %v2575, %v2574
      %v2607 = vpack.c.bf16 %v2577, %v2576
      %v2608 = vpack.c.bf16 %v2579, %v2578
      %v2609 = vpack.c.bf16 %v2581, %v2580
      %v2610 = vpack.c.bf16 %v2583, %v2582
      %v2611 = vpack.c.bf16 %v2585, %v2584
      %v2612 = vpack.c.bf16 %v2587, %v2586
      %v2613 = vpack.c.bf16 %v2589, %v2588
      %v2614 = vpack.c.bf16 %v2591, %v2590
      %v2615 = vpack.c.bf16 %v2593, %v2592
      %v2616 = vpack.c.bf16 %v2595, %v2594
      %v2617 = vpack.c.bf16 %v2597, %v2596
      %v2618 = vpack.c.bf16 %v2599, %v2598
      %v2619 = vpack.c.bf16 %v2601, %v2600
      %v2620 = vpack.c.bf16 %v2603, %v2602
      %v2621 = vpack.c.bf16 %v2605, %v2604
      %s2622 = scalar_lea.vmem %s2, 6
      %v2623 = vld [vmem:[%s2622] sm:$0x3]
      %v2625 = vsel %vm450, %v2606, 0
      %v2628 = vsel %vm450, %v2607, 0
      %v2631 = vsel %vm450, %v2608, 0
      %v2634 = vsel %vm450, %v2609, 0
      %v2637 = vsel %vm450, %v2610, 0
      %v2640 = vsel %vm450, %v2611, 0
      %v2643 = vsel %vm450, %v2612, 0
      %v2646 = vsel %vm450, %v2613, 0
      %v2649 = vsel %vm450, %v2614, 0
      %v2652 = vsel %vm450, %v2615, 0
      %v2655 = vsel %vm450, %v2616, 0
      %v2658 = vsel %vm450, %v2617, 0
      %v2661 = vsel %vm450, %v2618, 0
      %v2664 = vsel %vm450, %v2619, 0
      %v2667 = vsel %vm450, %v2620, 0
      %v2670 = vsel %vm450, %v2621, 0
      %v2673 = vsel %vm499, %v2623, 0
      %2675 = vmatprep.subr.bf16.mxu0 0
      %2676 = vmatpush1.bf16.msra.mxu0 %v2673
      %2677 = vmatprep.subr.bf16.mxu0 0
      %2678 = vmatpush1.bf16.msra.mxu0 0
      %2679 = vmatprep.subr.bf16.mxu0 0
      %2680 = vmatpush1.bf16.msra.mxu0 0
      %2681 = vmatprep.subr.bf16.mxu0 0
      %2682 = vmatpush1.bf16.msra.mxu0 0
      %2683 = vmatprep.subr.bf16.mxu0 0
      %2684 = vmatpush1.bf16.msra.mxu0 0
      %2685 = vmatprep.subr.bf16.mxu0 0
      %2686 = vmatpush1.bf16.msra.mxu0 0
      %2687 = vmatprep.subr.bf16.mxu0 0
      %2688 = vmatpush1.bf16.msra.mxu0 0
      %2689 = vmatprep.subr.bf16.mxu0 0
      %2690 = vmatpush1.bf16.msra.mxu0 0
      %2691 = vmatprep.subr.bf16.mxu0 0
      %2692 = vmatpush1.bf16.msra.mxu0 0
      %2693 = vmatprep.subr.bf16.mxu0 0
      %2694 = vmatpush1.bf16.msra.mxu0 0
      %2695 = vmatprep.subr.bf16.mxu0 0
      %2696 = vmatpush1.bf16.msra.mxu0 0
      %2697 = vmatprep.subr.bf16.mxu0 0
      %2698 = vmatpush1.bf16.msra.mxu0 0
      %2699 = vmatprep.subr.bf16.mxu0 0
      %2700 = vmatpush1.bf16.msra.mxu0 0
      %2701 = vmatprep.subr.bf16.mxu0 0
      %2702 = vmatpush1.bf16.msra.mxu0 0
      %2703 = vmatprep.subr.bf16.mxu0 0
      %2704 = vmatpush1.bf16.msra.mxu0 0
      %2705 = vmatprep.subr.bf16.mxu0 0
      %2706 = vmatpush1.bf16.msra.mxu0 0
      %2707 = vmatprep.mubr.bf16.mxu0 0
      %2708 = vmatmul.mubr.bf16.gmra.mrb[0].mxu0 %v2625
      %v2709 = vpop.f32.mrb[0].mxu0
      %v2710 = vadd.f32 0.0, %v2709
      %v2711 = vpop.f32.mrb[0].mxu0
      %v2712 = vpop.f32.mrb[0].mxu0
      %v2713 = vadd.f32 0.0, %v2712
      %v2714 = vpop.f32.mrb[0].mxu0
      %2715 = vmatprep.mubr.bf16.mxu0 0
      %2716 = vmatmul.mubr.bf16.gmra.mrb[0].mxu0 %v2628
      %v2717 = vpop.f32.mrb[0].mxu0
      %v2718 = vadd.f32 0.0, %v2717
      %v2719 = vpop.f32.mrb[0].mxu0
      %v2720 = vpop.f32.mrb[0].mxu0
      %v2721 = vadd.f32 0.0, %v2720
      %v2722 = vpop.f32.mrb[0].mxu0
      %2723 = vmatprep.mubr.bf16.mxu0 0
      %2724 = vmatmul.mubr.bf16.gmra.mrb[0].mxu0 %v2631
      %v2725 = vpop.f32.mrb[0].mxu0
      %v2726 = vadd.f32 0.0, %v2725
      %v2727 = vpop.f32.mrb[0].mxu0
      %v2728 = vpop.f32.mrb[0].mxu0
      %v2729 = vadd.f32 0.0, %v2728
      %v2730 = vpop.f32.mrb[0].mxu0
      %2731 = vmatprep.mubr.bf16.mxu0 0
      %2732 = vmatmul.mubr.bf16.gmra.mrb[0].mxu0 %v2634
      %v2733 = vpop.f32.mrb[0].mxu0
      %v2734 = vadd.f32 0.0, %v2733
      %v2735 = vpop.f32.mrb[0].mxu0
      %v2736 = vpop.f32.mrb[0].mxu0
      %v2737 = vadd.f32 0.0, %v2736
      %v2738 = vpop.f32.mrb[0].mxu0
      %2739 = vmatprep.mubr.bf16.mxu0 0
      %2740 = vmatmul.mubr.bf16.gmra.mrb[0].mxu0 %v2637
      %v2741 = vpop.f32.mrb[0].mxu0
      %v2742 = vadd.f32 0.0, %v2741
      %v2743 = vpop.f32.mrb[0].mxu0
      %v2744 = vpop.f32.mrb[0].mxu0
      %v2745 = vadd.f32 0.0, %v2744
      %v2746 = vpop.f32.mrb[0].mxu0
      %2747 = vmatprep.mubr.bf16.mxu0 0
      %2748 = vmatmul.mubr.bf16.gmra.mrb[0].mxu0 %v2640
      %v2749 = vpop.f32.mrb[0].mxu0
      %v2750 = vadd.f32 0.0, %v2749
      %v2751 = vpop.f32.mrb[0].mxu0
      %v2752 = vpop.f32.mrb[0].mxu0
      %v2753 = vadd.f32 0.0, %v2752
      %v2754 = vpop.f32.mrb[0].mxu0
      %2755 = vmatprep.mubr.bf16.mxu0 0
      %2756 = vmatmul.mubr.bf16.gmra.mrb[0].mxu0 %v2643
      %v2757 = vpop.f32.mrb[0].mxu0
      %v2758 = vadd.f32 0.0, %v2757
      %v2759 = vpop.f32.mrb[0].mxu0
      %v2760 = vpop.f32.mrb[0].mxu0
      %v2761 = vadd.f32 0.0, %v2760
      %v2762 = vpop.f32.mrb[0].mxu0
      %2763 = vmatprep.mubr.bf16.mxu0 0
      %2764 = vmatmul.mubr.bf16.gmra.mrb[0].mxu0 %v2646
      %v2765 = vpop.f32.mrb[0].mxu0
      %v2766 = vadd.f32 0.0, %v2765
      %v2767 = vpop.f32.mrb[0].mxu0
      %v2768 = vpop.f32.mrb[0].mxu0
      %v2769 = vadd.f32 0.0, %v2768
      %v2770 = vpop.f32.mrb[0].mxu0
      %2771 = vmatprep.mubr.bf16.mxu0 0
      %2772 = vmatmul.mubr.bf16.gmra.mrb[0].mxu0 %v2649
      %v2773 = vpop.f32.mrb[0].mxu0
      %v2774 = vadd.f32 0.0, %v2773
      %v2775 = vpop.f32.mrb[0].mxu0
      %v2776 = vpop.f32.mrb[0].mxu0
      %v2777 = vadd.f32 0.0, %v2776
      %v2778 = vpop.f32.mrb[0].mxu0
      %2779 = vmatprep.mubr.bf16.mxu0 0
      %2780 = vmatmul.mubr.bf16.gmra.mrb[0].mxu0 %v2652
      %v2781 = vpop.f32.mrb[0].mxu0
      %v2782 = vadd.f32 0.0, %v2781
      %v2783 = vpop.f32.mrb[0].mxu0
      %v2784 = vpop.f32.mrb[0].mxu0
      %v2785 = vadd.f32 0.0, %v2784
      %v2786 = vpop.f32.mrb[0].mxu0
      %2787 = vmatprep.mubr.bf16.mxu0 0
      %2788 = vmatmul.mubr.bf16.gmra.mrb[0].mxu0 %v2655
      %v2789 = vpop.f32.mrb[0].mxu0
      %v2790 = vadd.f32 0.0, %v2789
      %v2791 = vpop.f32.mrb[0].mxu0
      %v2792 = vpop.f32.mrb[0].mxu0
      %v2793 = vadd.f32 0.0, %v2792
      %v2794 = vpop.f32.mrb[0].mxu0
      %2795 = vmatprep.mubr.bf16.mxu0 0
      %2796 = vmatmul.mubr.bf16.gmra.mrb[0].mxu0 %v2658
      %v2797 = vpop.f32.mrb[0].mxu0
      %v2798 = vadd.f32 0.0, %v2797
      %v2799 = vpop.f32.mrb[0].mxu0
      %v2800 = vpop.f32.mrb[0].mxu0
      %v2801 = vadd.f32 0.0, %v2800
      %v2802 = vpop.f32.mrb[0].mxu0
      %2803 = vmatprep.mubr.bf16.mxu0 0
      %2804 = vmatmul.mubr.bf16.gmra.mrb[0].mxu0 %v2661
      %v2805 = vpop.f32.mrb[0].mxu0
      %v2806 = vadd.f32 0.0, %v2805
      %v2807 = vpop.f32.mrb[0].mxu0
      %v2808 = vpop.f32.mrb[0].mxu0
      %v2809 = vadd.f32 0.0, %v2808
      %v2810 = vpop.f32.mrb[0].mxu0
      %2811 = vmatprep.mubr.bf16.mxu0 0
      %2812 = vmatmul.mubr.bf16.gmra.mrb[0].mxu0 %v2664
      %v2813 = vpop.f32.mrb[0].mxu0
      %v2814 = vadd.f32 0.0, %v2813
      %v2815 = vpop.f32.mrb[0].mxu0
      %v2816 = vpop.f32.mrb[0].mxu0
      %v2817 = vadd.f32 0.0, %v2816
      %v2818 = vpop.f32.mrb[0].mxu0
      %2819 = vmatprep.mubr.bf16.mxu0 0
      %2820 = vmatmul.mubr.bf16.gmra.mrb[0].mxu0 %v2667
      %v2821 = vpop.f32.mrb[0].mxu0
      %v2822 = vadd.f32 0.0, %v2821
      %v2823 = vpop.f32.mrb[0].mxu0
      %v2824 = vpop.f32.mrb[0].mxu0
      %v2825 = vadd.f32 0.0, %v2824
      %v2826 = vpop.f32.mrb[0].mxu0
      %2827 = vmatprep.mubr.bf16.mxu0 0
      %2828 = vmatmul.mubr.bf16.gmra.mrb[0].mxu0 %v2670
      %v2829 = vpop.f32.mrb[0].mxu0
      %v2830 = vadd.f32 0.0, %v2829
      %v2831 = vpop.f32.mrb[0].mxu0
      %v2832 = vpop.f32.mrb[0].mxu0
      %v2833 = vadd.f32 0.0, %v2832
      %v2834 = vpop.f32.mrb[0].mxu0
      %2835 = vdwg.mxu0
      %v2836 = vadd.f32 %v2542, %v2710
      %v2837 = vadd.f32 %v2543, %v2713
      %v2838 = vadd.f32 %v2544, %v2718
      %v2839 = vadd.f32 %v2545, %v2721
      %v2840 = vadd.f32 %v2546, %v2726
      %v2841 = vadd.f32 %v2547, %v2729
      %v2842 = vadd.f32 %v2548, %v2734
      %v2843 = vadd.f32 %v2549, %v2737
      %v2844 = vadd.f32 %v2550, %v2742
      %v2845 = vadd.f32 %v2551, %v2745
      %v2846 = vadd.f32 %v2552, %v2750
      %v2847 = vadd.f32 %v2553, %v2753
      %v2848 = vadd.f32 %v2554, %v2758
      %v2849 = vadd.f32 %v2555, %v2761
      %v2850 = vadd.f32 %v2556, %v2766
      %v2851 = vadd.f32 %v2557, %v2769
      %v2852 = vadd.f32 %v2558, %v2774
      %v2853 = vadd.f32 %v2559, %v2777
      %v2854 = vadd.f32 %v2560, %v2782
      %v2855 = vadd.f32 %v2561, %v2785
      %v2856 = vadd.f32 %v2562, %v2790
      %v2857 = vadd.f32 %v2563, %v2793
      %v2858 = vadd.f32 %v2564, %v2798
      %v2859 = vadd.f32 %v2565, %v2801
      %v2860 = vadd.f32 %v2566, %v2806
      %v2861 = vadd.f32 %v2567, %v2809
      %v2862 = vadd.f32 %v2568, %v2814
      %v2863 = vadd.f32 %v2569, %v2817
      %v2864 = vadd.f32 %v2570, %v2822
      %v2865 = vadd.f32 %v2571, %v2825
      %v2866 = vadd.f32 %v2572, %v2830
      %v2867 = vadd.f32 %v2573, %v2833
      %v2868 = vld [vmem:[%s400] sm:$0xff]
      %v2869 = vld [vmem:[%s400 + $0x8] sm:$0xff]
      %v2870 = vld [vmem:[%s400 + $0x18] sm:$0xff]
      %v2871 = vld [vmem:[%s400 + $0x20] sm:$0xff]
      %v2872 = vld [vmem:[%s400 + $0x30] sm:$0xff]
      %v2873 = vld [vmem:[%s400 + $0x38] sm:$0xff]
      %v2874 = vld [vmem:[%s400 + $0x48] sm:$0xff]
      %v2875 = vld [vmem:[%s400 + $0x50] sm:$0xff]
      %v2876 = vld [vmem:[%s400 + $0x60] sm:$0xff]
      %v2877 = vld [vmem:[%s400 + $0x68] sm:$0xff]
      %v2878 = vld [vmem:[%s400 + $0x78] sm:$0xff]
      %v2879 = vld [vmem:[%s400 + $0x80] sm:$0xff]
      %v2880 = vld [vmem:[%s400 + $0x90] sm:$0xff]
      %v2881 = vld [vmem:[%s400 + $0x98] sm:$0xff]
      %v2882 = vld [vmem:[%s400 + $0xa8] sm:$0xff]
      %v2883 = vld [vmem:[%s400 + $0xb0] sm:$0xff]
      %v2884 = vld [vmem:[%s400 + $0xc0] sm:$0xff]
      %v2885 = vld [vmem:[%s400 + $0xc8] sm:$0xff]
      %v2886 = vld [vmem:[%s400 + $0xd8] sm:$0xff]
      %v2887 = vld [vmem:[%s400 + $0xe0] sm:$0xff]
      %v2888 = vld [vmem:[%s400 + $0xf0] sm:$0xff]
      %v2889 = vld [vmem:[%s400 + $0xf8] sm:$0xff]
      %v2890 = vld [vmem:[%s400 + $0x108] sm:$0xff]
      %v2891 = vld [vmem:[%s400 + $0x110] sm:$0xff]
      %v2892 = vld [vmem:[%s400 + $0x120] sm:$0xff]
      %v2893 = vld [vmem:[%s400 + $0x128] sm:$0xff]
      %v2894 = vld [vmem:[%s400 + $0x138] sm:$0xff]
      %v2895 = vld [vmem:[%s400 + $0x140] sm:$0xff]
      %v2896 = vld [vmem:[%s400 + $0x150] sm:$0xff]
      %v2897 = vld [vmem:[%s400 + $0x158] sm:$0xff]
      %v2898 = vld [vmem:[%s400 + $0x168] sm:$0xff]
      %v2899 = vld [vmem:[%s400 + $0x170] sm:$0xff]
      %v2900 = vpack.c.bf16 %v2869, %v2868
      %v2901 = vpack.c.bf16 %v2871, %v2870
      %v2902 = vpack.c.bf16 %v2873, %v2872
      %v2903 = vpack.c.bf16 %v2875, %v2874
      %v2904 = vpack.c.bf16 %v2877, %v2876
      %v2905 = vpack.c.bf16 %v2879, %v2878
      %v2906 = vpack.c.bf16 %v2881, %v2880
      %v2907 = vpack.c.bf16 %v2883, %v2882
      %v2908 = vpack.c.bf16 %v2885, %v2884
      %v2909 = vpack.c.bf16 %v2887, %v2886
      %v2910 = vpack.c.bf16 %v2889, %v2888
      %v2911 = vpack.c.bf16 %v2891, %v2890
      %v2912 = vpack.c.bf16 %v2893, %v2892
      %v2913 = vpack.c.bf16 %v2895, %v2894
      %v2914 = vpack.c.bf16 %v2897, %v2896
      %v2915 = vpack.c.bf16 %v2899, %v2898
      %s2916 = scalar_lea.vmem %s3, 6
      %v2917 = vld [vmem:[%s2916] sm:$0x3]
      %v2919 = vsel %vm450, %v2900, 0
      %v2922 = vsel %vm450, %v2901, 0
      %v2925 = vsel %vm450, %v2902, 0
      %v2928 = vsel %vm450, %v2903, 0
      %v2931 = vsel %vm450, %v2904, 0
      %v2934 = vsel %vm450, %v2905, 0
      %v2937 = vsel %vm450, %v2906, 0
      %v2940 = vsel %vm450, %v2907, 0
      %v2943 = vsel %vm450, %v2908, 0
      %v2946 = vsel %vm450, %v2909, 0
      %v2949 = vsel %vm450, %v2910, 0
      %v2952 = vsel %vm450, %v2911, 0
      %v2955 = vsel %vm450, %v2912, 0
      %v2958 = vsel %vm450, %v2913, 0
      %v2961 = vsel %vm450, %v2914, 0
      %v2964 = vsel %vm450, %v2915, 0
      %v2967 = vsel %vm499, %v2917, 0
      %2969 = vmatprep.subr.bf16.mxu0 0
      %2970 = vmatpush1.bf16.msra.mxu0 %v2967
      %2971 = vmatprep.subr.bf16.mxu0 0
      %2972 = vmatpush1.bf16.msra.mxu0 0
      %2973 = vmatprep.subr.bf16.mxu0 0
      %2974 = vmatpush1.bf16.msra.mxu0 0
      %2975 = vmatprep.subr.bf16.mxu0 0
      %2976 = vmatpush1.bf16.msra.mxu0 0
      %2977 = vmatprep.subr.bf16.mxu0 0
      %2978 = vmatpush1.bf16.msra.mxu0 0
      %2979 = vmatprep.subr.bf16.mxu0 0
      %2980 = vmatpush1.bf16.msra.mxu0 0
      %2981 = vmatprep.subr.bf16.mxu0 0
      %2982 = vmatpush1.bf16.msra.mxu0 0
      %2983 = vmatprep.subr.bf16.mxu0 0
      %2984 = vmatpush1.bf16.msra.mxu0 0
      %2985 = vmatprep.subr.bf16.mxu0 0
      %2986 = vmatpush1.bf16.msra.mxu0 0
      %2987 = vmatprep.subr.bf16.mxu0 0
      %2988 = vmatpush1.bf16.msra.mxu0 0
      %2989 = vmatprep.subr.bf16.mxu0 0
      %2990 = vmatpush1.bf16.msra.mxu0 0
      %2991 = vmatprep.subr.bf16.mxu0 0
      %2992 = vmatpush1.bf16.msra.mxu0 0
      %2993 = vmatprep.subr.bf16.mxu0 0
      %2994 = vmatpush1.bf16.msra.mxu0 0
      %2995 = vmatprep.subr.bf16.mxu0 0
      %2996 = vmatpush1.bf16.msra.mxu0 0
      %2997 = vmatprep.subr.bf16.mxu0 0
      %2998 = vmatpush1.bf16.msra.mxu0 0
      %2999 = vmatprep.subr.bf16.mxu0 0
      %3000 = vmatpush1.bf16.msra.mxu0 0
      %3001 = vmatprep.mubr.bf16.mxu0 0
      %3002 = vmatmul.mubr.bf16.gmra.mrb[0].mxu0 %v2919
      %v3003 = vpop.f32.mrb[0].mxu0
      %v3004 = vadd.f32 0.0, %v3003
      %v3005 = vpop.f32.mrb[0].mxu0
      %v3006 = vpop.f32.mrb[0].mxu0
      %v3007 = vadd.f32 0.0, %v3006
      %v3008 = vpop.f32.mrb[0].mxu0
      %3009 = vmatprep.mubr.bf16.mxu0 0
      %3010 = vmatmul.mubr.bf16.gmra.mrb[0].mxu0 %v2922
      %v3011 = vpop.f32.mrb[0].mxu0
      %v3012 = vadd.f32 0.0, %v3011
      %v3013 = vpop.f32.mrb[0].mxu0
      %v3014 = vpop.f32.mrb[0].mxu0
      %v3015 = vadd.f32 0.0, %v3014
      %v3016 = vpop.f32.mrb[0].mxu0
      %3017 = vmatprep.mubr.bf16.mxu0 0
      %3018 = vmatmul.mubr.bf16.gmra.mrb[0].mxu0 %v2925
      %v3019 = vpop.f32.mrb[0].mxu0
      %v3020 = vadd.f32 0.0, %v3019
      %v3021 = vpop.f32.mrb[0].mxu0
      %v3022 = vpop.f32.mrb[0].mxu0
      %v3023 = vadd.f32 0.0, %v3022
      %v3024 = vpop.f32.mrb[0].mxu0
      %3025 = vmatprep.mubr.bf16.mxu0 0
      %3026 = vmatmul.mubr.bf16.gmra.mrb[0].mxu0 %v2928
      %v3027 = vpop.f32.mrb[0].mxu0
      %v3028 = vadd.f32 0.0, %v3027
      %v3029 = vpop.f32.mrb[0].mxu0
      %v3030 = vpop.f32.mrb[0].mxu0
      %v3031 = vadd.f32 0.0, %v3030
      %v3032 = vpop.f32.mrb[0].mxu0
      %3033 = vmatprep.mubr.bf16.mxu0 0
      %3034 = vmatmul.mubr.bf16.gmra.mrb[0].mxu0 %v2931
      %v3035 = vpop.f32.mrb[0].mxu0
      %v3036 = vadd.f32 0.0, %v3035
      %v3037 = vpop.f32.mrb[0].mxu0
      %v3038 = vpop.f32.mrb[0].mxu0
      %v3039 = vadd.f32 0.0, %v3038
      %v3040 = vpop.f32.mrb[0].mxu0
      %3041 = vmatprep.mubr.bf16.mxu0 0
      %3042 = vmatmul.mubr.bf16.gmra.mrb[0].mxu0 %v2934
      %v3043 = vpop.f32.mrb[0].mxu0
      %v3044 = vadd.f32 0.0, %v3043
      %v3045 = vpop.f32.mrb[0].mxu0
      %v3046 = vpop.f32.mrb[0].mxu0
      %v3047 = vadd.f32 0.0, %v3046
      %v3048 = vpop.f32.mrb[0].mxu0
      %3049 = vmatprep.mubr.bf16.mxu0 0
      %3050 = vmatmul.mubr.bf16.gmra.mrb[0].mxu0 %v2937
      %v3051 = vpop.f32.mrb[0].mxu0
      %v3052 = vadd.f32 0.0, %v3051
      %v3053 = vpop.f32.mrb[0].mxu0
      %v3054 = vpop.f32.mrb[0].mxu0
      %v3055 = vadd.f32 0.0, %v3054
      %v3056 = vpop.f32.mrb[0].mxu0
      %3057 = vmatprep.mubr.bf16.mxu0 0
      %3058 = vmatmul.mubr.bf16.gmra.mrb[0].mxu0 %v2940
      %v3059 = vpop.f32.mrb[0].mxu0
      %v3060 = vadd.f32 0.0, %v3059
      %v3061 = vpop.f32.mrb[0].mxu0
      %v3062 = vpop.f32.mrb[0].mxu0
      %v3063 = vadd.f32 0.0, %v3062
      %v3064 = vpop.f32.mrb[0].mxu0
      %3065 = vmatprep.mubr.bf16.mxu0 0
      %3066 = vmatmul.mubr.bf16.gmra.mrb[0].mxu0 %v2943
      %v3067 = vpop.f32.mrb[0].mxu0
      %v3068 = vadd.f32 0.0, %v3067
      %v3069 = vpop.f32.mrb[0].mxu0
      %v3070 = vpop.f32.mrb[0].mxu0
      %v3071 = vadd.f32 0.0, %v3070
      %v3072 = vpop.f32.mrb[0].mxu0
      %3073 = vmatprep.mubr.bf16.mxu0 0
      %3074 = vmatmul.mubr.bf16.gmra.mrb[0].mxu0 %v2946
      %v3075 = vpop.f32.mrb[0].mxu0
      %v3076 = vadd.f32 0.0, %v3075
      %v3077 = vpop.f32.mrb[0].mxu0
      %v3078 = vpop.f32.mrb[0].mxu0
      %v3079 = vadd.f32 0.0, %v3078
      %v3080 = vpop.f32.mrb[0].mxu0
      %3081 = vmatprep.mubr.bf16.mxu0 0
      %3082 = vmatmul.mubr.bf16.gmra.mrb[0].mxu0 %v2949
      %v3083 = vpop.f32.mrb[0].mxu0
      %v3084 = vadd.f32 0.0, %v3083
      %v3085 = vpop.f32.mrb[0].mxu0
      %v3086 = vpop.f32.mrb[0].mxu0
      %v3087 = vadd.f32 0.0, %v3086
      %v3088 = vpop.f32.mrb[0].mxu0
      %3089 = vmatprep.mubr.bf16.mxu0 0
      %3090 = vmatmul.mubr.bf16.gmra.mrb[0].mxu0 %v2952
      %v3091 = vpop.f32.mrb[0].mxu0
      %v3092 = vadd.f32 0.0, %v3091
      %v3093 = vpop.f32.mrb[0].mxu0
      %v3094 = vpop.f32.mrb[0].mxu0
      %v3095 = vadd.f32 0.0, %v3094
      %v3096 = vpop.f32.mrb[0].mxu0
      %3097 = vmatprep.mubr.bf16.mxu0 0
      %3098 = vmatmul.mubr.bf16.gmra.mrb[0].mxu0 %v2955
      %v3099 = vpop.f32.mrb[0].mxu0
      %v3100 = vadd.f32 0.0, %v3099
      %v3101 = vpop.f32.mrb[0].mxu0
      %v3102 = vpop.f32.mrb[0].mxu0
      %v3103 = vadd.f32 0.0, %v3102
      %v3104 = vpop.f32.mrb[0].mxu0
      %3105 = vmatprep.mubr.bf16.mxu0 0
      %3106 = vmatmul.mubr.bf16.gmra.mrb[0].mxu0 %v2958
      %v3107 = vpop.f32.mrb[0].mxu0
      %v3108 = vadd.f32 0.0, %v3107
      %v3109 = vpop.f32.mrb[0].mxu0
      %v3110 = vpop.f32.mrb[0].mxu0
      %v3111 = vadd.f32 0.0, %v3110
      %v3112 = vpop.f32.mrb[0].mxu0
      %3113 = vmatprep.mubr.bf16.mxu0 0
      %3114 = vmatmul.mubr.bf16.gmra.mrb[0].mxu0 %v2961
      %v3115 = vpop.f32.mrb[0].mxu0
      %v3116 = vadd.f32 0.0, %v3115
      %v3117 = vpop.f32.mrb[0].mxu0
      %v3118 = vpop.f32.mrb[0].mxu0
      %v3119 = vadd.f32 0.0, %v3118
      %v3120 = vpop.f32.mrb[0].mxu0
      %3121 = vmatprep.mubr.bf16.mxu0 0
      %3122 = vmatmul.mubr.bf16.gmra.mrb[0].mxu0 %v2964
      %v3123 = vpop.f32.mrb[0].mxu0
      %v3124 = vadd.f32 0.0, %v3123
      %v3125 = vpop.f32.mrb[0].mxu0
      %v3126 = vpop.f32.mrb[0].mxu0
      %v3127 = vadd.f32 0.0, %v3126
      %v3128 = vpop.f32.mrb[0].mxu0
      %3129 = vdwg.mxu0
      %v3130 = vadd.f32 %v2836, %v3004
      %v3131 = vadd.f32 %v2837, %v3007
      %v3132 = vadd.f32 %v2838, %v3012
      %v3133 = vadd.f32 %v2839, %v3015
      %v3134 = vadd.f32 %v2840, %v3020
      %v3135 = vadd.f32 %v2841, %v3023
      %v3136 = vadd.f32 %v2842, %v3028
      %v3137 = vadd.f32 %v2843, %v3031
      %v3138 = vadd.f32 %v2844, %v3036
      %v3139 = vadd.f32 %v2845, %v3039
      %v3140 = vadd.f32 %v2846, %v3044
      %v3141 = vadd.f32 %v2847, %v3047
      %v3142 = vadd.f32 %v2848, %v3052
      %v3143 = vadd.f32 %v2849, %v3055
      %v3144 = vadd.f32 %v2850, %v3060
      %v3145 = vadd.f32 %v2851, %v3063
      %v3146 = vadd.f32 %v2852, %v3068
      %v3147 = vadd.f32 %v2853, %v3071
      %v3148 = vadd.f32 %v2854, %v3076
      %v3149 = vadd.f32 %v2855, %v3079
      %v3150 = vadd.f32 %v2856, %v3084
      %v3151 = vadd.f32 %v2857, %v3087
      %v3152 = vadd.f32 %v2858, %v3092
      %v3153 = vadd.f32 %v2859, %v3095
      %v3154 = vadd.f32 %v2860, %v3100
      %v3155 = vadd.f32 %v2861, %v3103
      %v3156 = vadd.f32 %v2862, %v3108
      %v3157 = vadd.f32 %v2863, %v3111
      %v3158 = vadd.f32 %v2864, %v3116
      %v3159 = vadd.f32 %v2865, %v3119
      %v3160 = vadd.f32 %v2866, %v3124
      %v3161 = vadd.f32 %v2867, %v3127
      %s3162 = scalar_lea.vmem %s2, 8
      %v3163 = vld [vmem:[%s3162] sm:$0x3]
      %v3165 = vsel %vm499, %v3163, 0
      %3167 = vmatprep.subr.bf16.mxu0 0
      %3168 = vmatpush1.bf16.msra.mxu0 %v3165
      %3169 = vmatprep.subr.bf16.mxu0 0
      %3170 = vmatpush1.bf16.msra.mxu0 0
      %3171 = vmatprep.subr.bf16.mxu0 0
      %3172 = vmatpush1.bf16.msra.mxu0 0
      %3173 = vmatprep.subr.bf16.mxu0 0
      %3174 = vmatpush1.bf16.msra.mxu0 0
      %3175 = vmatprep.subr.bf16.mxu0 0
      %3176 = vmatpush1.bf16.msra.mxu0 0
      %3177 = vmatprep.subr.bf16.mxu0 0
      %3178 = vmatpush1.bf16.msra.mxu0 0
      %3179 = vmatprep.subr.bf16.mxu0 0
      %3180 = vmatpush1.bf16.msra.mxu0 0
      %3181 = vmatprep.subr.bf16.mxu0 0
      %3182 = vmatpush1.bf16.msra.mxu0 0
      %3183 = vmatprep.subr.bf16.mxu0 0
      %3184 = vmatpush1.bf16.msra.mxu0 0
      %3185 = vmatprep.subr.bf16.mxu0 0
      %3186 = vmatpush1.bf16.msra.mxu0 0
      %3187 = vmatprep.subr.bf16.mxu0 0
      %3188 = vmatpush1.bf16.msra.mxu0 0
      %3189 = vmatprep.subr.bf16.mxu0 0
      %3190 = vmatpush1.bf16.msra.mxu0 0
      %3191 = vmatprep.subr.bf16.mxu0 0
      %3192 = vmatpush1.bf16.msra.mxu0 0
      %3193 = vmatprep.subr.bf16.mxu0 0
      %3194 = vmatpush1.bf16.msra.mxu0 0
      %3195 = vmatprep.subr.bf16.mxu0 0
      %3196 = vmatpush1.bf16.msra.mxu0 0
      %3197 = vmatprep.subr.bf16.mxu0 0
      %3198 = vmatpush1.bf16.msra.mxu0 0
      %3199 = vmatprep.mubr.bf16.mxu0 0
      %3200 = vmatmul.mubr.bf16.gmra.mrb[0].mxu0 %v665
      %v3201 = vpop.f32.mrb[0].mxu0
      %v3202 = vadd.f32 0.0, %v3201
      %v3203 = vpop.f32.mrb[0].mxu0
      %v3204 = vpop.f32.mrb[0].mxu0
      %v3205 = vadd.f32 0.0, %v3204
      %v3206 = vpop.f32.mrb[0].mxu0
      %3207 = vmatprep.mubr.bf16.mxu0 0
      %3208 = vmatmul.mubr.bf16.gmra.mrb[0].mxu0 %v668
      %v3209 = vpop.f32.mrb[0].mxu0
      %v3210 = vadd.f32 0.0, %v3209
      %v3211 = vpop.f32.mrb[0].mxu0
      %v3212 = vpop.f32.mrb[0].mxu0
      %v3213 = vadd.f32 0.0, %v3212
      %v3214 = vpop.f32.mrb[0].mxu0
      %3215 = vmatprep.mubr.bf16.mxu0 0
      %3216 = vmatmul.mubr.bf16.gmra.mrb[0].mxu0 %v671
      %v3217 = vpop.f32.mrb[0].mxu0
      %v3218 = vadd.f32 0.0, %v3217
      %v3219 = vpop.f32.mrb[0].mxu0
      %v3220 = vpop.f32.mrb[0].mxu0
      %v3221 = vadd.f32 0.0, %v3220
      %v3222 = vpop.f32.mrb[0].mxu0
      %3223 = vmatprep.mubr.bf16.mxu0 0
      %3224 = vmatmul.mubr.bf16.gmra.mrb[0].mxu0 %v674
      %v3225 = vpop.f32.mrb[0].mxu0
      %v3226 = vadd.f32 0.0, %v3225
      %v3227 = vpop.f32.mrb[0].mxu0
      %v3228 = vpop.f32.mrb[0].mxu0
      %v3229 = vadd.f32 0.0, %v3228
      %v3230 = vpop.f32.mrb[0].mxu0
      %3231 = vmatprep.mubr.bf16.mxu0 0
      %3232 = vmatmul.mubr.bf16.gmra.mrb[0].mxu0 %v677
      %v3233 = vpop.f32.mrb[0].mxu0
      %v3234 = vadd.f32 0.0, %v3233
      %v3235 = vpop.f32.mrb[0].mxu0
      %v3236 = vpop.f32.mrb[0].mxu0
      %v3237 = vadd.f32 0.0, %v3236
      %v3238 = vpop.f32.mrb[0].mxu0
      %3239 = vmatprep.mubr.bf16.mxu0 0
      %3240 = vmatmul.mubr.bf16.gmra.mrb[0].mxu0 %v680
      %v3241 = vpop.f32.mrb[0].mxu0
      %v3242 = vadd.f32 0.0, %v3241
      %v3243 = vpop.f32.mrb[0].mxu0
      %v3244 = vpop.f32.mrb[0].mxu0
      %v3245 = vadd.f32 0.0, %v3244
      %v3246 = vpop.f32.mrb[0].mxu0
      %3247 = vmatprep.mubr.bf16.mxu0 0
      %3248 = vmatmul.mubr.bf16.gmra.mrb[0].mxu0 %v683
      %v3249 = vpop.f32.mrb[0].mxu0
      %v3250 = vadd.f32 0.0, %v3249
      %v3251 = vpop.f32.mrb[0].mxu0
      %v3252 = vpop.f32.mrb[0].mxu0
      %v3253 = vadd.f32 0.0, %v3252
      %v3254 = vpop.f32.mrb[0].mxu0
      %3255 = vmatprep.mubr.bf16.mxu0 0
      %3256 = vmatmul.mubr.bf16.gmra.mrb[0].mxu0 %v686
      %v3257 = vpop.f32.mrb[0].mxu0
      %v3258 = vadd.f32 0.0, %v3257
      %v3259 = vpop.f32.mrb[0].mxu0
      %v3260 = vpop.f32.mrb[0].mxu0
      %v3261 = vadd.f32 0.0, %v3260
      %v3262 = vpop.f32.mrb[0].mxu0
      %3263 = vmatprep.mubr.bf16.mxu0 0
      %3264 = vmatmul.mubr.bf16.gmra.mrb[0].mxu0 %v689
      %v3265 = vpop.f32.mrb[0].mxu0
      %v3266 = vadd.f32 0.0, %v3265
      %v3267 = vpop.f32.mrb[0].mxu0
      %v3268 = vpop.f32.mrb[0].mxu0
      %v3269 = vadd.f32 0.0, %v3268
      %v3270 = vpop.f32.mrb[0].mxu0
      %3271 = vmatprep.mubr.bf16.mxu0 0
      %3272 = vmatmul.mubr.bf16.gmra.mrb[0].mxu0 %v692
      %v3273 = vpop.f32.mrb[0].mxu0
      %v3274 = vadd.f32 0.0, %v3273
      %v3275 = vpop.f32.mrb[0].mxu0
      %v3276 = vpop.f32.mrb[0].mxu0
      %v3277 = vadd.f32 0.0, %v3276
      %v3278 = vpop.f32.mrb[0].mxu0
      %3279 = vmatprep.mubr.bf16.mxu0 0
      %3280 = vmatmul.mubr.bf16.gmra.mrb[0].mxu0 %v695
      %v3281 = vpop.f32.mrb[0].mxu0
      %v3282 = vadd.f32 0.0, %v3281
      %v3283 = vpop.f32.mrb[0].mxu0
      %v3284 = vpop.f32.mrb[0].mxu0
      %v3285 = vadd.f32 0.0, %v3284
      %v3286 = vpop.f32.mrb[0].mxu0
      %3287 = vmatprep.mubr.bf16.mxu0 0
      %3288 = vmatmul.mubr.bf16.gmra.mrb[0].mxu0 %v698
      %v3289 = vpop.f32.mrb[0].mxu0
      %v3290 = vadd.f32 0.0, %v3289
      %v3291 = vpop.f32.mrb[0].mxu0
      %v3292 = vpop.f32.mrb[0].mxu0
      %v3293 = vadd.f32 0.0, %v3292
      %v3294 = vpop.f32.mrb[0].mxu0
      %3295 = vmatprep.mubr.bf16.mxu0 0
      %3296 = vmatmul.mubr.bf16.gmra.mrb[0].mxu0 %v701
      %v3297 = vpop.f32.mrb[0].mxu0
      %v3298 = vadd.f32 0.0, %v3297
      %v3299 = vpop.f32.mrb[0].mxu0
      %v3300 = vpop.f32.mrb[0].mxu0
      %v3301 = vadd.f32 0.0, %v3300
      %v3302 = vpop.f32.mrb[0].mxu0
      %3303 = vmatprep.mubr.bf16.mxu0 0
      %3304 = vmatmul.mubr.bf16.gmra.mrb[0].mxu0 %v704
      %v3305 = vpop.f32.mrb[0].mxu0
      %v3306 = vadd.f32 0.0, %v3305
      %v3307 = vpop.f32.mrb[0].mxu0
      %v3308 = vpop.f32.mrb[0].mxu0
      %v3309 = vadd.f32 0.0, %v3308
      %v3310 = vpop.f32.mrb[0].mxu0
      %3311 = vmatprep.mubr.bf16.mxu0 0
      %3312 = vmatmul.mubr.bf16.gmra.mrb[0].mxu0 %v707
      %v3313 = vpop.f32.mrb[0].mxu0
      %v3314 = vadd.f32 0.0, %v3313
      %v3315 = vpop.f32.mrb[0].mxu0
      %v3316 = vpop.f32.mrb[0].mxu0
      %v3317 = vadd.f32 0.0, %v3316
      %v3318 = vpop.f32.mrb[0].mxu0
      %3319 = vmatprep.mubr.bf16.mxu0 0
      %3320 = vmatmul.mubr.bf16.gmra.mrb[0].mxu0 %v710
      %v3321 = vpop.f32.mrb[0].mxu0
      %v3322 = vadd.f32 0.0, %v3321
      %v3323 = vpop.f32.mrb[0].mxu0
      %v3324 = vpop.f32.mrb[0].mxu0
      %v3325 = vadd.f32 0.0, %v3324
      %v3326 = vpop.f32.mrb[0].mxu0
      %3327 = vdwg.mxu0
      %v3328 = vadd.f32 %v3130, %v3202
      %v3329 = vadd.f32 %v3131, %v3205
      %v3330 = vadd.f32 %v3132, %v3210
      %v3331 = vadd.f32 %v3133, %v3213
      %v3332 = vadd.f32 %v3134, %v3218
      %v3333 = vadd.f32 %v3135, %v3221
      %v3334 = vadd.f32 %v3136, %v3226
      %v3335 = vadd.f32 %v3137, %v3229
      %v3336 = vadd.f32 %v3138, %v3234
      %v3337 = vadd.f32 %v3139, %v3237
      %v3338 = vadd.f32 %v3140, %v3242
      %v3339 = vadd.f32 %v3141, %v3245
      %v3340 = vadd.f32 %v3142, %v3250
      %v3341 = vadd.f32 %v3143, %v3253
      %v3342 = vadd.f32 %v3144, %v3258
      %v3343 = vadd.f32 %v3145, %v3261
      %v3344 = vadd.f32 %v3146, %v3266
      %v3345 = vadd.f32 %v3147, %v3269
      %v3346 = vadd.f32 %v3148, %v3274
      %v3347 = vadd.f32 %v3149, %v3277
      %v3348 = vadd.f32 %v3150, %v3282
      %v3349 = vadd.f32 %v3151, %v3285
      %v3350 = vadd.f32 %v3152, %v3290
      %v3351 = vadd.f32 %v3153, %v3293
      %v3352 = vadd.f32 %v3154, %v3298
      %v3353 = vadd.f32 %v3155, %v3301
      %v3354 = vadd.f32 %v3156, %v3306
      %v3355 = vadd.f32 %v3157, %v3309
      %v3356 = vadd.f32 %v3158, %v3314
      %v3357 = vadd.f32 %v3159, %v3317
      %v3358 = vadd.f32 %v3160, %v3322
      %v3359 = vadd.f32 %v3161, %v3325
      %s3360 = scalar_lea.vmem %s3, 8
      %v3361 = vld [vmem:[%s3360] sm:$0x3]
      %v3363 = vsel %vm499, %v3361, 0
      %3365 = vmatprep.subr.bf16.mxu0 0
      %3366 = vmatpush1.bf16.msra.mxu0 %v3363
      %3367 = vmatprep.subr.bf16.mxu0 0
      %3368 = vmatpush1.bf16.msra.mxu0 0
      %3369 = vmatprep.subr.bf16.mxu0 0
      %3370 = vmatpush1.bf16.msra.mxu0 0
      %3371 = vmatprep.subr.bf16.mxu0 0
      %3372 = vmatpush1.bf16.msra.mxu0 0
      %3373 = vmatprep.subr.bf16.mxu0 0
      %3374 = vmatpush1.bf16.msra.mxu0 0
      %3375 = vmatprep.subr.bf16.mxu0 0
      %3376 = vmatpush1.bf16.msra.mxu0 0
      %3377 = vmatprep.subr.bf16.mxu0 0
      %3378 = vmatpush1.bf16.msra.mxu0 0
      %3379 = vmatprep.subr.bf16.mxu0 0
      %3380 = vmatpush1.bf16.msra.mxu0 0
      %3381 = vmatprep.subr.bf16.mxu0 0
      %3382 = vmatpush1.bf16.msra.mxu0 0
      %3383 = vmatprep.subr.bf16.mxu0 0
      %3384 = vmatpush1.bf16.msra.mxu0 0
      %3385 = vmatprep.subr.bf16.mxu0 0
      %3386 = vmatpush1.bf16.msra.mxu0 0
      %3387 = vmatprep.subr.bf16.mxu0 0
      %3388 = vmatpush1.bf16.msra.mxu0 0
      %3389 = vmatprep.subr.bf16.mxu0 0
      %3390 = vmatpush1.bf16.msra.mxu0 0
      %3391 = vmatprep.subr.bf16.mxu0 0
      %3392 = vmatpush1.bf16.msra.mxu0 0
      %3393 = vmatprep.subr.bf16.mxu0 0
      %3394 = vmatpush1.bf16.msra.mxu0 0
      %3395 = vmatprep.subr.bf16.mxu0 0
      %3396 = vmatpush1.bf16.msra.mxu0 0
      %3397 = vmatprep.mubr.bf16.mxu0 0
      %3398 = vmatmul.mubr.bf16.gmra.mrb[0].mxu0 %v452
      %v3399 = vpop.f32.mrb[0].mxu0
      %v3400 = vadd.f32 0.0, %v3399
      %v3401 = vpop.f32.mrb[0].mxu0
      %v3402 = vpop.f32.mrb[0].mxu0
      %v3403 = vadd.f32 0.0, %v3402
      %v3404 = vpop.f32.mrb[0].mxu0
      %3405 = vmatprep.mubr.bf16.mxu0 0
      %3406 = vmatmul.mubr.bf16.gmra.mrb[0].mxu0 %v455
      %v3407 = vpop.f32.mrb[0].mxu0
      %v3408 = vadd.f32 0.0, %v3407
      %v3409 = vpop.f32.mrb[0].mxu0
      %v3410 = vpop.f32.mrb[0].mxu0
      %v3411 = vadd.f32 0.0, %v3410
      %v3412 = vpop.f32.mrb[0].mxu0
      %3413 = vmatprep.mubr.bf16.mxu0 0
      %3414 = vmatmul.mubr.bf16.gmra.mrb[0].mxu0 %v458
      %v3415 = vpop.f32.mrb[0].mxu0
      %v3416 = vadd.f32 0.0, %v3415
      %v3417 = vpop.f32.mrb[0].mxu0
      %v3418 = vpop.f32.mrb[0].mxu0
      %v3419 = vadd.f32 0.0, %v3418
      %v3420 = vpop.f32.mrb[0].mxu0
      %3421 = vmatprep.mubr.bf16.mxu0 0
      %3422 = vmatmul.mubr.bf16.gmra.mrb[0].mxu0 %v461
      %v3423 = vpop.f32.mrb[0].mxu0
      %v3424 = vadd.f32 0.0, %v3423
      %v3425 = vpop.f32.mrb[0].mxu0
      %v3426 = vpop.f32.mrb[0].mxu0
      %v3427 = vadd.f32 0.0, %v3426
      %v3428 = vpop.f32.mrb[0].mxu0
      %3429 = vmatprep.mubr.bf16.mxu0 0
      %3430 = vmatmul.mubr.bf16.gmra.mrb[0].mxu0 %v464
      %v3431 = vpop.f32.mrb[0].mxu0
      %v3432 = vadd.f32 0.0, %v3431
      %v3433 = vpop.f32.mrb[0].mxu0
      %v3434 = vpop.f32.mrb[0].mxu0
      %v3435 = vadd.f32 0.0, %v3434
      %v3436 = vpop.f32.mrb[0].mxu0
      %3437 = vmatprep.mubr.bf16.mxu0 0
      %3438 = vmatmul.mubr.bf16.gmra.mrb[0].mxu0 %v467
      %v3439 = vpop.f32.mrb[0].mxu0
      %v3440 = vadd.f32 0.0, %v3439
      %v3441 = vpop.f32.mrb[0].mxu0
      %v3442 = vpop.f32.mrb[0].mxu0
      %v3443 = vadd.f32 0.0, %v3442
      %v3444 = vpop.f32.mrb[0].mxu0
      %3445 = vmatprep.mubr.bf16.mxu0 0
      %3446 = vmatmul.mubr.bf16.gmra.mrb[0].mxu0 %v470
      %v3447 = vpop.f32.mrb[0].mxu0
      %v3448 = vadd.f32 0.0, %v3447
      %v3449 = vpop.f32.mrb[0].mxu0
      %v3450 = vpop.f32.mrb[0].mxu0
      %v3451 = vadd.f32 0.0, %v3450
      %v3452 = vpop.f32.mrb[0].mxu0
      %3453 = vmatprep.mubr.bf16.mxu0 0
      %3454 = vmatmul.mubr.bf16.gmra.mrb[0].mxu0 %v473
      %v3455 = vpop.f32.mrb[0].mxu0
      %v3456 = vadd.f32 0.0, %v3455
      %v3457 = vpop.f32.mrb[0].mxu0
      %v3458 = vpop.f32.mrb[0].mxu0
      %v3459 = vadd.f32 0.0, %v3458
      %v3460 = vpop.f32.mrb[0].mxu0
      %3461 = vmatprep.mubr.bf16.mxu0 0
      %3462 = vmatmul.mubr.bf16.gmra.mrb[0].mxu0 %v476
      %v3463 = vpop.f32.mrb[0].mxu0
      %v3464 = vadd.f32 0.0, %v3463
      %v3465 = vpop.f32.mrb[0].mxu0
      %v3466 = vpop.f32.mrb[0].mxu0
      %v3467 = vadd.f32 0.0, %v3466
      %v3468 = vpop.f32.mrb[0].mxu0
      %3469 = vmatprep.mubr.bf16.mxu0 0
      %3470 = vmatmul.mubr.bf16.gmra.mrb[0].mxu0 %v479
      %v3471 = vpop.f32.mrb[0].mxu0
      %v3472 = vadd.f32 0.0, %v3471
      %v3473 = vpop.f32.mrb[0].mxu0
      %v3474 = vpop.f32.mrb[0].mxu0
      %v3475 = vadd.f32 0.0, %v3474
      %v3476 = vpop.f32.mrb[0].mxu0
      %3477 = vmatprep.mubr.bf16.mxu0 0
      %3478 = vmatmul.mubr.bf16.gmra.mrb[0].mxu0 %v482
      %v3479 = vpop.f32.mrb[0].mxu0
      %v3480 = vadd.f32 0.0, %v3479
      %v3481 = vpop.f32.mrb[0].mxu0
      %v3482 = vpop.f32.mrb[0].mxu0
      %v3483 = vadd.f32 0.0, %v3482
      %v3484 = vpop.f32.mrb[0].mxu0
      %3485 = vmatprep.mubr.bf16.mxu0 0
      %3486 = vmatmul.mubr.bf16.gmra.mrb[0].mxu0 %v485
      %v3487 = vpop.f32.mrb[0].mxu0
      %v3488 = vadd.f32 0.0, %v3487
      %v3489 = vpop.f32.mrb[0].mxu0
      %v3490 = vpop.f32.mrb[0].mxu0
      %v3491 = vadd.f32 0.0, %v3490
      %v3492 = vpop.f32.mrb[0].mxu0
      %3493 = vmatprep.mubr.bf16.mxu0 0
      %3494 = vmatmul.mubr.bf16.gmra.mrb[0].mxu0 %v488
      %v3495 = vpop.f32.mrb[0].mxu0
      %v3496 = vadd.f32 0.0, %v3495
      %v3497 = vpop.f32.mrb[0].mxu0
      %v3498 = vpop.f32.mrb[0].mxu0
      %v3499 = vadd.f32 0.0, %v3498
      %v3500 = vpop.f32.mrb[0].mxu0
      %3501 = vmatprep.mubr.bf16.mxu0 0
      %3502 = vmatmul.mubr.bf16.gmra.mrb[0].mxu0 %v491
      %v3503 = vpop.f32.mrb[0].mxu0
      %v3504 = vadd.f32 0.0, %v3503
      %v3505 = vpop.f32.mrb[0].mxu0
      %v3506 = vpop.f32.mrb[0].mxu0
      %v3507 = vadd.f32 0.0, %v3506
      %v3508 = vpop.f32.mrb[0].mxu0
      %3509 = vmatprep.mubr.bf16.mxu0 0
      %3510 = vmatmul.mubr.bf16.gmra.mrb[0].mxu0 %v494
      %v3511 = vpop.f32.mrb[0].mxu0
      %v3512 = vadd.f32 0.0, %v3511
      %v3513 = vpop.f32.mrb[0].mxu0
      %v3514 = vpop.f32.mrb[0].mxu0
      %v3515 = vadd.f32 0.0, %v3514
      %v3516 = vpop.f32.mrb[0].mxu0
      %3517 = vmatprep.mubr.bf16.mxu0 0
      %3518 = vmatmul.mubr.bf16.gmra.mrb[0].mxu0 %v497
      %v3519 = vpop.f32.mrb[0].mxu0
      %v3520 = vadd.f32 0.0, %v3519
      %v3521 = vpop.f32.mrb[0].mxu0
      %v3522 = vpop.f32.mrb[0].mxu0
      %v3523 = vadd.f32 0.0, %v3522
      %v3524 = vpop.f32.mrb[0].mxu0
      %3525 = vdwg.mxu0
      %v3526 = vadd.f32 %v3328, %v3400
      %v3527 = vadd.f32 %v3329, %v3403
      %v3528 = vadd.f32 %v3330, %v3408
      %v3529 = vadd.f32 %v3331, %v3411
      %v3530 = vadd.f32 %v3332, %v3416
      %v3531 = vadd.f32 %v3333, %v3419
      %v3532 = vadd.f32 %v3334, %v3424
      %v3533 = vadd.f32 %v3335, %v3427
      %v3534 = vadd.f32 %v3336, %v3432
      %v3535 = vadd.f32 %v3337, %v3435
      %v3536 = vadd.f32 %v3338, %v3440
      %v3537 = vadd.f32 %v3339, %v3443
      %v3538 = vadd.f32 %v3340, %v3448
      %v3539 = vadd.f32 %v3341, %v3451
      %v3540 = vadd.f32 %v3342, %v3456
      %v3541 = vadd.f32 %v3343, %v3459
      %v3542 = vadd.f32 %v3344, %v3464
      %v3543 = vadd.f32 %v3345, %v3467
      %v3544 = vadd.f32 %v3346, %v3472
      %v3545 = vadd.f32 %v3347, %v3475
      %v3546 = vadd.f32 %v3348, %v3480
      %v3547 = vadd.f32 %v3349, %v3483
      %v3548 = vadd.f32 %v3350, %v3488
      %v3549 = vadd.f32 %v3351, %v3491
      %v3550 = vadd.f32 %v3352, %v3496
      %v3551 = vadd.f32 %v3353, %v3499
      %v3552 = vadd.f32 %v3354, %v3504
      %v3553 = vadd.f32 %v3355, %v3507
      %v3554 = vadd.f32 %v3356, %v3512
      %v3555 = vadd.f32 %v3357, %v3515
      %v3556 = vadd.f32 %v3358, %v3520
      %v3557 = vadd.f32 %v3359, %v3523
      %v3558 = vld [vmem:[%s350 + $0x2] sm:$0xff]
      %v3559 = vld [vmem:[%s350 + $0xa] sm:$0xff]
      %v3560 = vld [vmem:[%s350 + $0x1a] sm:$0xff]
      %v3561 = vld [vmem:[%s350 + $0x22] sm:$0xff]
      %v3562 = vld [vmem:[%s350 + $0x32] sm:$0xff]
      %v3563 = vld [vmem:[%s350 + $0x3a] sm:$0xff]
      %v3564 = vld [vmem:[%s350 + $0x4a] sm:$0xff]
      %v3565 = vld [vmem:[%s350 + $0x52] sm:$0xff]
      %v3566 = vld [vmem:[%s350 + $0x62] sm:$0xff]
      %v3567 = vld [vmem:[%s350 + $0x6a] sm:$0xff]
      %v3568 = vld [vmem:[%s350 + $0x7a] sm:$0xff]
      %v3569 = vld [vmem:[%s350 + $0x82] sm:$0xff]
      %v3570 = vld [vmem:[%s350 + $0x92] sm:$0xff]
      %v3571 = vld [vmem:[%s350 + $0x9a] sm:$0xff]
      %v3572 = vld [vmem:[%s350 + $0xaa] sm:$0xff]
      %v3573 = vld [vmem:[%s350 + $0xb2] sm:$0xff]
      %v3574 = vld [vmem:[%s350 + $0xc2] sm:$0xff]
      %v3575 = vld [vmem:[%s350 + $0xca] sm:$0xff]
      %v3576 = vld [vmem:[%s350 + $0xda] sm:$0xff]
      %v3577 = vld [vmem:[%s350 + $0xe2] sm:$0xff]
      %v3578 = vld [vmem:[%s350 + $0xf2] sm:$0xff]
      %v3579 = vld [vmem:[%s350 + $0xfa] sm:$0xff]
      %v3580 = vld [vmem:[%s350 + $0x10a] sm:$0xff]
      %v3581 = vld [vmem:[%s350 + $0x112] sm:$0xff]
      %v3582 = vld [vmem:[%s350 + $0x122] sm:$0xff]
      %v3583 = vld [vmem:[%s350 + $0x12a] sm:$0xff]
      %v3584 = vld [vmem:[%s350 + $0x13a] sm:$0xff]
      %v3585 = vld [vmem:[%s350 + $0x142] sm:$0xff]
      %v3586 = vld [vmem:[%s350 + $0x152] sm:$0xff]
      %v3587 = vld [vmem:[%s350 + $0x15a] sm:$0xff]
      %v3588 = vld [vmem:[%s350 + $0x16a] sm:$0xff]
      %v3589 = vld [vmem:[%s350 + $0x172] sm:$0xff]
      %v3590 = vpack.c.bf16 %v3559, %v3558
      %v3591 = vpack.c.bf16 %v3561, %v3560
      %v3592 = vpack.c.bf16 %v3563, %v3562
      %v3593 = vpack.c.bf16 %v3565, %v3564
      %v3594 = vpack.c.bf16 %v3567, %v3566
      %v3595 = vpack.c.bf16 %v3569, %v3568
      %v3596 = vpack.c.bf16 %v3571, %v3570
      %v3597 = vpack.c.bf16 %v3573, %v3572
      %v3598 = vpack.c.bf16 %v3575, %v3574
      %v3599 = vpack.c.bf16 %v3577, %v3576
      %v3600 = vpack.c.bf16 %v3579, %v3578
      %v3601 = vpack.c.bf16 %v3581, %v3580
      %v3602 = vpack.c.bf16 %v3583, %v3582
      %v3603 = vpack.c.bf16 %v3585, %v3584
      %v3604 = vpack.c.bf16 %v3587, %v3586
      %v3605 = vpack.c.bf16 %v3589, %v3588
      %s3606 = scalar_lea.vmem %s2, 10
      %v3607 = vld [vmem:[%s3606] sm:$0x3]
      %v3609 = vsel %vm450, %v3590, 0
      %v3612 = vsel %vm450, %v3591, 0
      %v3615 = vsel %vm450, %v3592, 0
      %v3618 = vsel %vm450, %v3593, 0
      %v3621 = vsel %vm450, %v3594, 0
      %v3624 = vsel %vm450, %v3595, 0
      %v3627 = vsel %vm450, %v3596, 0
      %v3630 = vsel %vm450, %v3597, 0
      %v3633 = vsel %vm450, %v3598, 0
      %v3636 = vsel %vm450, %v3599, 0
      %v3639 = vsel %vm450, %v3600, 0
      %v3642 = vsel %vm450, %v3601, 0
      %v3645 = vsel %vm450, %v3602, 0
      %v3648 = vsel %vm450, %v3603, 0
      %v3651 = vsel %vm450, %v3604, 0
      %v3654 = vsel %vm450, %v3605, 0
      %v3657 = vsel %vm499, %v3607, 0
      %3659 = vmatprep.subr.bf16.mxu0 0
      %3660 = vmatpush1.bf16.msra.mxu0 %v3657
      %3661 = vmatprep.subr.bf16.mxu0 0
      %3662 = vmatpush1.bf16.msra.mxu0 0
      %3663 = vmatprep.subr.bf16.mxu0 0
      %3664 = vmatpush1.bf16.msra.mxu0 0
      %3665 = vmatprep.subr.bf16.mxu0 0
      %3666 = vmatpush1.bf16.msra.mxu0 0
      %3667 = vmatprep.subr.bf16.mxu0 0
      %3668 = vmatpush1.bf16.msra.mxu0 0
      %3669 = vmatprep.subr.bf16.mxu0 0
      %3670 = vmatpush1.bf16.msra.mxu0 0
      %3671 = vmatprep.subr.bf16.mxu0 0
      %3672 = vmatpush1.bf16.msra.mxu0 0
      %3673 = vmatprep.subr.bf16.mxu0 0
      %3674 = vmatpush1.bf16.msra.mxu0 0
      %3675 = vmatprep.subr.bf16.mxu0 0
      %3676 = vmatpush1.bf16.msra.mxu0 0
      %3677 = vmatprep.subr.bf16.mxu0 0
      %3678 = vmatpush1.bf16.msra.mxu0 0
      %3679 = vmatprep.subr.bf16.mxu0 0
      %3680 = vmatpush1.bf16.msra.mxu0 0
      %3681 = vmatprep.subr.bf16.mxu0 0
      %3682 = vmatpush1.bf16.msra.mxu0 0
      %3683 = vmatprep.subr.bf16.mxu0 0
      %3684 = vmatpush1.bf16.msra.mxu0 0
      %3685 = vmatprep.subr.bf16.mxu0 0
      %3686 = vmatpush1.bf16.msra.mxu0 0
      %3687 = vmatprep.subr.bf16.mxu0 0
      %3688 = vmatpush1.bf16.msra.mxu0 0
      %3689 = vmatprep.subr.bf16.mxu0 0
      %3690 = vmatpush1.bf16.msra.mxu0 0
      %3691 = vmatprep.mubr.bf16.mxu0 0
      %3692 = vmatmul.mubr.bf16.gmra.mrb[0].mxu0 %v3609
      %v3693 = vpop.f32.mrb[0].mxu0
      %v3694 = vadd.f32 0.0, %v3693
      %v3695 = vpop.f32.mrb[0].mxu0
      %v3696 = vpop.f32.mrb[0].mxu0
      %v3697 = vadd.f32 0.0, %v3696
      %v3698 = vpop.f32.mrb[0].mxu0
      %3699 = vmatprep.mubr.bf16.mxu0 0
      %3700 = vmatmul.mubr.bf16.gmra.mrb[0].mxu0 %v3612
      %v3701 = vpop.f32.mrb[0].mxu0
      %v3702 = vadd.f32 0.0, %v3701
      %v3703 = vpop.f32.mrb[0].mxu0
      %v3704 = vpop.f32.mrb[0].mxu0
      %v3705 = vadd.f32 0.0, %v3704
      %v3706 = vpop.f32.mrb[0].mxu0
      %3707 = vmatprep.mubr.bf16.mxu0 0
      %3708 = vmatmul.mubr.bf16.gmra.mrb[0].mxu0 %v3615
      %v3709 = vpop.f32.mrb[0].mxu0
      %v3710 = vadd.f32 0.0, %v3709
      %v3711 = vpop.f32.mrb[0].mxu0
      %v3712 = vpop.f32.mrb[0].mxu0
      %v3713 = vadd.f32 0.0, %v3712
      %v3714 = vpop.f32.mrb[0].mxu0
      %3715 = vmatprep.mubr.bf16.mxu0 0
      %3716 = vmatmul.mubr.bf16.gmra.mrb[0].mxu0 %v3618
      %v3717 = vpop.f32.mrb[0].mxu0
      %v3718 = vadd.f32 0.0, %v3717
      %v3719 = vpop.f32.mrb[0].mxu0
      %v3720 = vpop.f32.mrb[0].mxu0
      %v3721 = vadd.f32 0.0, %v3720
      %v3722 = vpop.f32.mrb[0].mxu0
      %3723 = vmatprep.mubr.bf16.mxu0 0
      %3724 = vmatmul.mubr.bf16.gmra.mrb[0].mxu0 %v3621
      %v3725 = vpop.f32.mrb[0].mxu0
      %v3726 = vadd.f32 0.0, %v3725
      %v3727 = vpop.f32.mrb[0].mxu0
      %v3728 = vpop.f32.mrb[0].mxu0
      %v3729 = vadd.f32 0.0, %v3728
      %v3730 = vpop.f32.mrb[0].mxu0
      %3731 = vmatprep.mubr.bf16.mxu0 0
      %3732 = vmatmul.mubr.bf16.gmra.mrb[0].mxu0 %v3624
      %v3733 = vpop.f32.mrb[0].mxu0
      %v3734 = vadd.f32 0.0, %v3733
      %v3735 = vpop.f32.mrb[0].mxu0
      %v3736 = vpop.f32.mrb[0].mxu0
      %v3737 = vadd.f32 0.0, %v3736
      %v3738 = vpop.f32.mrb[0].mxu0
      %3739 = vmatprep.mubr.bf16.mxu0 0
      %3740 = vmatmul.mubr.bf16.gmra.mrb[0].mxu0 %v3627
      %v3741 = vpop.f32.mrb[0].mxu0
      %v3742 = vadd.f32 0.0, %v3741
      %v3743 = vpop.f32.mrb[0].mxu0
      %v3744 = vpop.f32.mrb[0].mxu0
      %v3745 = vadd.f32 0.0, %v3744
      %v3746 = vpop.f32.mrb[0].mxu0
      %3747 = vmatprep.mubr.bf16.mxu0 0
      %3748 = vmatmul.mubr.bf16.gmra.mrb[0].mxu0 %v3630
      %v3749 = vpop.f32.mrb[0].mxu0
      %v3750 = vadd.f32 0.0, %v3749
      %v3751 = vpop.f32.mrb[0].mxu0
      %v3752 = vpop.f32.mrb[0].mxu0
      %v3753 = vadd.f32 0.0, %v3752
      %v3754 = vpop.f32.mrb[0].mxu0
      %3755 = vmatprep.mubr.bf16.mxu0 0
      %3756 = vmatmul.mubr.bf16.gmra.mrb[0].mxu0 %v3633
      %v3757 = vpop.f32.mrb[0].mxu0
      %v3758 = vadd.f32 0.0, %v3757
      %v3759 = vpop.f32.mrb[0].mxu0
      %v3760 = vpop.f32.mrb[0].mxu0
      %v3761 = vadd.f32 0.0, %v3760
      %v3762 = vpop.f32.mrb[0].mxu0
      %3763 = vmatprep.mubr.bf16.mxu0 0
      %3764 = vmatmul.mubr.bf16.gmra.mrb[0].mxu0 %v3636
      %v3765 = vpop.f32.mrb[0].mxu0
      %v3766 = vadd.f32 0.0, %v3765
      %v3767 = vpop.f32.mrb[0].mxu0
      %v3768 = vpop.f32.mrb[0].mxu0
      %v3769 = vadd.f32 0.0, %v3768
      %v3770 = vpop.f32.mrb[0].mxu0
      %3771 = vmatprep.mubr.bf16.mxu0 0
      %3772 = vmatmul.mubr.bf16.gmra.mrb[0].mxu0 %v3639
      %v3773 = vpop.f32.mrb[0].mxu0
      %v3774 = vadd.f32 0.0, %v3773
      %v3775 = vpop.f32.mrb[0].mxu0
      %v3776 = vpop.f32.mrb[0].mxu0
      %v3777 = vadd.f32 0.0, %v3776
      %v3778 = vpop.f32.mrb[0].mxu0
      %3779 = vmatprep.mubr.bf16.mxu0 0
      %3780 = vmatmul.mubr.bf16.gmra.mrb[0].mxu0 %v3642
      %v3781 = vpop.f32.mrb[0].mxu0
      %v3782 = vadd.f32 0.0, %v3781
      %v3783 = vpop.f32.mrb[0].mxu0
      %v3784 = vpop.f32.mrb[0].mxu0
      %v3785 = vadd.f32 0.0, %v3784
      %v3786 = vpop.f32.mrb[0].mxu0
      %3787 = vmatprep.mubr.bf16.mxu0 0
      %3788 = vmatmul.mubr.bf16.gmra.mrb[0].mxu0 %v3645
      %v3789 = vpop.f32.mrb[0].mxu0
      %v3790 = vadd.f32 0.0, %v3789
      %v3791 = vpop.f32.mrb[0].mxu0
      %v3792 = vpop.f32.mrb[0].mxu0
      %v3793 = vadd.f32 0.0, %v3792
      %v3794 = vpop.f32.mrb[0].mxu0
      %3795 = vmatprep.mubr.bf16.mxu0 0
      %3796 = vmatmul.mubr.bf16.gmra.mrb[0].mxu0 %v3648
      %v3797 = vpop.f32.mrb[0].mxu0
      %v3798 = vadd.f32 0.0, %v3797
      %v3799 = vpop.f32.mrb[0].mxu0
      %v3800 = vpop.f32.mrb[0].mxu0
      %v3801 = vadd.f32 0.0, %v3800
      %v3802 = vpop.f32.mrb[0].mxu0
      %3803 = vmatprep.mubr.bf16.mxu0 0
      %3804 = vmatmul.mubr.bf16.gmra.mrb[0].mxu0 %v3651
      %v3805 = vpop.f32.mrb[0].mxu0
      %v3806 = vadd.f32 0.0, %v3805
      %v3807 = vpop.f32.mrb[0].mxu0
      %v3808 = vpop.f32.mrb[0].mxu0
      %v3809 = vadd.f32 0.0, %v3808
      %v3810 = vpop.f32.mrb[0].mxu0
      %3811 = vmatprep.mubr.bf16.mxu0 0
      %3812 = vmatmul.mubr.bf16.gmra.mrb[0].mxu0 %v3654
      %v3813 = vpop.f32.mrb[0].mxu0
      %v3814 = vadd.f32 0.0, %v3813
      %v3815 = vpop.f32.mrb[0].mxu0
      %v3816 = vpop.f32.mrb[0].mxu0
      %v3817 = vadd.f32 0.0, %v3816
      %v3818 = vpop.f32.mrb[0].mxu0
      %3819 = vdwg.mxu0
      %v3820 = vadd.f32 %v3526, %v3694
      %v3821 = vadd.f32 %v3527, %v3697
      %v3822 = vadd.f32 %v3528, %v3702
      %v3823 = vadd.f32 %v3529, %v3705
      %v3824 = vadd.f32 %v3530, %v3710
      %v3825 = vadd.f32 %v3531, %v3713
      %v3826 = vadd.f32 %v3532, %v3718
      %v3827 = vadd.f32 %v3533, %v3721
      %v3828 = vadd.f32 %v3534, %v3726
      %v3829 = vadd.f32 %v3535, %v3729
      %v3830 = vadd.f32 %v3536, %v3734
      %v3831 = vadd.f32 %v3537, %v3737
      %v3832 = vadd.f32 %v3538, %v3742
      %v3833 = vadd.f32 %v3539, %v3745
      %v3834 = vadd.f32 %v3540, %v3750
      %v3835 = vadd.f32 %v3541, %v3753
      %v3836 = vadd.f32 %v3542, %v3758
      %v3837 = vadd.f32 %v3543, %v3761
      %v3838 = vadd.f32 %v3544, %v3766
      %v3839 = vadd.f32 %v3545, %v3769
      %v3840 = vadd.f32 %v3546, %v3774
      %v3841 = vadd.f32 %v3547, %v3777
      %v3842 = vadd.f32 %v3548, %v3782
      %v3843 = vadd.f32 %v3549, %v3785
      %v3844 = vadd.f32 %v3550, %v3790
      %v3845 = vadd.f32 %v3551, %v3793
      %v3846 = vadd.f32 %v3552, %v3798
      %v3847 = vadd.f32 %v3553, %v3801
      %v3848 = vadd.f32 %v3554, %v3806
      %v3849 = vadd.f32 %v3555, %v3809
      %v3850 = vadd.f32 %v3556, %v3814
      %v3851 = vadd.f32 %v3557, %v3817
      %v3852 = vld [vmem:[%s400 + $0x2] sm:$0xff]
      %v3853 = vld [vmem:[%s400 + $0xa] sm:$0xff]
      %v3854 = vld [vmem:[%s400 + $0x1a] sm:$0xff]
      %v3855 = vld [vmem:[%s400 + $0x22] sm:$0xff]
      %v3856 = vld [vmem:[%s400 + $0x32] sm:$0xff]
      %v3857 = vld [vmem:[%s400 + $0x3a] sm:$0xff]
      %v3858 = vld [vmem:[%s400 + $0x4a] sm:$0xff]
      %v3859 = vld [vmem:[%s400 + $0x52] sm:$0xff]
      %v3860 = vld [vmem:[%s400 + $0x62] sm:$0xff]
      %v3861 = vld [vmem:[%s400 + $0x6a] sm:$0xff]
      %v3862 = vld [vmem:[%s400 + $0x7a] sm:$0xff]
      %v3863 = vld [vmem:[%s400 + $0x82] sm:$0xff]
      %v3864 = vld [vmem:[%s400 + $0x92] sm:$0xff]
      %v3865 = vld [vmem:[%s400 + $0x9a] sm:$0xff]
      %v3866 = vld [vmem:[%s400 + $0xaa] sm:$0xff]
      %v3867 = vld [vmem:[%s400 + $0xb2] sm:$0xff]
      %v3868 = vld [vmem:[%s400 + $0xc2] sm:$0xff]
      %v3869 = vld [vmem:[%s400 + $0xca] sm:$0xff]
      %v3870 = vld [vmem:[%s400 + $0xda] sm:$0xff]
      %v3871 = vld [vmem:[%s400 + $0xe2] sm:$0xff]
      %v3872 = vld [vmem:[%s400 + $0xf2] sm:$0xff]
      %v3873 = vld [vmem:[%s400 + $0xfa] sm:$0xff]
      %v3874 = vld [vmem:[%s400 + $0x10a] sm:$0xff]
      %v3875 = vld [vmem:[%s400 + $0x112] sm:$0xff]
      %v3876 = vld [vmem:[%s400 + $0x122] sm:$0xff]
      %v3877 = vld [vmem:[%s400 + $0x12a] sm:$0xff]
      %v3878 = vld [vmem:[%s400 + $0x13a] sm:$0xff]
      %v3879 = vld [vmem:[%s400 + $0x142] sm:$0xff]
      %v3880 = vld [vmem:[%s400 + $0x152] sm:$0xff]
      %v3881 = vld [vmem:[%s400 + $0x15a] sm:$0xff]
      %v3882 = vld [vmem:[%s400 + $0x16a] sm:$0xff]
      %v3883 = vld [vmem:[%s400 + $0x172] sm:$0xff]
      %v3884 = vpack.c.bf16 %v3853, %v3852
      %v3885 = vpack.c.bf16 %v3855, %v3854
      %v3886 = vpack.c.bf16 %v3857, %v3856
      %v3887 = vpack.c.bf16 %v3859, %v3858
      %v3888 = vpack.c.bf16 %v3861, %v3860
      %v3889 = vpack.c.bf16 %v3863, %v3862
      %v3890 = vpack.c.bf16 %v3865, %v3864
      %v3891 = vpack.c.bf16 %v3867, %v3866
      %v3892 = vpack.c.bf16 %v3869, %v3868
      %v3893 = vpack.c.bf16 %v3871, %v3870
      %v3894 = vpack.c.bf16 %v3873, %v3872
      %v3895 = vpack.c.bf16 %v3875, %v3874
      %v3896 = vpack.c.bf16 %v3877, %v3876
      %v3897 = vpack.c.bf16 %v3879, %v3878
      %v3898 = vpack.c.bf16 %v3881, %v3880
      %v3899 = vpack.c.bf16 %v3883, %v3882
      %s3900 = scalar_lea.vmem %s3, 10
      %v3901 = vld [vmem:[%s3900] sm:$0x3]
      %v3903 = vsel %vm450, %v3884, 0
      %v3906 = vsel %vm450, %v3885, 0
      %v3909 = vsel %vm450, %v3886, 0
      %v3912 = vsel %vm450, %v3887, 0
      %v3915 = vsel %vm450, %v3888, 0
      %v3918 = vsel %vm450, %v3889, 0
      %v3921 = vsel %vm450, %v3890, 0
      %v3924 = vsel %vm450, %v3891, 0
      %v3927 = vsel %vm450, %v3892, 0
      %v3930 = vsel %vm450, %v3893, 0
      %v3933 = vsel %vm450, %v3894, 0
      %v3936 = vsel %vm450, %v3895, 0
      %v3939 = vsel %vm450, %v3896, 0
      %v3942 = vsel %vm450, %v3897, 0
      %v3945 = vsel %vm450, %v3898, 0
      %v3948 = vsel %vm450, %v3899, 0
      %v3951 = vsel %vm499, %v3901, 0
      %3953 = vmatprep.subr.bf16.mxu0 0
      %3954 = vmatpush1.bf16.msra.mxu0 %v3951
      %3955 = vmatprep.subr.bf16.mxu0 0
      %3956 = vmatpush1.bf16.msra.mxu0 0
      %3957 = vmatprep.subr.bf16.mxu0 0
      %3958 = vmatpush1.bf16.msra.mxu0 0
      %3959 = vmatprep.subr.bf16.mxu0 0
      %3960 = vmatpush1.bf16.msra.mxu0 0
      %3961 = vmatprep.subr.bf16.mxu0 0
      %3962 = vmatpush1.bf16.msra.mxu0 0
      %3963 = vmatprep.subr.bf16.mxu0 0
      %3964 = vmatpush1.bf16.msra.mxu0 0
      %3965 = vmatprep.subr.bf16.mxu0 0
      %3966 = vmatpush1.bf16.msra.mxu0 0
      %3967 = vmatprep.subr.bf16.mxu0 0
      %3968 = vmatpush1.bf16.msra.mxu0 0
      %3969 = vmatprep.subr.bf16.mxu0 0
      %3970 = vmatpush1.bf16.msra.mxu0 0
      %3971 = vmatprep.subr.bf16.mxu0 0
      %3972 = vmatpush1.bf16.msra.mxu0 0
      %3973 = vmatprep.subr.bf16.mxu0 0
      %3974 = vmatpush1.bf16.msra.mxu0 0
      %3975 = vmatprep.subr.bf16.mxu0 0
      %3976 = vmatpush1.bf16.msra.mxu0 0
      %3977 = vmatprep.subr.bf16.mxu0 0
      %3978 = vmatpush1.bf16.msra.mxu0 0
      %3979 = vmatprep.subr.bf16.mxu0 0
      %3980 = vmatpush1.bf16.msra.mxu0 0
      %3981 = vmatprep.subr.bf16.mxu0 0
      %3982 = vmatpush1.bf16.msra.mxu0 0
      %3983 = vmatprep.subr.bf16.mxu0 0
      %3984 = vmatpush1.bf16.msra.mxu0 0
      %3985 = vmatprep.mubr.bf16.mxu0 0
      %3986 = vmatmul.mubr.bf16.gmra.mrb[0].mxu0 %v3903
      %v3987 = vpop.f32.mrb[0].mxu0
      %v3988 = vadd.f32 0.0, %v3987
      %v3989 = vpop.f32.mrb[0].mxu0
      %v3990 = vpop.f32.mrb[0].mxu0
      %v3991 = vadd.f32 0.0, %v3990
      %v3992 = vpop.f32.mrb[0].mxu0
      %3993 = vmatprep.mubr.bf16.mxu0 0
      %3994 = vmatmul.mubr.bf16.gmra.mrb[0].mxu0 %v3906
      %v3995 = vpop.f32.mrb[0].mxu0
      %v3996 = vadd.f32 0.0, %v3995
      %v3997 = vpop.f32.mrb[0].mxu0
      %v3998 = vpop.f32.mrb[0].mxu0
      %v3999 = vadd.f32 0.0, %v3998
      %v4000 = vpop.f32.mrb[0].mxu0
      %4001 = vmatprep.mubr.bf16.mxu0 0
      %4002 = vmatmul.mubr.bf16.gmra.mrb[0].mxu0 %v3909
      %v4003 = vpop.f32.mrb[0].mxu0
      %v4004 = vadd.f32 0.0, %v4003
      %v4005 = vpop.f32.mrb[0].mxu0
      %v4006 = vpop.f32.mrb[0].mxu0
      %v4007 = vadd.f32 0.0, %v4006
      %v4008 = vpop.f32.mrb[0].mxu0
      %4009 = vmatprep.mubr.bf16.mxu0 0
      %4010 = vmatmul.mubr.bf16.gmra.mrb[0].mxu0 %v3912
      %v4011 = vpop.f32.mrb[0].mxu0
      %v4012 = vadd.f32 0.0, %v4011
      %v4013 = vpop.f32.mrb[0].mxu0
      %v4014 = vpop.f32.mrb[0].mxu0
      %v4015 = vadd.f32 0.0, %v4014
      %v4016 = vpop.f32.mrb[0].mxu0
      %4017 = vmatprep.mubr.bf16.mxu0 0
      %4018 = vmatmul.mubr.bf16.gmra.mrb[0].mxu0 %v3915
      %v4019 = vpop.f32.mrb[0].mxu0
      %v4020 = vadd.f32 0.0, %v4019
      %v4021 = vpop.f32.mrb[0].mxu0
      %v4022 = vpop.f32.mrb[0].mxu0
      %v4023 = vadd.f32 0.0, %v4022
      %v4024 = vpop.f32.mrb[0].mxu0
      %4025 = vmatprep.mubr.bf16.mxu0 0
      %4026 = vmatmul.mubr.bf16.gmra.mrb[0].mxu0 %v3918
      %v4027 = vpop.f32.mrb[0].mxu0
      %v4028 = vadd.f32 0.0, %v4027
      %v4029 = vpop.f32.mrb[0].mxu0
      %v4030 = vpop.f32.mrb[0].mxu0
      %v4031 = vadd.f32 0.0, %v4030
      %v4032 = vpop.f32.mrb[0].mxu0
      %4033 = vmatprep.mubr.bf16.mxu0 0
      %4034 = vmatmul.mubr.bf16.gmra.mrb[0].mxu0 %v3921
      %v4035 = vpop.f32.mrb[0].mxu0
      %v4036 = vadd.f32 0.0, %v4035
      %v4037 = vpop.f32.mrb[0].mxu0
      %v4038 = vpop.f32.mrb[0].mxu0
      %v4039 = vadd.f32 0.0, %v4038
      %v4040 = vpop.f32.mrb[0].mxu0
      %4041 = vmatprep.mubr.bf16.mxu0 0
      %4042 = vmatmul.mubr.bf16.gmra.mrb[0].mxu0 %v3924
      %v4043 = vpop.f32.mrb[0].mxu0
      %v4044 = vadd.f32 0.0, %v4043
      %v4045 = vpop.f32.mrb[0].mxu0
      %v4046 = vpop.f32.mrb[0].mxu0
      %v4047 = vadd.f32 0.0, %v4046
      %v4048 = vpop.f32.mrb[0].mxu0
      %4049 = vmatprep.mubr.bf16.mxu0 0
      %4050 = vmatmul.mubr.bf16.gmra.mrb[0].mxu0 %v3927
      %v4051 = vpop.f32.mrb[0].mxu0
      %v4052 = vadd.f32 0.0, %v4051
      %v4053 = vpop.f32.mrb[0].mxu0
      %v4054 = vpop.f32.mrb[0].mxu0
      %v4055 = vadd.f32 0.0, %v4054
      %v4056 = vpop.f32.mrb[0].mxu0
      %4057 = vmatprep.mubr.bf16.mxu0 0
      %4058 = vmatmul.mubr.bf16.gmra.mrb[0].mxu0 %v3930
      %v4059 = vpop.f32.mrb[0].mxu0
      %v4060 = vadd.f32 0.0, %v4059
      %v4061 = vpop.f32.mrb[0].mxu0
      %v4062 = vpop.f32.mrb[0].mxu0
      %v4063 = vadd.f32 0.0, %v4062
      %v4064 = vpop.f32.mrb[0].mxu0
      %4065 = vmatprep.mubr.bf16.mxu0 0
      %4066 = vmatmul.mubr.bf16.gmra.mrb[0].mxu0 %v3933
      %v4067 = vpop.f32.mrb[0].mxu0
      %v4068 = vadd.f32 0.0, %v4067
      %v4069 = vpop.f32.mrb[0].mxu0
      %v4070 = vpop.f32.mrb[0].mxu0
      %v4071 = vadd.f32 0.0, %v4070
      %v4072 = vpop.f32.mrb[0].mxu0
      %4073 = vmatprep.mubr.bf16.mxu0 0
      %4074 = vmatmul.mubr.bf16.gmra.mrb[0].mxu0 %v3936
      %v4075 = vpop.f32.mrb[0].mxu0
      %v4076 = vadd.f32 0.0, %v4075
      %v4077 = vpop.f32.mrb[0].mxu0
      %v4078 = vpop.f32.mrb[0].mxu0
      %v4079 = vadd.f32 0.0, %v4078
      %v4080 = vpop.f32.mrb[0].mxu0
      %4081 = vmatprep.mubr.bf16.mxu0 0
      %4082 = vmatmul.mubr.bf16.gmra.mrb[0].mxu0 %v3939
      %v4083 = vpop.f32.mrb[0].mxu0
      %v4084 = vadd.f32 0.0, %v4083
      %v4085 = vpop.f32.mrb[0].mxu0
      %v4086 = vpop.f32.mrb[0].mxu0
      %v4087 = vadd.f32 0.0, %v4086
      %v4088 = vpop.f32.mrb[0].mxu0
      %4089 = vmatprep.mubr.bf16.mxu0 0
      %4090 = vmatmul.mubr.bf16.gmra.mrb[0].mxu0 %v3942
      %v4091 = vpop.f32.mrb[0].mxu0
      %v4092 = vadd.f32 0.0, %v4091
      %v4093 = vpop.f32.mrb[0].mxu0
      %v4094 = vpop.f32.mrb[0].mxu0
      %v4095 = vadd.f32 0.0, %v4094
      %v4096 = vpop.f32.mrb[0].mxu0
      %4097 = vmatprep.mubr.bf16.mxu0 0
      %4098 = vmatmul.mubr.bf16.gmra.mrb[0].mxu0 %v3945
      %v4099 = vpop.f32.mrb[0].mxu0
      %v4100 = vadd.f32 0.0, %v4099
      %v4101 = vpop.f32.mrb[0].mxu0
      %v4102 = vpop.f32.mrb[0].mxu0
      %v4103 = vadd.f32 0.0, %v4102
      %v4104 = vpop.f32.mrb[0].mxu0
      %4105 = vmatprep.mubr.bf16.mxu0 0
      %4106 = vmatmul.mubr.bf16.gmra.mrb[0].mxu0 %v3948
      %v4107 = vpop.f32.mrb[0].mxu0
      %v4108 = vadd.f32 0.0, %v4107
      %v4109 = vpop.f32.mrb[0].mxu0
      %v4110 = vpop.f32.mrb[0].mxu0
      %v4111 = vadd.f32 0.0, %v4110
      %v4112 = vpop.f32.mrb[0].mxu0
      %4113 = vdwg.mxu0
      %v4114 = vadd.f32 %v3820, %v3988
      %v4115 = vadd.f32 %v3821, %v3991
      %v4116 = vadd.f32 %v3822, %v3996
      %v4117 = vadd.f32 %v3823, %v3999
      %v4118 = vadd.f32 %v3824, %v4004
      %v4119 = vadd.f32 %v3825, %v4007
      %v4120 = vadd.f32 %v3826, %v4012
      %v4121 = vadd.f32 %v3827, %v4015
      %v4122 = vadd.f32 %v3828, %v4020
      %v4123 = vadd.f32 %v3829, %v4023
      %v4124 = vadd.f32 %v3830, %v4028
      %v4125 = vadd.f32 %v3831, %v4031
      %v4126 = vadd.f32 %v3832, %v4036
      %v4127 = vadd.f32 %v3833, %v4039
      %v4128 = vadd.f32 %v3834, %v4044
      %v4129 = vadd.f32 %v3835, %v4047
      %v4130 = vadd.f32 %v3836, %v4052
      %v4131 = vadd.f32 %v3837, %v4055
      %v4132 = vadd.f32 %v3838, %v4060
      %v4133 = vadd.f32 %v3839, %v4063
      %v4134 = vadd.f32 %v3840, %v4068
      %v4135 = vadd.f32 %v3841, %v4071
      %v4136 = vadd.f32 %v3842, %v4076
      %v4137 = vadd.f32 %v3843, %v4079
      %v4138 = vadd.f32 %v3844, %v4084
      %v4139 = vadd.f32 %v3845, %v4087
      %v4140 = vadd.f32 %v3846, %v4092
      %v4141 = vadd.f32 %v3847, %v4095
      %v4142 = vadd.f32 %v3848, %v4100
      %v4143 = vadd.f32 %v3849, %v4103
      %v4144 = vadd.f32 %v3850, %v4108
      %v4145 = vadd.f32 %v3851, %v4111
      %s4146 = scalar_lea.vmem %s329, 48
      %v4147 = vld [vmem:[%s4146] sm:$0xff]
      %v4148 = vld [vmem:[%s4146 + $0x8] sm:$0xff]
      %v4149 = vld [vmem:[%s4146 + $0x18] sm:$0xff]
      %v4150 = vld [vmem:[%s4146 + $0x20] sm:$0xff]
      %v4151 = vld [vmem:[%s4146 + $0x30] sm:$0xff]
      %v4152 = vld [vmem:[%s4146 + $0x38] sm:$0xff]
      %v4153 = vld [vmem:[%s4146 + $0x48] sm:$0xff]
      %v4154 = vld [vmem:[%s4146 + $0x50] sm:$0xff]
      %v4155 = vld [vmem:[%s4146 + $0x60] sm:$0xff]
      %v4156 = vld [vmem:[%s4146 + $0x68] sm:$0xff]
      %v4157 = vld [vmem:[%s4146 + $0x78] sm:$0xff]
      %v4158 = vld [vmem:[%s4146 + $0x80] sm:$0xff]
      %v4159 = vld [vmem:[%s4146 + $0x90] sm:$0xff]
      %v4160 = vld [vmem:[%s4146 + $0x98] sm:$0xff]
      %v4161 = vld [vmem:[%s4146 + $0xa8] sm:$0xff]
      %v4162 = vld [vmem:[%s4146 + $0xb0] sm:$0xff]
      %v4163 = vld [vmem:[%s4146 + $0xc0] sm:$0xff]
      %v4164 = vld [vmem:[%s4146 + $0xc8] sm:$0xff]
      %v4165 = vld [vmem:[%s4146 + $0xd8] sm:$0xff]
      %v4166 = vld [vmem:[%s4146 + $0xe0] sm:$0xff]
      %v4167 = vld [vmem:[%s4146 + $0xf0] sm:$0xff]
      %v4168 = vld [vmem:[%s4146 + $0xf8] sm:$0xff]
      %v4169 = vld [vmem:[%s4146 + $0x108] sm:$0xff]
      %v4170 = vld [vmem:[%s4146 + $0x110] sm:$0xff]
      %v4171 = vld [vmem:[%s4146 + $0x120] sm:$0xff]
      %v4172 = vld [vmem:[%s4146 + $0x128] sm:$0xff]
      %v4173 = vld [vmem:[%s4146 + $0x138] sm:$0xff]
      %v4174 = vld [vmem:[%s4146 + $0x140] sm:$0xff]
      %v4175 = vld [vmem:[%s4146 + $0x150] sm:$0xff]
      %v4176 = vld [vmem:[%s4146 + $0x158] sm:$0xff]
      %v4177 = vld [vmem:[%s4146 + $0x168] sm:$0xff]
      %v4178 = vld [vmem:[%s4146 + $0x170] sm:$0xff]
      %v4179 = vpack.c.bf16 %v4148, %v4147
      %v4180 = vpack.c.bf16 %v4150, %v4149
      %v4181 = vpack.c.bf16 %v4152, %v4151
      %v4182 = vpack.c.bf16 %v4154, %v4153
      %v4183 = vpack.c.bf16 %v4156, %v4155
      %v4184 = vpack.c.bf16 %v4158, %v4157
      %v4185 = vpack.c.bf16 %v4160, %v4159
      %v4186 = vpack.c.bf16 %v4162, %v4161
      %v4187 = vpack.c.bf16 %v4164, %v4163
      %v4188 = vpack.c.bf16 %v4166, %v4165
      %v4189 = vpack.c.bf16 %v4168, %v4167
      %v4190 = vpack.c.bf16 %v4170, %v4169
      %v4191 = vpack.c.bf16 %v4172, %v4171
      %v4192 = vpack.c.bf16 %v4174, %v4173
      %v4193 = vpack.c.bf16 %v4176, %v4175
      %v4194 = vpack.c.bf16 %v4178, %v4177
      %s4195 = scalar_lea.vmem %s2, 12
      %v4196 = vld [vmem:[%s4195] sm:$0x3]
      %v4198 = vsel %vm450, %v4179, 0
      %v4201 = vsel %vm450, %v4180, 0
      %v4204 = vsel %vm450, %v4181, 0
      %v4207 = vsel %vm450, %v4182, 0
      %v4210 = vsel %vm450, %v4183, 0
      %v4213 = vsel %vm450, %v4184, 0
      %v4216 = vsel %vm450, %v4185, 0
      %v4219 = vsel %vm450, %v4186, 0
      %v4222 = vsel %vm450, %v4187, 0
      %v4225 = vsel %vm450, %v4188, 0
      %v4228 = vsel %vm450, %v4189, 0
      %v4231 = vsel %vm450, %v4190, 0
      %v4234 = vsel %vm450, %v4191, 0
      %v4237 = vsel %vm450, %v4192, 0
      %v4240 = vsel %vm450, %v4193, 0
      %v4243 = vsel %vm450, %v4194, 0
      %v4246 = vsel %vm499, %v4196, 0
      %4248 = vmatprep.subr.bf16.mxu0 0
      %4249 = vmatpush1.bf16.msra.mxu0 %v4246
      %4250 = vmatprep.subr.bf16.mxu0 0
      %4251 = vmatpush1.bf16.msra.mxu0 0
      %4252 = vmatprep.subr.bf16.mxu0 0
      %4253 = vmatpush1.bf16.msra.mxu0 0
      %4254 = vmatprep.subr.bf16.mxu0 0
      %4255 = vmatpush1.bf16.msra.mxu0 0
      %4256 = vmatprep.subr.bf16.mxu0 0
      %4257 = vmatpush1.bf16.msra.mxu0 0
      %4258 = vmatprep.subr.bf16.mxu0 0
      %4259 = vmatpush1.bf16.msra.mxu0 0
      %4260 = vmatprep.subr.bf16.mxu0 0
      %4261 = vmatpush1.bf16.msra.mxu0 0
      %4262 = vmatprep.subr.bf16.mxu0 0
      %4263 = vmatpush1.bf16.msra.mxu0 0
      %4264 = vmatprep.subr.bf16.mxu0 0
      %4265 = vmatpush1.bf16.msra.mxu0 0
      %4266 = vmatprep.subr.bf16.mxu0 0
      %4267 = vmatpush1.bf16.msra.mxu0 0
      %4268 = vmatprep.subr.bf16.mxu0 0
      %4269 = vmatpush1.bf16.msra.mxu0 0
      %4270 = vmatprep.subr.bf16.mxu0 0
      %4271 = vmatpush1.bf16.msra.mxu0 0
      %4272 = vmatprep.subr.bf16.mxu0 0
      %4273 = vmatpush1.bf16.msra.mxu0 0
      %4274 = vmatprep.subr.bf16.mxu0 0
      %4275 = vmatpush1.bf16.msra.mxu0 0
      %4276 = vmatprep.subr.bf16.mxu0 0
      %4277 = vmatpush1.bf16.msra.mxu0 0
      %4278 = vmatprep.subr.bf16.mxu0 0
      %4279 = vmatpush1.bf16.msra.mxu0 0
      %4280 = vmatprep.mubr.bf16.mxu0 0
      %4281 = vmatmul.mubr.bf16.gmra.mrb[0].mxu0 %v4198
      %v4282 = vpop.f32.mrb[0].mxu0
      %v4283 = vadd.f32 0.0, %v4282
      %v4284 = vpop.f32.mrb[0].mxu0
      %v4285 = vpop.f32.mrb[0].mxu0
      %v4286 = vadd.f32 0.0, %v4285
      %v4287 = vpop.f32.mrb[0].mxu0
      %4288 = vmatprep.mubr.bf16.mxu0 0
      %4289 = vmatmul.mubr.bf16.gmra.mrb[0].mxu0 %v4201
      %v4290 = vpop.f32.mrb[0].mxu0
      %v4291 = vadd.f32 0.0, %v4290
      %v4292 = vpop.f32.mrb[0].mxu0
      %v4293 = vpop.f32.mrb[0].mxu0
      %v4294 = vadd.f32 0.0, %v4293
      %v4295 = vpop.f32.mrb[0].mxu0
      %4296 = vmatprep.mubr.bf16.mxu0 0
      %4297 = vmatmul.mubr.bf16.gmra.mrb[0].mxu0 %v4204
      %v4298 = vpop.f32.mrb[0].mxu0
      %v4299 = vadd.f32 0.0, %v4298
      %v4300 = vpop.f32.mrb[0].mxu0
      %v4301 = vpop.f32.mrb[0].mxu0
      %v4302 = vadd.f32 0.0, %v4301
      %v4303 = vpop.f32.mrb[0].mxu0
      %4304 = vmatprep.mubr.bf16.mxu0 0
      %4305 = vmatmul.mubr.bf16.gmra.mrb[0].mxu0 %v4207
      %v4306 = vpop.f32.mrb[0].mxu0
      %v4307 = vadd.f32 0.0, %v4306
      %v4308 = vpop.f32.mrb[0].mxu0
      %v4309 = vpop.f32.mrb[0].mxu0
      %v4310 = vadd.f32 0.0, %v4309
      %v4311 = vpop.f32.mrb[0].mxu0
      %4312 = vmatprep.mubr.bf16.mxu0 0
      %4313 = vmatmul.mubr.bf16.gmra.mrb[0].mxu0 %v4210
      %v4314 = vpop.f32.mrb[0].mxu0
      %v4315 = vadd.f32 0.0, %v4314
      %v4316 = vpop.f32.mrb[0].mxu0
      %v4317 = vpop.f32.mrb[0].mxu0
      %v4318 = vadd.f32 0.0, %v4317
      %v4319 = vpop.f32.mrb[0].mxu0
      %4320 = vmatprep.mubr.bf16.mxu0 0
      %4321 = vmatmul.mubr.bf16.gmra.mrb[0].mxu0 %v4213
      %v4322 = vpop.f32.mrb[0].mxu0
      %v4323 = vadd.f32 0.0, %v4322
      %v4324 = vpop.f32.mrb[0].mxu0
      %v4325 = vpop.f32.mrb[0].mxu0
      %v4326 = vadd.f32 0.0, %v4325
      %v4327 = vpop.f32.mrb[0].mxu0
      %4328 = vmatprep.mubr.bf16.mxu0 0
      %4329 = vmatmul.mubr.bf16.gmra.mrb[0].mxu0 %v4216
      %v4330 = vpop.f32.mrb[0].mxu0
      %v4331 = vadd.f32 0.0, %v4330
      %v4332 = vpop.f32.mrb[0].mxu0
      %v4333 = vpop.f32.mrb[0].mxu0
      %v4334 = vadd.f32 0.0, %v4333
      %v4335 = vpop.f32.mrb[0].mxu0
      %4336 = vmatprep.mubr.bf16.mxu0 0
      %4337 = vmatmul.mubr.bf16.gmra.mrb[0].mxu0 %v4219
      %v4338 = vpop.f32.mrb[0].mxu0
      %v4339 = vadd.f32 0.0, %v4338
      %v4340 = vpop.f32.mrb[0].mxu0
      %v4341 = vpop.f32.mrb[0].mxu0
      %v4342 = vadd.f32 0.0, %v4341
      %v4343 = vpop.f32.mrb[0].mxu0
      %4344 = vmatprep.mubr.bf16.mxu0 0
      %4345 = vmatmul.mubr.bf16.gmra.mrb[0].mxu0 %v4222
      %v4346 = vpop.f32.mrb[0].mxu0
      %v4347 = vadd.f32 0.0, %v4346
      %v4348 = vpop.f32.mrb[0].mxu0
      %v4349 = vpop.f32.mrb[0].mxu0
      %v4350 = vadd.f32 0.0, %v4349
      %v4351 = vpop.f32.mrb[0].mxu0
      %4352 = vmatprep.mubr.bf16.mxu0 0
      %4353 = vmatmul.mubr.bf16.gmra.mrb[0].mxu0 %v4225
      %v4354 = vpop.f32.mrb[0].mxu0
      %v4355 = vadd.f32 0.0, %v4354
      %v4356 = vpop.f32.mrb[0].mxu0
      %v4357 = vpop.f32.mrb[0].mxu0
      %v4358 = vadd.f32 0.0, %v4357
      %v4359 = vpop.f32.mrb[0].mxu0
      %4360 = vmatprep.mubr.bf16.mxu0 0
      %4361 = vmatmul.mubr.bf16.gmra.mrb[0].mxu0 %v4228
      %v4362 = vpop.f32.mrb[0].mxu0
      %v4363 = vadd.f32 0.0, %v4362
      %v4364 = vpop.f32.mrb[0].mxu0
      %v4365 = vpop.f32.mrb[0].mxu0
      %v4366 = vadd.f32 0.0, %v4365
      %v4367 = vpop.f32.mrb[0].mxu0
      %4368 = vmatprep.mubr.bf16.mxu0 0
      %4369 = vmatmul.mubr.bf16.gmra.mrb[0].mxu0 %v4231
      %v4370 = vpop.f32.mrb[0].mxu0
      %v4371 = vadd.f32 0.0, %v4370
      %v4372 = vpop.f32.mrb[0].mxu0
      %v4373 = vpop.f32.mrb[0].mxu0
      %v4374 = vadd.f32 0.0, %v4373
      %v4375 = vpop.f32.mrb[0].mxu0
      %4376 = vmatprep.mubr.bf16.mxu0 0
      %4377 = vmatmul.mubr.bf16.gmra.mrb[0].mxu0 %v4234
      %v4378 = vpop.f32.mrb[0].mxu0
      %v4379 = vadd.f32 0.0, %v4378
      %v4380 = vpop.f32.mrb[0].mxu0
      %v4381 = vpop.f32.mrb[0].mxu0
      %v4382 = vadd.f32 0.0, %v4381
      %v4383 = vpop.f32.mrb[0].mxu0
      %4384 = vmatprep.mubr.bf16.mxu0 0
      %4385 = vmatmul.mubr.bf16.gmra.mrb[0].mxu0 %v4237
      %v4386 = vpop.f32.mrb[0].mxu0
      %v4387 = vadd.f32 0.0, %v4386
      %v4388 = vpop.f32.mrb[0].mxu0
      %v4389 = vpop.f32.mrb[0].mxu0
      %v4390 = vadd.f32 0.0, %v4389
      %v4391 = vpop.f32.mrb[0].mxu0
      %4392 = vmatprep.mubr.bf16.mxu0 0
      %4393 = vmatmul.mubr.bf16.gmra.mrb[0].mxu0 %v4240
      %v4394 = vpop.f32.mrb[0].mxu0
      %v4395 = vadd.f32 0.0, %v4394
      %v4396 = vpop.f32.mrb[0].mxu0
      %v4397 = vpop.f32.mrb[0].mxu0
      %v4398 = vadd.f32 0.0, %v4397
      %v4399 = vpop.f32.mrb[0].mxu0
      %4400 = vmatprep.mubr.bf16.mxu0 0
      %4401 = vmatmul.mubr.bf16.gmra.mrb[0].mxu0 %v4243
      %v4402 = vpop.f32.mrb[0].mxu0
      %v4403 = vadd.f32 0.0, %v4402
      %v4404 = vpop.f32.mrb[0].mxu0
      %v4405 = vpop.f32.mrb[0].mxu0
      %v4406 = vadd.f32 0.0, %v4405
      %v4407 = vpop.f32.mrb[0].mxu0
      %4408 = vdwg.mxu0
      %v4409 = vadd.f32 %v4114, %v4283
      %v4410 = vadd.f32 %v4115, %v4286
      %v4411 = vadd.f32 %v4116, %v4291
      %v4412 = vadd.f32 %v4117, %v4294
      %v4413 = vadd.f32 %v4118, %v4299
      %v4414 = vadd.f32 %v4119, %v4302
      %v4415 = vadd.f32 %v4120, %v4307
      %v4416 = vadd.f32 %v4121, %v4310
      %v4417 = vadd.f32 %v4122, %v4315
      %v4418 = vadd.f32 %v4123, %v4318
      %v4419 = vadd.f32 %v4124, %v4323
      %v4420 = vadd.f32 %v4125, %v4326
      %v4421 = vadd.f32 %v4126, %v4331
      %v4422 = vadd.f32 %v4127, %v4334
      %v4423 = vadd.f32 %v4128, %v4339
      %v4424 = vadd.f32 %v4129, %v4342
      %v4425 = vadd.f32 %v4130, %v4347
      %v4426 = vadd.f32 %v4131, %v4350
      %v4427 = vadd.f32 %v4132, %v4355
      %v4428 = vadd.f32 %v4133, %v4358
      %v4429 = vadd.f32 %v4134, %v4363
      %v4430 = vadd.f32 %v4135, %v4366
      %v4431 = vadd.f32 %v4136, %v4371
      %v4432 = vadd.f32 %v4137, %v4374
      %v4433 = vadd.f32 %v4138, %v4379
      %v4434 = vadd.f32 %v4139, %v4382
      %v4435 = vadd.f32 %v4140, %v4387
      %v4436 = vadd.f32 %v4141, %v4390
      %v4437 = vadd.f32 %v4142, %v4395
      %v4438 = vadd.f32 %v4143, %v4398
      %v4439 = vadd.f32 %v4144, %v4403
      %v4440 = vadd.f32 %v4145, %v4406
      %s4441 = scalar_lea.vmem %s334, 48
      %v4442 = vld [vmem:[%s4441] sm:$0xff]
      %v4443 = vld [vmem:[%s4441 + $0x8] sm:$0xff]
      %v4444 = vld [vmem:[%s4441 + $0x18] sm:$0xff]
      %v4445 = vld [vmem:[%s4441 + $0x20] sm:$0xff]
      %v4446 = vld [vmem:[%s4441 + $0x30] sm:$0xff]
      %v4447 = vld [vmem:[%s4441 + $0x38] sm:$0xff]
      %v4448 = vld [vmem:[%s4441 + $0x48] sm:$0xff]
      %v4449 = vld [vmem:[%s4441 + $0x50] sm:$0xff]
      %v4450 = vld [vmem:[%s4441 + $0x60] sm:$0xff]
      %v4451 = vld [vmem:[%s4441 + $0x68] sm:$0xff]
      %v4452 = vld [vmem:[%s4441 + $0x78] sm:$0xff]
      %v4453 = vld [vmem:[%s4441 + $0x80] sm:$0xff]
      %v4454 = vld [vmem:[%s4441 + $0x90] sm:$0xff]
      %v4455 = vld [vmem:[%s4441 + $0x98] sm:$0xff]
      %v4456 = vld [vmem:[%s4441 + $0xa8] sm:$0xff]
      %v4457 = vld [vmem:[%s4441 + $0xb0] sm:$0xff]
      %v4458 = vld [vmem:[%s4441 + $0xc0] sm:$0xff]
      %v4459 = vld [vmem:[%s4441 + $0xc8] sm:$0xff]
      %v4460 = vld [vmem:[%s4441 + $0xd8] sm:$0xff]
      %v4461 = vld [vmem:[%s4441 + $0xe0] sm:$0xff]
      %v4462 = vld [vmem:[%s4441 + $0xf0] sm:$0xff]
      %v4463 = vld [vmem:[%s4441 + $0xf8] sm:$0xff]
      %v4464 = vld [vmem:[%s4441 + $0x108] sm:$0xff]
      %v4465 = vld [vmem:[%s4441 + $0x110] sm:$0xff]
      %v4466 = vld [vmem:[%s4441 + $0x120] sm:$0xff]
      %v4467 = vld [vmem:[%s4441 + $0x128] sm:$0xff]
      %v4468 = vld [vmem:[%s4441 + $0x138] sm:$0xff]
      %v4469 = vld [vmem:[%s4441 + $0x140] sm:$0xff]
      %v4470 = vld [vmem:[%s4441 + $0x150] sm:$0xff]
      %v4471 = vld [vmem:[%s4441 + $0x158] sm:$0xff]
      %v4472 = vld [vmem:[%s4441 + $0x168] sm:$0xff]
      %v4473 = vld [vmem:[%s4441 + $0x170] sm:$0xff]
      %v4474 = vpack.c.bf16 %v4443, %v4442
      %v4475 = vpack.c.bf16 %v4445, %v4444
      %v4476 = vpack.c.bf16 %v4447, %v4446
      %v4477 = vpack.c.bf16 %v4449, %v4448
      %v4478 = vpack.c.bf16 %v4451, %v4450
      %v4479 = vpack.c.bf16 %v4453, %v4452
      %v4480 = vpack.c.bf16 %v4455, %v4454
      %v4481 = vpack.c.bf16 %v4457, %v4456
      %v4482 = vpack.c.bf16 %v4459, %v4458
      %v4483 = vpack.c.bf16 %v4461, %v4460
      %v4484 = vpack.c.bf16 %v4463, %v4462
      %v4485 = vpack.c.bf16 %v4465, %v4464
      %v4486 = vpack.c.bf16 %v4467, %v4466
      %v4487 = vpack.c.bf16 %v4469, %v4468
      %v4488 = vpack.c.bf16 %v4471, %v4470
      %v4489 = vpack.c.bf16 %v4473, %v4472
      %s4490 = scalar_lea.vmem %s3, 12
      %v4491 = vld [vmem:[%s4490] sm:$0x3]
      %v4493 = vsel %vm450, %v4474, 0
      %v4496 = vsel %vm450, %v4475, 0
      %v4499 = vsel %vm450, %v4476, 0
      %v4502 = vsel %vm450, %v4477, 0
      %v4505 = vsel %vm450, %v4478, 0
      %v4508 = vsel %vm450, %v4479, 0
      %v4511 = vsel %vm450, %v4480, 0
      %v4514 = vsel %vm450, %v4481, 0
      %v4517 = vsel %vm450, %v4482, 0
      %v4520 = vsel %vm450, %v4483, 0
      %v4523 = vsel %vm450, %v4484, 0
      %v4526 = vsel %vm450, %v4485, 0
      %v4529 = vsel %vm450, %v4486, 0
      %v4532 = vsel %vm450, %v4487, 0
      %v4535 = vsel %vm450, %v4488, 0
      %v4538 = vsel %vm450, %v4489, 0
      %v4541 = vsel %vm499, %v4491, 0
      %4543 = vmatprep.subr.bf16.mxu0 0
      %4544 = vmatpush1.bf16.msra.mxu0 %v4541
      %4545 = vmatprep.subr.bf16.mxu0 0
      %4546 = vmatpush1.bf16.msra.mxu0 0
      %4547 = vmatprep.subr.bf16.mxu0 0
      %4548 = vmatpush1.bf16.msra.mxu0 0
      %4549 = vmatprep.subr.bf16.mxu0 0
      %4550 = vmatpush1.bf16.msra.mxu0 0
      %4551 = vmatprep.subr.bf16.mxu0 0
      %4552 = vmatpush1.bf16.msra.mxu0 0
      %4553 = vmatprep.subr.bf16.mxu0 0
      %4554 = vmatpush1.bf16.msra.mxu0 0
      %4555 = vmatprep.subr.bf16.mxu0 0
      %4556 = vmatpush1.bf16.msra.mxu0 0
      %4557 = vmatprep.subr.bf16.mxu0 0
      %4558 = vmatpush1.bf16.msra.mxu0 0
      %4559 = vmatprep.subr.bf16.mxu0 0
      %4560 = vmatpush1.bf16.msra.mxu0 0
      %4561 = vmatprep.subr.bf16.mxu0 0
      %4562 = vmatpush1.bf16.msra.mxu0 0
      %4563 = vmatprep.subr.bf16.mxu0 0
      %4564 = vmatpush1.bf16.msra.mxu0 0
      %4565 = vmatprep.subr.bf16.mxu0 0
      %4566 = vmatpush1.bf16.msra.mxu0 0
      %4567 = vmatprep.subr.bf16.mxu0 0
      %4568 = vmatpush1.bf16.msra.mxu0 0
      %4569 = vmatprep.subr.bf16.mxu0 0
      %4570 = vmatpush1.bf16.msra.mxu0 0
      %4571 = vmatprep.subr.bf16.mxu0 0
      %4572 = vmatpush1.bf16.msra.mxu0 0
      %4573 = vmatprep.subr.bf16.mxu0 0
      %4574 = vmatpush1.bf16.msra.mxu0 0
      %4575 = vmatprep.mubr.bf16.mxu0 0
      %4576 = vmatmul.mubr.bf16.gmra.mrb[0].mxu0 %v4493
      %v4577 = vpop.f32.mrb[0].mxu0
      %v4578 = vadd.f32 0.0, %v4577
      %v4579 = vpop.f32.mrb[0].mxu0
      %v4580 = vpop.f32.mrb[0].mxu0
      %v4581 = vadd.f32 0.0, %v4580
      %v4582 = vpop.f32.mrb[0].mxu0
      %4583 = vmatprep.mubr.bf16.mxu0 0
      %4584 = vmatmul.mubr.bf16.gmra.mrb[0].mxu0 %v4496
      %v4585 = vpop.f32.mrb[0].mxu0
      %v4586 = vadd.f32 0.0, %v4585
      %v4587 = vpop.f32.mrb[0].mxu0
      %v4588 = vpop.f32.mrb[0].mxu0
      %v4589 = vadd.f32 0.0, %v4588
      %v4590 = vpop.f32.mrb[0].mxu0
      %4591 = vmatprep.mubr.bf16.mxu0 0
      %4592 = vmatmul.mubr.bf16.gmra.mrb[0].mxu0 %v4499
      %v4593 = vpop.f32.mrb[0].mxu0
      %v4594 = vadd.f32 0.0, %v4593
      %v4595 = vpop.f32.mrb[0].mxu0
      %v4596 = vpop.f32.mrb[0].mxu0
      %v4597 = vadd.f32 0.0, %v4596
      %v4598 = vpop.f32.mrb[0].mxu0
      %4599 = vmatprep.mubr.bf16.mxu0 0
      %4600 = vmatmul.mubr.bf16.gmra.mrb[0].mxu0 %v4502
      %v4601 = vpop.f32.mrb[0].mxu0
      %v4602 = vadd.f32 0.0, %v4601
      %v4603 = vpop.f32.mrb[0].mxu0
      %v4604 = vpop.f32.mrb[0].mxu0
      %v4605 = vadd.f32 0.0, %v4604
      %v4606 = vpop.f32.mrb[0].mxu0
      %4607 = vmatprep.mubr.bf16.mxu0 0
      %4608 = vmatmul.mubr.bf16.gmra.mrb[0].mxu0 %v4505
      %v4609 = vpop.f32.mrb[0].mxu0
      %v4610 = vadd.f32 0.0, %v4609
      %v4611 = vpop.f32.mrb[0].mxu0
      %v4612 = vpop.f32.mrb[0].mxu0
      %v4613 = vadd.f32 0.0, %v4612
      %v4614 = vpop.f32.mrb[0].mxu0
      %4615 = vmatprep.mubr.bf16.mxu0 0
      %4616 = vmatmul.mubr.bf16.gmra.mrb[0].mxu0 %v4508
      %v4617 = vpop.f32.mrb[0].mxu0
      %v4618 = vadd.f32 0.0, %v4617
      %v4619 = vpop.f32.mrb[0].mxu0
      %v4620 = vpop.f32.mrb[0].mxu0
      %v4621 = vadd.f32 0.0, %v4620
      %v4622 = vpop.f32.mrb[0].mxu0
      %4623 = vmatprep.mubr.bf16.mxu0 0
      %4624 = vmatmul.mubr.bf16.gmra.mrb[0].mxu0 %v4511
      %v4625 = vpop.f32.mrb[0].mxu0
      %v4626 = vadd.f32 0.0, %v4625
      %v4627 = vpop.f32.mrb[0].mxu0
      %v4628 = vpop.f32.mrb[0].mxu0
      %v4629 = vadd.f32 0.0, %v4628
      %v4630 = vpop.f32.mrb[0].mxu0
      %4631 = vmatprep.mubr.bf16.mxu0 0
      %4632 = vmatmul.mubr.bf16.gmra.mrb[0].mxu0 %v4514
      %v4633 = vpop.f32.mrb[0].mxu0
      %v4634 = vadd.f32 0.0, %v4633
      %v4635 = vpop.f32.mrb[0].mxu0
      %v4636 = vpop.f32.mrb[0].mxu0
      %v4637 = vadd.f32 0.0, %v4636
      %v4638 = vpop.f32.mrb[0].mxu0
      %4639 = vmatprep.mubr.bf16.mxu0 0
      %4640 = vmatmul.mubr.bf16.gmra.mrb[0].mxu0 %v4517
      %v4641 = vpop.f32.mrb[0].mxu0
      %v4642 = vadd.f32 0.0, %v4641
      %v4643 = vpop.f32.mrb[0].mxu0
      %v4644 = vpop.f32.mrb[0].mxu0
      %v4645 = vadd.f32 0.0, %v4644
      %v4646 = vpop.f32.mrb[0].mxu0
      %4647 = vmatprep.mubr.bf16.mxu0 0
      %4648 = vmatmul.mubr.bf16.gmra.mrb[0].mxu0 %v4520
      %v4649 = vpop.f32.mrb[0].mxu0
      %v4650 = vadd.f32 0.0, %v4649
      %v4651 = vpop.f32.mrb[0].mxu0
      %v4652 = vpop.f32.mrb[0].mxu0
      %v4653 = vadd.f32 0.0, %v4652
      %v4654 = vpop.f32.mrb[0].mxu0
      %4655 = vmatprep.mubr.bf16.mxu0 0
      %4656 = vmatmul.mubr.bf16.gmra.mrb[0].mxu0 %v4523
      %v4657 = vpop.f32.mrb[0].mxu0
      %v4658 = vadd.f32 0.0, %v4657
      %v4659 = vpop.f32.mrb[0].mxu0
      %v4660 = vpop.f32.mrb[0].mxu0
      %v4661 = vadd.f32 0.0, %v4660
      %v4662 = vpop.f32.mrb[0].mxu0
      %4663 = vmatprep.mubr.bf16.mxu0 0
      %4664 = vmatmul.mubr.bf16.gmra.mrb[0].mxu0 %v4526
      %v4665 = vpop.f32.mrb[0].mxu0
      %v4666 = vadd.f32 0.0, %v4665
      %v4667 = vpop.f32.mrb[0].mxu0
      %v4668 = vpop.f32.mrb[0].mxu0
      %v4669 = vadd.f32 0.0, %v4668
      %v4670 = vpop.f32.mrb[0].mxu0
      %4671 = vmatprep.mubr.bf16.mxu0 0
      %4672 = vmatmul.mubr.bf16.gmra.mrb[0].mxu0 %v4529
      %v4673 = vpop.f32.mrb[0].mxu0
      %v4674 = vadd.f32 0.0, %v4673
      %v4675 = vpop.f32.mrb[0].mxu0
      %v4676 = vpop.f32.mrb[0].mxu0
      %v4677 = vadd.f32 0.0, %v4676
      %v4678 = vpop.f32.mrb[0].mxu0
      %4679 = vmatprep.mubr.bf16.mxu0 0
      %4680 = vmatmul.mubr.bf16.gmra.mrb[0].mxu0 %v4532
      %v4681 = vpop.f32.mrb[0].mxu0
      %v4682 = vadd.f32 0.0, %v4681
      %v4683 = vpop.f32.mrb[0].mxu0
      %v4684 = vpop.f32.mrb[0].mxu0
      %v4685 = vadd.f32 0.0, %v4684
      %v4686 = vpop.f32.mrb[0].mxu0
      %4687 = vmatprep.mubr.bf16.mxu0 0
      %4688 = vmatmul.mubr.bf16.gmra.mrb[0].mxu0 %v4535
      %v4689 = vpop.f32.mrb[0].mxu0
      %v4690 = vadd.f32 0.0, %v4689
      %v4691 = vpop.f32.mrb[0].mxu0
      %v4692 = vpop.f32.mrb[0].mxu0
      %v4693 = vadd.f32 0.0, %v4692
      %v4694 = vpop.f32.mrb[0].mxu0
      %4695 = vmatprep.mubr.bf16.mxu0 0
      %4696 = vmatmul.mubr.bf16.gmra.mrb[0].mxu0 %v4538
      %v4697 = vpop.f32.mrb[0].mxu0
      %v4698 = vadd.f32 0.0, %v4697
      %v4699 = vpop.f32.mrb[0].mxu0
      %v4700 = vpop.f32.mrb[0].mxu0
      %v4701 = vadd.f32 0.0, %v4700
      %v4702 = vpop.f32.mrb[0].mxu0
      %4703 = vdwg.mxu0
      %v4704 = vadd.f32 %v4409, %v4578
      %v4705 = vadd.f32 %v4410, %v4581
      %v4706 = vadd.f32 %v4411, %v4586
      %v4707 = vadd.f32 %v4412, %v4589
      %v4708 = vadd.f32 %v4413, %v4594
      %v4709 = vadd.f32 %v4414, %v4597
      %v4710 = vadd.f32 %v4415, %v4602
      %v4711 = vadd.f32 %v4416, %v4605
      %v4712 = vadd.f32 %v4417, %v4610
      %v4713 = vadd.f32 %v4418, %v4613
      %v4714 = vadd.f32 %v4419, %v4618
      %v4715 = vadd.f32 %v4420, %v4621
      %v4716 = vadd.f32 %v4421, %v4626
      %v4717 = vadd.f32 %v4422, %v4629
      %v4718 = vadd.f32 %v4423, %v4634
      %v4719 = vadd.f32 %v4424, %v4637
      %v4720 = vadd.f32 %v4425, %v4642
      %v4721 = vadd.f32 %v4426, %v4645
      %v4722 = vadd.f32 %v4427, %v4650
      %v4723 = vadd.f32 %v4428, %v4653
      %v4724 = vadd.f32 %v4429, %v4658
      %v4725 = vadd.f32 %v4430, %v4661
      %v4726 = vadd.f32 %v4431, %v4666
      %v4727 = vadd.f32 %v4432, %v4669
      %v4728 = vadd.f32 %v4433, %v4674
      %v4729 = vadd.f32 %v4434, %v4677
      %v4730 = vadd.f32 %v4435, %v4682
      %v4731 = vadd.f32 %v4436, %v4685
      %v4732 = vadd.f32 %v4437, %v4690
      %v4733 = vadd.f32 %v4438, %v4693
      %v4734 = vadd.f32 %v4439, %v4698
      %v4735 = vadd.f32 %v4440, %v4701
      %v4736 = vld [vmem:[%s4146 + $0x1] sm:$0xff]
      %v4737 = vld [vmem:[%s4146 + $0x9] sm:$0xff]
      %v4738 = vld [vmem:[%s4146 + $0x19] sm:$0xff]
      %v4739 = vld [vmem:[%s4146 + $0x21] sm:$0xff]
      %v4740 = vld [vmem:[%s4146 + $0x31] sm:$0xff]
      %v4741 = vld [vmem:[%s4146 + $0x39] sm:$0xff]
      %v4742 = vld [vmem:[%s4146 + $0x49] sm:$0xff]
      %v4743 = vld [vmem:[%s4146 + $0x51] sm:$0xff]
      %v4744 = vld [vmem:[%s4146 + $0x61] sm:$0xff]
      %v4745 = vld [vmem:[%s4146 + $0x69] sm:$0xff]
      %v4746 = vld [vmem:[%s4146 + $0x79] sm:$0xff]
      %v4747 = vld [vmem:[%s4146 + $0x81] sm:$0xff]
      %v4748 = vld [vmem:[%s4146 + $0x91] sm:$0xff]
      %v4749 = vld [vmem:[%s4146 + $0x99] sm:$0xff]
      %v4750 = vld [vmem:[%s4146 + $0xa9] sm:$0xff]
      %v4751 = vld [vmem:[%s4146 + $0xb1] sm:$0xff]
      %v4752 = vld [vmem:[%s4146 + $0xc1] sm:$0xff]
      %v4753 = vld [vmem:[%s4146 + $0xc9] sm:$0xff]
      %v4754 = vld [vmem:[%s4146 + $0xd9] sm:$0xff]
      %v4755 = vld [vmem:[%s4146 + $0xe1] sm:$0xff]
      %v4756 = vld [vmem:[%s4146 + $0xf1] sm:$0xff]
      %v4757 = vld [vmem:[%s4146 + $0xf9] sm:$0xff]
      %v4758 = vld [vmem:[%s4146 + $0x109] sm:$0xff]
      %v4759 = vld [vmem:[%s4146 + $0x111] sm:$0xff]
      %v4760 = vld [vmem:[%s4146 + $0x121] sm:$0xff]
      %v4761 = vld [vmem:[%s4146 + $0x129] sm:$0xff]
      %v4762 = vld [vmem:[%s4146 + $0x139] sm:$0xff]
      %v4763 = vld [vmem:[%s4146 + $0x141] sm:$0xff]
      %v4764 = vld [vmem:[%s4146 + $0x151] sm:$0xff]
      %v4765 = vld [vmem:[%s4146 + $0x159] sm:$0xff]
      %v4766 = vld [vmem:[%s4146 + $0x169] sm:$0xff]
      %v4767 = vld [vmem:[%s4146 + $0x171] sm:$0xff]
      %v4768 = vpack.c.bf16 %v4737, %v4736
      %v4769 = vpack.c.bf16 %v4739, %v4738
      %v4770 = vpack.c.bf16 %v4741, %v4740
      %v4771 = vpack.c.bf16 %v4743, %v4742
      %v4772 = vpack.c.bf16 %v4745, %v4744
      %v4773 = vpack.c.bf16 %v4747, %v4746
      %v4774 = vpack.c.bf16 %v4749, %v4748
      %v4775 = vpack.c.bf16 %v4751, %v4750
      %v4776 = vpack.c.bf16 %v4753, %v4752
      %v4777 = vpack.c.bf16 %v4755, %v4754
      %v4778 = vpack.c.bf16 %v4757, %v4756
      %v4779 = vpack.c.bf16 %v4759, %v4758
      %v4780 = vpack.c.bf16 %v4761, %v4760
      %v4781 = vpack.c.bf16 %v4763, %v4762
      %v4782 = vpack.c.bf16 %v4765, %v4764
      %v4783 = vpack.c.bf16 %v4767, %v4766
      %s4784 = scalar_lea.vmem %s2, 14
      %v4785 = vld [vmem:[%s4784] sm:$0x3]
      %v4787 = vsel %vm450, %v4768, 0
      %v4790 = vsel %vm450, %v4769, 0
      %v4793 = vsel %vm450, %v4770, 0
      %v4796 = vsel %vm450, %v4771, 0
      %v4799 = vsel %vm450, %v4772, 0
      %v4802 = vsel %vm450, %v4773, 0
      %v4805 = vsel %vm450, %v4774, 0
      %v4808 = vsel %vm450, %v4775, 0
      %v4811 = vsel %vm450, %v4776, 0
      %v4814 = vsel %vm450, %v4777, 0
      %v4817 = vsel %vm450, %v4778, 0
      %v4820 = vsel %vm450, %v4779, 0
      %v4823 = vsel %vm450, %v4780, 0
      %v4826 = vsel %vm450, %v4781, 0
      %v4829 = vsel %vm450, %v4782, 0
      %v4832 = vsel %vm450, %v4783, 0
      %v4835 = vsel %vm499, %v4785, 0
      %4837 = vmatprep.subr.bf16.mxu0 0
      %4838 = vmatpush1.bf16.msra.mxu0 %v4835
      %4839 = vmatprep.subr.bf16.mxu0 0
      %4840 = vmatpush1.bf16.msra.mxu0 0
      %4841 = vmatprep.subr.bf16.mxu0 0
      %4842 = vmatpush1.bf16.msra.mxu0 0
      %4843 = vmatprep.subr.bf16.mxu0 0
      %4844 = vmatpush1.bf16.msra.mxu0 0
      %4845 = vmatprep.subr.bf16.mxu0 0
      %4846 = vmatpush1.bf16.msra.mxu0 0
      %4847 = vmatprep.subr.bf16.mxu0 0
      %4848 = vmatpush1.bf16.msra.mxu0 0
      %4849 = vmatprep.subr.bf16.mxu0 0
      %4850 = vmatpush1.bf16.msra.mxu0 0
      %4851 = vmatprep.subr.bf16.mxu0 0
      %4852 = vmatpush1.bf16.msra.mxu0 0
      %4853 = vmatprep.subr.bf16.mxu0 0
      %4854 = vmatpush1.bf16.msra.mxu0 0
      %4855 = vmatprep.subr.bf16.mxu0 0
      %4856 = vmatpush1.bf16.msra.mxu0 0
      %4857 = vmatprep.subr.bf16.mxu0 0
      %4858 = vmatpush1.bf16.msra.mxu0 0
      %4859 = vmatprep.subr.bf16.mxu0 0
      %4860 = vmatpush1.bf16.msra.mxu0 0
      %4861 = vmatprep.subr.bf16.mxu0 0
      %4862 = vmatpush1.bf16.msra.mxu0 0
      %4863 = vmatprep.subr.bf16.mxu0 0
      %4864 = vmatpush1.bf16.msra.mxu0 0
      %4865 = vmatprep.subr.bf16.mxu0 0
      %4866 = vmatpush1.bf16.msra.mxu0 0
      %4867 = vmatprep.subr.bf16.mxu0 0
      %4868 = vmatpush1.bf16.msra.mxu0 0
      %4869 = vmatprep.mubr.bf16.mxu0 0
      %4870 = vmatmul.mubr.bf16.gmra.mrb[0].mxu0 %v4787
      %v4871 = vpop.f32.mrb[0].mxu0
      %v4872 = vadd.f32 0.0, %v4871
      %v4873 = vpop.f32.mrb[0].mxu0
      %v4874 = vpop.f32.mrb[0].mxu0
      %v4875 = vadd.f32 0.0, %v4874
      %v4876 = vpop.f32.mrb[0].mxu0
      %4877 = vmatprep.mubr.bf16.mxu0 0
      %4878 = vmatmul.mubr.bf16.gmra.mrb[0].mxu0 %v4790
      %v4879 = vpop.f32.mrb[0].mxu0
      %v4880 = vadd.f32 0.0, %v4879
      %v4881 = vpop.f32.mrb[0].mxu0
      %v4882 = vpop.f32.mrb[0].mxu0
      %v4883 = vadd.f32 0.0, %v4882
      %v4884 = vpop.f32.mrb[0].mxu0
      %4885 = vmatprep.mubr.bf16.mxu0 0
      %4886 = vmatmul.mubr.bf16.gmra.mrb[0].mxu0 %v4793
      %v4887 = vpop.f32.mrb[0].mxu0
      %v4888 = vadd.f32 0.0, %v4887
      %v4889 = vpop.f32.mrb[0].mxu0
      %v4890 = vpop.f32.mrb[0].mxu0
      %v4891 = vadd.f32 0.0, %v4890
      %v4892 = vpop.f32.mrb[0].mxu0
      %4893 = vmatprep.mubr.bf16.mxu0 0
      %4894 = vmatmul.mubr.bf16.gmra.mrb[0].mxu0 %v4796
      %v4895 = vpop.f32.mrb[0].mxu0
      %v4896 = vadd.f32 0.0, %v4895
      %v4897 = vpop.f32.mrb[0].mxu0
      %v4898 = vpop.f32.mrb[0].mxu0
      %v4899 = vadd.f32 0.0, %v4898
      %v4900 = vpop.f32.mrb[0].mxu0
      %4901 = vmatprep.mubr.bf16.mxu0 0
      %4902 = vmatmul.mubr.bf16.gmra.mrb[0].mxu0 %v4799
      %v4903 = vpop.f32.mrb[0].mxu0
      %v4904 = vadd.f32 0.0, %v4903
      %v4905 = vpop.f32.mrb[0].mxu0
      %v4906 = vpop.f32.mrb[0].mxu0
      %v4907 = vadd.f32 0.0, %v4906
      %v4908 = vpop.f32.mrb[0].mxu0
      %4909 = vmatprep.mubr.bf16.mxu0 0
      %4910 = vmatmul.mubr.bf16.gmra.mrb[0].mxu0 %v4802
      %v4911 = vpop.f32.mrb[0].mxu0
      %v4912 = vadd.f32 0.0, %v4911
      %v4913 = vpop.f32.mrb[0].mxu0
      %v4914 = vpop.f32.mrb[0].mxu0
      %v4915 = vadd.f32 0.0, %v4914
      %v4916 = vpop.f32.mrb[0].mxu0
      %4917 = vmatprep.mubr.bf16.mxu0 0
      %4918 = vmatmul.mubr.bf16.gmra.mrb[0].mxu0 %v4805
      %v4919 = vpop.f32.mrb[0].mxu0
      %v4920 = vadd.f32 0.0, %v4919
      %v4921 = vpop.f32.mrb[0].mxu0
      %v4922 = vpop.f32.mrb[0].mxu0
      %v4923 = vadd.f32 0.0, %v4922
      %v4924 = vpop.f32.mrb[0].mxu0
      %4925 = vmatprep.mubr.bf16.mxu0 0
      %4926 = vmatmul.mubr.bf16.gmra.mrb[0].mxu0 %v4808
      %v4927 = vpop.f32.mrb[0].mxu0
      %v4928 = vadd.f32 0.0, %v4927
      %v4929 = vpop.f32.mrb[0].mxu0
      %v4930 = vpop.f32.mrb[0].mxu0
      %v4931 = vadd.f32 0.0, %v4930
      %v4932 = vpop.f32.mrb[0].mxu0
      %4933 = vmatprep.mubr.bf16.mxu0 0
      %4934 = vmatmul.mubr.bf16.gmra.mrb[0].mxu0 %v4811
      %v4935 = vpop.f32.mrb[0].mxu0
      %v4936 = vadd.f32 0.0, %v4935
      %v4937 = vpop.f32.mrb[0].mxu0
      %v4938 = vpop.f32.mrb[0].mxu0
      %v4939 = vadd.f32 0.0, %v4938
      %v4940 = vpop.f32.mrb[0].mxu0
      %4941 = vmatprep.mubr.bf16.mxu0 0
      %4942 = vmatmul.mubr.bf16.gmra.mrb[0].mxu0 %v4814
      %v4943 = vpop.f32.mrb[0].mxu0
      %v4944 = vadd.f32 0.0, %v4943
      %v4945 = vpop.f32.mrb[0].mxu0
      %v4946 = vpop.f32.mrb[0].mxu0
      %v4947 = vadd.f32 0.0, %v4946
      %v4948 = vpop.f32.mrb[0].mxu0
      %4949 = vmatprep.mubr.bf16.mxu0 0
      %4950 = vmatmul.mubr.bf16.gmra.mrb[0].mxu0 %v4817
      %v4951 = vpop.f32.mrb[0].mxu0
      %v4952 = vadd.f32 0.0, %v4951
      %v4953 = vpop.f32.mrb[0].mxu0
      %v4954 = vpop.f32.mrb[0].mxu0
      %v4955 = vadd.f32 0.0, %v4954
      %v4956 = vpop.f32.mrb[0].mxu0
      %4957 = vmatprep.mubr.bf16.mxu0 0
      %4958 = vmatmul.mubr.bf16.gmra.mrb[0].mxu0 %v4820
      %v4959 = vpop.f32.mrb[0].mxu0
      %v4960 = vadd.f32 0.0, %v4959
      %v4961 = vpop.f32.mrb[0].mxu0
      %v4962 = vpop.f32.mrb[0].mxu0
      %v4963 = vadd.f32 0.0, %v4962
      %v4964 = vpop.f32.mrb[0].mxu0
      %4965 = vmatprep.mubr.bf16.mxu0 0
      %4966 = vmatmul.mubr.bf16.gmra.mrb[0].mxu0 %v4823
      %v4967 = vpop.f32.mrb[0].mxu0
      %v4968 = vadd.f32 0.0, %v4967
      %v4969 = vpop.f32.mrb[0].mxu0
      %v4970 = vpop.f32.mrb[0].mxu0
      %v4971 = vadd.f32 0.0, %v4970
      %v4972 = vpop.f32.mrb[0].mxu0
      %4973 = vmatprep.mubr.bf16.mxu0 0
      %4974 = vmatmul.mubr.bf16.gmra.mrb[0].mxu0 %v4826
      %v4975 = vpop.f32.mrb[0].mxu0
      %v4976 = vadd.f32 0.0, %v4975
      %v4977 = vpop.f32.mrb[0].mxu0
      %v4978 = vpop.f32.mrb[0].mxu0
      %v4979 = vadd.f32 0.0, %v4978
      %v4980 = vpop.f32.mrb[0].mxu0
      %4981 = vmatprep.mubr.bf16.mxu0 0
      %4982 = vmatmul.mubr.bf16.gmra.mrb[0].mxu0 %v4829
      %v4983 = vpop.f32.mrb[0].mxu0
      %v4984 = vadd.f32 0.0, %v4983
      %v4985 = vpop.f32.mrb[0].mxu0
      %v4986 = vpop.f32.mrb[0].mxu0
      %v4987 = vadd.f32 0.0, %v4986
      %v4988 = vpop.f32.mrb[0].mxu0
      %4989 = vmatprep.mubr.bf16.mxu0 0
      %4990 = vmatmul.mubr.bf16.gmra.mrb[0].mxu0 %v4832
      %v4991 = vpop.f32.mrb[0].mxu0
      %v4992 = vadd.f32 0.0, %v4991
      %v4993 = vpop.f32.mrb[0].mxu0
      %v4994 = vpop.f32.mrb[0].mxu0
      %v4995 = vadd.f32 0.0, %v4994
      %v4996 = vpop.f32.mrb[0].mxu0
      %4997 = vdwg.mxu0
      %v4998 = vadd.f32 %v4704, %v4872
      %v4999 = vadd.f32 %v4705, %v4875
      %v5000 = vadd.f32 %v4706, %v4880
      %v5001 = vadd.f32 %v4707, %v4883
      %v5002 = vadd.f32 %v4708, %v4888
      %v5003 = vadd.f32 %v4709, %v4891
      %v5004 = vadd.f32 %v4710, %v4896
      %v5005 = vadd.f32 %v4711, %v4899
      %v5006 = vadd.f32 %v4712, %v4904
      %v5007 = vadd.f32 %v4713, %v4907
      %v5008 = vadd.f32 %v4714, %v4912
      %v5009 = vadd.f32 %v4715, %v4915
      %v5010 = vadd.f32 %v4716, %v4920
      %v5011 = vadd.f32 %v4717, %v4923
      %v5012 = vadd.f32 %v4718, %v4928
      %v5013 = vadd.f32 %v4719, %v4931
      %v5014 = vadd.f32 %v4720, %v4936
      %v5015 = vadd.f32 %v4721, %v4939
      %v5016 = vadd.f32 %v4722, %v4944
      %v5017 = vadd.f32 %v4723, %v4947
      %v5018 = vadd.f32 %v4724, %v4952
      %v5019 = vadd.f32 %v4725, %v4955
      %v5020 = vadd.f32 %v4726, %v4960
      %v5021 = vadd.f32 %v4727, %v4963
      %v5022 = vadd.f32 %v4728, %v4968
      %v5023 = vadd.f32 %v4729, %v4971
      %v5024 = vadd.f32 %v4730, %v4976
      %v5025 = vadd.f32 %v4731, %v4979
      %v5026 = vadd.f32 %v4732, %v4984
      %v5027 = vadd.f32 %v4733, %v4987
      %v5028 = vadd.f32 %v4734, %v4992
      %v5029 = vadd.f32 %v4735, %v4995
      %v5030 = vld [vmem:[%s4441 + $0x1] sm:$0xff]
      %v5031 = vld [vmem:[%s4441 + $0x9] sm:$0xff]
      %v5032 = vld [vmem:[%s4441 + $0x19] sm:$0xff]
      %v5033 = vld [vmem:[%s4441 + $0x21] sm:$0xff]
      %v5034 = vld [vmem:[%s4441 + $0x31] sm:$0xff]
      %v5035 = vld [vmem:[%s4441 + $0x39] sm:$0xff]
      %v5036 = vld [vmem:[%s4441 + $0x49] sm:$0xff]
      %v5037 = vld [vmem:[%s4441 + $0x51] sm:$0xff]
      %v5038 = vld [vmem:[%s4441 + $0x61] sm:$0xff]
      %v5039 = vld [vmem:[%s4441 + $0x69] sm:$0xff]
      %v5040 = vld [vmem:[%s4441 + $0x79] sm:$0xff]
      %v5041 = vld [vmem:[%s4441 + $0x81] sm:$0xff]
      %v5042 = vld [vmem:[%s4441 + $0x91] sm:$0xff]
      %v5043 = vld [vmem:[%s4441 + $0x99] sm:$0xff]
      %v5044 = vld [vmem:[%s4441 + $0xa9] sm:$0xff]
      %v5045 = vld [vmem:[%s4441 + $0xb1] sm:$0xff]
      %v5046 = vld [vmem:[%s4441 + $0xc1] sm:$0xff]
      %v5047 = vld [vmem:[%s4441 + $0xc9] sm:$0xff]
      %v5048 = vld [vmem:[%s4441 + $0xd9] sm:$0xff]
      %v5049 = vld [vmem:[%s4441 + $0xe1] sm:$0xff]
      %v5050 = vld [vmem:[%s4441 + $0xf1] sm:$0xff]
      %v5051 = vld [vmem:[%s4441 + $0xf9] sm:$0xff]
      %v5052 = vld [vmem:[%s4441 + $0x109] sm:$0xff]
      %v5053 = vld [vmem:[%s4441 + $0x111] sm:$0xff]
      %v5054 = vld [vmem:[%s4441 + $0x121] sm:$0xff]
      %v5055 = vld [vmem:[%s4441 + $0x129] sm:$0xff]
      %v5056 = vld [vmem:[%s4441 + $0x139] sm:$0xff]
      %v5057 = vld [vmem:[%s4441 + $0x141] sm:$0xff]
      %v5058 = vld [vmem:[%s4441 + $0x151] sm:$0xff]
      %v5059 = vld [vmem:[%s4441 + $0x159] sm:$0xff]
      %v5060 = vld [vmem:[%s4441 + $0x169] sm:$0xff]
      %v5061 = vld [vmem:[%s4441 + $0x171] sm:$0xff]
      %v5062 = vpack.c.bf16 %v5031, %v5030
      %v5063 = vpack.c.bf16 %v5033, %v5032
      %v5064 = vpack.c.bf16 %v5035, %v5034
      %v5065 = vpack.c.bf16 %v5037, %v5036
      %v5066 = vpack.c.bf16 %v5039, %v5038
      %v5067 = vpack.c.bf16 %v5041, %v5040
      %v5068 = vpack.c.bf16 %v5043, %v5042
      %v5069 = vpack.c.bf16 %v5045, %v5044
      %v5070 = vpack.c.bf16 %v5047, %v5046
      %v5071 = vpack.c.bf16 %v5049, %v5048
      %v5072 = vpack.c.bf16 %v5051, %v5050
      %v5073 = vpack.c.bf16 %v5053, %v5052
      %v5074 = vpack.c.bf16 %v5055, %v5054
      %v5075 = vpack.c.bf16 %v5057, %v5056
      %v5076 = vpack.c.bf16 %v5059, %v5058
      %v5077 = vpack.c.bf16 %v5061, %v5060
      %s5078 = scalar_lea.vmem %s3, 14
      %v5079 = vld [vmem:[%s5078] sm:$0x3]
      %v5081 = vsel %vm450, %v5062, 0
      %v5084 = vsel %vm450, %v5063, 0
      %v5087 = vsel %vm450, %v5064, 0
      %v5090 = vsel %vm450, %v5065, 0
      %v5093 = vsel %vm450, %v5066, 0
      %v5096 = vsel %vm450, %v5067, 0
      %v5099 = vsel %vm450, %v5068, 0
      %v5102 = vsel %vm450, %v5069, 0
      %v5105 = vsel %vm450, %v5070, 0
      %v5108 = vsel %vm450, %v5071, 0
      %v5111 = vsel %vm450, %v5072, 0
      %v5114 = vsel %vm450, %v5073, 0
      %v5117 = vsel %vm450, %v5074, 0
      %v5120 = vsel %vm450, %v5075, 0
      %v5123 = vsel %vm450, %v5076, 0
      %v5126 = vsel %vm450, %v5077, 0
      %v5129 = vsel %vm499, %v5079, 0
      %5131 = vmatprep.subr.bf16.mxu0 0
      %5132 = vmatpush1.bf16.msra.mxu0 %v5129
      %5133 = vmatprep.subr.bf16.mxu0 0
      %5134 = vmatpush1.bf16.msra.mxu0 0
      %5135 = vmatprep.subr.bf16.mxu0 0
      %5136 = vmatpush1.bf16.msra.mxu0 0
      %5137 = vmatprep.subr.bf16.mxu0 0
      %5138 = vmatpush1.bf16.msra.mxu0 0
      %5139 = vmatprep.subr.bf16.mxu0 0
      %5140 = vmatpush1.bf16.msra.mxu0 0
      %5141 = vmatprep.subr.bf16.mxu0 0
      %5142 = vmatpush1.bf16.msra.mxu0 0
      %5143 = vmatprep.subr.bf16.mxu0 0
      %5144 = vmatpush1.bf16.msra.mxu0 0
      %5145 = vmatprep.subr.bf16.mxu0 0
      %5146 = vmatpush1.bf16.msra.mxu0 0
      %5147 = vmatprep.subr.bf16.mxu0 0
      %5148 = vmatpush1.bf16.msra.mxu0 0
      %5149 = vmatprep.subr.bf16.mxu0 0
      %5150 = vmatpush1.bf16.msra.mxu0 0
      %5151 = vmatprep.subr.bf16.mxu0 0
      %5152 = vmatpush1.bf16.msra.mxu0 0
      %5153 = vmatprep.subr.bf16.mxu0 0
      %5154 = vmatpush1.bf16.msra.mxu0 0
      %5155 = vmatprep.subr.bf16.mxu0 0
      %5156 = vmatpush1.bf16.msra.mxu0 0
      %5157 = vmatprep.subr.bf16.mxu0 0
      %5158 = vmatpush1.bf16.msra.mxu0 0
      %5159 = vmatprep.subr.bf16.mxu0 0
      %5160 = vmatpush1.bf16.msra.mxu0 0
      %5161 = vmatprep.subr.bf16.mxu0 0
      %5162 = vmatpush1.bf16.msra.mxu0 0
      %5163 = vmatprep.mubr.bf16.mxu0 0
      %5164 = vmatmul.mubr.bf16.gmra.mrb[0].mxu0 %v5081
      %v5165 = vpop.f32.mrb[0].mxu0
      %v5166 = vadd.f32 0.0, %v5165
      %v5167 = vpop.f32.mrb[0].mxu0
      %v5168 = vpop.f32.mrb[0].mxu0
      %v5169 = vadd.f32 0.0, %v5168
      %v5170 = vpop.f32.mrb[0].mxu0
      %5171 = vmatprep.mubr.bf16.mxu0 0
      %5172 = vmatmul.mubr.bf16.gmra.mrb[0].mxu0 %v5084
      %v5173 = vpop.f32.mrb[0].mxu0
      %v5174 = vadd.f32 0.0, %v5173
      %v5175 = vpop.f32.mrb[0].mxu0
      %v5176 = vpop.f32.mrb[0].mxu0
      %v5177 = vadd.f32 0.0, %v5176
      %v5178 = vpop.f32.mrb[0].mxu0
      %5179 = vmatprep.mubr.bf16.mxu0 0
      %5180 = vmatmul.mubr.bf16.gmra.mrb[0].mxu0 %v5087
      %v5181 = vpop.f32.mrb[0].mxu0
      %v5182 = vadd.f32 0.0, %v5181
      %v5183 = vpop.f32.mrb[0].mxu0
      %v5184 = vpop.f32.mrb[0].mxu0
      %v5185 = vadd.f32 0.0, %v5184
      %v5186 = vpop.f32.mrb[0].mxu0
      %5187 = vmatprep.mubr.bf16.mxu0 0
      %5188 = vmatmul.mubr.bf16.gmra.mrb[0].mxu0 %v5090
      %v5189 = vpop.f32.mrb[0].mxu0
      %v5190 = vadd.f32 0.0, %v5189
      %v5191 = vpop.f32.mrb[0].mxu0
      %v5192 = vpop.f32.mrb[0].mxu0
      %v5193 = vadd.f32 0.0, %v5192
      %v5194 = vpop.f32.mrb[0].mxu0
      %5195 = vmatprep.mubr.bf16.mxu0 0
      %5196 = vmatmul.mubr.bf16.gmra.mrb[0].mxu0 %v5093
      %v5197 = vpop.f32.mrb[0].mxu0
      %v5198 = vadd.f32 0.0, %v5197
      %v5199 = vpop.f32.mrb[0].mxu0
      %v5200 = vpop.f32.mrb[0].mxu0
      %v5201 = vadd.f32 0.0, %v5200
      %v5202 = vpop.f32.mrb[0].mxu0
      %5203 = vmatprep.mubr.bf16.mxu0 0
      %5204 = vmatmul.mubr.bf16.gmra.mrb[0].mxu0 %v5096
      %v5205 = vpop.f32.mrb[0].mxu0
      %v5206 = vadd.f32 0.0, %v5205
      %v5207 = vpop.f32.mrb[0].mxu0
      %v5208 = vpop.f32.mrb[0].mxu0
      %v5209 = vadd.f32 0.0, %v5208
      %v5210 = vpop.f32.mrb[0].mxu0
      %5211 = vmatprep.mubr.bf16.mxu0 0
      %5212 = vmatmul.mubr.bf16.gmra.mrb[0].mxu0 %v5099
      %v5213 = vpop.f32.mrb[0].mxu0
      %v5214 = vadd.f32 0.0, %v5213
      %v5215 = vpop.f32.mrb[0].mxu0
      %v5216 = vpop.f32.mrb[0].mxu0
      %v5217 = vadd.f32 0.0, %v5216
      %v5218 = vpop.f32.mrb[0].mxu0
      %5219 = vmatprep.mubr.bf16.mxu0 0
      %5220 = vmatmul.mubr.bf16.gmra.mrb[0].mxu0 %v5102
      %v5221 = vpop.f32.mrb[0].mxu0
      %v5222 = vadd.f32 0.0, %v5221
      %v5223 = vpop.f32.mrb[0].mxu0
      %v5224 = vpop.f32.mrb[0].mxu0
      %v5225 = vadd.f32 0.0, %v5224
      %v5226 = vpop.f32.mrb[0].mxu0
      %5227 = vmatprep.mubr.bf16.mxu0 0
      %5228 = vmatmul.mubr.bf16.gmra.mrb[0].mxu0 %v5105
      %v5229 = vpop.f32.mrb[0].mxu0
      %v5230 = vadd.f32 0.0, %v5229
      %v5231 = vpop.f32.mrb[0].mxu0
      %v5232 = vpop.f32.mrb[0].mxu0
      %v5233 = vadd.f32 0.0, %v5232
      %v5234 = vpop.f32.mrb[0].mxu0
      %5235 = vmatprep.mubr.bf16.mxu0 0
      %5236 = vmatmul.mubr.bf16.gmra.mrb[0].mxu0 %v5108
      %v5237 = vpop.f32.mrb[0].mxu0
      %v5238 = vadd.f32 0.0, %v5237
      %v5239 = vpop.f32.mrb[0].mxu0
      %v5240 = vpop.f32.mrb[0].mxu0
      %v5241 = vadd.f32 0.0, %v5240
      %v5242 = vpop.f32.mrb[0].mxu0
      %5243 = vmatprep.mubr.bf16.mxu0 0
      %5244 = vmatmul.mubr.bf16.gmra.mrb[0].mxu0 %v5111
      %v5245 = vpop.f32.mrb[0].mxu0
      %v5246 = vadd.f32 0.0, %v5245
      %v5247 = vpop.f32.mrb[0].mxu0
      %v5248 = vpop.f32.mrb[0].mxu0
      %v5249 = vadd.f32 0.0, %v5248
      %v5250 = vpop.f32.mrb[0].mxu0
      %5251 = vmatprep.mubr.bf16.mxu0 0
      %5252 = vmatmul.mubr.bf16.gmra.mrb[0].mxu0 %v5114
      %v5253 = vpop.f32.mrb[0].mxu0
      %v5254 = vadd.f32 0.0, %v5253
      %v5255 = vpop.f32.mrb[0].mxu0
      %v5256 = vpop.f32.mrb[0].mxu0
      %v5257 = vadd.f32 0.0, %v5256
      %v5258 = vpop.f32.mrb[0].mxu0
      %5259 = vmatprep.mubr.bf16.mxu0 0
      %5260 = vmatmul.mubr.bf16.gmra.mrb[0].mxu0 %v5117
      %v5261 = vpop.f32.mrb[0].mxu0
      %v5262 = vadd.f32 0.0, %v5261
      %v5263 = vpop.f32.mrb[0].mxu0
      %v5264 = vpop.f32.mrb[0].mxu0
      %v5265 = vadd.f32 0.0, %v5264
      %v5266 = vpop.f32.mrb[0].mxu0
      %5267 = vmatprep.mubr.bf16.mxu0 0
      %5268 = vmatmul.mubr.bf16.gmra.mrb[0].mxu0 %v5120
      %v5269 = vpop.f32.mrb[0].mxu0
      %v5270 = vadd.f32 0.0, %v5269
      %v5271 = vpop.f32.mrb[0].mxu0
      %v5272 = vpop.f32.mrb[0].mxu0
      %v5273 = vadd.f32 0.0, %v5272
      %v5274 = vpop.f32.mrb[0].mxu0
      %5275 = vmatprep.mubr.bf16.mxu0 0
      %5276 = vmatmul.mubr.bf16.gmra.mrb[0].mxu0 %v5123
      %v5277 = vpop.f32.mrb[0].mxu0
      %v5278 = vadd.f32 0.0, %v5277
      %v5279 = vpop.f32.mrb[0].mxu0
      %v5280 = vpop.f32.mrb[0].mxu0
      %v5281 = vadd.f32 0.0, %v5280
      %v5282 = vpop.f32.mrb[0].mxu0
      %5283 = vmatprep.mubr.bf16.mxu0 0
      %5284 = vmatmul.mubr.bf16.gmra.mrb[0].mxu0 %v5126
      %v5285 = vpop.f32.mrb[0].mxu0
      %v5286 = vadd.f32 0.0, %v5285
      %v5287 = vpop.f32.mrb[0].mxu0
      %v5288 = vpop.f32.mrb[0].mxu0
      %v5289 = vadd.f32 0.0, %v5288
      %v5290 = vpop.f32.mrb[0].mxu0
      %5291 = vdwg.mxu0
      %v5292 = vadd.f32 %v4998, %v5166
      %v5293 = vadd.f32 %v4999, %v5169
      %v5294 = vadd.f32 %v5000, %v5174
      %v5295 = vadd.f32 %v5001, %v5177
      %v5296 = vadd.f32 %v5002, %v5182
      %v5297 = vadd.f32 %v5003, %v5185
      %v5298 = vadd.f32 %v5004, %v5190
      %v5299 = vadd.f32 %v5005, %v5193
      %v5300 = vadd.f32 %v5006, %v5198
      %v5301 = vadd.f32 %v5007, %v5201
      %v5302 = vadd.f32 %v5008, %v5206
      %v5303 = vadd.f32 %v5009, %v5209
      %v5304 = vadd.f32 %v5010, %v5214
      %v5305 = vadd.f32 %v5011, %v5217
      %v5306 = vadd.f32 %v5012, %v5222
      %v5307 = vadd.f32 %v5013, %v5225
      %v5308 = vadd.f32 %v5014, %v5230
      %v5309 = vadd.f32 %v5015, %v5233
      %v5310 = vadd.f32 %v5016, %v5238
      %v5311 = vadd.f32 %v5017, %v5241
      %v5312 = vadd.f32 %v5018, %v5246
      %v5313 = vadd.f32 %v5019, %v5249
      %v5314 = vadd.f32 %v5020, %v5254
      %v5315 = vadd.f32 %v5021, %v5257
      %v5316 = vadd.f32 %v5022, %v5262
      %v5317 = vadd.f32 %v5023, %v5265
      %v5318 = vadd.f32 %v5024, %v5270
      %v5319 = vadd.f32 %v5025, %v5273
      %v5320 = vadd.f32 %v5026, %v5278
      %v5321 = vadd.f32 %v5027, %v5281
      %v5322 = vadd.f32 %v5028, %v5286
      %v5323 = vadd.f32 %v5029, %v5289
      %v5324 = vld [vmem:[%s4146 + $0x2] sm:$0xff]
      %v5325 = vld [vmem:[%s4146 + $0xa] sm:$0xff]
      %v5326 = vld [vmem:[%s4146 + $0x1a] sm:$0xff]
      %v5327 = vld [vmem:[%s4146 + $0x22] sm:$0xff]
      %v5328 = vld [vmem:[%s4146 + $0x32] sm:$0xff]
      %v5329 = vld [vmem:[%s4146 + $0x3a] sm:$0xff]
      %v5330 = vld [vmem:[%s4146 + $0x4a] sm:$0xff]
      %v5331 = vld [vmem:[%s4146 + $0x52] sm:$0xff]
      %v5332 = vld [vmem:[%s4146 + $0x62] sm:$0xff]
      %v5333 = vld [vmem:[%s4146 + $0x6a] sm:$0xff]
      %v5334 = vld [vmem:[%s4146 + $0x7a] sm:$0xff]
      %v5335 = vld [vmem:[%s4146 + $0x82] sm:$0xff]
      %v5336 = vld [vmem:[%s4146 + $0x92] sm:$0xff]
      %v5337 = vld [vmem:[%s4146 + $0x9a] sm:$0xff]
      %v5338 = vld [vmem:[%s4146 + $0xaa] sm:$0xff]
      %v5339 = vld [vmem:[%s4146 + $0xb2] sm:$0xff]
      %v5340 = vld [vmem:[%s4146 + $0xc2] sm:$0xff]
      %v5341 = vld [vmem:[%s4146 + $0xca] sm:$0xff]
      %v5342 = vld [vmem:[%s4146 + $0xda] sm:$0xff]
      %v5343 = vld [vmem:[%s4146 + $0xe2] sm:$0xff]
      %v5344 = vld [vmem:[%s4146 + $0xf2] sm:$0xff]
      %v5345 = vld [vmem:[%s4146 + $0xfa] sm:$0xff]
      %v5346 = vld [vmem:[%s4146 + $0x10a] sm:$0xff]
      %v5347 = vld [vmem:[%s4146 + $0x112] sm:$0xff]
      %v5348 = vld [vmem:[%s4146 + $0x122] sm:$0xff]
      %v5349 = vld [vmem:[%s4146 + $0x12a] sm:$0xff]
      %v5350 = vld [vmem:[%s4146 + $0x13a] sm:$0xff]
      %v5351 = vld [vmem:[%s4146 + $0x142] sm:$0xff]
      %v5352 = vld [vmem:[%s4146 + $0x152] sm:$0xff]
      %v5353 = vld [vmem:[%s4146 + $0x15a] sm:$0xff]
      %v5354 = vld [vmem:[%s4146 + $0x16a] sm:$0xff]
      %v5355 = vld [vmem:[%s4146 + $0x172] sm:$0xff]
      %v5356 = vpack.c.bf16 %v5325, %v5324
      %v5357 = vpack.c.bf16 %v5327, %v5326
      %v5358 = vpack.c.bf16 %v5329, %v5328
      %v5359 = vpack.c.bf16 %v5331, %v5330
      %v5360 = vpack.c.bf16 %v5333, %v5332
      %v5361 = vpack.c.bf16 %v5335, %v5334
      %v5362 = vpack.c.bf16 %v5337, %v5336
      %v5363 = vpack.c.bf16 %v5339, %v5338
      %v5364 = vpack.c.bf16 %v5341, %v5340
      %v5365 = vpack.c.bf16 %v5343, %v5342
      %v5366 = vpack.c.bf16 %v5345, %v5344
      %v5367 = vpack.c.bf16 %v5347, %v5346
      %v5368 = vpack.c.bf16 %v5349, %v5348
      %v5369 = vpack.c.bf16 %v5351, %v5350
      %v5370 = vpack.c.bf16 %v5353, %v5352
      %v5371 = vpack.c.bf16 %v5355, %v5354
      %s5372 = scalar_lea.vmem %s2, 16
      %v5373 = vld [vmem:[%s5372] sm:$0x3]
      %v5375 = vsel %vm450, %v5356, 0
      %v5378 = vsel %vm450, %v5357, 0
      %v5381 = vsel %vm450, %v5358, 0
      %v5384 = vsel %vm450, %v5359, 0
      %v5387 = vsel %vm450, %v5360, 0
      %v5390 = vsel %vm450, %v5361, 0
      %v5393 = vsel %vm450, %v5362, 0
      %v5396 = vsel %vm450, %v5363, 0
      %v5399 = vsel %vm450, %v5364, 0
      %v5402 = vsel %vm450, %v5365, 0
      %v5405 = vsel %vm450, %v5366, 0
      %v5408 = vsel %vm450, %v5367, 0
      %v5411 = vsel %vm450, %v5368, 0
      %v5414 = vsel %vm450, %v5369, 0
      %v5417 = vsel %vm450, %v5370, 0
      %v5420 = vsel %vm450, %v5371, 0
      %v5423 = vsel %vm499, %v5373, 0
      %5425 = vmatprep.subr.bf16.mxu0 0
      %5426 = vmatpush1.bf16.msra.mxu0 %v5423
      %5427 = vmatprep.subr.bf16.mxu0 0
      %5428 = vmatpush1.bf16.msra.mxu0 0
      %5429 = vmatprep.subr.bf16.mxu0 0
      %5430 = vmatpush1.bf16.msra.mxu0 0
      %5431 = vmatprep.subr.bf16.mxu0 0
      %5432 = vmatpush1.bf16.msra.mxu0 0
      %5433 = vmatprep.subr.bf16.mxu0 0
      %5434 = vmatpush1.bf16.msra.mxu0 0
      %5435 = vmatprep.subr.bf16.mxu0 0
      %5436 = vmatpush1.bf16.msra.mxu0 0
      %5437 = vmatprep.subr.bf16.mxu0 0
      %5438 = vmatpush1.bf16.msra.mxu0 0
      %5439 = vmatprep.subr.bf16.mxu0 0
      %5440 = vmatpush1.bf16.msra.mxu0 0
      %5441 = vmatprep.subr.bf16.mxu0 0
      %5442 = vmatpush1.bf16.msra.mxu0 0
      %5443 = vmatprep.subr.bf16.mxu0 0
      %5444 = vmatpush1.bf16.msra.mxu0 0
      %5445 = vmatprep.subr.bf16.mxu0 0
      %5446 = vmatpush1.bf16.msra.mxu0 0
      %5447 = vmatprep.subr.bf16.mxu0 0
      %5448 = vmatpush1.bf16.msra.mxu0 0
      %5449 = vmatprep.subr.bf16.mxu0 0
      %5450 = vmatpush1.bf16.msra.mxu0 0
      %5451 = vmatprep.subr.bf16.mxu0 0
      %5452 = vmatpush1.bf16.msra.mxu0 0
      %5453 = vmatprep.subr.bf16.mxu0 0
      %5454 = vmatpush1.bf16.msra.mxu0 0
      %5455 = vmatprep.subr.bf16.mxu0 0
      %5456 = vmatpush1.bf16.msra.mxu0 0
      %5457 = vmatprep.mubr.bf16.mxu0 0
      %5458 = vmatmul.mubr.bf16.gmra.mrb[0].mxu0 %v5375
      %v5459 = vpop.f32.mrb[0].mxu0
      %v5460 = vadd.f32 0.0, %v5459
      %v5461 = vpop.f32.mrb[0].mxu0
      %v5462 = vpop.f32.mrb[0].mxu0
      %v5463 = vadd.f32 0.0, %v5462
      %v5464 = vpop.f32.mrb[0].mxu0
      %5465 = vmatprep.mubr.bf16.mxu0 0
      %5466 = vmatmul.mubr.bf16.gmra.mrb[0].mxu0 %v5378
      %v5467 = vpop.f32.mrb[0].mxu0
      %v5468 = vadd.f32 0.0, %v5467
      %v5469 = vpop.f32.mrb[0].mxu0
      %v5470 = vpop.f32.mrb[0].mxu0
      %v5471 = vadd.f32 0.0, %v5470
      %v5472 = vpop.f32.mrb[0].mxu0
      %5473 = vmatprep.mubr.bf16.mxu0 0
      %5474 = vmatmul.mubr.bf16.gmra.mrb[0].mxu0 %v5381
      %v5475 = vpop.f32.mrb[0].mxu0
      %v5476 = vadd.f32 0.0, %v5475
      %v5477 = vpop.f32.mrb[0].mxu0
      %v5478 = vpop.f32.mrb[0].mxu0
      %v5479 = vadd.f32 0.0, %v5478
      %v5480 = vpop.f32.mrb[0].mxu0
      %5481 = vmatprep.mubr.bf16.mxu0 0
      %5482 = vmatmul.mubr.bf16.gmra.mrb[0].mxu0 %v5384
      %v5483 = vpop.f32.mrb[0].mxu0
      %v5484 = vadd.f32 0.0, %v5483
      %v5485 = vpop.f32.mrb[0].mxu0
      %v5486 = vpop.f32.mrb[0].mxu0
      %v5487 = vadd.f32 0.0, %v5486
      %v5488 = vpop.f32.mrb[0].mxu0
      %5489 = vmatprep.mubr.bf16.mxu0 0
      %5490 = vmatmul.mubr.bf16.gmra.mrb[0].mxu0 %v5387
      %v5491 = vpop.f32.mrb[0].mxu0
      %v5492 = vadd.f32 0.0, %v5491
      %v5493 = vpop.f32.mrb[0].mxu0
      %v5494 = vpop.f32.mrb[0].mxu0
      %v5495 = vadd.f32 0.0, %v5494
      %v5496 = vpop.f32.mrb[0].mxu0
      %5497 = vmatprep.mubr.bf16.mxu0 0
      %5498 = vmatmul.mubr.bf16.gmra.mrb[0].mxu0 %v5390
      %v5499 = vpop.f32.mrb[0].mxu0
      %v5500 = vadd.f32 0.0, %v5499
      %v5501 = vpop.f32.mrb[0].mxu0
      %v5502 = vpop.f32.mrb[0].mxu0
      %v5503 = vadd.f32 0.0, %v5502
      %v5504 = vpop.f32.mrb[0].mxu0
      %5505 = vmatprep.mubr.bf16.mxu0 0
      %5506 = vmatmul.mubr.bf16.gmra.mrb[0].mxu0 %v5393
      %v5507 = vpop.f32.mrb[0].mxu0
      %v5508 = vadd.f32 0.0, %v5507
      %v5509 = vpop.f32.mrb[0].mxu0
      %v5510 = vpop.f32.mrb[0].mxu0
      %v5511 = vadd.f32 0.0, %v5510
      %v5512 = vpop.f32.mrb[0].mxu0
      %5513 = vmatprep.mubr.bf16.mxu0 0
      %5514 = vmatmul.mubr.bf16.gmra.mrb[0].mxu0 %v5396
      %v5515 = vpop.f32.mrb[0].mxu0
      %v5516 = vadd.f32 0.0, %v5515
      %v5517 = vpop.f32.mrb[0].mxu0
      %v5518 = vpop.f32.mrb[0].mxu0
      %v5519 = vadd.f32 0.0, %v5518
      %v5520 = vpop.f32.mrb[0].mxu0
      %5521 = vmatprep.mubr.bf16.mxu0 0
      %5522 = vmatmul.mubr.bf16.gmra.mrb[0].mxu0 %v5399
      %v5523 = vpop.f32.mrb[0].mxu0
      %v5524 = vadd.f32 0.0, %v5523
      %v5525 = vpop.f32.mrb[0].mxu0
      %v5526 = vpop.f32.mrb[0].mxu0
      %v5527 = vadd.f32 0.0, %v5526
      %v5528 = vpop.f32.mrb[0].mxu0
      %5529 = vmatprep.mubr.bf16.mxu0 0
      %5530 = vmatmul.mubr.bf16.gmra.mrb[0].mxu0 %v5402
      %v5531 = vpop.f32.mrb[0].mxu0
      %v5532 = vadd.f32 0.0, %v5531
      %v5533 = vpop.f32.mrb[0].mxu0
      %v5534 = vpop.f32.mrb[0].mxu0
      %v5535 = vadd.f32 0.0, %v5534
      %v5536 = vpop.f32.mrb[0].mxu0
      %5537 = vmatprep.mubr.bf16.mxu0 0
      %5538 = vmatmul.mubr.bf16.gmra.mrb[0].mxu0 %v5405
      %v5539 = vpop.f32.mrb[0].mxu0
      %v5540 = vadd.f32 0.0, %v5539
      %v5541 = vpop.f32.mrb[0].mxu0
      %v5542 = vpop.f32.mrb[0].mxu0
      %v5543 = vadd.f32 0.0, %v5542
      %v5544 = vpop.f32.mrb[0].mxu0
      %5545 = vmatprep.mubr.bf16.mxu0 0
      %5546 = vmatmul.mubr.bf16.gmra.mrb[0].mxu0 %v5408
      %v5547 = vpop.f32.mrb[0].mxu0
      %v5548 = vadd.f32 0.0, %v5547
      %v5549 = vpop.f32.mrb[0].mxu0
      %v5550 = vpop.f32.mrb[0].mxu0
      %v5551 = vadd.f32 0.0, %v5550
      %v5552 = vpop.f32.mrb[0].mxu0
      %5553 = vmatprep.mubr.bf16.mxu0 0
      %5554 = vmatmul.mubr.bf16.gmra.mrb[0].mxu0 %v5411
      %v5555 = vpop.f32.mrb[0].mxu0
      %v5556 = vadd.f32 0.0, %v5555
      %v5557 = vpop.f32.mrb[0].mxu0
      %v5558 = vpop.f32.mrb[0].mxu0
      %v5559 = vadd.f32 0.0, %v5558
      %v5560 = vpop.f32.mrb[0].mxu0
      %5561 = vmatprep.mubr.bf16.mxu0 0
      %5562 = vmatmul.mubr.bf16.gmra.mrb[0].mxu0 %v5414
      %v5563 = vpop.f32.mrb[0].mxu0
      %v5564 = vadd.f32 0.0, %v5563
      %v5565 = vpop.f32.mrb[0].mxu0
      %v5566 = vpop.f32.mrb[0].mxu0
      %v5567 = vadd.f32 0.0, %v5566
      %v5568 = vpop.f32.mrb[0].mxu0
      %5569 = vmatprep.mubr.bf16.mxu0 0
      %5570 = vmatmul.mubr.bf16.gmra.mrb[0].mxu0 %v5417
      %v5571 = vpop.f32.mrb[0].mxu0
      %v5572 = vadd.f32 0.0, %v5571
      %v5573 = vpop.f32.mrb[0].mxu0
      %v5574 = vpop.f32.mrb[0].mxu0
      %v5575 = vadd.f32 0.0, %v5574
      %v5576 = vpop.f32.mrb[0].mxu0
      %5577 = vmatprep.mubr.bf16.mxu0 0
      %5578 = vmatmul.mubr.bf16.gmra.mrb[0].mxu0 %v5420
      %v5579 = vpop.f32.mrb[0].mxu0
      %v5580 = vadd.f32 0.0, %v5579
      %v5581 = vpop.f32.mrb[0].mxu0
      %v5582 = vpop.f32.mrb[0].mxu0
      %v5583 = vadd.f32 0.0, %v5582
      %v5584 = vpop.f32.mrb[0].mxu0
      %5585 = vdwg.mxu0
      %v5586 = vadd.f32 %v5292, %v5460
      %v5587 = vadd.f32 %v5293, %v5463
      %v5588 = vadd.f32 %v5294, %v5468
      %v5589 = vadd.f32 %v5295, %v5471
      %v5590 = vadd.f32 %v5296, %v5476
      %v5591 = vadd.f32 %v5297, %v5479
      %v5592 = vadd.f32 %v5298, %v5484
      %v5593 = vadd.f32 %v5299, %v5487
      %v5594 = vadd.f32 %v5300, %v5492
      %v5595 = vadd.f32 %v5301, %v5495
      %v5596 = vadd.f32 %v5302, %v5500
      %v5597 = vadd.f32 %v5303, %v5503
      %v5598 = vadd.f32 %v5304, %v5508
      %v5599 = vadd.f32 %v5305, %v5511
      %v5600 = vadd.f32 %v5306, %v5516
      %v5601 = vadd.f32 %v5307, %v5519
      %v5602 = vadd.f32 %v5308, %v5524
      %v5603 = vadd.f32 %v5309, %v5527
      %v5604 = vadd.f32 %v5310, %v5532
      %v5605 = vadd.f32 %v5311, %v5535
      %v5606 = vadd.f32 %v5312, %v5540
      %v5607 = vadd.f32 %v5313, %v5543
      %v5608 = vadd.f32 %v5314, %v5548
      %v5609 = vadd.f32 %v5315, %v5551
      %v5610 = vadd.f32 %v5316, %v5556
      %v5611 = vadd.f32 %v5317, %v5559
      %v5612 = vadd.f32 %v5318, %v5564
      %v5613 = vadd.f32 %v5319, %v5567
      %v5614 = vadd.f32 %v5320, %v5572
      %v5615 = vadd.f32 %v5321, %v5575
      %v5616 = vadd.f32 %v5322, %v5580
      %v5617 = vadd.f32 %v5323, %v5583
      %v5618 = vld [vmem:[%s4441 + $0x2] sm:$0xff]
      %v5619 = vld [vmem:[%s4441 + $0xa] sm:$0xff]
      %v5620 = vld [vmem:[%s4441 + $0x1a] sm:$0xff]
      %v5621 = vld [vmem:[%s4441 + $0x22] sm:$0xff]
      %v5622 = vld [vmem:[%s4441 + $0x32] sm:$0xff]
      %v5623 = vld [vmem:[%s4441 + $0x3a] sm:$0xff]
      %v5624 = vld [vmem:[%s4441 + $0x4a] sm:$0xff]
      %v5625 = vld [vmem:[%s4441 + $0x52] sm:$0xff]
      %v5626 = vld [vmem:[%s4441 + $0x62] sm:$0xff]
      %v5627 = vld [vmem:[%s4441 + $0x6a] sm:$0xff]
      %v5628 = vld [vmem:[%s4441 + $0x7a] sm:$0xff]
      %v5629 = vld [vmem:[%s4441 + $0x82] sm:$0xff]
      %v5630 = vld [vmem:[%s4441 + $0x92] sm:$0xff]
      %v5631 = vld [vmem:[%s4441 + $0x9a] sm:$0xff]
      %v5632 = vld [vmem:[%s4441 + $0xaa] sm:$0xff]
      %v5633 = vld [vmem:[%s4441 + $0xb2] sm:$0xff]
      %v5634 = vld [vmem:[%s4441 + $0xc2] sm:$0xff]
      %v5635 = vld [vmem:[%s4441 + $0xca] sm:$0xff]
      %v5636 = vld [vmem:[%s4441 + $0xda] sm:$0xff]
      %v5637 = vld [vmem:[%s4441 + $0xe2] sm:$0xff]
      %v5638 = vld [vmem:[%s4441 + $0xf2] sm:$0xff]
      %v5639 = vld [vmem:[%s4441 + $0xfa] sm:$0xff]
      %v5640 = vld [vmem:[%s4441 + $0x10a] sm:$0xff]
      %v5641 = vld [vmem:[%s4441 + $0x112] sm:$0xff]
      %v5642 = vld [vmem:[%s4441 + $0x122] sm:$0xff]
      %v5643 = vld [vmem:[%s4441 + $0x12a] sm:$0xff]
      %v5644 = vld [vmem:[%s4441 + $0x13a] sm:$0xff]
      %v5645 = vld [vmem:[%s4441 + $0x142] sm:$0xff]
      %v5646 = vld [vmem:[%s4441 + $0x152] sm:$0xff]
      %v5647 = vld [vmem:[%s4441 + $0x15a] sm:$0xff]
      %v5648 = vld [vmem:[%s4441 + $0x16a] sm:$0xff]
      %v5649 = vld [vmem:[%s4441 + $0x172] sm:$0xff]
      %v5650 = vpack.c.bf16 %v5619, %v5618
      %v5651 = vpack.c.bf16 %v5621, %v5620
      %v5652 = vpack.c.bf16 %v5623, %v5622
      %v5653 = vpack.c.bf16 %v5625, %v5624
      %v5654 = vpack.c.bf16 %v5627, %v5626
      %v5655 = vpack.c.bf16 %v5629, %v5628
      %v5656 = vpack.c.bf16 %v5631, %v5630
      %v5657 = vpack.c.bf16 %v5633, %v5632
      %v5658 = vpack.c.bf16 %v5635, %v5634
      %v5659 = vpack.c.bf16 %v5637, %v5636
      %v5660 = vpack.c.bf16 %v5639, %v5638
      %v5661 = vpack.c.bf16 %v5641, %v5640
      %v5662 = vpack.c.bf16 %v5643, %v5642
      %v5663 = vpack.c.bf16 %v5645, %v5644
      %v5664 = vpack.c.bf16 %v5647, %v5646
      %v5665 = vpack.c.bf16 %v5649, %v5648
      %s5666 = scalar_lea.vmem %s3, 16
      %v5667 = vld [vmem:[%s5666] sm:$0x3]
      %v5669 = vsel %vm450, %v5650, 0
      %v5672 = vsel %vm450, %v5651, 0
      %v5675 = vsel %vm450, %v5652, 0
      %v5678 = vsel %vm450, %v5653, 0
      %v5681 = vsel %vm450, %v5654, 0
      %v5684 = vsel %vm450, %v5655, 0
      %v5687 = vsel %vm450, %v5656, 0
      %v5690 = vsel %vm450, %v5657, 0
      %v5693 = vsel %vm450, %v5658, 0
      %v5696 = vsel %vm450, %v5659, 0
      %v5699 = vsel %vm450, %v5660, 0
      %v5702 = vsel %vm450, %v5661, 0
      %v5705 = vsel %vm450, %v5662, 0
      %v5708 = vsel %vm450, %v5663, 0
      %v5711 = vsel %vm450, %v5664, 0
      %v5714 = vsel %vm450, %v5665, 0
      %v5717 = vsel %vm499, %v5667, 0
      %5719 = vmatprep.subr.bf16.mxu0 0
      %5720 = vmatpush1.bf16.msra.mxu0 %v5717
      %5721 = vmatprep.subr.bf16.mxu0 0
      %5722 = vmatpush1.bf16.msra.mxu0 0
      %5723 = vmatprep.subr.bf16.mxu0 0
      %5724 = vmatpush1.bf16.msra.mxu0 0
      %5725 = vmatprep.subr.bf16.mxu0 0
      %5726 = vmatpush1.bf16.msra.mxu0 0
      %5727 = vmatprep.subr.bf16.mxu0 0
      %5728 = vmatpush1.bf16.msra.mxu0 0
      %5729 = vmatprep.subr.bf16.mxu0 0
      %5730 = vmatpush1.bf16.msra.mxu0 0
      %5731 = vmatprep.subr.bf16.mxu0 0
      %5732 = vmatpush1.bf16.msra.mxu0 0
      %5733 = vmatprep.subr.bf16.mxu0 0
      %5734 = vmatpush1.bf16.msra.mxu0 0
      %5735 = vmatprep.subr.bf16.mxu0 0
      %5736 = vmatpush1.bf16.msra.mxu0 0
      %5737 = vmatprep.subr.bf16.mxu0 0
      %5738 = vmatpush1.bf16.msra.mxu0 0
      %5739 = vmatprep.subr.bf16.mxu0 0
      %5740 = vmatpush1.bf16.msra.mxu0 0
      %5741 = vmatprep.subr.bf16.mxu0 0
      %5742 = vmatpush1.bf16.msra.mxu0 0
      %5743 = vmatprep.subr.bf16.mxu0 0
      %5744 = vmatpush1.bf16.msra.mxu0 0
      %5745 = vmatprep.subr.bf16.mxu0 0
      %5746 = vmatpush1.bf16.msra.mxu0 0
      %5747 = vmatprep.subr.bf16.mxu0 0
      %5748 = vmatpush1.bf16.msra.mxu0 0
      %5749 = vmatprep.subr.bf16.mxu0 0
      %5750 = vmatpush1.bf16.msra.mxu0 0
      %5751 = vmatprep.mubr.bf16.mxu0 0
      %5752 = vmatmul.mubr.bf16.gmra.mrb[0].mxu0 %v5669
      %v5753 = vpop.f32.mrb[0].mxu0
      %v5754 = vadd.f32 0.0, %v5753
      %v5755 = vpop.f32.mrb[0].mxu0
      %v5756 = vpop.f32.mrb[0].mxu0
      %v5757 = vadd.f32 0.0, %v5756
      %v5758 = vpop.f32.mrb[0].mxu0
      %5759 = vmatprep.mubr.bf16.mxu0 0
      %5760 = vmatmul.mubr.bf16.gmra.mrb[0].mxu0 %v5672
      %v5761 = vpop.f32.mrb[0].mxu0
      %v5762 = vadd.f32 0.0, %v5761
      %v5763 = vpop.f32.mrb[0].mxu0
      %v5764 = vpop.f32.mrb[0].mxu0
      %v5765 = vadd.f32 0.0, %v5764
      %v5766 = vpop.f32.mrb[0].mxu0
      %5767 = vmatprep.mubr.bf16.mxu0 0
      %5768 = vmatmul.mubr.bf16.gmra.mrb[0].mxu0 %v5675
      %v5769 = vpop.f32.mrb[0].mxu0
      %v5770 = vadd.f32 0.0, %v5769
      %v5771 = vpop.f32.mrb[0].mxu0
      %v5772 = vpop.f32.mrb[0].mxu0
      %v5773 = vadd.f32 0.0, %v5772
      %v5774 = vpop.f32.mrb[0].mxu0
      %5775 = vmatprep.mubr.bf16.mxu0 0
      %5776 = vmatmul.mubr.bf16.gmra.mrb[0].mxu0 %v5678
      %v5777 = vpop.f32.mrb[0].mxu0
      %v5778 = vadd.f32 0.0, %v5777
      %v5779 = vpop.f32.mrb[0].mxu0
      %v5780 = vpop.f32.mrb[0].mxu0
      %v5781 = vadd.f32 0.0, %v5780
      %v5782 = vpop.f32.mrb[0].mxu0
      %5783 = vmatprep.mubr.bf16.mxu0 0
      %5784 = vmatmul.mubr.bf16.gmra.mrb[0].mxu0 %v5681
      %v5785 = vpop.f32.mrb[0].mxu0
      %v5786 = vadd.f32 0.0, %v5785
      %v5787 = vpop.f32.mrb[0].mxu0
      %v5788 = vpop.f32.mrb[0].mxu0
      %v5789 = vadd.f32 0.0, %v5788
      %v5790 = vpop.f32.mrb[0].mxu0
      %5791 = vmatprep.mubr.bf16.mxu0 0
      %5792 = vmatmul.mubr.bf16.gmra.mrb[0].mxu0 %v5684
      %v5793 = vpop.f32.mrb[0].mxu0
      %v5794 = vadd.f32 0.0, %v5793
      %v5795 = vpop.f32.mrb[0].mxu0
      %v5796 = vpop.f32.mrb[0].mxu0
      %v5797 = vadd.f32 0.0, %v5796
      %v5798 = vpop.f32.mrb[0].mxu0
      %5799 = vmatprep.mubr.bf16.mxu0 0
      %5800 = vmatmul.mubr.bf16.gmra.mrb[0].mxu0 %v5687
      %v5801 = vpop.f32.mrb[0].mxu0
      %v5802 = vadd.f32 0.0, %v5801
      %v5803 = vpop.f32.mrb[0].mxu0
      %v5804 = vpop.f32.mrb[0].mxu0
      %v5805 = vadd.f32 0.0, %v5804
      %v5806 = vpop.f32.mrb[0].mxu0
      %5807 = vmatprep.mubr.bf16.mxu0 0
      %5808 = vmatmul.mubr.bf16.gmra.mrb[0].mxu0 %v5690
      %v5809 = vpop.f32.mrb[0].mxu0
      %v5810 = vadd.f32 0.0, %v5809
      %v5811 = vpop.f32.mrb[0].mxu0
      %v5812 = vpop.f32.mrb[0].mxu0
      %v5813 = vadd.f32 0.0, %v5812
      %v5814 = vpop.f32.mrb[0].mxu0
      %5815 = vmatprep.mubr.bf16.mxu0 0
      %5816 = vmatmul.mubr.bf16.gmra.mrb[0].mxu0 %v5693
      %v5817 = vpop.f32.mrb[0].mxu0
      %v5818 = vadd.f32 0.0, %v5817
      %v5819 = vpop.f32.mrb[0].mxu0
      %v5820 = vpop.f32.mrb[0].mxu0
      %v5821 = vadd.f32 0.0, %v5820
      %v5822 = vpop.f32.mrb[0].mxu0
      %5823 = vmatprep.mubr.bf16.mxu0 0
      %5824 = vmatmul.mubr.bf16.gmra.mrb[0].mxu0 %v5696
      %v5825 = vpop.f32.mrb[0].mxu0
      %v5826 = vadd.f32 0.0, %v5825
      %v5827 = vpop.f32.mrb[0].mxu0
      %v5828 = vpop.f32.mrb[0].mxu0
      %v5829 = vadd.f32 0.0, %v5828
      %v5830 = vpop.f32.mrb[0].mxu0
      %5831 = vmatprep.mubr.bf16.mxu0 0
      %5832 = vmatmul.mubr.bf16.gmra.mrb[0].mxu0 %v5699
      %v5833 = vpop.f32.mrb[0].mxu0
      %v5834 = vadd.f32 0.0, %v5833
      %v5835 = vpop.f32.mrb[0].mxu0
      %v5836 = vpop.f32.mrb[0].mxu0
      %v5837 = vadd.f32 0.0, %v5836
      %v5838 = vpop.f32.mrb[0].mxu0
      %5839 = vmatprep.mubr.bf16.mxu0 0
      %5840 = vmatmul.mubr.bf16.gmra.mrb[0].mxu0 %v5702
      %v5841 = vpop.f32.mrb[0].mxu0
      %v5842 = vadd.f32 0.0, %v5841
      %v5843 = vpop.f32.mrb[0].mxu0
      %v5844 = vpop.f32.mrb[0].mxu0
      %v5845 = vadd.f32 0.0, %v5844
      %v5846 = vpop.f32.mrb[0].mxu0
      %5847 = vmatprep.mubr.bf16.mxu0 0
      %5848 = vmatmul.mubr.bf16.gmra.mrb[0].mxu0 %v5705
      %v5849 = vpop.f32.mrb[0].mxu0
      %v5850 = vadd.f32 0.0, %v5849
      %v5851 = vpop.f32.mrb[0].mxu0
      %v5852 = vpop.f32.mrb[0].mxu0
      %v5853 = vadd.f32 0.0, %v5852
      %v5854 = vpop.f32.mrb[0].mxu0
      %5855 = vmatprep.mubr.bf16.mxu0 0
      %5856 = vmatmul.mubr.bf16.gmra.mrb[0].mxu0 %v5708
      %v5857 = vpop.f32.mrb[0].mxu0
      %v5858 = vadd.f32 0.0, %v5857
      %v5859 = vpop.f32.mrb[0].mxu0
      %v5860 = vpop.f32.mrb[0].mxu0
      %v5861 = vadd.f32 0.0, %v5860
      %v5862 = vpop.f32.mrb[0].mxu0
      %5863 = vmatprep.mubr.bf16.mxu0 0
      %5864 = vmatmul.mubr.bf16.gmra.mrb[0].mxu0 %v5711
      %v5865 = vpop.f32.mrb[0].mxu0
      %v5866 = vadd.f32 0.0, %v5865
      %v5867 = vpop.f32.mrb[0].mxu0
      %v5868 = vpop.f32.mrb[0].mxu0
      %v5869 = vadd.f32 0.0, %v5868
      %v5870 = vpop.f32.mrb[0].mxu0
      %5871 = vmatprep.mubr.bf16.mxu0 0
      %5872 = vmatmul.mubr.bf16.gmra.mrb[0].mxu0 %v5714
      %v5873 = vpop.f32.mrb[0].mxu0
      %v5874 = vadd.f32 0.0, %v5873
      %v5875 = vpop.f32.mrb[0].mxu0
      %v5876 = vpop.f32.mrb[0].mxu0
      %v5877 = vadd.f32 0.0, %v5876
      %v5878 = vpop.f32.mrb[0].mxu0
      %5879 = vdwg.mxu0
      %v5880 = vadd.f32 %v5586, %v5754
      %v5881 = vadd.f32 %v5587, %v5757
      %v5882 = vadd.f32 %v5588, %v5762
      %v5883 = vadd.f32 %v5589, %v5765
      %v5884 = vadd.f32 %v5590, %v5770
      %v5885 = vadd.f32 %v5591, %v5773
      %v5886 = vadd.f32 %v5592, %v5778
      %v5887 = vadd.f32 %v5593, %v5781
      %v5888 = vadd.f32 %v5594, %v5786
      %v5889 = vadd.f32 %v5595, %v5789
      %v5890 = vadd.f32 %v5596, %v5794
      %v5891 = vadd.f32 %v5597, %v5797
      %v5892 = vadd.f32 %v5598, %v5802
      %v5893 = vadd.f32 %v5599, %v5805
      %v5894 = vadd.f32 %v5600, %v5810
      %v5895 = vadd.f32 %v5601, %v5813
      %v5896 = vadd.f32 %v5602, %v5818
      %v5897 = vadd.f32 %v5603, %v5821
      %v5898 = vadd.f32 %v5604, %v5826
      %v5899 = vadd.f32 %v5605, %v5829
      %v5900 = vadd.f32 %v5606, %v5834
      %v5901 = vadd.f32 %v5607, %v5837
      %v5902 = vadd.f32 %v5608, %v5842
      %v5903 = vadd.f32 %v5609, %v5845
      %v5904 = vadd.f32 %v5610, %v5850
      %v5905 = vadd.f32 %v5611, %v5853
      %v5906 = vadd.f32 %v5612, %v5858
      %v5907 = vadd.f32 %v5613, %v5861
      %v5908 = vadd.f32 %v5614, %v5866
      %v5909 = vadd.f32 %v5615, %v5869
      %v5910 = vadd.f32 %v5616, %v5874
      %v5911 = vadd.f32 %v5617, %v5877
      %vm5912 = vcmask 64512
      %5913 = vst.msk [vmem:[%s339] sm:$0xff] %vm5912, %v5880
      %5914 = vst.msk [vmem:[%s339 + $0x8] sm:$0xff] %vm5912, %v5881
      %5915 = vst.msk [vmem:[%s339 + $0x10] sm:$0xff] %vm5912, %v5882
      %5916 = vst.msk [vmem:[%s339 + $0x18] sm:$0xff] %vm5912, %v5883
      %5917 = vst.msk [vmem:[%s339 + $0x20] sm:$0xff] %vm5912, %v5884
      %5918 = vst.msk [vmem:[%s339 + $0x28] sm:$0xff] %vm5912, %v5885
      %5919 = vst.msk [vmem:[%s339 + $0x30] sm:$0xff] %vm5912, %v5886
      %5920 = vst.msk [vmem:[%s339 + $0x38] sm:$0xff] %vm5912, %v5887
      %5921 = vst.msk [vmem:[%s339 + $0x40] sm:$0xff] %vm5912, %v5888
      %5922 = vst.msk [vmem:[%s339 + $0x48] sm:$0xff] %vm5912, %v5889
      %5923 = vst.msk [vmem:[%s339 + $0x50] sm:$0xff] %vm5912, %v5890
      %5924 = vst.msk [vmem:[%s339 + $0x58] sm:$0xff] %vm5912, %v5891
      %5925 = vst.msk [vmem:[%s339 + $0x60] sm:$0xff] %vm5912, %v5892
      %5926 = vst.msk [vmem:[%s339 + $0x68] sm:$0xff] %vm5912, %v5893
      %5927 = vst.msk [vmem:[%s339 + $0x70] sm:$0xff] %vm5912, %v5894
      %5928 = vst.msk [vmem:[%s339 + $0x78] sm:$0xff] %vm5912, %v5895
      %5929 = vst.msk [vmem:[%s339 + $0x80] sm:$0xff] %vm5912, %v5896
      %5930 = vst.msk [vmem:[%s339 + $0x88] sm:$0xff] %vm5912, %v5897
      %5931 = vst.msk [vmem:[%s339 + $0x90] sm:$0xff] %vm5912, %v5898
      %5932 = vst.msk [vmem:[%s339 + $0x98] sm:$0xff] %vm5912, %v5899
      %5933 = vst.msk [vmem:[%s339 + $0xa0] sm:$0xff] %vm5912, %v5900
      %5934 = vst.msk [vmem:[%s339 + $0xa8] sm:$0xff] %vm5912, %v5901
      %5935 = vst.msk [vmem:[%s339 + $0xb0] sm:$0xff] %vm5912, %v5902
      %5936 = vst.msk [vmem:[%s339 + $0xb8] sm:$0xff] %vm5912, %v5903
      %5937 = vst.msk [vmem:[%s339 + $0xc0] sm:$0xff] %vm5912, %v5904
      %5938 = vst.msk [vmem:[%s339 + $0xc8] sm:$0xff] %vm5912, %v5905
      %5939 = vst.msk [vmem:[%s339 + $0xd0] sm:$0xff] %vm5912, %v5906
      %5940 = vst.msk [vmem:[%s339 + $0xd8] sm:$0xff] %vm5912, %v5907
      %5941 = vst.msk [vmem:[%s339 + $0xe0] sm:$0xff] %vm5912, %v5908
      %5942 = vst.msk [vmem:[%s339 + $0xe8] sm:$0xff] %vm5912, %v5909
      %5943 = vst.msk [vmem:[%s339 + $0xf0] sm:$0xff] %vm5912, %v5910
      %5944 = vst.msk [vmem:[%s339 + $0xf8] sm:$0xff] %vm5912, %v5911
      %5945 = vst.msk [vmem:[%s344] sm:$0xff] %vm5912, %v750
      %5946 = vst.msk [vmem:[%s344 + $0x8] sm:$0xff] %vm5912, %v753
      %5947 = vst.msk [vmem:[%s344 + $0x10] sm:$0xff] %vm5912, %v758
      %5948 = vst.msk [vmem:[%s344 + $0x18] sm:$0xff] %vm5912, %v761
      %5949 = vst.msk [vmem:[%s344 + $0x20] sm:$0xff] %vm5912, %v766
      %5950 = vst.msk [vmem:[%s344 + $0x28] sm:$0xff] %vm5912, %v769
      %5951 = vst.msk [vmem:[%s344 + $0x30] sm:$0xff] %vm5912, %v774
      %5952 = vst.msk [vmem:[%s344 + $0x38] sm:$0xff] %vm5912, %v777
      %5953 = vst.msk [vmem:[%s344 + $0x40] sm:$0xff] %vm5912, %v782
      %5954 = vst.msk [vmem:[%s344 + $0x48] sm:$0xff] %vm5912, %v785
      %5955 = vst.msk [vmem:[%s344 + $0x50] sm:$0xff] %vm5912, %v790
      %5956 = vst.msk [vmem:[%s344 + $0x58] sm:$0xff] %vm5912, %v793
      %5957 = vst.msk [vmem:[%s344 + $0x60] sm:$0xff] %vm5912, %v798
      %5958 = vst.msk [vmem:[%s344 + $0x68] sm:$0xff] %vm5912, %v801
      %5959 = vst.msk [vmem:[%s344 + $0x70] sm:$0xff] %vm5912, %v806
      %5960 = vst.msk [vmem:[%s344 + $0x78] sm:$0xff] %vm5912, %v809
      %5961 = vst.msk [vmem:[%s344 + $0x80] sm:$0xff] %vm5912, %v814
      %5962 = vst.msk [vmem:[%s344 + $0x88] sm:$0xff] %vm5912, %v817
      %5963 = vst.msk [vmem:[%s344 + $0x90] sm:$0xff] %vm5912, %v822
      %5964 = vst.msk [vmem:[%s344 + $0x98] sm:$0xff] %vm5912, %v825
      %5965 = vst.msk [vmem:[%s344 + $0xa0] sm:$0xff] %vm5912, %v830
      %5966 = vst.msk [vmem:[%s344 + $0xa8] sm:$0xff] %vm5912, %v833
      %5967 = vst.msk [vmem:[%s344 + $0xb0] sm:$0xff] %vm5912, %v838
      %5968 = vst.msk [vmem:[%s344 + $0xb8] sm:$0xff] %vm5912, %v841
      %5969 = vst.msk [vmem:[%s344 + $0xc0] sm:$0xff] %vm5912, %v846
      %5970 = vst.msk [vmem:[%s344 + $0xc8] sm:$0xff] %vm5912, %v849
      %5971 = vst.msk [vmem:[%s344 + $0xd0] sm:$0xff] %vm5912, %v854
      %5972 = vst.msk [vmem:[%s344 + $0xd8] sm:$0xff] %vm5912, %v857
      %5973 = vst.msk [vmem:[%s344 + $0xe0] sm:$0xff] %vm5912, %v862
      %5974 = vst.msk [vmem:[%s344 + $0xe8] sm:$0xff] %vm5912, %v865
      %5975 = vst.msk [vmem:[%s344 + $0xf0] sm:$0xff] %vm5912, %v870
      %5976 = vst.msk [vmem:[%s344 + $0xf8] sm:$0xff] %vm5912, %v873
      %v5977 = vsel %vm5912, %v5880, 0.0
      %v5978 = vsel %vm5912, %v5881, 0.0
      %v5979 = vadd.f32 %v5977, %v5978
      %v5980 = vsel %vm5912, %v5882, 0.0
      %v5981 = vadd.f32 %v5979, %v5980
      %v5982 = vsel %vm5912, %v5883, 0.0
      %v5983 = vadd.f32 %v5981, %v5982
      %v5984 = vsel %vm5912, %v5884, 0.0
      %v5985 = vadd.f32 %v5983, %v5984
      %v5986 = vsel %vm5912, %v5885, 0.0
      %v5987 = vadd.f32 %v5985, %v5986
      %v5988 = vsel %vm5912, %v5886, 0.0
      %v5989 = vadd.f32 %v5987, %v5988
      %v5990 = vsel %vm5912, %v5887, 0.0
      %v5991 = vadd.f32 %v5989, %v5990
      %v5992 = vsel %vm5912, %v5888, 0.0
      %v5993 = vadd.f32 %v5991, %v5992
      %v5994 = vsel %vm5912, %v5889, 0.0
      %v5995 = vadd.f32 %v5993, %v5994
      %v5996 = vsel %vm5912, %v5890, 0.0
      %v5997 = vadd.f32 %v5995, %v5996
      %v5998 = vsel %vm5912, %v5891, 0.0
      %v5999 = vadd.f32 %v5997, %v5998
      %v6000 = vsel %vm5912, %v5892, 0.0
      %v6001 = vadd.f32 %v5999, %v6000
      %v6002 = vsel %vm5912, %v5893, 0.0
      %v6003 = vadd.f32 %v6001, %v6002
      %v6004 = vsel %vm5912, %v5894, 0.0
      %v6005 = vadd.f32 %v6003, %v6004
      %v6006 = vsel %vm5912, %v5895, 0.0
      %v6007 = vadd.f32 %v6005, %v6006
      %v6008 = vsel %vm5912, %v5896, 0.0
      %v6009 = vadd.f32 %v6007, %v6008
      %v6010 = vsel %vm5912, %v5897, 0.0
      %v6011 = vadd.f32 %v6009, %v6010
      %v6012 = vsel %vm5912, %v5898, 0.0
      %v6013 = vadd.f32 %v6011, %v6012
      %v6014 = vsel %vm5912, %v5899, 0.0
      %v6015 = vadd.f32 %v6013, %v6014
      %v6016 = vsel %vm5912, %v5900, 0.0
      %v6017 = vadd.f32 %v6015, %v6016
      %v6018 = vsel %vm5912, %v5901, 0.0
      %v6019 = vadd.f32 %v6017, %v6018
      %v6020 = vsel %vm5912, %v5902, 0.0
      %v6021 = vadd.f32 %v6019, %v6020
      %v6022 = vsel %vm5912, %v5903, 0.0
      %v6023 = vadd.f32 %v6021, %v6022
      %v6024 = vsel %vm5912, %v5904, 0.0
      %v6025 = vadd.f32 %v6023, %v6024
      %v6026 = vsel %vm5912, %v5905, 0.0
      %v6027 = vadd.f32 %v6025, %v6026
      %v6028 = vsel %vm5912, %v5906, 0.0
      %v6029 = vadd.f32 %v6027, %v6028
      %v6030 = vsel %vm5912, %v5907, 0.0
      %v6031 = vadd.f32 %v6029, %v6030
      %v6032 = vsel %vm5912, %v5908, 0.0
      %v6033 = vadd.f32 %v6031, %v6032
      %v6034 = vsel %vm5912, %v5909, 0.0
      %v6035 = vadd.f32 %v6033, %v6034
      %v6036 = vsel %vm5912, %v5910, 0.0
      %v6037 = vadd.f32 %v6035, %v6036
      %v6038 = vsel %vm5912, %v5911, 0.0
      %v6039 = vadd.f32 %v6037, %v6038
      %v6040 = vrot.slane %v6039, 4
      %v6041 = vadd.f32 %v6039, %v6040
      %v6042 = vrot.slane %v6041, 2
      %v6043 = vadd.f32 %v6041, %v6042
      %v6044 = vrot.slane %v6043, 1
      %v6045 = vadd.f32 %v6043, %v6044
      %v6046 = vmul.f32 %v5880, %v5880
      %v6047 = vmul.f32 %v5881, %v5881
      %v6048 = vmul.f32 %v5882, %v5882
      %v6049 = vmul.f32 %v5883, %v5883
      %v6050 = vmul.f32 %v5884, %v5884
      %v6051 = vmul.f32 %v5885, %v5885
      %v6052 = vmul.f32 %v5886, %v5886
      %v6053 = vmul.f32 %v5887, %v5887
      %v6054 = vmul.f32 %v5888, %v5888
      %v6055 = vmul.f32 %v5889, %v5889
      %v6056 = vmul.f32 %v5890, %v5890
      %v6057 = vmul.f32 %v5891, %v5891
      %v6058 = vmul.f32 %v5892, %v5892
      %v6059 = vmul.f32 %v5893, %v5893
      %v6060 = vmul.f32 %v5894, %v5894
      %v6061 = vmul.f32 %v5895, %v5895
      %v6062 = vmul.f32 %v5896, %v5896
      %v6063 = vmul.f32 %v5897, %v5897
      %v6064 = vmul.f32 %v5898, %v5898
      %v6065 = vmul.f32 %v5899, %v5899
      %v6066 = vmul.f32 %v5900, %v5900
      %v6067 = vmul.f32 %v5901, %v5901
      %v6068 = vmul.f32 %v5902, %v5902
      %v6069 = vmul.f32 %v5903, %v5903
      %v6070 = vmul.f32 %v5904, %v5904
      %v6071 = vmul.f32 %v5905, %v5905
      %v6072 = vmul.f32 %v5906, %v5906
      %v6073 = vmul.f32 %v5907, %v5907
      %v6074 = vmul.f32 %v5908, %v5908
      %v6075 = vmul.f32 %v5909, %v5909
      %v6076 = vmul.f32 %v5910, %v5910
      %v6077 = vmul.f32 %v5911, %v5911
      %v6078 = vsel %vm5912, %v6046, 0.0
      %v6079 = vsel %vm5912, %v6047, 0.0
      %v6080 = vadd.f32 %v6078, %v6079
      %v6081 = vsel %vm5912, %v6048, 0.0
      %v6082 = vadd.f32 %v6080, %v6081
      %v6083 = vsel %vm5912, %v6049, 0.0
      %v6084 = vadd.f32 %v6082, %v6083
      %v6085 = vsel %vm5912, %v6050, 0.0
      %v6086 = vadd.f32 %v6084, %v6085
      %v6087 = vsel %vm5912, %v6051, 0.0
      %v6088 = vadd.f32 %v6086, %v6087
      %v6089 = vsel %vm5912, %v6052, 0.0
      %v6090 = vadd.f32 %v6088, %v6089
      %v6091 = vsel %vm5912, %v6053, 0.0
      %v6092 = vadd.f32 %v6090, %v6091
      %v6093 = vsel %vm5912, %v6054, 0.0
      %v6094 = vadd.f32 %v6092, %v6093
      %v6095 = vsel %vm5912, %v6055, 0.0
      %v6096 = vadd.f32 %v6094, %v6095
      %v6097 = vsel %vm5912, %v6056, 0.0
      %v6098 = vadd.f32 %v6096, %v6097
      %v6099 = vsel %vm5912, %v6057, 0.0
      %v6100 = vadd.f32 %v6098, %v6099
      %v6101 = vsel %vm5912, %v6058, 0.0
      %v6102 = vadd.f32 %v6100, %v6101
      %v6103 = vsel %vm5912, %v6059, 0.0
      %v6104 = vadd.f32 %v6102, %v6103
      %v6105 = vsel %vm5912, %v6060, 0.0
      %v6106 = vadd.f32 %v6104, %v6105
      %v6107 = vsel %vm5912, %v6061, 0.0
      %v6108 = vadd.f32 %v6106, %v6107
      %v6109 = vsel %vm5912, %v6062, 0.0
      %v6110 = vadd.f32 %v6108, %v6109
      %v6111 = vsel %vm5912, %v6063, 0.0
      %v6112 = vadd.f32 %v6110, %v6111
      %v6113 = vsel %vm5912, %v6064, 0.0
      %v6114 = vadd.f32 %v6112, %v6113
      %v6115 = vsel %vm5912, %v6065, 0.0
      %v6116 = vadd.f32 %v6114, %v6115
      %v6117 = vsel %vm5912, %v6066, 0.0
      %v6118 = vadd.f32 %v6116, %v6117
      %v6119 = vsel %vm5912, %v6067, 0.0
      %v6120 = vadd.f32 %v6118, %v6119
      %v6121 = vsel %vm5912, %v6068, 0.0
      %v6122 = vadd.f32 %v6120, %v6121
      %v6123 = vsel %vm5912, %v6069, 0.0
      %v6124 = vadd.f32 %v6122, %v6123
      %v6125 = vsel %vm5912, %v6070, 0.0
      %v6126 = vadd.f32 %v6124, %v6125
      %v6127 = vsel %vm5912, %v6071, 0.0
      %v6128 = vadd.f32 %v6126, %v6127
      %v6129 = vsel %vm5912, %v6072, 0.0
      %v6130 = vadd.f32 %v6128, %v6129
      %v6131 = vsel %vm5912, %v6073, 0.0
      %v6132 = vadd.f32 %v6130, %v6131
      %v6133 = vsel %vm5912, %v6074, 0.0
      %v6134 = vadd.f32 %v6132, %v6133
      %v6135 = vsel %vm5912, %v6075, 0.0
      %v6136 = vadd.f32 %v6134, %v6135
      %v6137 = vsel %vm5912, %v6076, 0.0
      %v6138 = vadd.f32 %v6136, %v6137
      %v6139 = vsel %vm5912, %v6077, 0.0
      %v6140 = vadd.f32 %v6138, %v6139
      %v6141 = vrot.slane %v6140, 4
      %v6142 = vadd.f32 %v6140, %v6141
      %v6143 = vrot.slane %v6142, 2
      %v6144 = vadd.f32 %v6142, %v6143
      %v6145 = vrot.slane %v6144, 1
      %v6146 = vadd.f32 %v6144, %v6145
      %v6147 = vsel %vm5912, %v750, 0.0
      %v6148 = vsel %vm5912, %v753, 0.0
      %v6149 = vadd.f32 %v6147, %v6148
      %v6150 = vsel %vm5912, %v758, 0.0
      %v6151 = vadd.f32 %v6149, %v6150
      %v6152 = vsel %vm5912, %v761, 0.0
      %v6153 = vadd.f32 %v6151, %v6152
      %v6154 = vsel %vm5912, %v766, 0.0
      %v6155 = vadd.f32 %v6153, %v6154
      %v6156 = vsel %vm5912, %v769, 0.0
      %v6157 = vadd.f32 %v6155, %v6156
      %v6158 = vsel %vm5912, %v774, 0.0
      %v6159 = vadd.f32 %v6157, %v6158
      %v6160 = vsel %vm5912, %v777, 0.0
      %v6161 = vadd.f32 %v6159, %v6160
      %v6162 = vsel %vm5912, %v782, 0.0
      %v6163 = vadd.f32 %v6161, %v6162
      %v6164 = vsel %vm5912, %v785, 0.0
      %v6165 = vadd.f32 %v6163, %v6164
      %v6166 = vsel %vm5912, %v790, 0.0
      %v6167 = vadd.f32 %v6165, %v6166
      %v6168 = vsel %vm5912, %v793, 0.0
      %v6169 = vadd.f32 %v6167, %v6168
      %v6170 = vsel %vm5912, %v798, 0.0
      %v6171 = vadd.f32 %v6169, %v6170
      %v6172 = vsel %vm5912, %v801, 0.0
      %v6173 = vadd.f32 %v6171, %v6172
      %v6174 = vsel %vm5912, %v806, 0.0
      %v6175 = vadd.f32 %v6173, %v6174
      %v6176 = vsel %vm5912, %v809, 0.0
      %v6177 = vadd.f32 %v6175, %v6176
      %v6178 = vsel %vm5912, %v814, 0.0
      %v6179 = vadd.f32 %v6177, %v6178
      %v6180 = vsel %vm5912, %v817, 0.0
      %v6181 = vadd.f32 %v6179, %v6180
      %v6182 = vsel %vm5912, %v822, 0.0
      %v6183 = vadd.f32 %v6181, %v6182
      %v6184 = vsel %vm5912, %v825, 0.0
      %v6185 = vadd.f32 %v6183, %v6184
      %v6186 = vsel %vm5912, %v830, 0.0
      %v6187 = vadd.f32 %v6185, %v6186
      %v6188 = vsel %vm5912, %v833, 0.0
      %v6189 = vadd.f32 %v6187, %v6188
      %v6190 = vsel %vm5912, %v838, 0.0
      %v6191 = vadd.f32 %v6189, %v6190
      %v6192 = vsel %vm5912, %v841, 0.0
      %v6193 = vadd.f32 %v6191, %v6192
      %v6194 = vsel %vm5912, %v846, 0.0
      %v6195 = vadd.f32 %v6193, %v6194
      %v6196 = vsel %vm5912, %v849, 0.0
      %v6197 = vadd.f32 %v6195, %v6196
      %v6198 = vsel %vm5912, %v854, 0.0
      %v6199 = vadd.f32 %v6197, %v6198
      %v6200 = vsel %vm5912, %v857, 0.0
      %v6201 = vadd.f32 %v6199, %v6200
      %v6202 = vsel %vm5912, %v862, 0.0
      %v6203 = vadd.f32 %v6201, %v6202
      %v6204 = vsel %vm5912, %v865, 0.0
      %v6205 = vadd.f32 %v6203, %v6204
      %v6206 = vsel %vm5912, %v870, 0.0
      %v6207 = vadd.f32 %v6205, %v6206
      %v6208 = vsel %vm5912, %v873, 0.0
      %v6209 = vadd.f32 %v6207, %v6208
      %v6210 = vrot.slane %v6209, 4
      %v6211 = vadd.f32 %v6209, %v6210
      %v6212 = vrot.slane %v6211, 2
      %v6213 = vadd.f32 %v6211, %v6212
      %v6214 = vrot.slane %v6213, 1
      %v6215 = vadd.f32 %v6213, %v6214
      %v6216 = vmul.f32 %v750, %v750
      %v6217 = vmul.f32 %v753, %v753
      %v6218 = vmul.f32 %v758, %v758
      %v6219 = vmul.f32 %v761, %v761
      %v6220 = vmul.f32 %v766, %v766
      %v6221 = vmul.f32 %v769, %v769
      %v6222 = vmul.f32 %v774, %v774
      %v6223 = vmul.f32 %v777, %v777
      %v6224 = vmul.f32 %v782, %v782
      %v6225 = vmul.f32 %v785, %v785
      %v6226 = vmul.f32 %v790, %v790
      %v6227 = vmul.f32 %v793, %v793
      %v6228 = vmul.f32 %v798, %v798
      %v6229 = vmul.f32 %v801, %v801
      %v6230 = vmul.f32 %v806, %v806
      %v6231 = vmul.f32 %v809, %v809
      %v6232 = vmul.f32 %v814, %v814
      %v6233 = vmul.f32 %v817, %v817
      %v6234 = vmul.f32 %v822, %v822
      %v6235 = vmul.f32 %v825, %v825
      %v6236 = vmul.f32 %v830, %v830
      %v6237 = vmul.f32 %v833, %v833
      %v6238 = vmul.f32 %v838, %v838
      %v6239 = vmul.f32 %v841, %v841
      %v6240 = vmul.f32 %v846, %v846
      %v6241 = vmul.f32 %v849, %v849
      %v6242 = vmul.f32 %v854, %v854
      %v6243 = vmul.f32 %v857, %v857
      %v6244 = vmul.f32 %v862, %v862
      %v6245 = vmul.f32 %v865, %v865
      %v6246 = vmul.f32 %v870, %v870
      %v6247 = vmul.f32 %v873, %v873
      %v6248 = vsel %vm5912, %v6216, 0.0
      %v6249 = vsel %vm5912, %v6217, 0.0
      %v6250 = vadd.f32 %v6248, %v6249
      %v6251 = vsel %vm5912, %v6218, 0.0
      %v6252 = vadd.f32 %v6250, %v6251
      %v6253 = vsel %vm5912, %v6219, 0.0
      %v6254 = vadd.f32 %v6252, %v6253
      %v6255 = vsel %vm5912, %v6220, 0.0
      %v6256 = vadd.f32 %v6254, %v6255
      %v6257 = vsel %vm5912, %v6221, 0.0
      %v6258 = vadd.f32 %v6256, %v6257
      %v6259 = vsel %vm5912, %v6222, 0.0
      %v6260 = vadd.f32 %v6258, %v6259
      %v6261 = vsel %vm5912, %v6223, 0.0
      %v6262 = vadd.f32 %v6260, %v6261
      %v6263 = vsel %vm5912, %v6224, 0.0
      %v6264 = vadd.f32 %v6262, %v6263
      %v6265 = vsel %vm5912, %v6225, 0.0
      %v6266 = vadd.f32 %v6264, %v6265
      %v6267 = vsel %vm5912, %v6226, 0.0
      %v6268 = vadd.f32 %v6266, %v6267
      %v6269 = vsel %vm5912, %v6227, 0.0
      %v6270 = vadd.f32 %v6268, %v6269
      %v6271 = vsel %vm5912, %v6228, 0.0
      %v6272 = vadd.f32 %v6270, %v6271
      %v6273 = vsel %vm5912, %v6229, 0.0
      %v6274 = vadd.f32 %v6272, %v6273
      %v6275 = vsel %vm5912, %v6230, 0.0
      %v6276 = vadd.f32 %v6274, %v6275
      %v6277 = vsel %vm5912, %v6231, 0.0
      %v6278 = vadd.f32 %v6276, %v6277
      %v6279 = vsel %vm5912, %v6232, 0.0
      %v6280 = vadd.f32 %v6278, %v6279
      %v6281 = vsel %vm5912, %v6233, 0.0
      %v6282 = vadd.f32 %v6280, %v6281
      %v6283 = vsel %vm5912, %v6234, 0.0
      %v6284 = vadd.f32 %v6282, %v6283
      %v6285 = vsel %vm5912, %v6235, 0.0
      %v6286 = vadd.f32 %v6284, %v6285
      %v6287 = vsel %vm5912, %v6236, 0.0
      %v6288 = vadd.f32 %v6286, %v6287
      %v6289 = vsel %vm5912, %v6237, 0.0
      %v6290 = vadd.f32 %v6288, %v6289
      %v6291 = vsel %vm5912, %v6238, 0.0
      %v6292 = vadd.f32 %v6290, %v6291
      %v6293 = vsel %vm5912, %v6239, 0.0
      %v6294 = vadd.f32 %v6292, %v6293
      %v6295 = vsel %vm5912, %v6240, 0.0
      %v6296 = vadd.f32 %v6294, %v6295
      %v6297 = vsel %vm5912, %v6241, 0.0
      %v6298 = vadd.f32 %v6296, %v6297
      %v6299 = vsel %vm5912, %v6242, 0.0
      %v6300 = vadd.f32 %v6298, %v6299
      %v6301 = vsel %vm5912, %v6243, 0.0
      %v6302 = vadd.f32 %v6300, %v6301
      %v6303 = vsel %vm5912, %v6244, 0.0
      %v6304 = vadd.f32 %v6302, %v6303
      %v6305 = vsel %vm5912, %v6245, 0.0
      %v6306 = vadd.f32 %v6304, %v6305
      %v6307 = vsel %vm5912, %v6246, 0.0
      %v6308 = vadd.f32 %v6306, %v6307
      %v6309 = vsel %vm5912, %v6247, 0.0
      %v6310 = vadd.f32 %v6308, %v6309
      %v6311 = vrot.slane %v6310, 4
      %v6312 = vadd.f32 %v6310, %v6311
      %v6313 = vrot.slane %v6312, 2
      %v6314 = vadd.f32 %v6312, %v6313
      %v6315 = vrot.slane %v6314, 1
      %v6316 = vadd.f32 %v6314, %v6315
      %vm6317 = vcmask 1040384
      %v6318 = vsel %vm6317, %v6045, %v6146
      %v6319 = vsel %vm499, %v6318, %v6215
      %vm6320 = vcmask 1042432
      %v6321 = vsel %vm6320, %v6319, %v6316
      %vm6322 = vcmask 60416
      %6323 = vst.msk [vmem:[%s348] sm:$0xf] %vm6322, %v6321
      %p6324 = scmp.lt.s32.totalorder %s20, 1
      %s6325 = scalar_select %p6324, %s20, 1
      %s6326 = smul.addr %s6325, 32
      %s6327 = smul.addr %s6326, 8
      %s6328 = scalar_lea.vmem %s6, %s6327
      %p6329 = scmp.lt.s32.totalorder %s20, 1
      %s6330 = scalar_select %p6329, %s20, 1
      %s6331 = smul.addr %s6330, 32
      %s6332 = smul.addr %s6331, 8
      %s6333 = scalar_lea.vmem %s7, %s6332
      %p6334 = scmp.lt.s32.totalorder %s20, 1
      %s6335 = scalar_select %p6334, %s20, 1
      %s6336 = smul.addr %s6335, 4
      %s6337 = scalar_lea.vmem %s8, %s6336
      // Predicated region
      $region45: #{_lambda_.2} parent=43 // pred_check
        %p6338 = pneg %p174
      $region46: #{_lambda_.2} parent=43 // pred_check_branch
        %6340 = sbr.rel (%p6338) target = $region48
      $region47: #{_lambda_.2} parent=43 // pred_region
        _
      $region48: #{_lambda_.2} parent=43 // pred_fallthru
        _
      // Predicated region
      $region49: #{_lambda_.2} parent=43 // pred_check
        %p6341 = pneg %p200
      $region50: #{_lambda_.2} parent=43 // pred_check_branch
        %6343 = sbr.rel (%p6341) target = $region52
      $region51: #{_lambda_.2} parent=43 // pred_region
        _
      $region52: #{_lambda_.2} parent=43 // pred_fallthru
        _
      // Predicated region
      $region53: #{_lambda_.2} parent=43 // pred_check
        %p6344 = pneg %p226
      $region54: #{_lambda_.2} parent=43 // pred_check_branch
        %6346 = sbr.rel (%p6344) target = $region56
      $region55: #{_lambda_.2} parent=43 // pred_region
        _
      $region56: #{_lambda_.2} parent=43 // pred_fallthru
        _
    $region44: #{_lambda_.2} parent=5 // pred_fallthru
      _
    %p6347 = scmp.le.s32.totalorder 2, %s15
    // Predicated region
    $region57: #{_lambda_.2} parent=5 // pred_check
      %p6348 = pneg %p6347
    $region58: #{_lambda_.2} parent=5 // pred_check_branch
      %6350 = sbr.rel (%p6348) target = $region60
    $region59: #{_lambda_.2} parent=5 // pred_region
      %s6351 = ssub.s32 %s15, 2
      // Predicated region
      $region61: #{_lambda_.2} parent=59 // pred_check
        %p6352 = pneg %p180
      $region62: #{_lambda_.2} parent=59 // pred_check_branch
        %6354 = sbr.rel (%p6352) target = $region64
      $region63: #{_lambda_.2} parent=59 // pred_region
        %p6355 = scmp.lt.s32.totalorder %s21, 1
        %s6356 = scalar_select %p6355, %s21, 1
        %s6357 = smul.addr %s6356, 32
        %s6358 = smul.addr %s6357, 8
        %s6359 = scalar_lea.vmem %s6, %s6358
      $region64: #{_lambda_.2} parent=59 // pred_fallthru
        _
      // Predicated region
      $region65: #{_lambda_.2} parent=59 // pred_check
        %p6360 = pneg %p206
      $region66: #{_lambda_.2} parent=59 // pred_check_branch
        %6362 = sbr.rel (%p6360) target = $region68
      $region67: #{_lambda_.2} parent=59 // pred_region
        %p6363 = scmp.lt.s32.totalorder %s21, 1
        %s6364 = scalar_select %p6363, %s21, 1
        %s6365 = smul.addr %s6364, 32
        %s6366 = smul.addr %s6365, 8
        %s6367 = scalar_lea.vmem %s7, %s6366
      $region68: #{_lambda_.2} parent=59 // pred_fallthru
        _
      // Predicated region
      $region69: #{_lambda_.2} parent=59 // pred_check
        %p6368 = pneg %p232
      $region70: #{_lambda_.2} parent=59 // pred_check_branch
        %6370 = sbr.rel (%p6368) target = $region72
      $region71: #{_lambda_.2} parent=59 // pred_region
        %p6371 = scmp.lt.s32.totalorder %s21, 1
        %s6372 = scalar_select %p6371, %s21, 1
        %s6373 = smul.addr %s6372, 4
        %s6374 = scalar_lea.vmem %s8, %s6373
      $region72: #{_lambda_.2} parent=59 // pred_fallthru
        _
    $region60: #{_lambda_.2} parent=5 // pred_fallthru
      _
  $region6: #{_lambda_.2} parent=0 // loop_footer
    %s19 = sadd.s32 1, %s15
  $region7: #{_lambda_.2} parent=0 // loop_footer_branch
    %14 = sbr.rel target = $region3
  $region8: #{_lambda_.2} parent=0 // loop_exit
    _

</llo_original>
